<compile_context>
chip_gen: v7x
topology: tpu7x:2x2x1
jax: 0.10.0
libtpu: 0.0.40
codegen_flags: <defaults>
</compile_context>

<pallas_src>
import functools

import jax
import jax.numpy as jnp
from jax.experimental import pallas as pl
from jax.experimental.pallas import tpu as pltpu


# ----------------------------------------------------------------------------
# Per-generation tiling configuration
# ----------------------------------------------------------------------------
def _arch_config():
    try:
        kind = jax.devices()[0].device_kind.lower()
    except Exception:  # pragma: no cover - backend probing best-effort
        kind = ""
    if "v7" in kind:
        # v7x: 64 MiB physical VMEM / TC -> stay inside a 32 MiB scoped budget,
        # moderate tiles; the row grid axis is 'parallel' so 2 TCs split work.
        return {"tm": 512, "tc": 512, "vmem_limit": 32 * 1024 * 1024}
    if "v6" in kind:
        # v6e: 128 MiB VMEM, ~1.4 TB/s HBM -> grow tiles into the budget.
        return {"tm": 512, "tc": 1024, "vmem_limit": 64 * 1024 * 1024}
    if "v5e" in kind or "v5 lite" in kind or "v5lite" in kind:
        # v5e: lowest HBM BW -> large tiles amortize DMA / per-step overhead.
        return {"tm": 512, "tc": 1024, "vmem_limit": 48 * 1024 * 1024}
    return {"tm": 512, "tc": 512, "vmem_limit": None}


_CFG = _arch_config()


def _compiler_params(dimension_semantics):
    kwargs = {"dimension_semantics": dimension_semantics}
    if _CFG["vmem_limit"] is not None:
        kwargs["vmem_limit_bytes"] = _CFG["vmem_limit"]
    return pltpu.CompilerParams(**kwargs)


def _round_up(x, m):
    return ((x + m - 1) // m) * m


def _plan(dim, target):
    """Return (tile, padded): tile is a multiple of 128 dividing `padded`,
    tile <= target, padding waste bounded (<= ~25%). Fixes the old collapse
    to 128-wide tiles for non-power-of-two layer widths."""
    dp = _round_up(max(int(dim), 1), 128)
    t = min(target, dp)
    while t > 128:
        padded = _round_up(dp, t)
        if padded - dp <= dp // 4:
            return t, padded
        t -= 128
    return 128, dp


def _tile_for_padded(padded, target):
    """Largest multiple of 128 that is <= target and divides `padded`."""
    t = min(target, padded)
    while padded % t:
        t -= 128
    return t


def _pad2(a, rows, cols):
    a = a.astype(jnp.float32)
    r, c = a.shape
    if r == rows and c == cols:
        return a
    return jnp.pad(a, ((0, rows - r), (0, cols - c)))


def _pad_row(v, n):
    v = v.astype(jnp.float32)
    return jnp.pad(v, (0, n - v.shape[0])).reshape(1, n)


def _pad_col(v, n):
    v = v.astype(jnp.float32)
    return jnp.pad(v, (0, n - v.shape[0])).reshape(n, 1)


def _box_matrix(lb, ub, kp):
    """(kp, 128) lane-dense box matrix: column 0 = center, column 1 = radius."""
    c = 0.5 * (lb + ub)
    r = 0.5 * (ub - lb)
    cols = jnp.stack([c, r], axis=1).astype(jnp.float32)          # (k, 2)
    return jnp.pad(cols, ((0, kp - lb.shape[0]), (0, 126)))


# ----------------------------------------------------------------------------
# Pallas kernels
# ----------------------------------------------------------------------------
def _relu_scaled_tile(c_ref, sl_ref, su_ref, half_tiles):
    """ReLU back-substitution scaling of one constraint tile (no diag matmul).

    Row tiles [0, half_tiles) hold the lower constraints, the rest the upper:
      lower:  cs = pos(C)*sl + neg(C)*su        upper:  cs = pos(C)*su + neg(C)*sl
    Returns (cs, cpos, cneg, u) so the (guarded) bias mix can be formed later.
    """
    u = jnp.where(pl.program_id(0) >= half_tiles, 1.0, 0.0)   # 0 lower, 1 upper
    c = c_ref[...]
    cpos = jnp.maximum(c, 0.0)
    cneg = c - cpos
    sl = sl_ref[...]
    su = su_ref[...]
    spos = sl + (su - sl) * u          # lower -> sl, upper -> su (cheap (1,tk) blend)
    sneg = su + (sl - su) * u          # lower -> su, upper -> sl
    cs = cpos * spos + cneg * sneg
    return cs, cpos, cneg, u


def _relu_affine_kernel(c_ref, sl_ref, su_ref, bu_ref, p_ref, q_ref, b_ref,
                        ow_ref, ob_ref, accw_ref, accb_ref, *, half_tiles):
    """Fused (ReLU scale) + (affine back-substitution) step.

      C_new = relu_scale(C) @ P
      bias += relu_scale(C) @ q + mix(C) @ bu           (mix = neg/pos for lo/up)
    The bias reduction only runs on the last N-tile sweep (j == last_j).
    """
    j = pl.program_id(1)
    k = pl.program_id(2)
    last_j = j == pl.num_programs(1) - 1
    last_k = k == pl.num_programs(2) - 1

    @pl.when(k == 0)
    def _():
        accw_ref[...] = jnp.zeros_like(accw_ref)

    cs, cpos, cneg, u = _relu_scaled_tile(c_ref, sl_ref, su_ref, half_tiles)
    accw_ref[...] += jnp.dot(cs, p_ref[...], preferred_element_type=jnp.float32)

    @pl.when(jnp.logical_and(last_j, k == 0))
    def _():
        accb_ref[...] = jnp.zeros_like(accb_ref)

    @pl.when(last_j)
    def _():
        mix = cneg + (cpos - cneg) * u     # lower -> cneg, upper -> cpos
        accb_ref[...] += jnp.sum(cs * q_ref[...] + mix * bu_ref[...],
                                 axis=1, keepdims=True)

    @pl.when(last_k)
    def _():
        ow_ref[...] = accw_ref[...]

    @pl.when(jnp.logical_and(last_j, last_k))
    def _():
        ob_ref[...] = accb_ref[...] + b_ref[...]


def dp_relu_affine(C, bias, sl_row, su_row, bu_row, P, q_row, *,
                   tm, tn, tk, half_tiles):
    M2, K = C.shape
    _, N = P.shape
    grid = (M2 // tm, N // tn, K // tk)
    cost = pl.CostEstimate(
        flops=2 * M2 * K * N + 8 * M2 * K,
        transcendentals=0,
        bytes_accessed=4 * (M2 * K * (N // tn) + K * N * (M2 // tm)
                            + M2 * N + 2 * M2 + 4 * K),
    )
    kernel = functools.partial(_relu_affine_kernel, half_tiles=half_tiles)
    return pl.pallas_call(
        kernel,
        out_shape=(jax.ShapeDtypeStruct((M2, N), jnp.float32),
                   jax.ShapeDtypeStruct((M2, 1), jnp.float32)),
        grid_spec=pltpu.PrefetchScalarGridSpec(
            num_scalar_prefetch=0,
            grid=grid,
            in_specs=[
                pl.BlockSpec((tm, tk), lambda i, j, k: (i, k)),    # C
                pl.BlockSpec((1, tk), lambda i, j, k: (0, k)),     # sl
                pl.BlockSpec((1, tk), lambda i, j, k: (0, k)),     # su
                pl.BlockSpec((1, tk), lambda i, j, k: (0, k)),     # bu
                pl.BlockSpec((tk, tn), lambda i, j, k: (k, j)),    # P
                pl.BlockSpec((1, tk), lambda i, j, k: (0, k)),     # q
                pl.BlockSpec((tm, 1), lambda i, j, k: (i, 0)),     # bias in
            ],
            out_specs=(
                pl.BlockSpec((tm, tn), lambda i, j, k: (i, j)),    # C_new
                pl.BlockSpec((tm, 1), lambda i, j, k: (i, 0)),     # bias out
            ),
            scratch_shapes=[pltpu.VMEM((tm, tn), jnp.float32),
                            pltpu.VMEM((tm, 1), jnp.float32)],
        ),
        compiler_params=_compiler_params(("parallel", "arbitrary", "arbitrary")),
        cost_estimate=cost,
    )(C, sl_row, su_row, bu_row, P, q_row, bias)


def _relu_affine_concretize_kernel(c_ref, sl_ref, su_ref, bu_ref, p_ref, q_ref,
                                   b_ref, box_ref, y_ref, z_ref, ob_ref,
                                   accw_ref, accy_ref, accz_ref, accb_ref,
                                   *, half_tiles):
    """Fused (ReLU scale) + (affine backsub) + (box concretization) final step.

    The full input-width constraint matrix C_new = relu_scale(C) @ P is kept
    tile-resident only: at k == last each (tm, tn) tile is immediately folded
    into Y += C_new@B, Z += |C_new|@B (B = lane-dense (N,128) box matrix), so
    C_new is never written to HBM.
    """
    j = pl.program_id(1)
    k = pl.program_id(2)
    last_j = j == pl.num_programs(1) - 1
    last_k = k == pl.num_programs(2) - 1

    @pl.when(jnp.logical_and(j == 0, k == 0))
    def _():
        accy_ref[...] = jnp.zeros_like(accy_ref)
        accz_ref[...] = jnp.zeros_like(accz_ref)

    @pl.when(k == 0)
    def _():
        accw_ref[...] = jnp.zeros_like(accw_ref)

    cs, cpos, cneg, u = _relu_scaled_tile(c_ref, sl_ref, su_ref, half_tiles)
    accw_ref[...] += jnp.dot(cs, p_ref[...], preferred_element_type=jnp.float32)

    @pl.when(jnp.logical_and(last_j, k == 0))
    def _():
        accb_ref[...] = jnp.zeros_like(accb_ref)

    @pl.when(last_j)
    def _():
        mix = cneg + (cpos - cneg) * u
        accb_ref[...] += jnp.sum(cs * q_ref[...] + mix * bu_ref[...],
                                 axis=1, keepdims=True)

    @pl.when(last_k)
    def _():
        w = accw_ref[...]
        box = box_ref[...]
        accy_ref[...] += jnp.dot(w, box, preferred_element_type=jnp.float32)
        accz_ref[...] += jnp.dot(jnp.abs(w), box,
                                 preferred_element_type=jnp.float32)

    @pl.when(jnp.logical_and(last_j, last_k))
    def _():
        y_ref[...] = accy_ref[...]
        z_ref[...] = accz_ref[...]
        ob_ref[...] = accb_ref[...] + b_ref[...]


def dp_relu_affine_concretize(C, bias, sl_row, su_row, bu_row, P, q_row, Box,
                              *, tm, tn, tk, half_tiles):
    M2, K = C.shape
    _, N = P.shape
    grid = (M2 // tm, N // tn, K // tk)
    cost = pl.CostEstimate(
        flops=2 * M2 * K * N + 4 * M2 * N * 128 + 8 * M2 * K,
        transcendentals=0,
        bytes_accessed=4 * (M2 * K * (N // tn) + K * N * (M2 // tm)
                            + N * 128 * (M2 // tm) + 2 * M2 * 128
                            + 2 * M2 + 4 * K),
    )
    kernel = functools.partial(_relu_affine_concretize_kernel,
                               half_tiles=half_tiles)
    return pl.pallas_call(
        kernel,
        out_shape=(jax.ShapeDtypeStruct((M2, 128), jnp.float32),
                   jax.ShapeDtypeStruct((M2, 128), jnp.float32),
                   jax.ShapeDtypeStruct((M2, 1), jnp.float32)),
        grid_spec=pltpu.PrefetchScalarGridSpec(
            num_scalar_prefetch=0,
            grid=grid,
            in_specs=[
                pl.BlockSpec((tm, tk), lambda i, j, k: (i, k)),    # C
                pl.BlockSpec((1, tk), lambda i, j, k: (0, k)),     # sl
                pl.BlockSpec((1, tk), lambda i, j, k: (0, k)),     # su
                pl.BlockSpec((1, tk), lambda i, j, k: (0, k)),     # bu
                pl.BlockSpec((tk, tn), lambda i, j, k: (k, j)),    # P
                pl.BlockSpec((1, tk), lambda i, j, k: (0, k)),     # q
                pl.BlockSpec((tm, 1), lambda i, j, k: (i, 0)),     # bias in
                pl.BlockSpec((tn, 128), lambda i, j, k: (j, 0)),   # box
            ],
            out_specs=(
                pl.BlockSpec((tm, 128), lambda i, j, k: (i, 0)),   # Y
                pl.BlockSpec((tm, 128), lambda i, j, k: (i, 0)),   # Z
                pl.BlockSpec((tm, 1), lambda i, j, k: (i, 0)),     # bias out
            ),
            scratch_shapes=[pltpu.VMEM((tm, tn), jnp.float32),
                            pltpu.VMEM((tm, 128), jnp.float32),
                            pltpu.VMEM((tm, 128), jnp.float32),
                            pltpu.VMEM((tm, 1), jnp.float32)],
        ),
        compiler_params=_compiler_params(("parallel", "arbitrary", "arbitrary")),
        cost_estimate=cost,
    )(C, sl_row, su_row, bu_row, P, q_row, bias, Box)


def _affine_backsub_kernel(c_ref, p_ref, q_ref, b_ref, ow_ref, ob_ref,
                           accw_ref, accb_ref):
    """Plain affine back-substitution (linear layer NOT preceded by a ReLU)."""
    j = pl.program_id(1)
    k = pl.program_id(2)
    last_j = j == pl.num_programs(1) - 1
    last_k = k == pl.num_programs(2) - 1

    @pl.when(k == 0)
    def _():
        accw_ref[...] = jnp.zeros_like(accw_ref)

    c = c_ref[...]
    accw_ref[...] += jnp.dot(c, p_ref[...], preferred_element_type=jnp.float32)

    @pl.when(jnp.logical_and(last_j, k == 0))
    def _():
        accb_ref[...] = jnp.zeros_like(accb_ref)

    @pl.when(last_j)
    def _():
        accb_ref[...] += jnp.sum(c * q_ref[...], axis=1, keepdims=True)

    @pl.when(last_k)
    def _():
        ow_ref[...] = accw_ref[...]

    @pl.when(jnp.logical_and(last_j, last_k))
    def _():
        ob_ref[...] = accb_ref[...] + b_ref[...]


def dp_affine_backsub(C, bias, P, q_row, *, tm, tn, tk):
    M2, K = C.shape
    _, N = P.shape
    grid = (M2 // tm, N // tn, K // tk)
    cost = pl.CostEstimate(
        flops=2 * M2 * K * N + 2 * M2 * K,
        transcendentals=0,
        bytes_accessed=4 * (M2 * K * (N // tn) + K * N * (M2 // tm)
                            + M2 * N + 2 * M2 + K),
    )
    return pl.pallas_call(
        _affine_backsub_kernel,
        out_shape=(jax.ShapeDtypeStruct((M2, N), jnp.float32),
                   jax.ShapeDtypeStruct((M2, 1), jnp.float32)),
        grid_spec=pltpu.PrefetchScalarGridSpec(
            num_scalar_prefetch=0,
            grid=grid,
            in_specs=[
                pl.BlockSpec((tm, tk), lambda i, j, k: (i, k)),
                pl.BlockSpec((tk, tn), lambda i, j, k: (k, j)),
                pl.BlockSpec((1, tk), lambda i, j, k: (0, k)),
                pl.BlockSpec((tm, 1), lambda i, j, k: (i, 0)),
            ],
            out_specs=(
                pl.BlockSpec((tm, tn), lambda i, j, k: (i, j)),
                pl.BlockSpec((tm, 1), lambda i, j, k: (i, 0)),
            ),
            scratch_shapes=[pltpu.VMEM((tm, tn), jnp.float32),
                            pltpu.VMEM((tm, 1), jnp.float32)],
        ),
        compiler_params=_compiler_params(("parallel", "arbitrary", "arbitrary")),
        cost_estimate=cost,
    )(C, P, q_row, bias)


def _concretize_kernel(c_ref, b_ref, y_ref, z_ref, accy_ref, accz_ref):
    """Center/radius concretization: Y = C@B, Z = |C|@B (B lane-dense box)."""
    k = pl.program_id(1)

    @pl.when(k == 0)
    def _():
        accy_ref[...] = jnp.zeros_like(accy_ref)
        accz_ref[...] = jnp.zeros_like(accz_ref)

    c = c_ref[...]
    b = b_ref[...]
    accy_ref[...] += jnp.dot(c, b, preferred_element_type=jnp.float32)
    accz_ref[...] += jnp.dot(jnp.abs(c), b, preferred_element_type=jnp.float32)

    @pl.when(k == pl.num_programs(1) - 1)
    def _():
        y_ref[...] = accy_ref[...]
        z_ref[...] = accz_ref[...]


def dp_concretize(C, B, *, tm, tk):
    R, K = C.shape
    grid = (R // tm, K // tk)
    cost = pl.CostEstimate(
        flops=4 * R * K * 128,
        transcendentals=0,
        bytes_accessed=4 * (R * K + K * 128 * (R // tm) + 2 * R * 128),
    )
    return pl.pallas_call(
        _concretize_kernel,
        out_shape=(jax.ShapeDtypeStruct((R, 128), jnp.float32),
                   jax.ShapeDtypeStruct((R, 128), jnp.float32)),
        grid_spec=pltpu.PrefetchScalarGridSpec(
            num_scalar_prefetch=0,
            grid=grid,
            in_specs=[
                pl.BlockSpec((tm, tk), lambda i, k: (i, k)),
                pl.BlockSpec((tk, 128), lambda i, k: (k, 0)),
            ],
            out_specs=(
                pl.BlockSpec((tm, 128), lambda i, k: (i, 0)),
                pl.BlockSpec((tm, 128), lambda i, k: (i, 0)),
            ),
            scratch_shapes=[pltpu.VMEM((tm, 128), jnp.float32),
                            pltpu.VMEM((tm, 128), jnp.float32)],
        ),
        compiler_params=_compiler_params(("parallel", "arbitrary")),
        cost_estimate=cost,
    )(C, B)


# ----------------------------------------------------------------------------
# DeepPoly glue (plain JAX, runs inside the jitted forward)
# ----------------------------------------------------------------------------
def _relu_relaxation(lb, ub):
    """DeepPoly ReLU relaxation from pre-activation bounds (lb, ub)."""
    crossing = (lb < 0.0) & (ub > 0.0)
    denom = jnp.where(crossing, ub - lb, 1.0)
    su = jnp.where(ub <= 0.0, 0.0, jnp.where(lb >= 0.0, 1.0, ub / denom))
    bu = jnp.where(crossing, -lb * ub / denom, 0.0)
    sl = jnp.where(ub <= 0.0, 0.0,
                   jnp.where(lb >= 0.0, 1.0,
                             jnp.where(ub > -lb, 1.0, 0.0)))
    return sl, su, bu


class DeepPolyVerifierPallas:
    """JAX/Pallas port of DeepPolyVerifier.forward for Flatten/Linear/ReLU nets."""

    def __init__(self, layers, inputs_nchw, eps, true_label, clamp=True):
        x = jnp.asarray(inputs_nchw, jnp.float32).reshape(-1)
        if clamp:
            self.input_lb = jnp.clip(x - eps, 0.0, 1.0)
            self.input_ub = jnp.clip(x + eps, 0.0, 1.0)
        else:
            self.input_lb = x - eps
            self.input_ub = x + eps
        self.true_label = true_label
        self._kinds = tuple(kind for kind, _ in layers)
        self._params = tuple(
            (jnp.asarray(p[0], jnp.float32), jnp.asarray(p[1], jnp.float32))
            if kind == "linear" else ()
            for kind, p in layers)
        self.out_lower_bounds = None
        self.out_upper_bounds = None
        self.constraints_first_to_final = None
        self._fwd = jax.jit(self._forward_impl)

    # ------------------------------------------------------------------ #
    def _interval_linear(self, w, b, lb_prev, ub_prev):
        """Interval forward pass through one linear layer (cur_l == cur_u)."""
        M, K = w.shape
        tm, Mp = _plan(M, _CFG["tm"])
        tk, Kp = _plan(K, _CFG["tc"])
        Wp = _pad2(w, Mp, Kp)
        B = _box_matrix(lb_prev, ub_prev, Kp)
        Y, Z = dp_concretize(Wp, B, tm=tm, tk=tk)
        lo = Y[:M, 0] - Z[:M, 1] + b
        hi = Y[:M, 0] + Z[:M, 1] + b
        return lo, hi

    def _backsub(self, entries, idx, input_lb, input_ub, store=False):
        """Full back-substitution of entries[idx] down to the input box."""
        kind0, p0 = entries[idx]
        assert kind0 == "linear"
        w0, b0 = p0
        M, K0 = w0.shape
        tm, Mp = _plan(M, _CFG["tm"])
        half_tiles = Mp // tm
        _, K0p = _plan(K0, _CFG["tc"])

        Wp = _pad2(w0, Mp, K0p)
        C = jnp.concatenate([Wp, Wp], axis=0)                 # (2Mp, K0p)
        bp = _pad_col(b0, Mp)
        bias = jnp.concatenate([bp, bp], axis=0)              # (2Mp, 1)

        D = input_lb.shape[0]

        i = idx - 1
        while i >= 0:
            Kp_cur = C.shape[1]
            tk = _tile_for_padded(Kp_cur, _CFG["tc"])
            kind_i, p_i = entries[i]
            if kind_i == "relu":
                assert i >= 1 and entries[i - 1][0] == "linear", \
                    "ReLU must be preceded by a linear layer"
                sl, su, bu = p_i
                w, q = entries[i - 1][1]
                _, Nd = w.shape
                tn, Np = _plan(Nd, _CFG["tc"])
                Wi = _pad2(w, Kp_cur, Np)
                q_row = _pad_row(q, Kp_cur)
                sl_row = _pad_row(sl, Kp_cur)
                su_row = _pad_row(su, Kp_cur)
                bu_row = _pad_row(bu, Kp_cur)
                last_step = (i - 2) < 0
                if last_step and not store:
                    # Fuse the final concretization: the input-width constraint
                    # matrix never touches HBM.
                    B = _box_matrix(input_lb, input_ub, Np)
                    Y, Z, bias = dp_relu_affine_concretize(
                        C, bias, sl_row, su_row, bu_row, Wi, q_row, B,
                        tm=tm, tn=tn, tk=tk, half_tiles=half_tiles)
                    lo = Y[:M, 0] - Z[:M, 1] + bias[:M, 0]
                    hi = Y[Mp:Mp + M, 0] + Z[Mp:Mp + M, 1] + bias[Mp:Mp + M, 0]
                    return lo, hi, None
                C, bias = dp_relu_affine(
                    C, bias, sl_row, su_row, bu_row, Wi, q_row,
                    tm=tm, tn=tn, tk=tk, half_tiles=half_tiles)
                i -= 2
            else:  # linear layer not preceded by a ReLU (consecutive linears)
                w, q = p_i
                _, Nd = w.shape
                tn, Np = _plan(Nd, _CFG["tc"])
                Wi = _pad2(w, Kp_cur, Np)
                q_row = _pad_row(q, Kp_cur)
                C, bias = dp_affine_backsub(C, bias, Wi, q_row,
                                            tm=tm, tn=tn, tk=tk)
                i -= 1

        # Concretize against the input box (store=True path, or the last step
        # of the chain was a plain affine layer).
        Dp = C.shape[1]
        tk = _tile_for_padded(Dp, _CFG["tc"])
        B = _box_matrix(input_lb, input_ub, Dp)
        Y, Z = dp_concretize(C, B, tm=tm, tk=tk)
        lo = Y[:M, 0] - Z[:M, 1] + bias[:M, 0]
        hi = Y[Mp:Mp + M, 0] + Z[Mp:Mp + M, 1] + bias[Mp:Mp + M, 0]

        stored = None
        if store:
            stored = {"weights_lower": C[:M, :D],
                      "weights_upper": C[Mp:Mp + M, :D],
                      "bias_lower": bias[:M, 0],
                      "bias_upper": bias[Mp:Mp + M, 0]}
        return lo, hi, stored

    def _forward_impl(self, input_lb, input_ub, params):
        lb, ub = input_lb, input_ub
        entries = []
        prev_kind = "input"
        for pos, kind in enumerate(self._kinds):
            if kind == "linear":
                w, b = params[pos]
                entries.append(("linear", (w, b)))
                if prev_kind == "relu":
                    # full back-substitution for layers that follow a ReLU
                    lb, ub, _ = self._backsub(entries, len(entries) - 1,
                                              input_lb, input_ub)
                else:
                    lb, ub = self._interval_linear(w, b, lb, ub)
            elif kind == "relu":
                sl, su, bu = _relu_relaxation(lb, ub)
                entries.append(("relu", (sl, su, bu)))
                lb = jnp.maximum(lb, 0.0)
                ub = jnp.maximum(ub, 0.0)
            else:
                # TODO(synk): Conv2d / LeakyReLU transformers not implemented.
                raise NotImplementedError(f"Unsupported layer type: {kind}")
            prev_kind = kind

        # Output transformer: identity over class scores.  When the net ends
        # with a linear layer, start the final full backsub directly from it
        # (I @ W_last == W_last), skipping the wasted identity matmul.
        if entries[-1][0] == "linear":
            lo, hi, stored = self._backsub(entries, len(entries) - 1,
                                           input_lb, input_ub, store=True)
        else:
            n_out = lb.shape[0]
            entries.append(("linear", (jnp.eye(n_out, dtype=jnp.float32),
                                       jnp.zeros((n_out,), jnp.float32))))
            lo, hi, stored = self._backsub(entries, len(entries) - 1,
                                           input_lb, input_ub, store=True)
        return lo, hi, stored

    def forward(self, lower_bound=None, upper_bound=None):
        # (the torch module ignores its arguments too and uses the stored box)
        lo, hi, stored = self._fwd(self.input_lb, self.input_ub, self._params)
        self.constraints_first_to_final = stored
        self.out_lower_bounds = lo.reshape(-1, 1)
        self.out_upper_bounds = hi.reshape(-1, 1)
        return self.out_lower_bounds, self.out_upper_bounds


# ----------------------------------------------------------------------------
# Pure-JAX reference (mirrors the torch semantics) for the self-check
# ----------------------------------------------------------------------------
def _deeppoly_reference(layers, lb0, ub0):
    def concretize(Cl, Cu, bl, bu):
        lo = jnp.sum(jnp.where(Cl > 0, lb0, ub0) * Cl, axis=1) + bl
        hi = jnp.sum(jnp.where(Cu > 0, ub0, lb0) * Cu, axis=1) + bu
        return lo, hi

    def backsub(entries, idx):
        kind, p = entries[idx]
        assert kind == "linear"
        w, b = p
        Cl, Cu, bl, bu = w, w, b, b
        for i in range(idx - 1, -1, -1):
            kind_i, p_i = entries[i]
            if kind_i == "linear":
                wi, bi = p_i
                bl = Cl @ bi + bl
                bu = Cu @ bi + bu
                Cl = Cl @ wi
                Cu = Cu @ wi
            else:
                sl, su, bub = p_i
                Clp, Cln = jnp.maximum(Cl, 0.0), jnp.minimum(Cl, 0.0)
                Cup, Cun = jnp.maximum(Cu, 0.0), jnp.minimum(Cu, 0.0)
                bl = Cln @ bub + bl
                bu = Cup @ bub + bu
                Cl = Clp * sl + Cln * su
                Cu = Cup * su + Cun * sl
        return concretize(Cl, Cu, bl, bu)

    entries = []
    lb, ub = lb0, ub0
    prev = "input"
    for kind, p in layers:
        if kind == "linear":
            w, b = jnp.asarray(p[0], jnp.float32), jnp.asarray(p[1], jnp.float32)
            entries.append(("linear", (w, b)))
            if prev == "relu":
                lb, ub = backsub(entries, len(entries) - 1)
            else:
                lb_new = jnp.sum(jnp.where(w > 0, lb, ub) * w, axis=1) + b
                ub_new = jnp.sum(jnp.where(w > 0, ub, lb) * w, axis=1) + b
                lb, ub = lb_new, ub_new
        else:
            sl, su, bub = _relu_relaxation(lb, ub)
            entries.append(("relu", (sl, su, bub)))
            lb, ub = jnp.maximum(lb, 0.0), jnp.maximum(ub, 0.0)
        prev = kind
    if entries[-1][0] != "linear":
        n = lb.shape[0]
        entries.append(("linear", (jnp.eye(n, dtype=jnp.float32),
                                   jnp.zeros((n,), jnp.float32))))
    return backsub(entries, len(entries) - 1)


# ----------------------------------------------------------------------------
# Demo / self-check
# ----------------------------------------------------------------------------
if __name__ == "__main__":
    key = jax.random.PRNGKey(0)
    keys = jax.random.split(key, 9)

    # input image: NCHW (1, 1, 8, 8) in [0, 1]  -> flattened D = 64
    x = jax.random.uniform(keys[0], (1, 1, 8, 8), dtype=jnp.float32)
    d_in, h1, h2, h3, n_cls = 64, 48, 32, 24, 10

    # Flatten -> Linear(64,48) -> ReLU -> Linear(48,32) -> Linear(32,24)
    #         -> ReLU -> Linear(24,10)
    # (the consecutive Linear pair exercises the plain affine-backsub kernel)
    w1 = 0.1 * jax.random.normal(keys[1], (h1, d_in), jnp.float32)
    b1 = 0.1 * jax.random.normal(keys[2], (h1,), jnp.float32)
    w2 = 0.1 * jax.random.normal(keys[3], (h2, h1), jnp.float32)
    b2 = 0.1 * jax.random.normal(keys[4], (h2,), jnp.float32)
    w3 = 0.1 * jax.random.normal(keys[5], (h3, h2), jnp.float32)
    b3 = 0.1 * jax.random.normal(keys[6], (h3,), jnp.float32)
    w4 = 0.1 * jax.random.normal(keys[7], (n_cls, h3), jnp.float32)
    b4 = 0.1 * jax.random.normal(keys[8], (n_cls,), jnp.float32)
    layers = [("linear", (w1, b1)), ("relu", None),
              ("linear", (w2, b2)), ("linear", (w3, b3)), ("relu", None),
              ("linear", (w4, b4))]

    verifier = DeepPolyVerifierPallas(layers, x, eps=0.05, true_label=3)
    lo, hi = verifier.forward()
    jax.block_until_ready((lo, hi))

    assert lo.shape == (n_cls, 1) and hi.shape == (n_cls, 1)
    assert bool(jnp.all(lo <= hi + 1e-5))

    # soundness: nominal network output must lie inside the bounds
    xf = x.reshape(-1)
    h = jnp.maximum(w1 @ xf + b1, 0.0)
    h = w3 @ (w2 @ h + b2) + b3
    y = w4 @ jnp.maximum(h, 0.0) + b4
    assert bool(jnp.all(lo[:, 0] <= y + 1e-4))
    assert bool(jnp.all(y <= hi[:, 0] + 1e-4))

    # cross-check against a plain-JAX DeepPoly reference (same semantics)
    ref_lo, ref_hi = _deeppoly_reference(layers, verifier.input_lb,
                                         verifier.input_ub)
    assert bool(jnp.allclose(lo[:, 0], ref_lo, atol=2e-3, rtol=1e-3))
    assert bool(jnp.allclose(hi[:, 0], ref_hi, atol=2e-3, rtol=1e-3))

    stored = verifier.constraints_first_to_final
    assert stored["weights_lower"].shape == (n_cls, d_in)
    assert stored["weights_upper"].shape == (n_cls, d_in)

    print("KERNEL_OK")
</pallas_src>

<mosaic_0001>
module attributes {stable_mosaic.version = 11 : i64} {
  func.func @_concretize_kernel(%arg0: i32, %arg1: i32, %arg2: memref<128x128xf32, #tpu.memory_space<vmem>>, %arg3: memref<128x128xf32, #tpu.memory_space<vmem>>, %arg4: memref<128x128xf32, #tpu.memory_space<vmem>>, %arg5: memref<128x128xf32, #tpu.memory_space<vmem>>, %arg6: memref<128x128xf32, #tpu.memory_space<vmem>>, %arg7: memref<128x128xf32, #tpu.memory_space<vmem>>) attributes {dimension_semantics = [#tpu.dimension_semantics<parallel>, #tpu.dimension_semantics<arbitrary>], iteration_bounds = array<i64: 1, 1>, scalar_prefetch = 0 : i64, scratch_operands = 2 : i64, tpu.core_type = #tpu.core_type<tc>, window_params = [{transform_indices = @transform_0, window_bounds = array<i64: 128, 128>}, {transform_indices = @transform_1, window_bounds = array<i64: 128, 128>}, {transform_indices = @transform_2, window_bounds = array<i64: 128, 128>}, {transform_indices = @transform_3, window_bounds = array<i64: 128, 128>}]} {
    %c0_i32 = arith.constant 0 : i32
    %0 = arith.cmpi eq, %arg1, %c0_i32 : i32
    %1 = arith.extui %0 : i1 to i32
    %c0_i32_0 = arith.constant 0 : i32
    %2 = arith.cmpi ne, %1, %c0_i32_0 : i32
    scf.if %2 {
      %cst_15 = arith.constant 0.000000e+00 : f32
      %17 = vector.broadcast %cst_15 : f32 to vector<128x128xf32>
      %c0_16 = arith.constant 0 : index
      %c0_17 = arith.constant 0 : index
      %18 = vector.load %arg6[%c0_16, %c0_17] : memref<128x128xf32, #tpu.memory_space<vmem>>, vector<128x128xf32>
      tpu.vector_store %arg6[%c0_16, %c0_17], %17 {strides = array<i32>} : memref<128x128xf32, #tpu.memory_space<vmem>>, vector<128x128xf32>,
      %cst_18 = arith.constant 0.000000e+00 : f32
      %19 = vector.broadcast %cst_18 : f32 to vector<128x128xf32>
      %c0_19 = arith.constant 0 : index
      %c0_20 = arith.constant 0 : index
      %20 = vector.load %arg7[%c0_19, %c0_20] : memref<128x128xf32, #tpu.memory_space<vmem>>, vector<128x128xf32>
      tpu.vector_store %arg7[%c0_19, %c0_20], %19 {strides = array<i32>} : memref<128x128xf32, #tpu.memory_space<vmem>>, vector<128x128xf32>,
    } else {
    }
    %c0 = arith.constant 0 : index
    %c0_1 = arith.constant 0 : index
    %3 = vector.load %arg2[%c0, %c0_1] : memref<128x128xf32, #tpu.memory_space<vmem>>, vector<128x128xf32>
    %c0_2 = arith.constant 0 : index
    %c0_3 = arith.constant 0 : index
    %4 = vector.load %arg3[%c0_2, %c0_3] : memref<128x128xf32, #tpu.memory_space<vmem>>, vector<128x128xf32>
    %c0_4 = arith.constant 0 : index
    %c0_5 = arith.constant 0 : index
    %5 = vector.load %arg6[%c0_4, %c0_5] : memref<128x128xf32, #tpu.memory_space<vmem>>, vector<128x128xf32>
    %cst = arith.constant dense<0.000000e+00> : vector<128x128xf32>
    %6 = tpu.matmul %3, %4, %cst {dimension_numbers = #tpu.dot_dimension_numbers<[1], [0], [0], [1], [0, 0, 1, 1], [], []>} : vector<128x128xf32>, vector<128x128xf32>, vector<128x128xf32> -> vector<128x128xf32>
    %7 = arith.addf %5, %6 : vector<128x128xf32>
    %c0_6 = arith.constant 0 : index
    %c0_7 = arith.constant 0 : index
    %8 = vector.load %arg6[%c0_6, %c0_7] : memref<128x128xf32, #tpu.memory_space<vmem>>, vector<128x128xf32>
    tpu.vector_store %arg6[%c0_6, %c0_7], %7 {strides = array<i32>} : memref<128x128xf32, #tpu.memory_space<vmem>>, vector<128x128xf32>,
    %c0_8 = arith.constant 0 : index
    %c0_9 = arith.constant 0 : index
    %9 = vector.load %arg7[%c0_8, %c0_9] : memref<128x128xf32, #tpu.memory_space<vmem>>, vector<128x128xf32>
    %10 = math.absf %3 : vector<128x128xf32>
    %cst_10 = arith.constant dense<0.000000e+00> : vector<128x128xf32>
    %11 = tpu.matmul %10, %4, %cst_10 {dimension_numbers = #tpu.dot_dimension_numbers<[1], [0], [0], [1], [0, 0, 1, 1], [], []>} : vector<128x128xf32>, vector<128x128xf32>, vector<128x128xf32> -> vector<128x128xf32>
    %12 = arith.addf %9, %11 : vector<128x128xf32>
    %c0_11 = arith.constant 0 : index
    %c0_12 = arith.constant 0 : index
    %13 = vector.load %arg7[%c0_11, %c0_12] : memref<128x128xf32, #tpu.memory_space<vmem>>, vector<128x128xf32>
    tpu.vector_store %arg7[%c0_11, %c0_12], %12 {strides = array<i32>} : memref<128x128xf32, #tpu.memory_space<vmem>>, vector<128x128xf32>,
    %c0_i32_13 = arith.constant 0 : i32
    %14 = arith.cmpi eq, %arg1, %c0_i32_13 : i32
    %15 = arith.extui %14 : i1 to i32
    %c0_i32_14 = arith.constant 0 : i32
    %16 = arith.cmpi ne, %15, %c0_i32_14 : i32
    scf.if %16 {
      %c0_15 = arith.constant 0 : index
      %c0_16 = arith.constant 0 : index
      %17 = vector.load %arg6[%c0_15, %c0_16] : memref<128x128xf32, #tpu.memory_space<vmem>>, vector<128x128xf32>
      %c0_17 = arith.constant 0 : index
      %c0_18 = arith.constant 0 : index
      %18 = vector.load %arg4[%c0_17, %c0_18] : memref<128x128xf32, #tpu.memory_space<vmem>>, vector<128x128xf32>
      tpu.vector_store %arg4[%c0_17, %c0_18], %17 {strides = array<i32>} : memref<128x128xf32, #tpu.memory_space<vmem>>, vector<128x128xf32>,
      %c0_19 = arith.constant 0 : index
      %c0_20 = arith.constant 0 : index
      %19 = vector.load %arg7[%c0_19, %c0_20] : memref<128x128xf32, #tpu.memory_space<vmem>>, vector<128x128xf32>
      %c0_21 = arith.constant 0 : index
      %c0_22 = arith.constant 0 : index
      %20 = vector.load %arg5[%c0_21, %c0_22] : memref<128x128xf32, #tpu.memory_space<vmem>>, vector<128x128xf32>
      tpu.vector_store %arg5[%c0_21, %c0_22], %19 {strides = array<i32>} : memref<128x128xf32, #tpu.memory_space<vmem>>, vector<128x128xf32>,
    } else {
    }
    return
  }
  func.func @transform_0(%arg0: i32, %arg1: i32) -> (i32, i32) {
    %c0_i32 = arith.constant 0 : i32
    return %arg0, %arg1 : i32, i32
  }
  func.func @transform_1(%arg0: i32, %arg1: i32) -> (i32, i32) {
    %c0_i32 = arith.constant 0 : i32
    %c0_i32_0 = arith.constant 0 : i32
    return %arg1, %c0_i32 : i32, i32
  }
  func.func @transform_2(%arg0: i32, %arg1: i32) -> (i32, i32) {
    %c0_i32 = arith.constant 0 : i32
    %c0_i32_0 = arith.constant 0 : i32
    return %arg0, %c0_i32 : i32, i32
  }
  func.func @transform_3(%arg0: i32, %arg1: i32) -> (i32, i32) {
    %c0_i32 = arith.constant 0 : i32
    %c0_i32_0 = arith.constant 0 : i32
    return %arg0, %c0_i32 : i32, i32
  }
}

module attributes {stable_mosaic.version = 11 : i64} {
  func.func @_relu_affine_concretize_kernel(%arg0: i32, %arg1: i32, %arg2: i32, %arg3: memref<128x128xf32, #tpu.memory_space<vmem>>, %arg4: memref<1x128xf32, #tpu.memory_space<vmem>>, %arg5: memref<1x128xf32, #tpu.memory_space<vmem>>, %arg6: memref<1x128xf32, #tpu.memory_space<vmem>>, %arg7: memref<128x128xf32, #tpu.memory_space<vmem>>, %arg8: memref<1x128xf32, #tpu.memory_space<vmem>>, %arg9: memref<128x1xf32, #tpu.memory_space<vmem>>, %arg10: memref<128x128xf32, #tpu.memory_space<vmem>>, %arg11: memref<128x128xf32, #tpu.memory_space<vmem>>, %arg12: memref<128x128xf32, #tpu.memory_space<vmem>>, %arg13: memref<128x1xf32, #tpu.memory_space<vmem>>, %arg14: memref<128x128xf32, #tpu.memory_space<vmem>>, %arg15: memref<128x128xf32, #tpu.memory_space<vmem>>, %arg16: memref<128x128xf32, #tpu.memory_space<vmem>>, %arg17: memref<128x1xf32, #tpu.memory_space<vmem>>) attributes {dimension_semantics = [#tpu.dimension_semantics<parallel>, #tpu.dimension_semantics<arbitrary>, #tpu.dimension_semantics<arbitrary>], iteration_bounds = array<i64: 2, 1, 1>, scalar_prefetch = 0 : i64, scratch_operands = 4 : i64, tpu.core_type = #tpu.core_type<tc>, window_params = [{transform_indices = @transform_0, window_bounds = array<i64: 128, 128>}, {transform_indices = @transform_1, window_bounds = array<i64: 1, 128>}, {transform_indices = @transform_2, window_bounds = array<i64: 1, 128>}, {transform_indices = @transform_3, window_bounds = array<i64: 1, 128>}, {transform_indices = @transform_4, window_bounds = array<i64: 128, 128>}, {transform_indices = @transform_5, window_bounds = array<i64: 1, 128>}, {transform_indices = @transform_6, window_bounds = array<i64: 128, 1>}, {transform_indices = @transform_7, window_bounds = array<i64: 128, 128>}, {transform_indices = @transform_8, window_bounds = array<i64: 128, 128>}, {transform_indices = @transform_9, window_bounds = array<i64: 128, 128>}, {transform_indices = @transform_10, window_bounds = array<i64: 128, 1>}]} {
    %c0_i32 = arith.constant 0 : i32
    %0 = arith.cmpi eq, %arg1, %c0_i32 : i32
    %c0_i32_0 = arith.constant 0 : i32
    %1 = arith.cmpi eq, %arg2, %c0_i32_0 : i32
    %c0_i32_1 = arith.constant 0 : i32
    %2 = arith.cmpi eq, %arg1, %c0_i32_1 : i32
    %c0_i32_2 = arith.constant 0 : i32
    %3 = arith.cmpi eq, %arg2, %c0_i32_2 : i32
    %4 = arith.andi %2, %3 : i1
    %5 = arith.extui %4 : i1 to i32
    %c0_i32_3 = arith.constant 0 : i32
    %6 = arith.cmpi ne, %5, %c0_i32_3 : i32
    scf.if %6 {
      %cst_25 = arith.constant 0.000000e+00 : f32
      %47 = vector.broadcast %cst_25 : f32 to vector<128x128xf32>
      %c0_26 = arith.constant 0 : index
      %c0_27 = arith.constant 0 : index
      %48 = vector.load %arg15[%c0_26, %c0_27] : memref<128x128xf32, #tpu.memory_space<vmem>>, vector<128x128xf32>
      tpu.vector_store %arg15[%c0_26, %c0_27], %47 {strides = array<i32>} : memref<128x128xf32, #tpu.memory_space<vmem>>, vector<128x128xf32>,
      %cst_28 = arith.constant 0.000000e+00 : f32
      %49 = vector.broadcast %cst_28 : f32 to vector<128x128xf32>
      %c0_29 = arith.constant 0 : index
      %c0_30 = arith.constant 0 : index
      %50 = vector.load %arg16[%c0_29, %c0_30] : memref<128x128xf32, #tpu.memory_space<vmem>>, vector<128x128xf32>
      tpu.vector_store %arg16[%c0_29, %c0_30], %49 {strides = array<i32>} : memref<128x128xf32, #tpu.memory_space<vmem>>, vector<128x128xf32>,
    } else {
    }
    %c0_i32_4 = arith.constant 0 : i32
    %7 = arith.cmpi eq, %arg2, %c0_i32_4 : i32
    %8 = arith.extui %7 : i1 to i32
    %c0_i32_5 = arith.constant 0 : i32
    %9 = arith.cmpi ne, %8, %c0_i32_5 : i32
    scf.if %9 {
      %cst_25 = arith.constant 0.000000e+00 : f32
      %47 = vector.broadcast %cst_25 : f32 to vector<128x128xf32>
      %c0_26 = arith.constant 0 : index
      %c0_27 = arith.constant 0 : index
      %48 = vector.load %arg14[%c0_26, %c0_27] : memref<128x128xf32, #tpu.memory_space<vmem>>, vector<128x128xf32>
      tpu.vector_store %arg14[%c0_26, %c0_27], %47 {strides = array<i32>} : memref<128x128xf32, #tpu.memory_space<vmem>>, vector<128x128xf32>,
    } else {
    }
    %c1_i32 = arith.constant 1 : i32
    %10 = arith.cmpi sge, %arg0, %c1_i32 : i32
    %cst = arith.constant 1.000000e+00 : f32
    %cst_6 = arith.constant 0.000000e+00 : f32
    %11 = arith.select %10, %cst, %cst_6 : f32
    %c0 = arith.constant 0 : index
    %c0_7 = arith.constant 0 : index
    %12 = vector.load %arg3[%c0, %c0_7] : memref<128x128xf32, #tpu.memory_space<vmem>>, vector<128x128xf32>
    %cst_8 = arith.constant 0.000000e+00 : f32
    %13 = vector.broadcast %cst_8 : f32 to vector<128x128xf32>
    %14 = arith.maximumf %12, %13 : vector<128x128xf32>
    %15 = arith.subf %12, %14 : vector<128x128xf32>
    %c0_9 = arith.constant 0 : index
    %c0_10 = arith.constant 0 : index
    %16 = vector.load %arg4[%c0_9, %c0_10] : memref<1x128xf32, #tpu.memory_space<vmem>>, vector<1x128xf32>
    %c0_11 = arith.constant 0 : index
    %c0_12 = arith.constant 0 : index
    %17 = vector.load %arg5[%c0_11, %c0_12] : memref<1x128xf32, #tpu.memory_space<vmem>>, vector<1x128xf32>
    %18 = arith.subf %17, %16 : vector<1x128xf32>
    %19 = vector.broadcast %11 : f32 to vector<1x128xf32>
    %20 = arith.mulf %18, %19 : vector<1x128xf32>
    %21 = arith.addf %16, %20 : vector<1x128xf32>
    %22 = arith.subf %16, %17 : vector<1x128xf32>
    %23 = vector.broadcast %11 : f32 to vector<1x128xf32>
    %24 = arith.mulf %22, %23 : vector<1x128xf32>
    %25 = arith.addf %17, %24 : vector<1x128xf32>
    %26 = vector.broadcast %21 : vector<1x128xf32> to vector<128x128xf32>
    %27 = arith.mulf %14, %26 : vector<128x128xf32>
    %28 = vector.broadcast %25 : vector<1x128xf32> to vector<128x128xf32>
    %29 = arith.mulf %15, %28 : vector<128x128xf32>
    %30 = arith.addf %27, %29 : vector<128x128xf32>
    %c0_13 = arith.constant 0 : index
    %c0_14 = arith.constant 0 : index
    %31 = vector.load %arg14[%c0_13, %c0_14] : memref<128x128xf32, #tpu.memory_space<vmem>>, vector<128x128xf32>
    %c0_15 = arith.constant 0 : index
    %c0_16 = arith.constant 0 : index
    %32 = vector.load %arg7[%c0_15, %c0_16] : memref<128x128xf32, #tpu.memory_space<vmem>>, vector<128x128xf32>
    %cst_17 = arith.constant dense<0.000000e+00> : vector<128x128xf32>
    %33 = tpu.matmul %30, %32, %cst_17 {dimension_numbers = #tpu.dot_dimension_numbers<[1], [0], [0], [1], [0, 0, 1, 1], [], []>} : vector<128x128xf32>, vector<128x128xf32>, vector<128x128xf32> -> vector<128x128xf32>
    %34 = arith.addf %31, %33 : vector<128x128xf32>
    %c0_18 = arith.constant 0 : index
    %c0_19 = arith.constant 0 : index
    %35 = vector.load %arg14[%c0_18, %c0_19] : memref<128x128xf32, #tpu.memory_space<vmem>>, vector<128x128xf32>
    tpu.vector_store %arg14[%c0_18, %c0_19], %34 {strides = array<i32>} : memref<128x128xf32, #tpu.memory_space<vmem>>, vector<128x128xf32>,
    %c0_i32_20 = arith.constant 0 : i32
    %36 = arith.cmpi eq, %arg2, %c0_i32_20 : i32
    %37 = arith.andi %0, %36 : i1
    %38 = arith.extui %37 : i1 to i32
    %c0_i32_21 = arith.constant 0 : i32
    %39 = arith.cmpi ne, %38, %c0_i32_21 : i32
    scf.if %39 {
      %cst_25 = arith.constant 0.000000e+00 : f32
      %47 = vector.broadcast %cst_25 : f32 to vector<128x1xf32>
      %c0_26 = arith.constant 0 : index
      %c0_27 = arith.constant 0 : index
      %48 = vector.load %arg17[%c0_26, %c0_27] : memref<128x1xf32, #tpu.memory_space<vmem>>, vector<128x1xf32>
      tpu.vector_store %arg17[%c0_26, %c0_27], %47 {strides = array<i32>} : memref<128x1xf32, #tpu.memory_space<vmem>>, vector<128x1xf32>,
    } else {
    }
    %40 = arith.extui %0 : i1 to i32
    %c0_i32_22 = arith.constant 0 : i32
    %41 = arith.cmpi ne, %40, %c0_i32_22 : i32
    scf.if %41 {
      %47 = arith.subf %14, %15 : vector<128x128xf32>
      %48 = vector.broadcast %11 : f32 to vector<128x128xf32>
      %49 = arith.mulf %47, %48 : vector<128x128xf32>
      %50 = arith.addf %15, %49 : vector<128x128xf32>
      %c0_25 = arith.constant 0 : index
      %c0_26 = arith.constant 0 : index
      %51 = vector.load %arg17[%c0_25, %c0_26] : memref<128x1xf32, #tpu.memory_space<vmem>>, vector<128x1xf32>
      %c0_27 = arith.constant 0 : index
      %c0_28 = arith.constant 0 : index
      %52 = vector.load %arg8[%c0_27, %c0_28] : memref<1x128xf32, #tpu.memory_space<vmem>>, vector<1x128xf32>
      %53 = vector.broadcast %52 : vector<1x128xf32> to vector<128x128xf32>
      %54 = arith.mulf %30, %53 : vector<128x128xf32>
      %c0_29 = arith.constant 0 : index
      %c0_30 = arith.constant 0 : index
      %55 = vector.load %arg6[%c0_29, %c0_30] : memref<1x128xf32, #tpu.memory_space<vmem>>, vector<1x128xf32>
      %56 = vector.broadcast %55 : vector<1x128xf32> to vector<128x128xf32>
      %57 = arith.mulf %50, %56 : vector<128x128xf32>
      %58 = arith.addf %54, %57 : vector<128x128xf32>
      %cst_31 = arith.constant dense<0.000000e+00> : vector<128xf32>
      %59 = vector.multi_reduction <add>, %58, %cst_31 [1] : vector<128x128xf32> to vector<128xf32>
      %60 = vector.shape_cast %59 : vector<128xf32> to vector<128x1xf32>
      %61 = arith.addf %51, %60 : vector<128x1xf32>
      %c0_32 = arith.constant 0 : index
      %c0_33 = arith.constant 0 : index
      %62 = vector.load %arg17[%c0_32, %c0_33] : memref<128x1xf32, #tpu.memory_space<vmem>>, vector<128x1xf32>
      tpu.vector_store %arg17[%c0_32, %c0_33], %61 {strides = array<i32>} : memref<128x1xf32, #tpu.memory_space<vmem>>, vector<128x1xf32>,
    } else {
    }
    %42 = arith.extui %1 : i1 to i32
    %c0_i32_23 = arith.constant 0 : i32
    %43 = arith.cmpi ne, %42, %c0_i32_23 : i32
    scf.if %43 {
      %c0_25 = arith.constant 0 : index
      %c0_26 = arith.constant 0 : index
      %47 = vector.load %arg14[%c0_25, %c0_26] : memref<128x128xf32, #tpu.memory_space<vmem>>, vector<128x128xf32>
      %c0_27 = arith.constant 0 : index
      %c0_28 = arith.constant 0 : index
      %48 = vector.load %arg10[%c0_27, %c0_28] : memref<128x128xf32, #tpu.memory_space<vmem>>, vector<128x128xf32>
      %c0_29 = arith.constant 0 : index
      %c0_30 = arith.constant 0 : index
      %49 = vector.load %arg15[%c0_29, %c0_30] : memref<128x128xf32, #tpu.memory_space<vmem>>, vector<128x128xf32>
      %cst_31 = arith.constant dense<0.000000e+00> : vector<128x128xf32>
      %50 = tpu.matmul %47, %48, %cst_31 {dimension_numbers = #tpu.dot_dimension_numbers<[1], [0], [0], [1], [0, 0, 1, 1], [], []>} : vector<128x128xf32>, vector<128x128xf32>, vector<128x128xf32> -> vector<128x128xf32>
      %51 = arith.addf %49, %50 : vector<128x128xf32>
      %c0_32 = arith.constant 0 : index
      %c0_33 = arith.constant 0 : index
      %52 = vector.load %arg15[%c0_32, %c0_33] : memref<128x128xf32, #tpu.memory_space<vmem>>, vector<128x128xf32>
      tpu.vector_store %arg15[%c0_32, %c0_33], %51 {strides = array<i32>} : memref<128x128xf32, #tpu.memory_space<vmem>>, vector<128x128xf32>,
      %c0_34 = arith.constant 0 : index
      %c0_35 = arith.constant 0 : index
      %53 = vector.load %arg16[%c0_34, %c0_35] : memref<128x128xf32, #tpu.memory_space<vmem>>, vector<128x128xf32>
      %54 = math.absf %47 : vector<128x128xf32>
      %cst_36 = arith.constant dense<0.000000e+00> : vector<128x128xf32>
      %55 = tpu.matmul %54, %48, %cst_36 {dimension_numbers = #tpu.dot_dimension_numbers<[1], [0], [0], [1], [0, 0, 1, 1], [], []>} : vector<128x128xf32>, vector<128x128xf32>, vector<128x128xf32> -> vector<128x128xf32>
      %56 = arith.addf %53, %55 : vector<128x128xf32>
      %c0_37 = arith.constant 0 : index
      %c0_38 = arith.constant 0 : index
      %57 = vector.load %arg16[%c0_37, %c0_38] : memref<128x128xf32, #tpu.memory_space<vmem>>, vector<128x128xf32>
      tpu.vector_store %arg16[%c0_37, %c0_38], %56 {strides = array<i32>} : memref<128x128xf32, #tpu.memory_space<vmem>>, vector<128x128xf32>,
    } else {
    }
    %44 = arith.andi %0, %1 : i1
    %45 = arith.extui %44 : i1 to i32
    %c0_i32_24 = arith.constant 0 : i32
    %46 = arith.cmpi ne, %45, %c0_i32_24 : i32
    scf.if %46 {
      %c0_25 = arith.constant 0 : index
      %c0_26 = arith.constant 0 : index
      %47 = vector.load %arg15[%c0_25, %c0_26] : memref<128x128xf32, #tpu.memory_space<vmem>>, vector<128x128xf32>
      %c0_27 = arith.constant 0 : index
      %c0_28 = arith.constant 0 : index
      %48 = vector.load %arg11[%c0_27, %c0_28] : memref<128x128xf32, #tpu.memory_space<vmem>>, vector<128x128xf32>
      tpu.vector_store %arg11[%c0_27, %c0_28], %47 {strides = array<i32>} : memref<128x128xf32, #tpu.memory_space<vmem>>, vector<128x128xf32>,
      %c0_29 = arith.constant 0 : index
      %c0_30 = arith.constant 0 : index
      %49 = vector.load %arg16[%c0_29, %c0_30] : memref<128x128xf32, #tpu.memory_space<vmem>>, vector<128x128xf32>
      %c0_31 = arith.constant 0 : index
      %c0_32 = arith.constant 0 : index
      %50 = vector.load %arg12[%c0_31, %c0_32] : memref<128x128xf32, #tpu.memory_space<vmem>>, vector<128x128xf32>
      tpu.vector_store %arg12[%c0_31, %c0_32], %49 {strides = array<i32>} : memref<128x128xf32, #tpu.memory_space<vmem>>, vector<128x128xf32>,
      %c0_33 = arith.constant 0 : index
      %c0_34 = arith.constant 0 : index
      %51 = vector.load %arg17[%c0_33, %c0_34] : memref<128x1xf32, #tpu.memory_space<vmem>>, vector<128x1xf32>
      %c0_35 = arith.constant 0 : index
      %c0_36 = arith.constant 0 : index
      %52 = vector.load %arg9[%c0_35, %c0_36] : memref<128x1xf32, #tpu.memory_space<vmem>>, vector<128x1xf32>
      %53 = arith.addf %51, %52 : vector<128x1xf32>
      %c0_37 = arith.constant 0 : index
      %c0_38 = arith.constant 0 : index
      %54 = vector.load %arg13[%c0_37, %c0_38] : memref<128x1xf32, #tpu.memory_space<vmem>>, vector<128x1xf32>
      tpu.vector_store %arg13[%c0_37, %c0_38], %53 {strides = array<i32>} : memref<128x1xf32, #tpu.memory_space<vmem>>, vector<128x1xf32>,
    } else {
    }
    return
  }
  func.func @transform_0(%arg0: i32, %arg1: i32, %arg2: i32) -> (i32, i32) {
    %c0_i32 = arith.constant 0 : i32
    return %arg0, %arg2 : i32, i32
  }
  func.func @transform_1(%arg0: i32, %arg1: i32, %arg2: i32) -> (i32, i32) {
    %c0_i32 = arith.constant 0 : i32
    %c0_i32_0 = arith.constant 0 : i32
    return %c0_i32, %arg2 : i32, i32
  }
  func.func @transform_2(%arg0: i32, %arg1: i32, %arg2: i32) -> (i32, i32) {
    %c0_i32 = arith.constant 0 : i32
    %c0_i32_0 = arith.constant 0 : i32
    return %c0_i32, %arg2 : i32, i32
  }
  func.func @transform_3(%arg0: i32, %arg1: i32, %arg2: i32) -> (i32, i32) {
    %c0_i32 = arith.constant 0 : i32
    %c0_i32_0 = arith.constant 0 : i32
    return %c0_i32, %arg2 : i32, i32
  }
  func.func @transform_4(%arg0: i32, %arg1: i32, %arg2: i32) -> (i32, i32) {
    %c0_i32 = arith.constant 0 : i32
    return %arg2, %arg1 : i32, i32
  }
  func.func @transform_5(%arg0: i32, %arg1: i32, %arg2: i32) -> (i32, i32) {
    %c0_i32 = arith.constant 0 : i32
    %c0_i32_0 = arith.constant 0 : i32
    return %c0_i32, %arg2 : i32, i32
  }
  func.func @transform_6(%arg0: i32, %arg1: i32, %arg2: i32) -> (i32, i32) {
    %c0_i32 = arith.constant 0 : i32
    %c0_i32_0 = arith.constant 0 : i32
    return %arg0, %c0_i32 : i32, i32
  }
  func.func @transform_7(%arg0: i32, %arg1: i32, %arg2: i32) -> (i32, i32) {
    %c0_i32 = arith.constant 0 : i32
    %c0_i32_0 = arith.constant 0 : i32
    return %arg1, %c0_i32 : i32, i32
  }
  func.func @transform_8(%arg0: i32, %arg1: i32, %arg2: i32) -> (i32, i32) {
    %c0_i32 = arith.constant 0 : i32
    %c0_i32_0 = arith.constant 0 : i32
    return %arg0, %c0_i32 : i32, i32
  }
  func.func @transform_9(%arg0: i32, %arg1: i32, %arg2: i32) -> (i32, i32) {
    %c0_i32 = arith.constant 0 : i32
    %c0_i32_0 = arith.constant 0 : i32
    return %arg0, %c0_i32 : i32, i32
  }
  func.func @transform_10(%arg0: i32, %arg1: i32, %arg2: i32) -> (i32, i32) {
    %c0_i32 = arith.constant 0 : i32
    %c0_i32_0 = arith.constant 0 : i32
    return %arg0, %c0_i32 : i32, i32
  }
}

module attributes {stable_mosaic.version = 11 : i64} {
  func.func @_relu_affine_kernel(%arg0: i32, %arg1: i32, %arg2: i32, %arg3: memref<128x128xf32, #tpu.memory_space<vmem>>, %arg4: memref<1x128xf32, #tpu.memory_space<vmem>>, %arg5: memref<1x128xf32, #tpu.memory_space<vmem>>, %arg6: memref<1x128xf32, #tpu.memory_space<vmem>>, %arg7: memref<128x128xf32, #tpu.memory_space<vmem>>, %arg8: memref<1x128xf32, #tpu.memory_space<vmem>>, %arg9: memref<128x1xf32, #tpu.memory_space<vmem>>, %arg10: memref<128x128xf32, #tpu.memory_space<vmem>>, %arg11: memref<128x1xf32, #tpu.memory_space<vmem>>, %arg12: memref<128x128xf32, #tpu.memory_space<vmem>>, %arg13: memref<128x1xf32, #tpu.memory_space<vmem>>) attributes {dimension_semantics = [#tpu.dimension_semantics<parallel>, #tpu.dimension_semantics<arbitrary>, #tpu.dimension_semantics<arbitrary>], iteration_bounds = array<i64: 2, 1, 1>, scalar_prefetch = 0 : i64, scratch_operands = 2 : i64, tpu.core_type = #tpu.core_type<tc>, window_params = [{transform_indices = @transform_0, window_bounds = array<i64: 128, 128>}, {transform_indices = @transform_1, window_bounds = array<i64: 1, 128>}, {transform_indices = @transform_2, window_bounds = array<i64: 1, 128>}, {transform_indices = @transform_3, window_bounds = array<i64: 1, 128>}, {transform_indices = @transform_4, window_bounds = array<i64: 128, 128>}, {transform_indices = @transform_5, window_bounds = array<i64: 1, 128>}, {transform_indices = @transform_6, window_bounds = array<i64: 128, 1>}, {transform_indices = @transform_7, window_bounds = array<i64: 128, 128>}, {transform_indices = @transform_8, window_bounds = array<i64: 128, 1>}]} {
    %c0_i32 = arith.constant 0 : i32
    %0 = arith.cmpi eq, %arg1, %c0_i32 : i32
    %c0_i32_0 = arith.constant 0 : i32
    %1 = arith.cmpi eq, %arg2, %c0_i32_0 : i32
    %c0_i32_1 = arith.constant 0 : i32
    %2 = arith.cmpi eq, %arg2, %c0_i32_1 : i32
    %3 = arith.extui %2 : i1 to i32
    %c0_i32_2 = arith.constant 0 : i32
    %4 = arith.cmpi ne, %3, %c0_i32_2 : i32
    scf.if %4 {
      %cst_22 = arith.constant 0.000000e+00 : f32
      %42 = vector.broadcast %cst_22 : f32 to vector<128x128xf32>
      %c0_23 = arith.constant 0 : index
      %c0_24 = arith.constant 0 : index
      %43 = vector.load %arg12[%c0_23, %c0_24] : memref<128x128xf32, #tpu.memory_space<vmem>>, vector<128x128xf32>
      tpu.vector_store %arg12[%c0_23, %c0_24], %42 {strides = array<i32>} : memref<128x128xf32, #tpu.memory_space<vmem>>, vector<128x128xf32>,
    } else {
    }
    %c1_i32 = arith.constant 1 : i32
    %5 = arith.cmpi sge, %arg0, %c1_i32 : i32
    %cst = arith.constant 1.000000e+00 : f32
    %cst_3 = arith.constant 0.000000e+00 : f32
    %6 = arith.select %5, %cst, %cst_3 : f32
    %c0 = arith.constant 0 : index
    %c0_4 = arith.constant 0 : index
    %7 = vector.load %arg3[%c0, %c0_4] : memref<128x128xf32, #tpu.memory_space<vmem>>, vector<128x128xf32>
    %cst_5 = arith.constant 0.000000e+00 : f32
    %8 = vector.broadcast %cst_5 : f32 to vector<128x128xf32>
    %9 = arith.maximumf %7, %8 : vector<128x128xf32>
    %10 = arith.subf %7, %9 : vector<128x128xf32>
    %c0_6 = arith.constant 0 : index
    %c0_7 = arith.constant 0 : index
    %11 = vector.load %arg4[%c0_6, %c0_7] : memref<1x128xf32, #tpu.memory_space<vmem>>, vector<1x128xf32>
    %c0_8 = arith.constant 0 : index
    %c0_9 = arith.constant 0 : index
    %12 = vector.load %arg5[%c0_8, %c0_9] : memref<1x128xf32, #tpu.memory_space<vmem>>, vector<1x128xf32>
    %13 = arith.subf %12, %11 : vector<1x128xf32>
    %14 = vector.broadcast %6 : f32 to vector<1x128xf32>
    %15 = arith.mulf %13, %14 : vector<1x128xf32>
    %16 = arith.addf %11, %15 : vector<1x128xf32>
    %17 = arith.subf %11, %12 : vector<1x128xf32>
    %18 = vector.broadcast %6 : f32 to vector<1x128xf32>
    %19 = arith.mulf %17, %18 : vector<1x128xf32>
    %20 = arith.addf %12, %19 : vector<1x128xf32>
    %21 = vector.broadcast %16 : vector<1x128xf32> to vector<128x128xf32>
    %22 = arith.mulf %9, %21 : vector<128x128xf32>
    %23 = vector.broadcast %20 : vector<1x128xf32> to vector<128x128xf32>
    %24 = arith.mulf %10, %23 : vector<128x128xf32>
    %25 = arith.addf %22, %24 : vector<128x128xf32>
    %c0_10 = arith.constant 0 : index
    %c0_11 = arith.constant 0 : index
    %26 = vector.load %arg12[%c0_10, %c0_11] : memref<128x128xf32, #tpu.memory_space<vmem>>, vector<128x128xf32>
    %c0_12 = arith.constant 0 : index
    %c0_13 = arith.constant 0 : index
    %27 = vector.load %arg7[%c0_12, %c0_13] : memref<128x128xf32, #tpu.memory_space<vmem>>, vector<128x128xf32>
    %cst_14 = arith.constant dense<0.000000e+00> : vector<128x128xf32>
    %28 = tpu.matmul %25, %27, %cst_14 {dimension_numbers = #tpu.dot_dimension_numbers<[1], [0], [0], [1], [0, 0, 1, 1], [], []>} : vector<128x128xf32>, vector<128x128xf32>, vector<128x128xf32> -> vector<128x128xf32>
    %29 = arith.addf %26, %28 : vector<128x128xf32>
    %c0_15 = arith.constant 0 : index
    %c0_16 = arith.constant 0 : index
    %30 = vector.load %arg12[%c0_15, %c0_16] : memref<128x128xf32, #tpu.memory_space<vmem>>, vector<128x128xf32>
    tpu.vector_store %arg12[%c0_15, %c0_16], %29 {strides = array<i32>} : memref<128x128xf32, #tpu.memory_space<vmem>>, vector<128x128xf32>,
    %c0_i32_17 = arith.constant 0 : i32
    %31 = arith.cmpi eq, %arg2, %c0_i32_17 : i32
    %32 = arith.andi %0, %31 : i1
    %33 = arith.extui %32 : i1 to i32
    %c0_i32_18 = arith.constant 0 : i32
    %34 = arith.cmpi ne, %33, %c0_i32_18 : i32
    scf.if %34 {
      %cst_22 = arith.constant 0.000000e+00 : f32
      %42 = vector.broadcast %cst_22 : f32 to vector<128x1xf32>
      %c0_23 = arith.constant 0 : index
      %c0_24 = arith.constant 0 : index
      %43 = vector.load %arg13[%c0_23, %c0_24] : memref<128x1xf32, #tpu.memory_space<vmem>>, vector<128x1xf32>
      tpu.vector_store %arg13[%c0_23, %c0_24], %42 {strides = array<i32>} : memref<128x1xf32, #tpu.memory_space<vmem>>, vector<128x1xf32>,
    } else {
    }
    %35 = arith.extui %0 : i1 to i32
    %c0_i32_19 = arith.constant 0 : i32
    %36 = arith.cmpi ne, %35, %c0_i32_19 : i32
    scf.if %36 {
      %42 = arith.subf %9, %10 : vector<128x128xf32>
      %43 = vector.broadcast %6 : f32 to vector<128x128xf32>
      %44 = arith.mulf %42, %43 : vector<128x128xf32>
      %45 = arith.addf %10, %44 : vector<128x128xf32>
      %c0_22 = arith.constant 0 : index
      %c0_23 = arith.constant 0 : index
      %46 = vector.load %arg13[%c0_22, %c0_23] : memref<128x1xf32, #tpu.memory_space<vmem>>, vector<128x1xf32>
      %c0_24 = arith.constant 0 : index
      %c0_25 = arith.constant 0 : index
      %47 = vector.load %arg8[%c0_24, %c0_25] : memref<1x128xf32, #tpu.memory_space<vmem>>, vector<1x128xf32>
      %48 = vector.broadcast %47 : vector<1x128xf32> to vector<128x128xf32>
      %49 = arith.mulf %25, %48 : vector<128x128xf32>
      %c0_26 = arith.constant 0 : index
      %c0_27 = arith.constant 0 : index
      %50 = vector.load %arg6[%c0_26, %c0_27] : memref<1x128xf32, #tpu.memory_space<vmem>>, vector<1x128xf32>
      %51 = vector.broadcast %50 : vector<1x128xf32> to vector<128x128xf32>
      %52 = arith.mulf %45, %51 : vector<128x128xf32>
      %53 = arith.addf %49, %52 : vector<128x128xf32>
      %cst_28 = arith.constant dense<0.000000e+00> : vector<128xf32>
      %54 = vector.multi_reduction <add>, %53, %cst_28 [1] : vector<128x128xf32> to vector<128xf32>
      %55 = vector.shape_cast %54 : vector<128xf32> to vector<128x1xf32>
      %56 = arith.addf %46, %55 : vector<128x1xf32>
      %c0_29 = arith.constant 0 : index
      %c0_30 = arith.constant 0 : index
      %57 = vector.load %arg13[%c0_29, %c0_30] : memref<128x1xf32, #tpu.memory_space<vmem>>, vector<128x1xf32>
      tpu.vector_store %arg13[%c0_29, %c0_30], %56 {strides = array<i32>} : memref<128x1xf32, #tpu.memory_space<vmem>>, vector<128x1xf32>,
    } else {
    }
    %37 = arith.extui %1 : i1 to i32
    %c0_i32_20 = arith.constant 0 : i32
    %38 = arith.cmpi ne, %37, %c0_i32_20 : i32
    scf.if %38 {
      %c0_22 = arith.constant 0 : index
      %c0_23 = arith.constant 0 : index
      %42 = vector.load %arg12[%c0_22, %c0_23] : memref<128x128xf32, #tpu.memory_space<vmem>>, vector<128x128xf32>
      %c0_24 = arith.constant 0 : index
      %c0_25 = arith.constant 0 : index
      %43 = vector.load %arg10[%c0_24, %c0_25] : memref<128x128xf32, #tpu.memory_space<vmem>>, vector<128x128xf32>
      tpu.vector_store %arg10[%c0_24, %c0_25], %42 {strides = array<i32>} : memref<128x128xf32, #tpu.memory_space<vmem>>, vector<128x128xf32>,
    } else {
    }
    %39 = arith.andi %0, %1 : i1
    %40 = arith.extui %39 : i1 to i32
    %c0_i32_21 = arith.constant 0 : i32
    %41 = arith.cmpi ne, %40, %c0_i32_21 : i32
    scf.if %41 {
      %c0_22 = arith.constant 0 : index
      %c0_23 = arith.constant 0 : index
      %42 = vector.load %arg13[%c0_22, %c0_23] : memref<128x1xf32, #tpu.memory_space<vmem>>, vector<128x1xf32>
      %c0_24 = arith.constant 0 : index
      %c0_25 = arith.constant 0 : index
      %43 = vector.load %arg9[%c0_24, %c0_25] : memref<128x1xf32, #tpu.memory_space<vmem>>, vector<128x1xf32>
      %44 = arith.addf %42, %43 : vector<128x1xf32>
      %c0_26 = arith.constant 0 : index
      %c0_27 = arith.constant 0 : index
      %45 = vector.load %arg11[%c0_26, %c0_27] : memref<128x1xf32, #tpu.memory_space<vmem>>, vector<128x1xf32>
      tpu.vector_store %arg11[%c0_26, %c0_27], %44 {strides = array<i32>} : memref<128x1xf32, #tpu.memory_space<vmem>>, vector<128x1xf32>,
    } else {
    }
    return
  }
  func.func @transform_0(%arg0: i32, %arg1: i32, %arg2: i32) -> (i32, i32) {
    %c0_i32 = arith.constant 0 : i32
    return %arg0, %arg2 : i32, i32
  }
  func.func @transform_1(%arg0: i32, %arg1: i32, %arg2: i32) -> (i32, i32) {
    %c0_i32 = arith.constant 0 : i32
    %c0_i32_0 = arith.constant 0 : i32
    return %c0_i32, %arg2 : i32, i32
  }
  func.func @transform_2(%arg0: i32, %arg1: i32, %arg2: i32) -> (i32, i32) {
    %c0_i32 = arith.constant 0 : i32
    %c0_i32_0 = arith.constant 0 : i32
    return %c0_i32, %arg2 : i32, i32
  }
  func.func @transform_3(%arg0: i32, %arg1: i32, %arg2: i32) -> (i32, i32) {
    %c0_i32 = arith.constant 0 : i32
    %c0_i32_0 = arith.constant 0 : i32
    return %c0_i32, %arg2 : i32, i32
  }
  func.func @transform_4(%arg0: i32, %arg1: i32, %arg2: i32) -> (i32, i32) {
    %c0_i32 = arith.constant 0 : i32
    return %arg2, %arg1 : i32, i32
  }
  func.func @transform_5(%arg0: i32, %arg1: i32, %arg2: i32) -> (i32, i32) {
    %c0_i32 = arith.constant 0 : i32
    %c0_i32_0 = arith.constant 0 : i32
    return %c0_i32, %arg2 : i32, i32
  }
  func.func @transform_6(%arg0: i32, %arg1: i32, %arg2: i32) -> (i32, i32) {
    %c0_i32 = arith.constant 0 : i32
    %c0_i32_0 = arith.constant 0 : i32
    return %arg0, %c0_i32 : i32, i32
  }
  func.func @transform_7(%arg0: i32, %arg1: i32, %arg2: i32) -> (i32, i32) {
    %c0_i32 = arith.constant 0 : i32
    return %arg0, %arg1 : i32, i32
  }
  func.func @transform_8(%arg0: i32, %arg1: i32, %arg2: i32) -> (i32, i32) {
    %c0_i32 = arith.constant 0 : i32
    %c0_i32_0 = arith.constant 0 : i32
    return %arg0, %c0_i32 : i32, i32
  }
}

module attributes {stable_mosaic.version = 11 : i64} {
  func.func @_affine_backsub_kernel(%arg0: i32, %arg1: i32, %arg2: i32, %arg3: memref<128x128xf32, #tpu.memory_space<vmem>>, %arg4: memref<128x128xf32, #tpu.memory_space<vmem>>, %arg5: memref<1x128xf32, #tpu.memory_space<vmem>>, %arg6: memref<128x1xf32, #tpu.memory_space<vmem>>, %arg7: memref<128x128xf32, #tpu.memory_space<vmem>>, %arg8: memref<128x1xf32, #tpu.memory_space<vmem>>, %arg9: memref<128x128xf32, #tpu.memory_space<vmem>>, %arg10: memref<128x1xf32, #tpu.memory_space<vmem>>) attributes {dimension_semantics = [#tpu.dimension_semantics<parallel>, #tpu.dimension_semantics<arbitrary>, #tpu.dimension_semantics<arbitrary>], iteration_bounds = array<i64: 2, 1, 1>, scalar_prefetch = 0 : i64, scratch_operands = 2 : i64, tpu.core_type = #tpu.core_type<tc>, window_params = [{transform_indices = @transform_0, window_bounds = array<i64: 128, 128>}, {transform_indices = @transform_1, window_bounds = array<i64: 128, 128>}, {transform_indices = @transform_2, window_bounds = array<i64: 1, 128>}, {transform_indices = @transform_3, window_bounds = array<i64: 128, 1>}, {transform_indices = @transform_4, window_bounds = array<i64: 128, 128>}, {transform_indices = @transform_5, window_bounds = array<i64: 128, 1>}]} {
    %c0_i32 = arith.constant 0 : i32
    %0 = arith.cmpi eq, %arg1, %c0_i32 : i32
    %c0_i32_0 = arith.constant 0 : i32
    %1 = arith.cmpi eq, %arg2, %c0_i32_0 : i32
    %c0_i32_1 = arith.constant 0 : i32
    %2 = arith.cmpi eq, %arg2, %c0_i32_1 : i32
    %3 = arith.extui %2 : i1 to i32
    %c0_i32_2 = arith.constant 0 : i32
    %4 = arith.cmpi ne, %3, %c0_i32_2 : i32
    scf.if %4 {
      %cst_15 = arith.constant 0.000000e+00 : f32
      %22 = vector.broadcast %cst_15 : f32 to vector<128x128xf32>
      %c0_16 = arith.constant 0 : index
      %c0_17 = arith.constant 0 : index
      %23 = vector.load %arg9[%c0_16, %c0_17] : memref<128x128xf32, #tpu.memory_space<vmem>>, vector<128x128xf32>
      tpu.vector_store %arg9[%c0_16, %c0_17], %22 {strides = array<i32>} : memref<128x128xf32, #tpu.memory_space<vmem>>, vector<128x128xf32>,
    } else {
    }
    %c0 = arith.constant 0 : index
    %c0_3 = arith.constant 0 : index
    %5 = vector.load %arg3[%c0, %c0_3] : memref<128x128xf32, #tpu.memory_space<vmem>>, vector<128x128xf32>
    %c0_4 = arith.constant 0 : index
    %c0_5 = arith.constant 0 : index
    %6 = vector.load %arg9[%c0_4, %c0_5] : memref<128x128xf32, #tpu.memory_space<vmem>>, vector<128x128xf32>
    %c0_6 = arith.constant 0 : index
    %c0_7 = arith.constant 0 : index
    %7 = vector.load %arg4[%c0_6, %c0_7] : memref<128x128xf32, #tpu.memory_space<vmem>>, vector<128x128xf32>
    %cst = arith.constant dense<0.000000e+00> : vector<128x128xf32>
    %8 = tpu.matmul %5, %7, %cst {dimension_numbers = #tpu.dot_dimension_numbers<[1], [0], [0], [1], [0, 0, 1, 1], [], []>} : vector<128x128xf32>, vector<128x128xf32>, vector<128x128xf32> -> vector<128x128xf32>
    %9 = arith.addf %6, %8 : vector<128x128xf32>
    %c0_8 = arith.constant 0 : index
    %c0_9 = arith.constant 0 : index
    %10 = vector.load %arg9[%c0_8, %c0_9] : memref<128x128xf32, #tpu.memory_space<vmem>>, vector<128x128xf32>
    tpu.vector_store %arg9[%c0_8, %c0_9], %9 {strides = array<i32>} : memref<128x128xf32, #tpu.memory_space<vmem>>, vector<128x128xf32>,
    %c0_i32_10 = arith.constant 0 : i32
    %11 = arith.cmpi eq, %arg2, %c0_i32_10 : i32
    %12 = arith.andi %0, %11 : i1
    %13 = arith.extui %12 : i1 to i32
    %c0_i32_11 = arith.constant 0 : i32
    %14 = arith.cmpi ne, %13, %c0_i32_11 : i32
    scf.if %14 {
      %cst_15 = arith.constant 0.000000e+00 : f32
      %22 = vector.broadcast %cst_15 : f32 to vector<128x1xf32>
      %c0_16 = arith.constant 0 : index
      %c0_17 = arith.constant 0 : index
      %23 = vector.load %arg10[%c0_16, %c0_17] : memref<128x1xf32, #tpu.memory_space<vmem>>, vector<128x1xf32>
      tpu.vector_store %arg10[%c0_16, %c0_17], %22 {strides = array<i32>} : memref<128x1xf32, #tpu.memory_space<vmem>>, vector<128x1xf32>,
    } else {
    }
    %15 = arith.extui %0 : i1 to i32
    %c0_i32_12 = arith.constant 0 : i32
    %16 = arith.cmpi ne, %15, %c0_i32_12 : i32
    scf.if %16 {
      %c0_15 = arith.constant 0 : index
      %c0_16 = arith.constant 0 : index
      %22 = vector.load %arg10[%c0_15, %c0_16] : memref<128x1xf32, #tpu.memory_space<vmem>>, vector<128x1xf32>
      %c0_17 = arith.constant 0 : index
      %c0_18 = arith.constant 0 : index
      %23 = vector.load %arg5[%c0_17, %c0_18] : memref<1x128xf32, #tpu.memory_space<vmem>>, vector<1x128xf32>
      %24 = vector.broadcast %23 : vector<1x128xf32> to vector<128x128xf32>
      %25 = arith.mulf %5, %24 : vector<128x128xf32>
      %cst_19 = arith.constant dense<0.000000e+00> : vector<128xf32>
      %26 = vector.multi_reduction <add>, %25, %cst_19 [1] : vector<128x128xf32> to vector<128xf32>
      %27 = vector.shape_cast %26 : vector<128xf32> to vector<128x1xf32>
      %28 = arith.addf %22, %27 : vector<128x1xf32>
      %c0_20 = arith.constant 0 : index
      %c0_21 = arith.constant 0 : index
      %29 = vector.load %arg10[%c0_20, %c0_21] : memref<128x1xf32, #tpu.memory_space<vmem>>, vector<128x1xf32>
      tpu.vector_store %arg10[%c0_20, %c0_21], %28 {strides = array<i32>} : memref<128x1xf32, #tpu.memory_space<vmem>>, vector<128x1xf32>,
    } else {
    }
    %17 = arith.extui %1 : i1 to i32
    %c0_i32_13 = arith.constant 0 : i32
    %18 = arith.cmpi ne, %17, %c0_i32_13 : i32
    scf.if %18 {
      %c0_15 = arith.constant 0 : index
      %c0_16 = arith.constant 0 : index
      %22 = vector.load %arg9[%c0_15, %c0_16] : memref<128x128xf32, #tpu.memory_space<vmem>>, vector<128x128xf32>
      %c0_17 = arith.constant 0 : index
      %c0_18 = arith.constant 0 : index
      %23 = vector.load %arg7[%c0_17, %c0_18] : memref<128x128xf32, #tpu.memory_space<vmem>>, vector<128x128xf32>
      tpu.vector_store %arg7[%c0_17, %c0_18], %22 {strides = array<i32>} : memref<128x128xf32, #tpu.memory_space<vmem>>, vector<128x128xf32>,
    } else {
    }
    %19 = arith.andi %0, %1 : i1
    %20 = arith.extui %19 : i1 to i32
    %c0_i32_14 = arith.constant 0 : i32
    %21 = arith.cmpi ne, %20, %c0_i32_14 : i32
    scf.if %21 {
      %c0_15 = arith.constant 0 : index
      %c0_16 = arith.constant 0 : index
      %22 = vector.load %arg10[%c0_15, %c0_16] : memref<128x1xf32, #tpu.memory_space<vmem>>, vector<128x1xf32>
      %c0_17 = arith.constant 0 : index
      %c0_18 = arith.constant 0 : index
      %23 = vector.load %arg6[%c0_17, %c0_18] : memref<128x1xf32, #tpu.memory_space<vmem>>, vector<128x1xf32>
      %24 = arith.addf %22, %23 : vector<128x1xf32>
      %c0_19 = arith.constant 0 : index
      %c0_20 = arith.constant 0 : index
      %25 = vector.load %arg8[%c0_19, %c0_20] : memref<128x1xf32, #tpu.memory_space<vmem>>, vector<128x1xf32>
      tpu.vector_store %arg8[%c0_19, %c0_20], %24 {strides = array<i32>} : memref<128x1xf32, #tpu.memory_space<vmem>>, vector<128x1xf32>,
    } else {
    }
    return
  }
  func.func @transform_0(%arg0: i32, %arg1: i32, %arg2: i32) -> (i32, i32) {
    %c0_i32 = arith.constant 0 : i32
    return %arg0, %arg2 : i32, i32
  }
  func.func @transform_1(%arg0: i32, %arg1: i32, %arg2: i32) -> (i32, i32) {
    %c0_i32 = arith.constant 0 : i32
    return %arg2, %arg1 : i32, i32
  }
  func.func @transform_2(%arg0: i32, %arg1: i32, %arg2: i32) -> (i32, i32) {
    %c0_i32 = arith.constant 0 : i32
    %c0_i32_0 = arith.constant 0 : i32
    return %c0_i32, %arg2 : i32, i32
  }
  func.func @transform_3(%arg0: i32, %arg1: i32, %arg2: i32) -> (i32, i32) {
    %c0_i32 = arith.constant 0 : i32
    %c0_i32_0 = arith.constant 0 : i32
    return %arg0, %c0_i32 : i32, i32
  }
  func.func @transform_4(%arg0: i32, %arg1: i32, %arg2: i32) -> (i32, i32) {
    %c0_i32 = arith.constant 0 : i32
    return %arg0, %arg1 : i32, i32
  }
  func.func @transform_5(%arg0: i32, %arg1: i32, %arg2: i32) -> (i32, i32) {
    %c0_i32 = arith.constant 0 : i32
    %c0_i32_0 = arith.constant 0 : i32
    return %arg0, %c0_i32 : i32, i32
  }
}

module attributes {stable_mosaic.version = 11 : i64} {
  func.func @_concretize_kernel(%arg0: i32, %arg1: i32, %arg2: memref<128x128xf32, #tpu.memory_space<vmem>>, %arg3: memref<128x128xf32, #tpu.memory_space<vmem>>, %arg4: memref<128x128xf32, #tpu.memory_space<vmem>>, %arg5: memref<128x128xf32, #tpu.memory_space<vmem>>, %arg6: memref<128x128xf32, #tpu.memory_space<vmem>>, %arg7: memref<128x128xf32, #tpu.memory_space<vmem>>) attributes {dimension_semantics = [#tpu.dimension_semantics<parallel>, #tpu.dimension_semantics<arbitrary>], iteration_bounds = array<i64: 2, 1>, scalar_prefetch = 0 : i64, scratch_operands = 2 : i64, tpu.core_type = #tpu.core_type<tc>, window_params = [{transform_indices = @transform_0, window_bounds = array<i64: 128, 128>}, {transform_indices = @transform_1, window_bounds = array<i64: 128, 128>}, {transform_indices = @transform_2, window_bounds = array<i64: 128, 128>}, {transform_indices = @transform_3, window_bounds = array<i64: 128, 128>}]} {
    %c0_i32 = arith.constant 0 : i32
    %0 = arith.cmpi eq, %arg1, %c0_i32 : i32
    %1 = arith.extui %0 : i1 to i32
    %c0_i32_0 = arith.constant 0 : i32
    %2 = arith.cmpi ne, %1, %c0_i32_0 : i32
    scf.if %2 {
      %cst_15 = arith.constant 0.000000e+00 : f32
      %17 = vector.broadcast %cst_15 : f32 to vector<128x128xf32>
      %c0_16 = arith.constant 0 : index
      %c0_17 = arith.constant 0 : index
      %18 = vector.load %arg6[%c0_16, %c0_17] : memref<128x128xf32, #tpu.memory_space<vmem>>, vector<128x128xf32>
      tpu.vector_store %arg6[%c0_16, %c0_17], %17 {strides = array<i32>} : memref<128x128xf32, #tpu.memory_space<vmem>>, vector<128x128xf32>,
      %cst_18 = arith.constant 0.000000e+00 : f32
      %19 = vector.broadcast %cst_18 : f32 to vector<128x128xf32>
      %c0_19 = arith.constant 0 : index
      %c0_20 = arith.constant 0 : index
      %20 = vector.load %arg7[%c0_19, %c0_20] : memref<128x128xf32, #tpu.memory_space<vmem>>, vector<128x128xf32>
      tpu.vector_store %arg7[%c0_19, %c0_20], %19 {strides = array<i32>} : memref<128x128xf32, #tpu.memory_space<vmem>>, vector<128x128xf32>,
    } else {
    }
    %c0 = arith.constant 0 : index
    %c0_1 = arith.constant 0 : index
    %3 = vector.load %arg2[%c0, %c0_1] : memref<128x128xf32, #tpu.memory_space<vmem>>, vector<128x128xf32>
    %c0_2 = arith.constant 0 : index
    %c0_3 = arith.constant 0 : index
    %4 = vector.load %arg3[%c0_2, %c0_3] : memref<128x128xf32, #tpu.memory_space<vmem>>, vector<128x128xf32>
    %c0_4 = arith.constant 0 : index
    %c0_5 = arith.constant 0 : index
    %5 = vector.load %arg6[%c0_4, %c0_5] : memref<128x128xf32, #tpu.memory_space<vmem>>, vector<128x128xf32>
    %cst = arith.constant dense<0.000000e+00> : vector<128x128xf32>
    %6 = tpu.matmul %3, %4, %cst {dimension_numbers = #tpu.dot_dimension_numbers<[1], [0], [0], [1], [0, 0, 1, 1], [], []>} : vector<128x128xf32>, vector<128x128xf32>, vector<128x128xf32> -> vector<128x128xf32>
    %7 = arith.addf %5, %6 : vector<128x128xf32>
    %c0_6 = arith.constant 0 : index
    %c0_7 = arith.constant 0 : index
    %8 = vector.load %arg6[%c0_6, %c0_7] : memref<128x128xf32, #tpu.memory_space<vmem>>, vector<128x128xf32>
    tpu.vector_store %arg6[%c0_6, %c0_7], %7 {strides = array<i32>} : memref<128x128xf32, #tpu.memory_space<vmem>>, vector<128x128xf32>,
    %c0_8 = arith.constant 0 : index
    %c0_9 = arith.constant 0 : index
    %9 = vector.load %arg7[%c0_8, %c0_9] : memref<128x128xf32, #tpu.memory_space<vmem>>, vector<128x128xf32>
    %10 = math.absf %3 : vector<128x128xf32>
    %cst_10 = arith.constant dense<0.000000e+00> : vector<128x128xf32>
    %11 = tpu.matmul %10, %4, %cst_10 {dimension_numbers = #tpu.dot_dimension_numbers<[1], [0], [0], [1], [0, 0, 1, 1], [], []>} : vector<128x128xf32>, vector<128x128xf32>, vector<128x128xf32> -> vector<128x128xf32>
    %12 = arith.addf %9, %11 : vector<128x128xf32>
    %c0_11 = arith.constant 0 : index
    %c0_12 = arith.constant 0 : index
    %13 = vector.load %arg7[%c0_11, %c0_12] : memref<128x128xf32, #tpu.memory_space<vmem>>, vector<128x128xf32>
    tpu.vector_store %arg7[%c0_11, %c0_12], %12 {strides = array<i32>} : memref<128x128xf32, #tpu.memory_space<vmem>>, vector<128x128xf32>,
    %c0_i32_13 = arith.constant 0 : i32
    %14 = arith.cmpi eq, %arg1, %c0_i32_13 : i32
    %15 = arith.extui %14 : i1 to i32
    %c0_i32_14 = arith.constant 0 : i32
    %16 = arith.cmpi ne, %15, %c0_i32_14 : i32
    scf.if %16 {
      %c0_15 = arith.constant 0 : index
      %c0_16 = arith.constant 0 : index
      %17 = vector.load %arg6[%c0_15, %c0_16] : memref<128x128xf32, #tpu.memory_space<vmem>>, vector<128x128xf32>
      %c0_17 = arith.constant 0 : index
      %c0_18 = arith.constant 0 : index
      %18 = vector.load %arg4[%c0_17, %c0_18] : memref<128x128xf32, #tpu.memory_space<vmem>>, vector<128x128xf32>
      tpu.vector_store %arg4[%c0_17, %c0_18], %17 {strides = array<i32>} : memref<128x128xf32, #tpu.memory_space<vmem>>, vector<128x128xf32>,
      %c0_19 = arith.constant 0 : index
      %c0_20 = arith.constant 0 : index
      %19 = vector.load %arg7[%c0_19, %c0_20] : memref<128x128xf32, #tpu.memory_space<vmem>>, vector<128x128xf32>
      %c0_21 = arith.constant 0 : index
      %c0_22 = arith.constant 0 : index
      %20 = vector.load %arg5[%c0_21, %c0_22] : memref<128x128xf32, #tpu.memory_space<vmem>>, vector<128x128xf32>
      tpu.vector_store %arg5[%c0_21, %c0_22], %19 {strides = array<i32>} : memref<128x128xf32, #tpu.memory_space<vmem>>, vector<128x128xf32>,
    } else {
    }
    return
  }
  func.func @transform_0(%arg0: i32, %arg1: i32) -> (i32, i32) {
    %c0_i32 = arith.constant 0 : i32
    return %arg0, %arg1 : i32, i32
  }
  func.func @transform_1(%arg0: i32, %arg1: i32) -> (i32, i32) {
    %c0_i32 = arith.constant 0 : i32
    %c0_i32_0 = arith.constant 0 : i32
    return %arg1, %c0_i32 : i32, i32
  }
  func.func @transform_2(%arg0: i32, %arg1: i32) -> (i32, i32) {
    %c0_i32 = arith.constant 0 : i32
    %c0_i32_0 = arith.constant 0 : i32
    return %arg0, %c0_i32 : i32, i32
  }
  func.func @transform_3(%arg0: i32, %arg1: i32) -> (i32, i32) {
    %c0_i32 = arith.constant 0 : i32
    %c0_i32_0 = arith.constant 0 : i32
    return %arg0, %c0_i32 : i32, i32
  }
}

</mosaic_0001>

<llo_original>
// kernel: _forward_impl.7
$region0: #{_forward_impl.7}
  #allocation0 [shape = 'u32[]', space=smem, size = 0x4, offset = 0x4, fixed_abs, tag = 'smem constant byte address 0x4 - core index']
  #allocation1 [shape = 'u32[144,128]{1,0:T(1,128)}', space=vmem, size = 0x12000, scoped, tag = 'internal scratch']
  #allocation2 [shape = 'f32[128,128]{1,0:T(8,128)}', space=vmem, size = 0x10000, scoped, tag = 'scratch operand']
  #allocation3 [shape = 'f32[128,128]{1,0:T(8,128)}', space=vmem, size = 0x10000, scoped, tag = 'scratch operand']
  %s0 = inlined_call_operand.vmem [shape: f32[128,128], index: 0, kind: input, shape index: {}]
  %s1 = inlined_call_operand.vmem [shape: f32[128,128], index: 1, kind: input, shape index: {}]
  %s2 = inlined_call_operand.vmem [shape: f32[128,128], index: 2, kind: output, shape index: {0}]
  %s3 = inlined_call_operand.vmem [shape: f32[128,128], index: 3, kind: output, shape index: {1}]
  %4 = xla_tuple %s2, %s3
  %s5 = sld [smem:[#allocation0]]
  $region34: #{_forward_impl.7} parent=0
    _
  %s7 = ssub.s32 1, %s5
  %s8 = scalar_select 0, %s7, %s5
  // Predicated region
  $region2: #{_forward_impl.7} parent=0 // pred_check
    _
  $region3: #{_forward_impl.7} parent=0 // pred_check_branch
    %10 = sbr.rel (0) target = $region5
  $region4: #{_forward_impl.7} parent=0 // pred_region
    _
  $region5: #{_forward_impl.7} parent=0 // pred_fallthru
    _
  // Predicated region
  $region6: #{_forward_impl.7} parent=0 // pred_check
    _
  $region7: #{_forward_impl.7} parent=0 // pred_check_branch
    %12 = sbr.rel (0) target = $region9
  $region8: #{_forward_impl.7} parent=0 // pred_region
    _
  $region9: #{_forward_impl.7} parent=0 // pred_fallthru
    _
  %p13 = scmp.eq.s32.totalorder 0, 0
  // Predicated region
  $region10: #{_forward_impl.7} parent=0 // pred_check
    %p14 = pneg %p13
  $region11: #{_forward_impl.7} parent=0 // pred_check_branch
    %16 = sbr.rel (%p14) target = $region13
  $region12: #{_forward_impl.7} parent=0 // pred_region
    %17 = vst [vmem:[#allocation2] sm:$0xff] 0.0
    %18 = vst [vmem:[#allocation2 + $0x8] sm:$0xff] 0.0
    %19 = vst [vmem:[#allocation2 + $0x10] sm:$0xff] 0.0
    %20 = vst [vmem:[#allocation2 + $0x18] sm:$0xff] 0.0
    %21 = vst [vmem:[#allocation2 + $0x20] sm:$0xff] 0.0
    %22 = vst [vmem:[#allocation2 + $0x28] sm:$0xff] 0.0
    %23 = vst [vmem:[#allocation2 + $0x30] sm:$0xff] 0.0
    %24 = vst [vmem:[#allocation2 + $0x38] sm:$0xff] 0.0
    %25 = vst [vmem:[#allocation2 + $0x40] sm:$0xff] 0.0
    %26 = vst [vmem:[#allocation2 + $0x48] sm:$0xff] 0.0
    %27 = vst [vmem:[#allocation2 + $0x50] sm:$0xff] 0.0
    %28 = vst [vmem:[#allocation2 + $0x58] sm:$0xff] 0.0
    %29 = vst [vmem:[#allocation2 + $0x60] sm:$0xff] 0.0
    %30 = vst [vmem:[#allocation2 + $0x68] sm:$0xff] 0.0
    %31 = vst [vmem:[#allocation2 + $0x70] sm:$0xff] 0.0
    %32 = vst [vmem:[#allocation2 + $0x78] sm:$0xff] 0.0
    %33 = vst [vmem:[#allocation3] sm:$0xff] 0.0
    %34 = vst [vmem:[#allocation3 + $0x8] sm:$0xff] 0.0
    %35 = vst [vmem:[#allocation3 + $0x10] sm:$0xff] 0.0
    %36 = vst [vmem:[#allocation3 + $0x18] sm:$0xff] 0.0
    %37 = vst [vmem:[#allocation3 + $0x20] sm:$0xff] 0.0
    %38 = vst [vmem:[#allocation3 + $0x28] sm:$0xff] 0.0
    %39 = vst [vmem:[#allocation3 + $0x30] sm:$0xff] 0.0
    %40 = vst [vmem:[#allocation3 + $0x38] sm:$0xff] 0.0
    %41 = vst [vmem:[#allocation3 + $0x40] sm:$0xff] 0.0
    %42 = vst [vmem:[#allocation3 + $0x48] sm:$0xff] 0.0
    %43 = vst [vmem:[#allocation3 + $0x50] sm:$0xff] 0.0
    %44 = vst [vmem:[#allocation3 + $0x58] sm:$0xff] 0.0
    %45 = vst [vmem:[#allocation3 + $0x60] sm:$0xff] 0.0
    %46 = vst [vmem:[#allocation3 + $0x68] sm:$0xff] 0.0
    %47 = vst [vmem:[#allocation3 + $0x70] sm:$0xff] 0.0
    %48 = vst [vmem:[#allocation3 + $0x78] sm:$0xff] 0.0
  $region13: #{_forward_impl.7} parent=0 // pred_fallthru
    _
  %v49 = vld [vmem:[%s0] sm:$0xff]
  %v50 = vld [vmem:[%s0 + $0x8] sm:$0xff]
  %v51 = vld [vmem:[%s0 + $0x10] sm:$0xff]
  %v52 = vld [vmem:[%s0 + $0x18] sm:$0xff]
  %v53 = vld [vmem:[%s0 + $0x20] sm:$0xff]
  %v54 = vld [vmem:[%s0 + $0x28] sm:$0xff]
  %v55 = vld [vmem:[%s0 + $0x30] sm:$0xff]
  %v56 = vld [vmem:[%s0 + $0x38] sm:$0xff]
  %v57 = vld [vmem:[%s0 + $0x40] sm:$0xff]
  %v58 = vld [vmem:[%s0 + $0x48] sm:$0xff]
  %v59 = vld [vmem:[%s0 + $0x50] sm:$0xff]
  %v60 = vld [vmem:[%s0 + $0x58] sm:$0xff]
  %v61 = vld [vmem:[%s0 + $0x60] sm:$0xff]
  %v62 = vld [vmem:[%s0 + $0x68] sm:$0xff]
  %v63 = vld [vmem:[%s0 + $0x70] sm:$0xff]
  %v64 = vld [vmem:[%s0 + $0x78] sm:$0xff]
  %v65 = vld [vmem:[%s1] sm:$0xff]
  %v66 = vld [vmem:[%s1 + $0x8] sm:$0xff]
  %v67 = vld [vmem:[%s1 + $0x10] sm:$0xff]
  %v68 = vld [vmem:[%s1 + $0x18] sm:$0xff]
  %v69 = vld [vmem:[%s1 + $0x20] sm:$0xff]
  %v70 = vld [vmem:[%s1 + $0x28] sm:$0xff]
  %v71 = vld [vmem:[%s1 + $0x30] sm:$0xff]
  %v72 = vld [vmem:[%s1 + $0x38] sm:$0xff]
  %v73 = vld [vmem:[%s1 + $0x40] sm:$0xff]
  %v74 = vld [vmem:[%s1 + $0x48] sm:$0xff]
  %v75 = vld [vmem:[%s1 + $0x50] sm:$0xff]
  %v76 = vld [vmem:[%s1 + $0x58] sm:$0xff]
  %v77 = vld [vmem:[%s1 + $0x60] sm:$0xff]
  %v78 = vld [vmem:[%s1 + $0x68] sm:$0xff]
  %v79 = vld [vmem:[%s1 + $0x70] sm:$0xff]
  %v80 = vld [vmem:[%s1 + $0x78] sm:$0xff]
  %v81 = vld [vmem:[#allocation2] sm:$0xff]
  %v82 = vld [vmem:[#allocation2 + $0x8] sm:$0xff]
  %v83 = vld [vmem:[#allocation2 + $0x10] sm:$0xff]
  %v84 = vld [vmem:[#allocation2 + $0x18] sm:$0xff]
  %v85 = vld [vmem:[#allocation2 + $0x20] sm:$0xff]
  %v86 = vld [vmem:[#allocation2 + $0x28] sm:$0xff]
  %v87 = vld [vmem:[#allocation2 + $0x30] sm:$0xff]
  %v88 = vld [vmem:[#allocation2 + $0x38] sm:$0xff]
  %v89 = vld [vmem:[#allocation2 + $0x40] sm:$0xff]
  %v90 = vld [vmem:[#allocation2 + $0x48] sm:$0xff]
  %v91 = vld [vmem:[#allocation2 + $0x50] sm:$0xff]
  %v92 = vld [vmem:[#allocation2 + $0x58] sm:$0xff]
  %v93 = vld [vmem:[#allocation2 + $0x60] sm:$0xff]
  %v94 = vld [vmem:[#allocation2 + $0x68] sm:$0xff]
  %v95 = vld [vmem:[#allocation2 + $0x70] sm:$0xff]
  %v96 = vld [vmem:[#allocation2 + $0x78] sm:$0xff]
  %97 = vmatprep.subr.mxu0 0.0
  %98 = vmatpush1.msra.mxu0 %v65
  %99 = vmatprep.subr.mxu0 0.0
  %100 = vmatpush1.msra.mxu0 %v66
  %101 = vmatprep.subr.mxu0 0.0
  %102 = vmatpush1.msra.mxu0 %v67
  %103 = vmatprep.subr.mxu0 0.0
  %104 = vmatpush1.msra.mxu0 %v68
  %105 = vmatprep.subr.mxu0 0.0
  %106 = vmatpush1.msra.mxu0 %v69
  %107 = vmatprep.subr.mxu0 0.0
  %108 = vmatpush1.msra.mxu0 %v70
  %109 = vmatprep.subr.mxu0 0.0
  %110 = vmatpush1.msra.mxu0 %v71
  %111 = vmatprep.subr.mxu0 0.0
  %112 = vmatpush1.msra.mxu0 %v72
  %113 = vmatprep.subr.mxu0 0.0
  %114 = vmatpush1.msra.mxu0 %v73
  %115 = vmatprep.subr.mxu0 0.0
  %116 = vmatpush1.msra.mxu0 %v74
  %117 = vmatprep.subr.mxu0 0.0
  %118 = vmatpush1.msra.mxu0 %v75
  %119 = vmatprep.subr.mxu0 0.0
  %120 = vmatpush1.msra.mxu0 %v76
  %121 = vmatprep.subr.mxu0 0.0
  %122 = vmatpush1.msra.mxu0 %v77
  %123 = vmatprep.subr.mxu0 0.0
  %124 = vmatpush1.msra.mxu0 %v78
  %125 = vmatprep.subr.mxu0 0.0
  %126 = vmatpush1.msra.mxu0 %v79
  %127 = vmatprep.subr.mxu0 0.0
  %128 = vmatpush1.msra.mxu0 %v80
  %129 = vmatprep.subr.mxu0 0.0
  %130 = vmatpush1.msra.mxu0 0.0
  %131 = vmatprep.subr.mxu0 0.0
  %132 = vmatpush1.msra.mxu0 0.0
  %133 = vmatprep.subr.mxu0 0.0
  %134 = vmatpush1.msra.mxu0 0.0
  %135 = vmatprep.subr.mxu0 0.0
  %136 = vmatpush1.msra.mxu0 0.0
  %137 = vmatprep.subr.mxu0 0.0
  %138 = vmatpush1.msra.mxu0 0.0
  %139 = vmatprep.subr.mxu0 0.0
  %140 = vmatpush1.msra.mxu0 0.0
  %141 = vmatprep.subr.mxu0 0.0
  %142 = vmatpush1.msra.mxu0 0.0
  %143 = vmatprep.subr.mxu0 0.0
  %144 = vmatpush1.msra.mxu0 0.0
  %145 = vmatprep.subr.mxu0 0.0
  %146 = vmatpush1.msra.mxu0 0.0
  %147 = vmatprep.subr.mxu0 0.0
  %148 = vmatpush1.msra.mxu0 0.0
  %149 = vmatprep.subr.mxu0 0.0
  %150 = vmatpush1.msra.mxu0 0.0
  %151 = vmatprep.subr.mxu0 0.0
  %152 = vmatpush1.msra.mxu0 0.0
  %153 = vmatprep.subr.mxu0 0.0
  %154 = vmatpush1.msra.mxu0 0.0
  %155 = vmatprep.subr.mxu0 0.0
  %156 = vmatpush1.msra.mxu0 0.0
  %157 = vmatprep.subr.mxu0 0.0
  %158 = vmatpush1.msra.mxu0 0.0
  %159 = vmatprep.subr.mxu0 0.0
  %160 = vmatpush1.msra.mxu0 0.0
  %161 = vmatprep.mubr.f32.mxu0 0.0
  %162 = vmatmul.mubr.f32.gmra.mrb[0].mxu0 %v49
  %v163 = vpop.f32.mrb[0].mxu0
  %v164 = vadd.f32 0.0, %v163
  %v165 = vpop.f32.mrb[0].mxu0
  %166 = vmatprep.mubr.f32.mxu0 0.0
  %167 = vmatmul.mubr.f32.gmra.mrb[0].mxu0 %v50
  %v168 = vpop.f32.mrb[0].mxu0
  %v169 = vadd.f32 0.0, %v168
  %v170 = vpop.f32.mrb[0].mxu0
  %171 = vmatprep.mubr.f32.mxu0 0.0
  %172 = vmatmul.mubr.f32.gmra.mrb[0].mxu0 %v51
  %v173 = vpop.f32.mrb[0].mxu0
  %v174 = vadd.f32 0.0, %v173
  %v175 = vpop.f32.mrb[0].mxu0
  %176 = vmatprep.mubr.f32.mxu0 0.0
  %177 = vmatmul.mubr.f32.gmra.mrb[0].mxu0 %v52
  %v178 = vpop.f32.mrb[0].mxu0
  %v179 = vadd.f32 0.0, %v178
  %v180 = vpop.f32.mrb[0].mxu0
  %181 = vmatprep.mubr.f32.mxu0 0.0
  %182 = vmatmul.mubr.f32.gmra.mrb[0].mxu0 %v53
  %v183 = vpop.f32.mrb[0].mxu0
  %v184 = vadd.f32 0.0, %v183
  %v185 = vpop.f32.mrb[0].mxu0
  %186 = vmatprep.mubr.f32.mxu0 0.0
  %187 = vmatmul.mubr.f32.gmra.mrb[0].mxu0 %v54
  %v188 = vpop.f32.mrb[0].mxu0
  %v189 = vadd.f32 0.0, %v188
  %v190 = vpop.f32.mrb[0].mxu0
  %191 = vmatprep.mubr.f32.mxu0 0.0
  %192 = vmatmul.mubr.f32.gmra.mrb[0].mxu0 %v55
  %v193 = vpop.f32.mrb[0].mxu0
  %v194 = vadd.f32 0.0, %v193
  %v195 = vpop.f32.mrb[0].mxu0
  %196 = vmatprep.mubr.f32.mxu0 0.0
  %197 = vmatmul.mubr.f32.gmra.mrb[0].mxu0 %v56
  %v198 = vpop.f32.mrb[0].mxu0
  %v199 = vadd.f32 0.0, %v198
  %v200 = vpop.f32.mrb[0].mxu0
  %201 = vmatprep.mubr.f32.mxu0 0.0
  %202 = vmatmul.mubr.f32.gmra.mrb[0].mxu0 %v57
  %v203 = vpop.f32.mrb[0].mxu0
  %v204 = vadd.f32 0.0, %v203
  %v205 = vpop.f32.mrb[0].mxu0
  %206 = vmatprep.mubr.f32.mxu0 0.0
  %207 = vmatmul.mubr.f32.gmra.mrb[0].mxu0 %v58
  %v208 = vpop.f32.mrb[0].mxu0
  %v209 = vadd.f32 0.0, %v208
  %v210 = vpop.f32.mrb[0].mxu0
  %211 = vmatprep.mubr.f32.mxu0 0.0
  %212 = vmatmul.mubr.f32.gmra.mrb[0].mxu0 %v59
  %v213 = vpop.f32.mrb[0].mxu0
  %v214 = vadd.f32 0.0, %v213
  %v215 = vpop.f32.mrb[0].mxu0
  %216 = vmatprep.mubr.f32.mxu0 0.0
  %217 = vmatmul.mubr.f32.gmra.mrb[0].mxu0 %v60
  %v218 = vpop.f32.mrb[0].mxu0
  %v219 = vadd.f32 0.0, %v218
  %v220 = vpop.f32.mrb[0].mxu0
  %221 = vmatprep.mubr.f32.mxu0 0.0
  %222 = vmatmul.mubr.f32.gmra.mrb[0].mxu0 %v61
  %v223 = vpop.f32.mrb[0].mxu0
  %v224 = vadd.f32 0.0, %v223
  %v225 = vpop.f32.mrb[0].mxu0
  %226 = vmatprep.mubr.f32.mxu0 0.0
  %227 = vmatmul.mubr.f32.gmra.mrb[0].mxu0 %v62
  %v228 = vpop.f32.mrb[0].mxu0
  %v229 = vadd.f32 0.0, %v228
  %v230 = vpop.f32.mrb[0].mxu0
  %231 = vmatprep.mubr.f32.mxu0 0.0
  %232 = vmatmul.mubr.f32.gmra.mrb[0].mxu0 %v63
  %v233 = vpop.f32.mrb[0].mxu0
  %v234 = vadd.f32 0.0, %v233
  %v235 = vpop.f32.mrb[0].mxu0
  %236 = vmatprep.mubr.f32.mxu0 0.0
  %237 = vmatmul.mubr.f32.gmra.mrb[0].mxu0 %v64
  %v238 = vpop.f32.mrb[0].mxu0
  %v239 = vadd.f32 0.0, %v238
  %v240 = vpop.f32.mrb[0].mxu0
  %241 = vdwg.mxu0
  %v242 = vadd.f32 %v81, %v164
  %v243 = vadd.f32 %v82, %v169
  %v244 = vadd.f32 %v83, %v174
  %v245 = vadd.f32 %v84, %v179
  %v246 = vadd.f32 %v85, %v184
  %v247 = vadd.f32 %v86, %v189
  %v248 = vadd.f32 %v87, %v194
  %v249 = vadd.f32 %v88, %v199
  %v250 = vadd.f32 %v89, %v204
  %v251 = vadd.f32 %v90, %v209
  %v252 = vadd.f32 %v91, %v214
  %v253 = vadd.f32 %v92, %v219
  %v254 = vadd.f32 %v93, %v224
  %v255 = vadd.f32 %v94, %v229
  %v256 = vadd.f32 %v95, %v234
  %v257 = vadd.f32 %v96, %v239
  %258 = vst [vmem:[#allocation2] sm:$0xff] %v242
  %259 = vst [vmem:[#allocation2 + $0x8] sm:$0xff] %v243
  %260 = vst [vmem:[#allocation2 + $0x10] sm:$0xff] %v244
  %261 = vst [vmem:[#allocation2 + $0x18] sm:$0xff] %v245
  %262 = vst [vmem:[#allocation2 + $0x20] sm:$0xff] %v246
  %263 = vst [vmem:[#allocation2 + $0x28] sm:$0xff] %v247
  %264 = vst [vmem:[#allocation2 + $0x30] sm:$0xff] %v248
  %265 = vst [vmem:[#allocation2 + $0x38] sm:$0xff] %v249
  %266 = vst [vmem:[#allocation2 + $0x40] sm:$0xff] %v250
  %267 = vst [vmem:[#allocation2 + $0x48] sm:$0xff] %v251
  %268 = vst [vmem:[#allocation2 + $0x50] sm:$0xff] %v252
  %269 = vst [vmem:[#allocation2 + $0x58] sm:$0xff] %v253
  %270 = vst [vmem:[#allocation2 + $0x60] sm:$0xff] %v254
  %271 = vst [vmem:[#allocation2 + $0x68] sm:$0xff] %v255
  %272 = vst [vmem:[#allocation2 + $0x70] sm:$0xff] %v256
  %273 = vst [vmem:[#allocation2 + $0x78] sm:$0xff] %v257
  %v274 = vld [vmem:[#allocation3] sm:$0xff]
  %v275 = vld [vmem:[#allocation3 + $0x8] sm:$0xff]
  %v276 = vld [vmem:[#allocation3 + $0x10] sm:$0xff]
  %v277 = vld [vmem:[#allocation3 + $0x18] sm:$0xff]
  %v278 = vld [vmem:[#allocation3 + $0x20] sm:$0xff]
  %v279 = vld [vmem:[#allocation3 + $0x28] sm:$0xff]
  %v280 = vld [vmem:[#allocation3 + $0x30] sm:$0xff]
  %v281 = vld [vmem:[#allocation3 + $0x38] sm:$0xff]
  %v282 = vld [vmem:[#allocation3 + $0x40] sm:$0xff]
  %v283 = vld [vmem:[#allocation3 + $0x48] sm:$0xff]
  %v284 = vld [vmem:[#allocation3 + $0x50] sm:$0xff]
  %v285 = vld [vmem:[#allocation3 + $0x58] sm:$0xff]
  %v286 = vld [vmem:[#allocation3 + $0x60] sm:$0xff]
  %v287 = vld [vmem:[#allocation3 + $0x68] sm:$0xff]
  %v288 = vld [vmem:[#allocation3 + $0x70] sm:$0xff]
  %v289 = vld [vmem:[#allocation3 + $0x78] sm:$0xff]
  %v290 = vand.u32 2147483647, %v49
  %v291 = vand.u32 2147483647, %v50
  %v292 = vand.u32 2147483647, %v51
  %v293 = vand.u32 2147483647, %v52
  %v294 = vand.u32 2147483647, %v53
  %v295 = vand.u32 2147483647, %v54
  %v296 = vand.u32 2147483647, %v55
  %v297 = vand.u32 2147483647, %v56
  %v298 = vand.u32 2147483647, %v57
  %v299 = vand.u32 2147483647, %v58
  %v300 = vand.u32 2147483647, %v59
  %v301 = vand.u32 2147483647, %v60
  %v302 = vand.u32 2147483647, %v61
  %v303 = vand.u32 2147483647, %v62
  %v304 = vand.u32 2147483647, %v63
  %v305 = vand.u32 2147483647, %v64
  %306 = vmatprep.subr.mxu0 0.0
  %307 = vmatpush1.msra.mxu0 %v65
  %308 = vmatprep.subr.mxu0 0.0
  %309 = vmatpush1.msra.mxu0 %v66
  %310 = vmatprep.subr.mxu0 0.0
  %311 = vmatpush1.msra.mxu0 %v67
  %312 = vmatprep.subr.mxu0 0.0
  %313 = vmatpush1.msra.mxu0 %v68
  %314 = vmatprep.subr.mxu0 0.0
  %315 = vmatpush1.msra.mxu0 %v69
  %316 = vmatprep.subr.mxu0 0.0
  %317 = vmatpush1.msra.mxu0 %v70
  %318 = vmatprep.subr.mxu0 0.0
  %319 = vmatpush1.msra.mxu0 %v71
  %320 = vmatprep.subr.mxu0 0.0
  %321 = vmatpush1.msra.mxu0 %v72
  %322 = vmatprep.subr.mxu0 0.0
  %323 = vmatpush1.msra.mxu0 %v73
  %324 = vmatprep.subr.mxu0 0.0
  %325 = vmatpush1.msra.mxu0 %v74
  %326 = vmatprep.subr.mxu0 0.0
  %327 = vmatpush1.msra.mxu0 %v75
  %328 = vmatprep.subr.mxu0 0.0
  %329 = vmatpush1.msra.mxu0 %v76
  %330 = vmatprep.subr.mxu0 0.0
  %331 = vmatpush1.msra.mxu0 %v77
  %332 = vmatprep.subr.mxu0 0.0
  %333 = vmatpush1.msra.mxu0 %v78
  %334 = vmatprep.subr.mxu0 0.0
  %335 = vmatpush1.msra.mxu0 %v79
  %336 = vmatprep.subr.mxu0 0.0
  %337 = vmatpush1.msra.mxu0 %v80
  %338 = vmatprep.subr.mxu0 0.0
  %339 = vmatpush1.msra.mxu0 0.0
  %340 = vmatprep.subr.mxu0 0.0
  %341 = vmatpush1.msra.mxu0 0.0
  %342 = vmatprep.subr.mxu0 0.0
  %343 = vmatpush1.msra.mxu0 0.0
  %344 = vmatprep.subr.mxu0 0.0
  %345 = vmatpush1.msra.mxu0 0.0
  %346 = vmatprep.subr.mxu0 0.0
  %347 = vmatpush1.msra.mxu0 0.0
  %348 = vmatprep.subr.mxu0 0.0
  %349 = vmatpush1.msra.mxu0 0.0
  %350 = vmatprep.subr.mxu0 0.0
  %351 = vmatpush1.msra.mxu0 0.0
  %352 = vmatprep.subr.mxu0 0.0
  %353 = vmatpush1.msra.mxu0 0.0
  %354 = vmatprep.subr.mxu0 0.0
  %355 = vmatpush1.msra.mxu0 0.0
  %356 = vmatprep.subr.mxu0 0.0
  %357 = vmatpush1.msra.mxu0 0.0
  %358 = vmatprep.subr.mxu0 0.0
  %359 = vmatpush1.msra.mxu0 0.0
  %360 = vmatprep.subr.mxu0 0.0
  %361 = vmatpush1.msra.mxu0 0.0
  %362 = vmatprep.subr.mxu0 0.0
  %363 = vmatpush1.msra.mxu0 0.0
  %364 = vmatprep.subr.mxu0 0.0
  %365 = vmatpush1.msra.mxu0 0.0
  %366 = vmatprep.subr.mxu0 0.0
  %367 = vmatpush1.msra.mxu0 0.0
  %368 = vmatprep.subr.mxu0 0.0
  %369 = vmatpush1.msra.mxu0 0.0
  %370 = vmatprep.mubr.f32.mxu0 0.0
  %371 = vmatmul.mubr.f32.gmra.mrb[0].mxu0 %v290
  %v372 = vpop.f32.mrb[0].mxu0
  %v373 = vadd.f32 0.0, %v372
  %v374 = vpop.f32.mrb[0].mxu0
  %375 = vmatprep.mubr.f32.mxu0 0.0
  %376 = vmatmul.mubr.f32.gmra.mrb[0].mxu0 %v291
  %v377 = vpop.f32.mrb[0].mxu0
  %v378 = vadd.f32 0.0, %v377
  %v379 = vpop.f32.mrb[0].mxu0
  %380 = vmatprep.mubr.f32.mxu0 0.0
  %381 = vmatmul.mubr.f32.gmra.mrb[0].mxu0 %v292
  %v382 = vpop.f32.mrb[0].mxu0
  %v383 = vadd.f32 0.0, %v382
  %v384 = vpop.f32.mrb[0].mxu0
  %385 = vmatprep.mubr.f32.mxu0 0.0
  %386 = vmatmul.mubr.f32.gmra.mrb[0].mxu0 %v293
  %v387 = vpop.f32.mrb[0].mxu0
  %v388 = vadd.f32 0.0, %v387
  %v389 = vpop.f32.mrb[0].mxu0
  %390 = vmatprep.mubr.f32.mxu0 0.0
  %391 = vmatmul.mubr.f32.gmra.mrb[0].mxu0 %v294
  %v392 = vpop.f32.mrb[0].mxu0
  %v393 = vadd.f32 0.0, %v392
  %v394 = vpop.f32.mrb[0].mxu0
  %395 = vmatprep.mubr.f32.mxu0 0.0
  %396 = vmatmul.mubr.f32.gmra.mrb[0].mxu0 %v295
  %v397 = vpop.f32.mrb[0].mxu0
  %v398 = vadd.f32 0.0, %v397
  %v399 = vpop.f32.mrb[0].mxu0
  %400 = vmatprep.mubr.f32.mxu0 0.0
  %401 = vmatmul.mubr.f32.gmra.mrb[0].mxu0 %v296
  %v402 = vpop.f32.mrb[0].mxu0
  %v403 = vadd.f32 0.0, %v402
  %v404 = vpop.f32.mrb[0].mxu0
  %405 = vmatprep.mubr.f32.mxu0 0.0
  %406 = vmatmul.mubr.f32.gmra.mrb[0].mxu0 %v297
  %v407 = vpop.f32.mrb[0].mxu0
  %v408 = vadd.f32 0.0, %v407
  %v409 = vpop.f32.mrb[0].mxu0
  %410 = vmatprep.mubr.f32.mxu0 0.0
  %411 = vmatmul.mubr.f32.gmra.mrb[0].mxu0 %v298
  %v412 = vpop.f32.mrb[0].mxu0
  %v413 = vadd.f32 0.0, %v412
  %v414 = vpop.f32.mrb[0].mxu0
  %415 = vmatprep.mubr.f32.mxu0 0.0
  %416 = vmatmul.mubr.f32.gmra.mrb[0].mxu0 %v299
  %v417 = vpop.f32.mrb[0].mxu0
  %v418 = vadd.f32 0.0, %v417
  %v419 = vpop.f32.mrb[0].mxu0
  %420 = vmatprep.mubr.f32.mxu0 0.0
  %421 = vmatmul.mubr.f32.gmra.mrb[0].mxu0 %v300
  %v422 = vpop.f32.mrb[0].mxu0
  %v423 = vadd.f32 0.0, %v422
  %v424 = vpop.f32.mrb[0].mxu0
  %425 = vmatprep.mubr.f32.mxu0 0.0
  %426 = vmatmul.mubr.f32.gmra.mrb[0].mxu0 %v301
  %v427 = vpop.f32.mrb[0].mxu0
  %v428 = vadd.f32 0.0, %v427
  %v429 = vpop.f32.mrb[0].mxu0
  %430 = vmatprep.mubr.f32.mxu0 0.0
  %431 = vmatmul.mubr.f32.gmra.mrb[0].mxu0 %v302
  %v432 = vpop.f32.mrb[0].mxu0
  %v433 = vadd.f32 0.0, %v432
  %v434 = vpop.f32.mrb[0].mxu0
  %435 = vmatprep.mubr.f32.mxu0 0.0
  %436 = vmatmul.mubr.f32.gmra.mrb[0].mxu0 %v303
  %v437 = vpop.f32.mrb[0].mxu0
  %v438 = vadd.f32 0.0, %v437
  %v439 = vpop.f32.mrb[0].mxu0
  %440 = vmatprep.mubr.f32.mxu0 0.0
  %441 = vmatmul.mubr.f32.gmra.mrb[0].mxu0 %v304
  %v442 = vpop.f32.mrb[0].mxu0
  %v443 = vadd.f32 0.0, %v442
  %v444 = vpop.f32.mrb[0].mxu0
  %445 = vmatprep.mubr.f32.mxu0 0.0
  %446 = vmatmul.mubr.f32.gmra.mrb[0].mxu0 %v305
  %v447 = vpop.f32.mrb[0].mxu0
  %v448 = vadd.f32 0.0, %v447
  %v449 = vpop.f32.mrb[0].mxu0
  %450 = vdwg.mxu0
  %v451 = vadd.f32 %v274, %v373
  %v452 = vadd.f32 %v275, %v378
  %v453 = vadd.f32 %v276, %v383
  %v454 = vadd.f32 %v277, %v388
  %v455 = vadd.f32 %v278, %v393
  %v456 = vadd.f32 %v279, %v398
  %v457 = vadd.f32 %v280, %v403
  %v458 = vadd.f32 %v281, %v408
  %v459 = vadd.f32 %v282, %v413
  %v460 = vadd.f32 %v283, %v418
  %v461 = vadd.f32 %v284, %v423
  %v462 = vadd.f32 %v285, %v428
  %v463 = vadd.f32 %v286, %v433
  %v464 = vadd.f32 %v287, %v438
  %v465 = vadd.f32 %v288, %v443
  %v466 = vadd.f32 %v289, %v448
  %467 = vst [vmem:[#allocation3] sm:$0xff] %v451
  %468 = vst [vmem:[#allocation3 + $0x8] sm:$0xff] %v452
  %469 = vst [vmem:[#allocation3 + $0x10] sm:$0xff] %v453
  %470 = vst [vmem:[#allocation3 + $0x18] sm:$0xff] %v454
  %471 = vst [vmem:[#allocation3 + $0x20] sm:$0xff] %v455
  %472 = vst [vmem:[#allocation3 + $0x28] sm:$0xff] %v456
  %473 = vst [vmem:[#allocation3 + $0x30] sm:$0xff] %v457
  %474 = vst [vmem:[#allocation3 + $0x38] sm:$0xff] %v458
  %475 = vst [vmem:[#allocation3 + $0x40] sm:$0xff] %v459
  %476 = vst [vmem:[#allocation3 + $0x48] sm:$0xff] %v460
  %477 = vst [vmem:[#allocation3 + $0x50] sm:$0xff] %v461
  %478 = vst [vmem:[#allocation3 + $0x58] sm:$0xff] %v462
  %479 = vst [vmem:[#allocation3 + $0x60] sm:$0xff] %v463
  %480 = vst [vmem:[#allocation3 + $0x68] sm:$0xff] %v464
  %481 = vst [vmem:[#allocation3 + $0x70] sm:$0xff] %v465
  %482 = vst [vmem:[#allocation3 + $0x78] sm:$0xff] %v466
  // Predicated region
  $region14: #{_forward_impl.7} parent=0 // pred_check
    %p483 = pneg %p13
  $region15: #{_forward_impl.7} parent=0 // pred_check_branch
    %485 = sbr.rel (%p483) target = $region17
  $region16: #{_forward_impl.7} parent=0 // pred_region
    %v486 = vld [vmem:[#allocation2] sm:$0xff]
    %v487 = vld [vmem:[#allocation2 + $0x8] sm:$0xff]
    %v488 = vld [vmem:[#allocation2 + $0x10] sm:$0xff]
    %v489 = vld [vmem:[#allocation2 + $0x18] sm:$0xff]
    %v490 = vld [vmem:[#allocation2 + $0x20] sm:$0xff]
    %v491 = vld [vmem:[#allocation2 + $0x28] sm:$0xff]
    %v492 = vld [vmem:[#allocation2 + $0x30] sm:$0xff]
    %v493 = vld [vmem:[#allocation2 + $0x38] sm:$0xff]
    %v494 = vld [vmem:[#allocation2 + $0x40] sm:$0xff]
    %v495 = vld [vmem:[#allocation2 + $0x48] sm:$0xff]
    %v496 = vld [vmem:[#allocation2 + $0x50] sm:$0xff]
    %v497 = vld [vmem:[#allocation2 + $0x58] sm:$0xff]
    %v498 = vld [vmem:[#allocation2 + $0x60] sm:$0xff]
    %v499 = vld [vmem:[#allocation2 + $0x68] sm:$0xff]
    %v500 = vld [vmem:[#allocation2 + $0x70] sm:$0xff]
    %v501 = vld [vmem:[#allocation2 + $0x78] sm:$0xff]
    %502 = vst [vmem:[%s2] sm:$0xff] %v486
    %503 = vst [vmem:[%s2 + $0x8] sm:$0xff] %v487
    %504 = vst [vmem:[%s2 + $0x10] sm:$0xff] %v488
    %505 = vst [vmem:[%s2 + $0x18] sm:$0xff] %v489
    %506 = vst [vmem:[%s2 + $0x20] sm:$0xff] %v490
    %507 = vst [vmem:[%s2 + $0x28] sm:$0xff] %v491
    %508 = vst [vmem:[%s2 + $0x30] sm:$0xff] %v492
    %509 = vst [vmem:[%s2 + $0x38] sm:$0xff] %v493
    %510 = vst [vmem:[%s2 + $0x40] sm:$0xff] %v494
    %511 = vst [vmem:[%s2 + $0x48] sm:$0xff] %v495
    %512 = vst [vmem:[%s2 + $0x50] sm:$0xff] %v496
    %513 = vst [vmem:[%s2 + $0x58] sm:$0xff] %v497
    %514 = vst [vmem:[%s2 + $0x60] sm:$0xff] %v498
    %515 = vst [vmem:[%s2 + $0x68] sm:$0xff] %v499
    %516 = vst [vmem:[%s2 + $0x70] sm:$0xff] %v500
    %517 = vst [vmem:[%s2 + $0x78] sm:$0xff] %v501
    %v518 = vld [vmem:[#allocation3] sm:$0xff]
    %v519 = vld [vmem:[#allocation3 + $0x8] sm:$0xff]
    %v520 = vld [vmem:[#allocation3 + $0x10] sm:$0xff]
    %v521 = vld [vmem:[#allocation3 + $0x18] sm:$0xff]
    %v522 = vld [vmem:[#allocation3 + $0x20] sm:$0xff]
    %v523 = vld [vmem:[#allocation3 + $0x28] sm:$0xff]
    %v524 = vld [vmem:[#allocation3 + $0x30] sm:$0xff]
    %v525 = vld [vmem:[#allocation3 + $0x38] sm:$0xff]
    %v526 = vld [vmem:[#allocation3 + $0x40] sm:$0xff]
    %v527 = vld [vmem:[#allocation3 + $0x48] sm:$0xff]
    %v528 = vld [vmem:[#allocation3 + $0x50] sm:$0xff]
    %v529 = vld [vmem:[#allocation3 + $0x58] sm:$0xff]
    %v530 = vld [vmem:[#allocation3 + $0x60] sm:$0xff]
    %v531 = vld [vmem:[#allocation3 + $0x68] sm:$0xff]
    %v532 = vld [vmem:[#allocation3 + $0x70] sm:$0xff]
    %v533 = vld [vmem:[#allocation3 + $0x78] sm:$0xff]
    %534 = vst [vmem:[%s3] sm:$0xff] %v518
    %535 = vst [vmem:[%s3 + $0x8] sm:$0xff] %v519
    %536 = vst [vmem:[%s3 + $0x10] sm:$0xff] %v520
    %537 = vst [vmem:[%s3 + $0x18] sm:$0xff] %v521
    %538 = vst [vmem:[%s3 + $0x20] sm:$0xff] %v522
    %539 = vst [vmem:[%s3 + $0x28] sm:$0xff] %v523
    %540 = vst [vmem:[%s3 + $0x30] sm:$0xff] %v524
    %541 = vst [vmem:[%s3 + $0x38] sm:$0xff] %v525
    %542 = vst [vmem:[%s3 + $0x40] sm:$0xff] %v526
    %543 = vst [vmem:[%s3 + $0x48] sm:$0xff] %v527
    %544 = vst [vmem:[%s3 + $0x50] sm:$0xff] %v528
    %545 = vst [vmem:[%s3 + $0x58] sm:$0xff] %v529
    %546 = vst [vmem:[%s3 + $0x60] sm:$0xff] %v530
    %547 = vst [vmem:[%s3 + $0x68] sm:$0xff] %v531
    %548 = vst [vmem:[%s3 + $0x70] sm:$0xff] %v532
    %549 = vst [vmem:[%s3 + $0x78] sm:$0xff] %v533
  $region17: #{_forward_impl.7} parent=0 // pred_fallthru
    _
  // Predicated region
  $region18: #{_forward_impl.7} parent=0 // pred_check
    _
  $region19: #{_forward_impl.7} parent=0 // pred_check_branch
    %551 = sbr.rel (0) target = $region21
  $region20: #{_forward_impl.7} parent=0 // pred_region
    _
  $region21: #{_forward_impl.7} parent=0 // pred_fallthru
    _
  // Predicated region
  $region22: #{_forward_impl.7} parent=0 // pred_check
    _
  $region23: #{_forward_impl.7} parent=0 // pred_check_branch
    %553 = sbr.rel (0) target = $region25
  $region24: #{_forward_impl.7} parent=0 // pred_region
    _
  $region25: #{_forward_impl.7} parent=0 // pred_fallthru
    _
  // Predicated region
  $region26: #{_forward_impl.7} parent=0 // pred_check
    _
  $region27: #{_forward_impl.7} parent=0 // pred_check_branch
    %555 = sbr.rel (0) target = $region29
  $region28: #{_forward_impl.7} parent=0 // pred_region
    _
  $region29: #{_forward_impl.7} parent=0 // pred_fallthru
    _
  // Predicated region
  $region30: #{_forward_impl.7} parent=0 // pred_check
    _
  $region31: #{_forward_impl.7} parent=0 // pred_check_branch
    %557 = sbr.rel (0) target = $region33
  $region32: #{_forward_impl.7} parent=0 // pred_region
    _
  $region33: #{_forward_impl.7} parent=0 // pred_fallthru
    _

// kernel: _forward_impl.10
$region0: #{_forward_impl.10}
  #allocation0 [shape = 'u32[]', space=smem, size = 0x4, offset = 0x4, fixed_abs, tag = 'smem constant byte address 0x4 - core index']
  #allocation1 [shape = 'u32[144,128]{1,0:T(1,128)}', space=vmem, size = 0x12000, scoped, tag = 'internal scratch']
  #allocation2 [shape = 'f32[128,128]{1,0:T(8,128)}', space=vmem, size = 0x10000, scoped, tag = 'scratch operand']
  #allocation3 [shape = 'f32[128,1]{1,0:T(8,128)}', space=vmem, size = 0x10000, scoped, tag = 'scratch operand']
  %s0 = inlined_call_operand.vmem [shape: f32[256,128], index: 0, kind: input, shape index: {}]
  %s1 = inlined_call_operand.vmem [shape: f32[1,128], index: 1, kind: input, shape index: {}]
  %s2 = inlined_call_operand.vmem [shape: f32[1,128], index: 2, kind: input, shape index: {}]
  %s3 = inlined_call_operand.vmem [shape: f32[1,128], index: 3, kind: input, shape index: {}]
  %s4 = inlined_call_operand.vmem [shape: f32[128,128], index: 4, kind: input, shape index: {}]
  %s5 = inlined_call_operand.vmem [shape: f32[1,128], index: 5, kind: input, shape index: {}]
  %s6 = inlined_call_operand.vmem [shape: f32[256,1], index: 6, kind: input, shape index: {}]
  %s7 = inlined_call_operand.vmem [shape: f32[256,128], index: 7, kind: output, shape index: {0}]
  %s8 = inlined_call_operand.vmem [shape: f32[256,1], index: 8, kind: output, shape index: {1}]
  %9 = xla_tuple %s7, %s8
  %s10 = sld [smem:[#allocation0]]
  $region89: #{_forward_impl.10} parent=0
    _
  %s12 = ssub.s32 1, %s10
  %s13 = scalar_select 0, %s12, %s10
  loop: start=0, step=1, limit=4
  $region2: #{_forward_impl.10} parent=0 // loop_pre_header
    _
  $region3: #{_forward_impl.10} parent=0 // loop_header
    %s15 = sphi 0, %s19
    %p16 = scmp.ge.s32.totalorder %s15, 4
    %s22 = sphi 0, %s41
    %s23 = sphi 0, %s37
    %s24 = sphi 0, %s33
    %s25 = sphi 0, %s22
    %s26 = sphi 0, %s23
    %s27 = sphi 0, %s24
    %s28 = sphi 0, %s25
    %s29 = sphi 0, %s26
    %s30 = sphi 0, %s27
    %s46 = sphi 0, %s48
    %s49 = sphi 0, %s46
    %s50 = sphi 0, %s49
    %s66 = sphi 0, %s50
    %s72 = sphi 0, %s74
    %s75 = sphi 0, %s72
    %s76 = sphi 0, %s75
    %s92 = sphi 0, %s76
    %s98 = sphi 0, %s100
    %s101 = sphi 0, %s98
    %s102 = sphi 0, %s101
    %s118 = sphi 0, %s102
    %s124 = sphi 0, %s126
    %s127 = sphi 0, %s124
    %s128 = sphi 0, %s127
    %s144 = sphi 0, %s128
    %s152 = sphi 0, %s154
    %s155 = sphi 0, %s152
    %s156 = sphi 0, %s155
    %s172 = sphi 0, %s156
    %s178 = sphi 0, %s180
    %s181 = sphi 0, %s178
    %s182 = sphi 0, %s181
    %s198 = sphi 0, %s182
    %s204 = sphi 0, %s206
    %s207 = sphi 0, %s204
    %s208 = sphi 0, %s207
    %s224 = sphi 0, %s208
    %s232 = sphi 0, %s234
    %s235 = sphi 0, %s232
    %s236 = sphi 0, %s235
    %s252 = sphi 0, %s236
    %s258 = sphi 0, %s260
    %s261 = sphi 0, %s258
    %s262 = sphi 0, %s261
    %s278 = sphi 0, %s262
  $region4: #{_forward_impl.10} parent=0 // loop_header_branch
    %18 = sbr.rel (%p16) target = $region8
  $region5: #{_forward_impl.10} parent=0 // loop_body
    %s20 = ssub.s32 %s15, 1
    %s21 = ssub.s32 %s15, 2
    %s31 = sadd.s32 1, %s24
    %p32 = scmp.ge.s32.totalorder %s31, 1
    %s33 = scalar_select %p32, 0, %s31
    %s34 = sadd.s32 1, %s23
    %s35 = scalar_select %p32, %s34, %s23
    %p36 = scmp.ge.s32.totalorder %s35, 1
    %s37 = scalar_select %p36, 0, %s35
    %s38 = sadd.s32 1, %s22
    %s39 = scalar_select %p36, %s38, %s22
    %p40 = scmp.ge.s32.totalorder %s39, 2
    %s41 = scalar_select %p40, 0, %s39
    %s42 = ssub.s32 %s22, %s41
    %s43 = ssub.s32 %s24, %s33
    %s44 = sor.u32 %s42, %s43
    %p45 = scmp.eq.s32.totalorder %s44, 0
    %s47 = sadd.s32 %s46, 1
    %s48 = scalar_select %p45, %s46, %s47
    %p51 = pneg %p45
    %p52 = scmp.eq.s32.totalorder %s15, 1
    %p53 = por %p51, %p52
    %p54 = scmp.ne.s32.totalorder %s46, %s49
    %p55 = scmp.eq.s32.totalorder %s15, 0
    %p56 = por %p54, %p55
    %p57 = scmp.ne.s32.totalorder %s46, %s49
    %p58 = scmp.eq.s32.totalorder %s20, 1
    %p59 = por %p57, %p58
    %p60 = scmp.ne.s32.totalorder %s49, %s50
    %p61 = scmp.eq.s32.totalorder %s20, 0
    %p62 = por %p60, %p61
    %p63 = scmp.ne.s32.totalorder %s49, %s50
    %p64 = scmp.eq.s32.totalorder %s21, 1
    %p65 = por %p63, %p64
    %p67 = scmp.ne.s32.totalorder %s50, %s66
    %p68 = scmp.eq.s32.totalorder %s21, 0
    %p69 = por %p67, %p68
    %s70 = ssub.s32 %s24, %s33
    %p71 = scmp.eq.s32.totalorder %s70, 0
    %s73 = sadd.s32 %s72, 1
    %s74 = scalar_select %p71, %s72, %s73
    %p77 = pneg %p71
    %p78 = scmp.eq.s32.totalorder %s15, 1
    %p79 = por %p77, %p78
    %p80 = scmp.ne.s32.totalorder %s72, %s75
    %p81 = scmp.eq.s32.totalorder %s15, 0
    %p82 = por %p80, %p81
    %p83 = scmp.ne.s32.totalorder %s72, %s75
    %p84 = scmp.eq.s32.totalorder %s20, 1
    %p85 = por %p83, %p84
    %p86 = scmp.ne.s32.totalorder %s75, %s76
    %p87 = scmp.eq.s32.totalorder %s20, 0
    %p88 = por %p86, %p87
    %p89 = scmp.ne.s32.totalorder %s75, %s76
    %p90 = scmp.eq.s32.totalorder %s21, 1
    %p91 = por %p89, %p90
    %p93 = scmp.ne.s32.totalorder %s76, %s92
    %p94 = scmp.eq.s32.totalorder %s21, 0
    %p95 = por %p93, %p94
    %s96 = ssub.s32 %s24, %s33
    %p97 = scmp.eq.s32.totalorder %s96, 0
    %s99 = sadd.s32 %s98, 1
    %s100 = scalar_select %p97, %s98, %s99
    %p103 = pneg %p97
    %p104 = scmp.eq.s32.totalorder %s15, 1
    %p105 = por %p103, %p104
    %p106 = scmp.ne.s32.totalorder %s98, %s101
    %p107 = scmp.eq.s32.totalorder %s15, 0
    %p108 = por %p106, %p107
    %p109 = scmp.ne.s32.totalorder %s98, %s101
    %p110 = scmp.eq.s32.totalorder %s20, 1
    %p111 = por %p109, %p110
    %p112 = scmp.ne.s32.totalorder %s101, %s102
    %p113 = scmp.eq.s32.totalorder %s20, 0
    %p114 = por %p112, %p113
    %p115 = scmp.ne.s32.totalorder %s101, %s102
    %p116 = scmp.eq.s32.totalorder %s21, 1
    %p117 = por %p115, %p116
    %p119 = scmp.ne.s32.totalorder %s102, %s118
    %p120 = scmp.eq.s32.totalorder %s21, 0
    %p121 = por %p119, %p120
    %s122 = ssub.s32 %s24, %s33
    %p123 = scmp.eq.s32.totalorder %s122, 0
    %s125 = sadd.s32 %s124, 1
    %s126 = scalar_select %p123, %s124, %s125
    %p129 = pneg %p123
    %p130 = scmp.eq.s32.totalorder %s15, 1
    %p131 = por %p129, %p130
    %p132 = scmp.ne.s32.totalorder %s124, %s127
    %p133 = scmp.eq.s32.totalorder %s15, 0
    %p134 = por %p132, %p133
    %p135 = scmp.ne.s32.totalorder %s124, %s127
    %p136 = scmp.eq.s32.totalorder %s20, 1
    %p137 = por %p135, %p136
    %p138 = scmp.ne.s32.totalorder %s127, %s128
    %p139 = scmp.eq.s32.totalorder %s20, 0
    %p140 = por %p138, %p139
    %p141 = scmp.ne.s32.totalorder %s127, %s128
    %p142 = scmp.eq.s32.totalorder %s21, 1
    %p143 = por %p141, %p142
    %p145 = scmp.ne.s32.totalorder %s128, %s144
    %p146 = scmp.eq.s32.totalorder %s21, 0
    %p147 = por %p145, %p146
    %s148 = ssub.s32 %s24, %s33
    %s149 = ssub.s32 %s23, %s37
    %s150 = sor.u32 %s148, %s149
    %p151 = scmp.eq.s32.totalorder %s150, 0
    %s153 = sadd.s32 %s152, 1
    %s154 = scalar_select %p151, %s152, %s153
    %p157 = pneg %p151
    %p158 = scmp.eq.s32.totalorder %s15, 1
    %p159 = por %p157, %p158
    %p160 = scmp.ne.s32.totalorder %s152, %s155
    %p161 = scmp.eq.s32.totalorder %s15, 0
    %p162 = por %p160, %p161
    %p163 = scmp.ne.s32.totalorder %s152, %s155
    %p164 = scmp.eq.s32.totalorder %s20, 1
    %p165 = por %p163, %p164
    %p166 = scmp.ne.s32.totalorder %s155, %s156
    %p167 = scmp.eq.s32.totalorder %s20, 0
    %p168 = por %p166, %p167
    %p169 = scmp.ne.s32.totalorder %s155, %s156
    %p170 = scmp.eq.s32.totalorder %s21, 1
    %p171 = por %p169, %p170
    %p173 = scmp.ne.s32.totalorder %s156, %s172
    %p174 = scmp.eq.s32.totalorder %s21, 0
    %p175 = por %p173, %p174
    %s176 = ssub.s32 %s24, %s33
    %p177 = scmp.eq.s32.totalorder %s176, 0
    %s179 = sadd.s32 %s178, 1
    %s180 = scalar_select %p177, %s178, %s179
    %p183 = pneg %p177
    %p184 = scmp.eq.s32.totalorder %s15, 1
    %p185 = por %p183, %p184
    %p186 = scmp.ne.s32.totalorder %s178, %s181
    %p187 = scmp.eq.s32.totalorder %s15, 0
    %p188 = por %p186, %p187
    %p189 = scmp.ne.s32.totalorder %s178, %s181
    %p190 = scmp.eq.s32.totalorder %s20, 1
    %p191 = por %p189, %p190
    %p192 = scmp.ne.s32.totalorder %s181, %s182
    %p193 = scmp.eq.s32.totalorder %s20, 0
    %p194 = por %p192, %p193
    %p195 = scmp.ne.s32.totalorder %s181, %s182
    %p196 = scmp.eq.s32.totalorder %s21, 1
    %p197 = por %p195, %p196
    %p199 = scmp.ne.s32.totalorder %s182, %s198
    %p200 = scmp.eq.s32.totalorder %s21, 0
    %p201 = por %p199, %p200
    %s202 = ssub.s32 %s22, %s41
    %p203 = scmp.eq.s32.totalorder %s202, 0
    %s205 = sadd.s32 %s204, 1
    %s206 = scalar_select %p203, %s204, %s205
    %p209 = pneg %p203
    %p210 = scmp.eq.s32.totalorder %s15, 1
    %p211 = por %p209, %p210
    %p212 = scmp.ne.s32.totalorder %s204, %s207
    %p213 = scmp.eq.s32.totalorder %s15, 0
    %p214 = por %p212, %p213
    %p215 = scmp.ne.s32.totalorder %s204, %s207
    %p216 = scmp.eq.s32.totalorder %s20, 1
    %p217 = por %p215, %p216
    %p218 = scmp.ne.s32.totalorder %s207, %s208
    %p219 = scmp.eq.s32.totalorder %s20, 0
    %p220 = por %p218, %p219
    %p221 = scmp.ne.s32.totalorder %s207, %s208
    %p222 = scmp.eq.s32.totalorder %s21, 1
    %p223 = por %p221, %p222
    %p225 = scmp.ne.s32.totalorder %s208, %s224
    %p226 = scmp.eq.s32.totalorder %s21, 0
    %p227 = por %p225, %p226
    %s228 = ssub.s32 %s22, %s41
    %s229 = ssub.s32 %s23, %s37
    %s230 = sor.u32 %s228, %s229
    %p231 = scmp.eq.s32.totalorder %s230, 0
    %s233 = sadd.s32 %s232, 1
    %s234 = scalar_select %p231, %s232, %s233
    %p237 = pneg %p231
    %p238 = scmp.eq.s32.totalorder %s15, 1
    %p239 = por %p237, %p238
    %p240 = scmp.ne.s32.totalorder %s232, %s235
    %p241 = scmp.eq.s32.totalorder %s15, 0
    %p242 = por %p240, %p241
    %p243 = scmp.ne.s32.totalorder %s232, %s235
    %p244 = scmp.eq.s32.totalorder %s20, 1
    %p245 = por %p243, %p244
    %p246 = scmp.ne.s32.totalorder %s235, %s236
    %p247 = scmp.eq.s32.totalorder %s20, 0
    %p248 = por %p246, %p247
    %p249 = scmp.ne.s32.totalorder %s235, %s236
    %p250 = scmp.eq.s32.totalorder %s21, 1
    %p251 = por %p249, %p250
    %p253 = scmp.ne.s32.totalorder %s236, %s252
    %p254 = scmp.eq.s32.totalorder %s21, 0
    %p255 = por %p253, %p254
    %s256 = ssub.s32 %s22, %s41
    %p257 = scmp.eq.s32.totalorder %s256, 0
    %s259 = sadd.s32 %s258, 1
    %s260 = scalar_select %p257, %s258, %s259
    %p263 = pneg %p257
    %p264 = scmp.eq.s32.totalorder %s15, 1
    %p265 = por %p263, %p264
    %p266 = scmp.ne.s32.totalorder %s258, %s261
    %p267 = scmp.eq.s32.totalorder %s15, 0
    %p268 = por %p266, %p267
    %p269 = scmp.ne.s32.totalorder %s258, %s261
    %p270 = scmp.eq.s32.totalorder %s20, 1
    %p271 = por %p269, %p270
    %p272 = scmp.ne.s32.totalorder %s261, %s262
    %p273 = scmp.eq.s32.totalorder %s20, 0
    %p274 = por %p272, %p273
    %p275 = scmp.ne.s32.totalorder %s261, %s262
    %p276 = scmp.eq.s32.totalorder %s21, 1
    %p277 = por %p275, %p276
    %p279 = scmp.ne.s32.totalorder %s262, %s278
    %p280 = scmp.eq.s32.totalorder %s21, 0
    %p281 = por %p279, %p280
    %p282 = scmp.le.s32.totalorder 1, %s15
    %p283 = scmp.lt.s32.totalorder %s15, 3
    %p284 = pnand %p282, %p283
    %p285 = pneg %p284
    // Predicated region
    $region9: #{_forward_impl.10} parent=5 // pred_check
      _
    $region10: #{_forward_impl.10} parent=5 // pred_check_branch
      %287 = sbr.rel (%p284) target = $region12
    $region11: #{_forward_impl.10} parent=5 // pred_region
      %s288 = ssub.s32 %s15, 1
      // Predicated region
      $region13: #{_forward_impl.10} parent=11 // pred_check
        %p289 = pneg %p88
      $region14: #{_forward_impl.10} parent=11 // pred_check_branch
        %291 = sbr.rel (%p289) target = $region16
      $region15: #{_forward_impl.10} parent=11 // pred_region
        %p292 = scmp.lt.s32.totalorder %s27, 0
        %s293 = scalar_select %p292, %s27, 0
        %s294 = scalar_lea.vmem %s1, %s293
      $region16: #{_forward_impl.10} parent=11 // pred_fallthru
        _
      // Predicated region
      $region17: #{_forward_impl.10} parent=11 // pred_check
        %p295 = pneg %p114
      $region18: #{_forward_impl.10} parent=11 // pred_check_branch
        %297 = sbr.rel (%p295) target = $region20
      $region19: #{_forward_impl.10} parent=11 // pred_region
        %p298 = scmp.lt.s32.totalorder %s27, 0
        %s299 = scalar_select %p298, %s27, 0
        %s300 = scalar_lea.vmem %s2, %s299
      $region20: #{_forward_impl.10} parent=11 // pred_fallthru
        _
      // Predicated region
      $region21: #{_forward_impl.10} parent=11 // pred_check
        %p301 = pneg %p140
      $region22: #{_forward_impl.10} parent=11 // pred_check_branch
        %303 = sbr.rel (%p301) target = $region24
      $region23: #{_forward_impl.10} parent=11 // pred_region
        %p304 = scmp.lt.s32.totalorder %s27, 0
        %s305 = scalar_select %p304, %s27, 0
        %s306 = scalar_lea.vmem %s3, %s305
      $region24: #{_forward_impl.10} parent=11 // pred_fallthru
        _
      // Predicated region
      $region25: #{_forward_impl.10} parent=11 // pred_check
        %p307 = pneg %p168
      $region26: #{_forward_impl.10} parent=11 // pred_check_branch
        %309 = sbr.rel (%p307) target = $region28
      $region27: #{_forward_impl.10} parent=11 // pred_region
        %s310 = smul.u32 16, %s27
        %p311 = scmp.lt.s32.totalorder %s310, 15
        %s312 = scalar_select %p311, %s310, 15
        %p313 = scmp.lt.s32.totalorder %s26, 0
        %s314 = scalar_select %p313, %s26, 0
        %s315 = sadd.s32 %s314, %s312
        %s316 = smul.addr %s315, 8
        %s317 = scalar_lea.vmem %s4, %s316
        %s318 = smul.u32 16, %s27
      $region28: #{_forward_impl.10} parent=11 // pred_fallthru
        _
      // Predicated region
      $region29: #{_forward_impl.10} parent=11 // pred_check
        %p319 = pneg %p194
      $region30: #{_forward_impl.10} parent=11 // pred_check_branch
        %321 = sbr.rel (%p319) target = $region32
      $region31: #{_forward_impl.10} parent=11 // pred_region
        %p322 = scmp.lt.s32.totalorder %s27, 0
        %s323 = scalar_select %p322, %s27, 0
        %s324 = scalar_lea.vmem %s5, %s323
      $region32: #{_forward_impl.10} parent=11 // pred_fallthru
        _
    $region12: #{_forward_impl.10} parent=5 // pred_fallthru
      _
    %p325 = scmp.lt.s32.totalorder %s15, 2
    // Predicated region
    $region33: #{_forward_impl.10} parent=5 // pred_check
      %p326 = pneg %p325
    $region34: #{_forward_impl.10} parent=5 // pred_check_branch
      %328 = sbr.rel (%p326) target = $region36
    $region35: #{_forward_impl.10} parent=5 // pred_region
      // Predicated region
      $region37: #{_forward_impl.10} parent=35 // pred_check
        %p329 = pneg %p56
      $region38: #{_forward_impl.10} parent=35 // pred_check_branch
        %331 = sbr.rel (%p329) target = $region40
      $region39: #{_forward_impl.10} parent=35 // pred_region
        %s332 = smul.u32 16, %s22
        %p333 = scmp.lt.s32.totalorder %s332, 31
        %s334 = scalar_select %p333, %s332, 31
        %p335 = scmp.lt.s32.totalorder %s24, 0
        %s336 = scalar_select %p335, %s24, 0
        %s337 = sadd.s32 %s336, %s334
        %s338 = smul.addr %s337, 8
        %s339 = scalar_lea.vmem %s0, %s338
        %s340 = smul.u32 16, %s22
      $region40: #{_forward_impl.10} parent=35 // pred_fallthru
        _
      // Predicated region
      $region41: #{_forward_impl.10} parent=35 // pred_check
        %p341 = pneg %p214
      $region42: #{_forward_impl.10} parent=35 // pred_check_branch
        %343 = sbr.rel (%p341) target = $region44
      $region43: #{_forward_impl.10} parent=35 // pred_region
        %s344 = smul.u32 16, %s22
        %p345 = scmp.lt.s32.totalorder %s344, 31
        %s346 = scalar_select %p345, %s344, 31
        %s347 = smul.addr %s346, 8
        %s348 = scalar_lea.vmem %s6, %s347
        %s349 = smul.u32 16, %s22
      $region44: #{_forward_impl.10} parent=35 // pred_fallthru
        _
    $region36: #{_forward_impl.10} parent=5 // pred_fallthru
      _
    %p350 = scmp.le.s32.totalorder 1, %s15
    %p351 = scmp.lt.s32.totalorder %s15, 3
    %p352 = pnand %p350, %p351
    %p353 = pneg %p352
    // Predicated region
    $region45: #{_forward_impl.10} parent=5 // pred_check
      _
    $region46: #{_forward_impl.10} parent=5 // pred_check_branch
      %355 = sbr.rel (%p352) target = $region48
    $region47: #{_forward_impl.10} parent=5 // pred_region
      %s356 = ssub.s32 %s15, 1
      %s357 = smul.u32 16, %s25
      %p358 = scmp.lt.s32.totalorder %s357, 31
      %s359 = scalar_select %p358, %s357, 31
      %p360 = scmp.lt.s32.totalorder %s27, 0
      %s361 = scalar_select %p360, %s27, 0
      %s362 = sadd.s32 %s361, %s359
      %s363 = smul.addr %s362, 8
      %s364 = scalar_lea.vmem %s0, %s363
      %p365 = pneg %p62
      %p366 = pneg %p59
      %p367 = scmp.lt.s32.totalorder %s27, 0
      %s368 = scalar_select %p367, %s27, 0
      %s369 = scalar_lea.vmem %s1, %s368
      %p370 = pneg %p88
      %p371 = pneg %p85
      %p372 = scmp.lt.s32.totalorder %s27, 0
      %s373 = scalar_select %p372, %s27, 0
      %s374 = scalar_lea.vmem %s2, %s373
      %p375 = pneg %p114
      %p376 = pneg %p111
      %p377 = scmp.lt.s32.totalorder %s27, 0
      %s378 = scalar_select %p377, %s27, 0
      %s379 = scalar_lea.vmem %s3, %s378
      %p380 = pneg %p140
      %p381 = pneg %p137
      %s382 = smul.u32 16, %s27
      %p383 = scmp.lt.s32.totalorder %s382, 15
      %s384 = scalar_select %p383, %s382, 15
      %p385 = scmp.lt.s32.totalorder %s26, 0
      %s386 = scalar_select %p385, %s26, 0
      %s387 = sadd.s32 %s386, %s384
      %s388 = smul.addr %s387, 8
      %s389 = scalar_lea.vmem %s4, %s388
      %p390 = pneg %p168
      %p391 = pneg %p165
      %p392 = scmp.lt.s32.totalorder %s27, 0
      %s393 = scalar_select %p392, %s27, 0
      %s394 = scalar_lea.vmem %s5, %s393
      %p395 = pneg %p194
      %p396 = pneg %p191
      %s397 = smul.u32 16, %s25
      %p398 = scmp.lt.s32.totalorder %s397, 31
      %s399 = scalar_select %p398, %s397, 31
      %s400 = smul.addr %s399, 8
      %s401 = scalar_lea.vmem %s6, %s400
      %p402 = pneg %p220
      %p403 = pneg %p217
      %p404 = pneg %p248
      %p405 = pneg %p245
      %s406 = smul.u32 16, %s25
      %p407 = scmp.lt.s32.totalorder %s406, 31
      %s408 = scalar_select %p407, %s406, 31
      %p409 = scmp.lt.s32.totalorder %s26, 0
      %s410 = scalar_select %p409, %s26, 0
      %s411 = sadd.s32 %s410, %s408
      %s412 = smul.addr %s411, 8
      %s413 = scalar_lea.vmem %s7, %s412
      %p414 = pneg %p274
      %p415 = pneg %p271
      %s416 = smul.u32 16, %s25
      %p417 = scmp.lt.s32.totalorder %s416, 31
      %s418 = scalar_select %p417, %s416, 31
      %s419 = smul.addr %s418, 8
      %s420 = scalar_lea.vmem %s8, %s419
      %s421 = smul.u32 16, %s25
      %p422 = scmp.lt.s32.totalorder %s421, 31
      %s423 = scalar_select %p422, %s421, 31
      %p424 = scmp.lt.s32.totalorder %s27, 0
      %s425 = scalar_select %p424, %s27, 0
      %s426 = sadd.s32 %s425, %s423
      %s427 = smul.addr %s426, 8
      %s428 = scalar_lea.vmem %s0, %s427
      %s429 = smul.u32 16, %s25
      %p430 = scmp.lt.s32.totalorder %s27, 0
      %s431 = scalar_select %p430, %s27, 0
      %s432 = scalar_lea.vmem %s1, %s431
      %p433 = scmp.lt.s32.totalorder %s27, 0
      %s434 = scalar_select %p433, %s27, 0
      %s435 = scalar_lea.vmem %s2, %s434
      %p436 = scmp.lt.s32.totalorder %s27, 0
      %s437 = scalar_select %p436, %s27, 0
      %s438 = scalar_lea.vmem %s3, %s437
      %s439 = smul.u32 16, %s27
      %p440 = scmp.lt.s32.totalorder %s439, 15
      %s441 = scalar_select %p440, %s439, 15
      %p442 = scmp.lt.s32.totalorder %s26, 0
      %s443 = scalar_select %p442, %s26, 0
      %s444 = sadd.s32 %s443, %s441
      %s445 = smul.addr %s444, 8
      %s446 = scalar_lea.vmem %s4, %s445
      %s447 = smul.u32 16, %s27
      %p448 = scmp.lt.s32.totalorder %s27, 0
      %s449 = scalar_select %p448, %s27, 0
      %s450 = scalar_lea.vmem %s5, %s449
      %s451 = smul.u32 16, %s25
      %p452 = scmp.lt.s32.totalorder %s451, 31
      %s453 = scalar_select %p452, %s451, 31
      %s454 = smul.addr %s453, 8
      %s455 = scalar_lea.vmem %s6, %s454
      %s456 = smul.u32 16, %s25
      %s457 = smul.u32 16, %s25
      %p458 = scmp.lt.s32.totalorder %s457, 31
      %s459 = scalar_select %p458, %s457, 31
      %p460 = scmp.lt.s32.totalorder %s26, 0
      %s461 = scalar_select %p460, %s26, 0
      %s462 = sadd.s32 %s461, %s459
      %s463 = smul.addr %s462, 8
      %s464 = scalar_lea.vmem %s7, %s463
      %s465 = smul.u32 16, %s25
      %s466 = smul.u32 16, %s25
      %p467 = scmp.lt.s32.totalorder %s466, 31
      %s468 = scalar_select %p467, %s466, 31
      %s469 = smul.addr %s468, 8
      %s470 = scalar_lea.vmem %s8, %s469
      %s471 = smul.u32 16, %s25
      %p472 = scmp.eq.s32.totalorder %s26, 0
      %p473 = scmp.eq.s32.totalorder %s27, 0
      // Predicated region
      $region49: #{_forward_impl.10} parent=47 // pred_check
        %p474 = pneg %p473
      $region50: #{_forward_impl.10} parent=47 // pred_check_branch
        %476 = sbr.rel (%p474) target = $region52
      $region51: #{_forward_impl.10} parent=47 // pred_region
        %477 = vst [vmem:[#allocation2] sm:$0xff] 0.0
        %478 = vst [vmem:[#allocation2 + $0x8] sm:$0xff] 0.0
        %479 = vst [vmem:[#allocation2 + $0x10] sm:$0xff] 0.0
        %480 = vst [vmem:[#allocation2 + $0x18] sm:$0xff] 0.0
        %481 = vst [vmem:[#allocation2 + $0x20] sm:$0xff] 0.0
        %482 = vst [vmem:[#allocation2 + $0x28] sm:$0xff] 0.0
        %483 = vst [vmem:[#allocation2 + $0x30] sm:$0xff] 0.0
        %484 = vst [vmem:[#allocation2 + $0x38] sm:$0xff] 0.0
        %485 = vst [vmem:[#allocation2 + $0x40] sm:$0xff] 0.0
        %486 = vst [vmem:[#allocation2 + $0x48] sm:$0xff] 0.0
        %487 = vst [vmem:[#allocation2 + $0x50] sm:$0xff] 0.0
        %488 = vst [vmem:[#allocation2 + $0x58] sm:$0xff] 0.0
        %489 = vst [vmem:[#allocation2 + $0x60] sm:$0xff] 0.0
        %490 = vst [vmem:[#allocation2 + $0x68] sm:$0xff] 0.0
        %491 = vst [vmem:[#allocation2 + $0x70] sm:$0xff] 0.0
        %492 = vst [vmem:[#allocation2 + $0x78] sm:$0xff] 0.0
      $region52: #{_forward_impl.10} parent=47 // pred_fallthru
        _
      %p493 = scmp.ge.s32.totalorder %s25, 1
      %s494 = scalar_select %p493, 1.0, 0.0
      %v495 = vld [vmem:[%s428] sm:$0xff]
      %v496 = vld [vmem:[%s428 + $0x8] sm:$0xff]
      %v497 = vld [vmem:[%s428 + $0x10] sm:$0xff]
      %v498 = vld [vmem:[%s428 + $0x18] sm:$0xff]
      %v499 = vld [vmem:[%s428 + $0x20] sm:$0xff]
      %v500 = vld [vmem:[%s428 + $0x28] sm:$0xff]
      %v501 = vld [vmem:[%s428 + $0x30] sm:$0xff]
      %v502 = vld [vmem:[%s428 + $0x38] sm:$0xff]
      %v503 = vld [vmem:[%s428 + $0x40] sm:$0xff]
      %v504 = vld [vmem:[%s428 + $0x48] sm:$0xff]
      %v505 = vld [vmem:[%s428 + $0x50] sm:$0xff]
      %v506 = vld [vmem:[%s428 + $0x58] sm:$0xff]
      %v507 = vld [vmem:[%s428 + $0x60] sm:$0xff]
      %v508 = vld [vmem:[%s428 + $0x68] sm:$0xff]
      %v509 = vld [vmem:[%s428 + $0x70] sm:$0xff]
      %v510 = vld [vmem:[%s428 + $0x78] sm:$0xff]
      %v511 = vmax.f32 %v495, 0.0
      %v512 = vmax.f32 %v496, 0.0
      %v513 = vmax.f32 %v497, 0.0
      %v514 = vmax.f32 %v498, 0.0
      %v515 = vmax.f32 %v499, 0.0
      %v516 = vmax.f32 %v500, 0.0
      %v517 = vmax.f32 %v501, 0.0
      %v518 = vmax.f32 %v502, 0.0
      %v519 = vmax.f32 %v503, 0.0
      %v520 = vmax.f32 %v504, 0.0
      %v521 = vmax.f32 %v505, 0.0
      %v522 = vmax.f32 %v506, 0.0
      %v523 = vmax.f32 %v507, 0.0
      %v524 = vmax.f32 %v508, 0.0
      %v525 = vmax.f32 %v509, 0.0
      %v526 = vmax.f32 %v510, 0.0
      %v527 = vsub.f32 %v495, %v511
      %v528 = vsub.f32 %v496, %v512
      %v529 = vsub.f32 %v497, %v513
      %v530 = vsub.f32 %v498, %v514
      %v531 = vsub.f32 %v499, %v515
      %v532 = vsub.f32 %v500, %v516
      %v533 = vsub.f32 %v501, %v517
      %v534 = vsub.f32 %v502, %v518
      %v535 = vsub.f32 %v503, %v519
      %v536 = vsub.f32 %v504, %v520
      %v537 = vsub.f32 %v505, %v521
      %v538 = vsub.f32 %v506, %v522
      %v539 = vsub.f32 %v507, %v523
      %v540 = vsub.f32 %v508, %v524
      %v541 = vsub.f32 %v509, %v525
      %v542 = vsub.f32 %v510, %v526
      %v543 = vld [vmem:[%s432] sm:$0x1]
      %v544 = vld [vmem:[%s435] sm:$0x1]
      %v545 = vsub.f32 %v544, %v543
      %v546 = vstv %s494
      %v547 = vmul.f32 %v545, %v546
      %v548 = vadd.f32 %v543, %v547
      %v549 = vsub.f32 %v543, %v544
      %v550 = vmul.f32 %v549, %v546
      %v551 = vadd.f32 %v544, %v550
      %v553 = vlaneseq
      %v554 = vshrl.u32 %v553, 7
      %v555 = vsub.s32 0, %v554
      %v556 = vrot.slane %v548, %v555
      %v558 = vmul.f32 %v511, %v556
      %v559 = vmul.f32 %v512, %v556
      %v560 = vmul.f32 %v513, %v556
      %v561 = vmul.f32 %v514, %v556
      %v562 = vmul.f32 %v515, %v556
      %v563 = vmul.f32 %v516, %v556
      %v564 = vmul.f32 %v517, %v556
      %v565 = vmul.f32 %v518, %v556
      %v566 = vmul.f32 %v519, %v556
      %v567 = vmul.f32 %v520, %v556
      %v568 = vmul.f32 %v521, %v556
      %v569 = vmul.f32 %v522, %v556
      %v570 = vmul.f32 %v523, %v556
      %v571 = vmul.f32 %v524, %v556
      %v572 = vmul.f32 %v525, %v556
      %v573 = vmul.f32 %v526, %v556
      %v575 = vlaneseq
      %v576 = vshrl.u32 %v575, 7
      %v577 = vsub.s32 0, %v576
      %v578 = vrot.slane %v551, %v577
      %v580 = vmul.f32 %v527, %v578
      %v581 = vmul.f32 %v528, %v578
      %v582 = vmul.f32 %v529, %v578
      %v583 = vmul.f32 %v530, %v578
      %v584 = vmul.f32 %v531, %v578
      %v585 = vmul.f32 %v532, %v578
      %v586 = vmul.f32 %v533, %v578
      %v587 = vmul.f32 %v534, %v578
      %v588 = vmul.f32 %v535, %v578
      %v589 = vmul.f32 %v536, %v578
      %v590 = vmul.f32 %v537, %v578
      %v591 = vmul.f32 %v538, %v578
      %v592 = vmul.f32 %v539, %v578
      %v593 = vmul.f32 %v540, %v578
      %v594 = vmul.f32 %v541, %v578
      %v595 = vmul.f32 %v542, %v578
      %v596 = vadd.f32 %v558, %v580
      %v597 = vadd.f32 %v559, %v581
      %v598 = vadd.f32 %v560, %v582
      %v599 = vadd.f32 %v561, %v583
      %v600 = vadd.f32 %v562, %v584
      %v601 = vadd.f32 %v563, %v585
      %v602 = vadd.f32 %v564, %v586
      %v603 = vadd.f32 %v565, %v587
      %v604 = vadd.f32 %v566, %v588
      %v605 = vadd.f32 %v567, %v589
      %v606 = vadd.f32 %v568, %v590
      %v607 = vadd.f32 %v569, %v591
      %v608 = vadd.f32 %v570, %v592
      %v609 = vadd.f32 %v571, %v593
      %v610 = vadd.f32 %v572, %v594
      %v611 = vadd.f32 %v573, %v595
      %v612 = vld [vmem:[#allocation2] sm:$0xff]
      %v613 = vld [vmem:[#allocation2 + $0x8] sm:$0xff]
      %v614 = vld [vmem:[#allocation2 + $0x10] sm:$0xff]
      %v615 = vld [vmem:[#allocation2 + $0x18] sm:$0xff]
      %v616 = vld [vmem:[#allocation2 + $0x20] sm:$0xff]
      %v617 = vld [vmem:[#allocation2 + $0x28] sm:$0xff]
      %v618 = vld [vmem:[#allocation2 + $0x30] sm:$0xff]
      %v619 = vld [vmem:[#allocation2 + $0x38] sm:$0xff]
      %v620 = vld [vmem:[#allocation2 + $0x40] sm:$0xff]
      %v621 = vld [vmem:[#allocation2 + $0x48] sm:$0xff]
      %v622 = vld [vmem:[#allocation2 + $0x50] sm:$0xff]
      %v623 = vld [vmem:[#allocation2 + $0x58] sm:$0xff]
      %v624 = vld [vmem:[#allocation2 + $0x60] sm:$0xff]
      %v625 = vld [vmem:[#allocation2 + $0x68] sm:$0xff]
      %v626 = vld [vmem:[#allocation2 + $0x70] sm:$0xff]
      %v627 = vld [vmem:[#allocation2 + $0x78] sm:$0xff]
      %v628 = vld [vmem:[%s446] sm:$0xff]
      %v629 = vld [vmem:[%s446 + $0x8] sm:$0xff]
      %v630 = vld [vmem:[%s446 + $0x10] sm:$0xff]
      %v631 = vld [vmem:[%s446 + $0x18] sm:$0xff]
      %v632 = vld [vmem:[%s446 + $0x20] sm:$0xff]
      %v633 = vld [vmem:[%s446 + $0x28] sm:$0xff]
      %v634 = vld [vmem:[%s446 + $0x30] sm:$0xff]
      %v635 = vld [vmem:[%s446 + $0x38] sm:$0xff]
      %v636 = vld [vmem:[%s446 + $0x40] sm:$0xff]
      %v637 = vld [vmem:[%s446 + $0x48] sm:$0xff]
      %v638 = vld [vmem:[%s446 + $0x50] sm:$0xff]
      %v639 = vld [vmem:[%s446 + $0x58] sm:$0xff]
      %v640 = vld [vmem:[%s446 + $0x60] sm:$0xff]
      %v641 = vld [vmem:[%s446 + $0x68] sm:$0xff]
      %v642 = vld [vmem:[%s446 + $0x70] sm:$0xff]
      %v643 = vld [vmem:[%s446 + $0x78] sm:$0xff]
      %644 = vmatprep.subr.mxu0 0.0
      %645 = vmatpush1.msra.mxu0 %v628
      %646 = vmatprep.subr.mxu0 0.0
      %647 = vmatpush1.msra.mxu0 %v629
      %648 = vmatprep.subr.mxu0 0.0
      %649 = vmatpush1.msra.mxu0 %v630
      %650 = vmatprep.subr.mxu0 0.0
      %651 = vmatpush1.msra.mxu0 %v631
      %652 = vmatprep.subr.mxu0 0.0
      %653 = vmatpush1.msra.mxu0 %v632
      %654 = vmatprep.subr.mxu0 0.0
      %655 = vmatpush1.msra.mxu0 %v633
      %656 = vmatprep.subr.mxu0 0.0
      %657 = vmatpush1.msra.mxu0 %v634
      %658 = vmatprep.subr.mxu0 0.0
      %659 = vmatpush1.msra.mxu0 %v635
      %660 = vmatprep.subr.mxu0 0.0
      %661 = vmatpush1.msra.mxu0 %v636
      %662 = vmatprep.subr.mxu0 0.0
      %663 = vmatpush1.msra.mxu0 %v637
      %664 = vmatprep.subr.mxu0 0.0
      %665 = vmatpush1.msra.mxu0 %v638
      %666 = vmatprep.subr.mxu0 0.0
      %667 = vmatpush1.msra.mxu0 %v639
      %668 = vmatprep.subr.mxu0 0.0
      %669 = vmatpush1.msra.mxu0 %v640
      %670 = vmatprep.subr.mxu0 0.0
      %671 = vmatpush1.msra.mxu0 %v641
      %672 = vmatprep.subr.mxu0 0.0
      %673 = vmatpush1.msra.mxu0 %v642
      %674 = vmatprep.subr.mxu0 0.0
      %675 = vmatpush1.msra.mxu0 %v643
      %676 = vmatprep.subr.mxu0 0.0
      %677 = vmatpush1.msra.mxu0 0.0
      %678 = vmatprep.subr.mxu0 0.0
      %679 = vmatpush1.msra.mxu0 0.0
      %680 = vmatprep.subr.mxu0 0.0
      %681 = vmatpush1.msra.mxu0 0.0
      %682 = vmatprep.subr.mxu0 0.0
      %683 = vmatpush1.msra.mxu0 0.0
      %684 = vmatprep.subr.mxu0 0.0
      %685 = vmatpush1.msra.mxu0 0.0
      %686 = vmatprep.subr.mxu0 0.0
      %687 = vmatpush1.msra.mxu0 0.0
      %688 = vmatprep.subr.mxu0 0.0
      %689 = vmatpush1.msra.mxu0 0.0
      %690 = vmatprep.subr.mxu0 0.0
      %691 = vmatpush1.msra.mxu0 0.0
      %692 = vmatprep.subr.mxu0 0.0
      %693 = vmatpush1.msra.mxu0 0.0
      %694 = vmatprep.subr.mxu0 0.0
      %695 = vmatpush1.msra.mxu0 0.0
      %696 = vmatprep.subr.mxu0 0.0
      %697 = vmatpush1.msra.mxu0 0.0
      %698 = vmatprep.subr.mxu0 0.0
      %699 = vmatpush1.msra.mxu0 0.0
      %700 = vmatprep.subr.mxu0 0.0
      %701 = vmatpush1.msra.mxu0 0.0
      %702 = vmatprep.subr.mxu0 0.0
      %703 = vmatpush1.msra.mxu0 0.0
      %704 = vmatprep.subr.mxu0 0.0
      %705 = vmatpush1.msra.mxu0 0.0
      %706 = vmatprep.subr.mxu0 0.0
      %707 = vmatpush1.msra.mxu0 0.0
      %708 = vmatprep.mubr.f32.mxu0 0.0
      %709 = vmatmul.mubr.f32.gmra.mrb[0].mxu0 %v596
      %v710 = vpop.f32.mrb[0].mxu0
      %v711 = vadd.f32 0.0, %v710
      %v712 = vpop.f32.mrb[0].mxu0
      %713 = vmatprep.mubr.f32.mxu0 0.0
      %714 = vmatmul.mubr.f32.gmra.mrb[0].mxu0 %v597
      %v715 = vpop.f32.mrb[0].mxu0
      %v716 = vadd.f32 0.0, %v715
      %v717 = vpop.f32.mrb[0].mxu0
      %718 = vmatprep.mubr.f32.mxu0 0.0
      %719 = vmatmul.mubr.f32.gmra.mrb[0].mxu0 %v598
      %v720 = vpop.f32.mrb[0].mxu0
      %v721 = vadd.f32 0.0, %v720
      %v722 = vpop.f32.mrb[0].mxu0
      %723 = vmatprep.mubr.f32.mxu0 0.0
      %724 = vmatmul.mubr.f32.gmra.mrb[0].mxu0 %v599
      %v725 = vpop.f32.mrb[0].mxu0
      %v726 = vadd.f32 0.0, %v725
      %v727 = vpop.f32.mrb[0].mxu0
      %728 = vmatprep.mubr.f32.mxu0 0.0
      %729 = vmatmul.mubr.f32.gmra.mrb[0].mxu0 %v600
      %v730 = vpop.f32.mrb[0].mxu0
      %v731 = vadd.f32 0.0, %v730
      %v732 = vpop.f32.mrb[0].mxu0
      %733 = vmatprep.mubr.f32.mxu0 0.0
      %734 = vmatmul.mubr.f32.gmra.mrb[0].mxu0 %v601
      %v735 = vpop.f32.mrb[0].mxu0
      %v736 = vadd.f32 0.0, %v735
      %v737 = vpop.f32.mrb[0].mxu0
      %738 = vmatprep.mubr.f32.mxu0 0.0
      %739 = vmatmul.mubr.f32.gmra.mrb[0].mxu0 %v602
      %v740 = vpop.f32.mrb[0].mxu0
      %v741 = vadd.f32 0.0, %v740
      %v742 = vpop.f32.mrb[0].mxu0
      %743 = vmatprep.mubr.f32.mxu0 0.0
      %744 = vmatmul.mubr.f32.gmra.mrb[0].mxu0 %v603
      %v745 = vpop.f32.mrb[0].mxu0
      %v746 = vadd.f32 0.0, %v745
      %v747 = vpop.f32.mrb[0].mxu0
      %748 = vmatprep.mubr.f32.mxu0 0.0
      %749 = vmatmul.mubr.f32.gmra.mrb[0].mxu0 %v604
      %v750 = vpop.f32.mrb[0].mxu0
      %v751 = vadd.f32 0.0, %v750
      %v752 = vpop.f32.mrb[0].mxu0
      %753 = vmatprep.mubr.f32.mxu0 0.0
      %754 = vmatmul.mubr.f32.gmra.mrb[0].mxu0 %v605
      %v755 = vpop.f32.mrb[0].mxu0
      %v756 = vadd.f32 0.0, %v755
      %v757 = vpop.f32.mrb[0].mxu0
      %758 = vmatprep.mubr.f32.mxu0 0.0
      %759 = vmatmul.mubr.f32.gmra.mrb[0].mxu0 %v606
      %v760 = vpop.f32.mrb[0].mxu0
      %v761 = vadd.f32 0.0, %v760
      %v762 = vpop.f32.mrb[0].mxu0
      %763 = vmatprep.mubr.f32.mxu0 0.0
      %764 = vmatmul.mubr.f32.gmra.mrb[0].mxu0 %v607
      %v765 = vpop.f32.mrb[0].mxu0
      %v766 = vadd.f32 0.0, %v765
      %v767 = vpop.f32.mrb[0].mxu0
      %768 = vmatprep.mubr.f32.mxu0 0.0
      %769 = vmatmul.mubr.f32.gmra.mrb[0].mxu0 %v608
      %v770 = vpop.f32.mrb[0].mxu0
      %v771 = vadd.f32 0.0, %v770
      %v772 = vpop.f32.mrb[0].mxu0
      %773 = vmatprep.mubr.f32.mxu0 0.0
      %774 = vmatmul.mubr.f32.gmra.mrb[0].mxu0 %v609
      %v775 = vpop.f32.mrb[0].mxu0
      %v776 = vadd.f32 0.0, %v775
      %v777 = vpop.f32.mrb[0].mxu0
      %778 = vmatprep.mubr.f32.mxu0 0.0
      %779 = vmatmul.mubr.f32.gmra.mrb[0].mxu0 %v610
      %v780 = vpop.f32.mrb[0].mxu0
      %v781 = vadd.f32 0.0, %v780
      %v782 = vpop.f32.mrb[0].mxu0
      %783 = vmatprep.mubr.f32.mxu0 0.0
      %784 = vmatmul.mubr.f32.gmra.mrb[0].mxu0 %v611
      %v785 = vpop.f32.mrb[0].mxu0
      %v786 = vadd.f32 0.0, %v785
      %v787 = vpop.f32.mrb[0].mxu0
      %788 = vdwg.mxu0
      %v789 = vadd.f32 %v612, %v711
      %v790 = vadd.f32 %v613, %v716
      %v791 = vadd.f32 %v614, %v721
      %v792 = vadd.f32 %v615, %v726
      %v793 = vadd.f32 %v616, %v731
      %v794 = vadd.f32 %v617, %v736
      %v795 = vadd.f32 %v618, %v741
      %v796 = vadd.f32 %v619, %v746
      %v797 = vadd.f32 %v620, %v751
      %v798 = vadd.f32 %v621, %v756
      %v799 = vadd.f32 %v622, %v761
      %v800 = vadd.f32 %v623, %v766
      %v801 = vadd.f32 %v624, %v771
      %v802 = vadd.f32 %v625, %v776
      %v803 = vadd.f32 %v626, %v781
      %v804 = vadd.f32 %v627, %v786
      %805 = vst [vmem:[#allocation2] sm:$0xff] %v789
      %806 = vst [vmem:[#allocation2 + $0x8] sm:$0xff] %v790
      %807 = vst [vmem:[#allocation2 + $0x10] sm:$0xff] %v791
      %808 = vst [vmem:[#allocation2 + $0x18] sm:$0xff] %v792
      %809 = vst [vmem:[#allocation2 + $0x20] sm:$0xff] %v793
      %810 = vst [vmem:[#allocation2 + $0x28] sm:$0xff] %v794
      %811 = vst [vmem:[#allocation2 + $0x30] sm:$0xff] %v795
      %812 = vst [vmem:[#allocation2 + $0x38] sm:$0xff] %v796
      %813 = vst [vmem:[#allocation2 + $0x40] sm:$0xff] %v797
      %814 = vst [vmem:[#allocation2 + $0x48] sm:$0xff] %v798
      %815 = vst [vmem:[#allocation2 + $0x50] sm:$0xff] %v799
      %816 = vst [vmem:[#allocation2 + $0x58] sm:$0xff] %v800
      %817 = vst [vmem:[#allocation2 + $0x60] sm:$0xff] %v801
      %818 = vst [vmem:[#allocation2 + $0x68] sm:$0xff] %v802
      %819 = vst [vmem:[#allocation2 + $0x70] sm:$0xff] %v803
      %820 = vst [vmem:[#allocation2 + $0x78] sm:$0xff] %v804
      %p821 = pnand %p472, %p473
      %p822 = pneg %p821
      // Predicated region
      $region53: #{_forward_impl.10} parent=47 // pred_check
        _
      $region54: #{_forward_impl.10} parent=47 // pred_check_branch
        %824 = sbr.rel (%p821) target = $region56
      $region55: #{_forward_impl.10} parent=47 // pred_region
        %vm825 = vcmask 7168
        %826 = vst.msk [vmem:[#allocation3] sm:$0xff] %vm825, 0.0
        %827 = vst.msk [vmem:[#allocation3 + $0x8] sm:$0xff] %vm825, 0.0
        %828 = vst.msk [vmem:[#allocation3 + $0x10] sm:$0xff] %vm825, 0.0
        %829 = vst.msk [vmem:[#allocation3 + $0x18] sm:$0xff] %vm825, 0.0
        %830 = vst.msk [vmem:[#allocation3 + $0x20] sm:$0xff] %vm825, 0.0
        %831 = vst.msk [vmem:[#allocation3 + $0x28] sm:$0xff] %vm825, 0.0
        %832 = vst.msk [vmem:[#allocation3 + $0x30] sm:$0xff] %vm825, 0.0
        %833 = vst.msk [vmem:[#allocation3 + $0x38] sm:$0xff] %vm825, 0.0
        %834 = vst.msk [vmem:[#allocation3 + $0x40] sm:$0xff] %vm825, 0.0
        %835 = vst.msk [vmem:[#allocation3 + $0x48] sm:$0xff] %vm825, 0.0
        %836 = vst.msk [vmem:[#allocation3 + $0x50] sm:$0xff] %vm825, 0.0
        %837 = vst.msk [vmem:[#allocation3 + $0x58] sm:$0xff] %vm825, 0.0
        %838 = vst.msk [vmem:[#allocation3 + $0x60] sm:$0xff] %vm825, 0.0
        %839 = vst.msk [vmem:[#allocation3 + $0x68] sm:$0xff] %vm825, 0.0
        %840 = vst.msk [vmem:[#allocation3 + $0x70] sm:$0xff] %vm825, 0.0
        %841 = vst.msk [vmem:[#allocation3 + $0x78] sm:$0xff] %vm825, 0.0
      $region56: #{_forward_impl.10} parent=47 // pred_fallthru
        _
      // Predicated region
      $region57: #{_forward_impl.10} parent=47 // pred_check
        %p842 = pneg %p472
      $region58: #{_forward_impl.10} parent=47 // pred_check_branch
        %844 = sbr.rel (%p842) target = $region60
      $region59: #{_forward_impl.10} parent=47 // pred_region
        %v845 = vsub.f32 %v511, %v527
        %v846 = vsub.f32 %v512, %v528
        %v847 = vsub.f32 %v513, %v529
        %v848 = vsub.f32 %v514, %v530
        %v849 = vsub.f32 %v515, %v531
        %v850 = vsub.f32 %v516, %v532
        %v851 = vsub.f32 %v517, %v533
        %v852 = vsub.f32 %v518, %v534
        %v853 = vsub.f32 %v519, %v535
        %v854 = vsub.f32 %v520, %v536
        %v855 = vsub.f32 %v521, %v537
        %v856 = vsub.f32 %v522, %v538
        %v857 = vsub.f32 %v523, %v539
        %v858 = vsub.f32 %v524, %v540
        %v859 = vsub.f32 %v525, %v541
        %v860 = vsub.f32 %v526, %v542
        %v861 = vmul.f32 %v845, %v546
        %v862 = vmul.f32 %v846, %v546
        %v863 = vmul.f32 %v847, %v546
        %v864 = vmul.f32 %v848, %v546
        %v865 = vmul.f32 %v849, %v546
        %v866 = vmul.f32 %v850, %v546
        %v867 = vmul.f32 %v851, %v546
        %v868 = vmul.f32 %v852, %v546
        %v869 = vmul.f32 %v853, %v546
        %v870 = vmul.f32 %v854, %v546
        %v871 = vmul.f32 %v855, %v546
        %v872 = vmul.f32 %v856, %v546
        %v873 = vmul.f32 %v857, %v546
        %v874 = vmul.f32 %v858, %v546
        %v875 = vmul.f32 %v859, %v546
        %v876 = vmul.f32 %v860, %v546
        %v877 = vadd.f32 %v527, %v861
        %v878 = vadd.f32 %v528, %v862
        %v879 = vadd.f32 %v529, %v863
        %v880 = vadd.f32 %v530, %v864
        %v881 = vadd.f32 %v531, %v865
        %v882 = vadd.f32 %v532, %v866
        %v883 = vadd.f32 %v533, %v867
        %v884 = vadd.f32 %v534, %v868
        %v885 = vadd.f32 %v535, %v869
        %v886 = vadd.f32 %v536, %v870
        %v887 = vadd.f32 %v537, %v871
        %v888 = vadd.f32 %v538, %v872
        %v889 = vadd.f32 %v539, %v873
        %v890 = vadd.f32 %v540, %v874
        %v891 = vadd.f32 %v541, %v875
        %v892 = vadd.f32 %v542, %v876
        %v893 = vld [vmem:[#allocation3] sm:$0xff]
        %v894 = vld [vmem:[#allocation3 + $0x8] sm:$0xff]
        %v895 = vld [vmem:[#allocation3 + $0x10] sm:$0xff]
        %v896 = vld [vmem:[#allocation3 + $0x18] sm:$0xff]
        %v897 = vld [vmem:[#allocation3 + $0x20] sm:$0xff]
        %v898 = vld [vmem:[#allocation3 + $0x28] sm:$0xff]
        %v899 = vld [vmem:[#allocation3 + $0x30] sm:$0xff]
        %v900 = vld [vmem:[#allocation3 + $0x38] sm:$0xff]
        %v901 = vld [vmem:[#allocation3 + $0x40] sm:$0xff]
        %v902 = vld [vmem:[#allocation3 + $0x48] sm:$0xff]
        %v903 = vld [vmem:[#allocation3 + $0x50] sm:$0xff]
        %v904 = vld [vmem:[#allocation3 + $0x58] sm:$0xff]
        %v905 = vld [vmem:[#allocation3 + $0x60] sm:$0xff]
        %v906 = vld [vmem:[#allocation3 + $0x68] sm:$0xff]
        %v907 = vld [vmem:[#allocation3 + $0x70] sm:$0xff]
        %v908 = vld [vmem:[#allocation3 + $0x78] sm:$0xff]
        %v909 = vld [vmem:[%s450] sm:$0x1]
        %v911 = vlaneseq
        %v912 = vshrl.u32 %v911, 7
        %v913 = vsub.s32 0, %v912
        %v914 = vrot.slane %v909, %v913
        %v916 = vmul.f32 %v596, %v914
        %v917 = vmul.f32 %v597, %v914
        %v918 = vmul.f32 %v598, %v914
        %v919 = vmul.f32 %v599, %v914
        %v920 = vmul.f32 %v600, %v914
        %v921 = vmul.f32 %v601, %v914
        %v922 = vmul.f32 %v602, %v914
        %v923 = vmul.f32 %v603, %v914
        %v924 = vmul.f32 %v604, %v914
        %v925 = vmul.f32 %v605, %v914
        %v926 = vmul.f32 %v606, %v914
        %v927 = vmul.f32 %v607, %v914
        %v928 = vmul.f32 %v608, %v914
        %v929 = vmul.f32 %v609, %v914
        %v930 = vmul.f32 %v610, %v914
        %v931 = vmul.f32 %v611, %v914
        %v932 = vld [vmem:[%s438] sm:$0x1]
        %v934 = vlaneseq
        %v935 = vshrl.u32 %v934, 7
        %v936 = vsub.s32 0, %v935
        %v937 = vrot.slane %v932, %v936
        %v939 = vmul.f32 %v877, %v937
        %v940 = vmul.f32 %v878, %v937
        %v941 = vmul.f32 %v879, %v937
        %v942 = vmul.f32 %v880, %v937
        %v943 = vmul.f32 %v881, %v937
        %v944 = vmul.f32 %v882, %v937
        %v945 = vmul.f32 %v883, %v937
        %v946 = vmul.f32 %v884, %v937
        %v947 = vmul.f32 %v885, %v937
        %v948 = vmul.f32 %v886, %v937
        %v949 = vmul.f32 %v887, %v937
        %v950 = vmul.f32 %v888, %v937
        %v951 = vmul.f32 %v889, %v937
        %v952 = vmul.f32 %v890, %v937
        %v953 = vmul.f32 %v891, %v937
        %v954 = vmul.f32 %v892, %v937
        %v955 = vadd.f32 %v916, %v939
        %v956 = vadd.f32 %v917, %v940
        %v957 = vadd.f32 %v918, %v941
        %v958 = vadd.f32 %v919, %v942
        %v959 = vadd.f32 %v920, %v943
        %v960 = vadd.f32 %v921, %v944
        %v961 = vadd.f32 %v922, %v945
        %v962 = vadd.f32 %v923, %v946
        %v963 = vadd.f32 %v924, %v947
        %v964 = vadd.f32 %v925, %v948
        %v965 = vadd.f32 %v926, %v949
        %v966 = vadd.f32 %v927, %v950
        %v967 = vadd.f32 %v928, %v951
        %v968 = vadd.f32 %v929, %v952
        %v969 = vadd.f32 %v930, %v953
        %v970 = vadd.f32 %v931, %v954
        %971 = vadd.xlane.f32.xlu0 %v955
        %v972 = vpop.xlane.xlu0 %971
        %973 = vadd.xlane.f32.xlu0 %v956
        %v974 = vpop.xlane.xlu0 %973
        %975 = vadd.xlane.f32.xlu0 %v957
        %v976 = vpop.xlane.xlu0 %975
        %977 = vadd.xlane.f32.xlu0 %v958
        %v978 = vpop.xlane.xlu0 %977
        %979 = vadd.xlane.f32.xlu0 %v959
        %v980 = vpop.xlane.xlu0 %979
        %981 = vadd.xlane.f32.xlu0 %v960
        %v982 = vpop.xlane.xlu0 %981
        %983 = vadd.xlane.f32.xlu0 %v961
        %v984 = vpop.xlane.xlu0 %983
        %985 = vadd.xlane.f32.xlu0 %v962
        %v986 = vpop.xlane.xlu0 %985
        %987 = vadd.xlane.f32.xlu0 %v963
        %v988 = vpop.xlane.xlu0 %987
        %989 = vadd.xlane.f32.xlu0 %v964
        %v990 = vpop.xlane.xlu0 %989
        %991 = vadd.xlane.f32.xlu0 %v965
        %v992 = vpop.xlane.xlu0 %991
        %993 = vadd.xlane.f32.xlu0 %v966
        %v994 = vpop.xlane.xlu0 %993
        %995 = vadd.xlane.f32.xlu0 %v967
        %v996 = vpop.xlane.xlu0 %995
        %997 = vadd.xlane.f32.xlu0 %v968
        %v998 = vpop.xlane.xlu0 %997
        %999 = vadd.xlane.f32.xlu0 %v969
        %v1000 = vpop.xlane.xlu0 %999
        %1001 = vadd.xlane.f32.xlu0 %v970
        %v1002 = vpop.xlane.xlu0 %1001
        %v1003 = vadd.f32 %v893, %v972
        %v1004 = vadd.f32 %v894, %v974
        %v1005 = vadd.f32 %v895, %v976
        %v1006 = vadd.f32 %v896, %v978
        %v1007 = vadd.f32 %v897, %v980
        %v1008 = vadd.f32 %v898, %v982
        %v1009 = vadd.f32 %v899, %v984
        %v1010 = vadd.f32 %v900, %v986
        %v1011 = vadd.f32 %v901, %v988
        %v1012 = vadd.f32 %v902, %v990
        %v1013 = vadd.f32 %v903, %v992
        %v1014 = vadd.f32 %v904, %v994
        %v1015 = vadd.f32 %v905, %v996
        %v1016 = vadd.f32 %v906, %v998
        %v1017 = vadd.f32 %v907, %v1000
        %v1018 = vadd.f32 %v908, %v1002
        %vm1019 = vcmask 7168
        %1020 = vst.msk [vmem:[#allocation3] sm:$0xff] %vm1019, %v1003
        %1021 = vst.msk [vmem:[#allocation3 + $0x8] sm:$0xff] %vm1019, %v1004
        %1022 = vst.msk [vmem:[#allocation3 + $0x10] sm:$0xff] %vm1019, %v1005
        %1023 = vst.msk [vmem:[#allocation3 + $0x18] sm:$0xff] %vm1019, %v1006
        %1024 = vst.msk [vmem:[#allocation3 + $0x20] sm:$0xff] %vm1019, %v1007
        %1025 = vst.msk [vmem:[#allocation3 + $0x28] sm:$0xff] %vm1019, %v1008
        %1026 = vst.msk [vmem:[#allocation3 + $0x30] sm:$0xff] %vm1019, %v1009
        %1027 = vst.msk [vmem:[#allocation3 + $0x38] sm:$0xff] %vm1019, %v1010
        %1028 = vst.msk [vmem:[#allocation3 + $0x40] sm:$0xff] %vm1019, %v1011
        %1029 = vst.msk [vmem:[#allocation3 + $0x48] sm:$0xff] %vm1019, %v1012
        %1030 = vst.msk [vmem:[#allocation3 + $0x50] sm:$0xff] %vm1019, %v1013
        %1031 = vst.msk [vmem:[#allocation3 + $0x58] sm:$0xff] %vm1019, %v1014
        %1032 = vst.msk [vmem:[#allocation3 + $0x60] sm:$0xff] %vm1019, %v1015
        %1033 = vst.msk [vmem:[#allocation3 + $0x68] sm:$0xff] %vm1019, %v1016
        %1034 = vst.msk [vmem:[#allocation3 + $0x70] sm:$0xff] %vm1019, %v1017
        %1035 = vst.msk [vmem:[#allocation3 + $0x78] sm:$0xff] %vm1019, %v1018
      $region60: #{_forward_impl.10} parent=47 // pred_fallthru
        _
      // Predicated region
      $region61: #{_forward_impl.10} parent=47 // pred_check
        %p1036 = pneg %p473
      $region62: #{_forward_impl.10} parent=47 // pred_check_branch
        %1038 = sbr.rel (%p1036) target = $region64
      $region63: #{_forward_impl.10} parent=47 // pred_region
        %v1039 = vld [vmem:[#allocation2] sm:$0xff]
        %v1040 = vld [vmem:[#allocation2 + $0x8] sm:$0xff]
        %v1041 = vld [vmem:[#allocation2 + $0x10] sm:$0xff]
        %v1042 = vld [vmem:[#allocation2 + $0x18] sm:$0xff]
        %v1043 = vld [vmem:[#allocation2 + $0x20] sm:$0xff]
        %v1044 = vld [vmem:[#allocation2 + $0x28] sm:$0xff]
        %v1045 = vld [vmem:[#allocation2 + $0x30] sm:$0xff]
        %v1046 = vld [vmem:[#allocation2 + $0x38] sm:$0xff]
        %v1047 = vld [vmem:[#allocation2 + $0x40] sm:$0xff]
        %v1048 = vld [vmem:[#allocation2 + $0x48] sm:$0xff]
        %v1049 = vld [vmem:[#allocation2 + $0x50] sm:$0xff]
        %v1050 = vld [vmem:[#allocation2 + $0x58] sm:$0xff]
        %v1051 = vld [vmem:[#allocation2 + $0x60] sm:$0xff]
        %v1052 = vld [vmem:[#allocation2 + $0x68] sm:$0xff]
        %v1053 = vld [vmem:[#allocation2 + $0x70] sm:$0xff]
        %v1054 = vld [vmem:[#allocation2 + $0x78] sm:$0xff]
        %1055 = vst [vmem:[%s464] sm:$0xff] %v1039
        %1056 = vst [vmem:[%s464 + $0x8] sm:$0xff] %v1040
        %1057 = vst [vmem:[%s464 + $0x10] sm:$0xff] %v1041
        %1058 = vst [vmem:[%s464 + $0x18] sm:$0xff] %v1042
        %1059 = vst [vmem:[%s464 + $0x20] sm:$0xff] %v1043
        %1060 = vst [vmem:[%s464 + $0x28] sm:$0xff] %v1044
        %1061 = vst [vmem:[%s464 + $0x30] sm:$0xff] %v1045
        %1062 = vst [vmem:[%s464 + $0x38] sm:$0xff] %v1046
        %1063 = vst [vmem:[%s464 + $0x40] sm:$0xff] %v1047
        %1064 = vst [vmem:[%s464 + $0x48] sm:$0xff] %v1048
        %1065 = vst [vmem:[%s464 + $0x50] sm:$0xff] %v1049
        %1066 = vst [vmem:[%s464 + $0x58] sm:$0xff] %v1050
        %1067 = vst [vmem:[%s464 + $0x60] sm:$0xff] %v1051
        %1068 = vst [vmem:[%s464 + $0x68] sm:$0xff] %v1052
        %1069 = vst [vmem:[%s464 + $0x70] sm:$0xff] %v1053
        %1070 = vst [vmem:[%s464 + $0x78] sm:$0xff] %v1054
      $region64: #{_forward_impl.10} parent=47 // pred_fallthru
        _
      // Predicated region
      $region65: #{_forward_impl.10} parent=47 // pred_check
        _
      $region66: #{_forward_impl.10} parent=47 // pred_check_branch
        %1072 = sbr.rel (%p821) target = $region68
      $region67: #{_forward_impl.10} parent=47 // pred_region
        %v1073 = vld [vmem:[#allocation3] sm:$0xff]
        %v1074 = vld [vmem:[#allocation3 + $0x8] sm:$0xff]
        %v1075 = vld [vmem:[#allocation3 + $0x10] sm:$0xff]
        %v1076 = vld [vmem:[#allocation3 + $0x18] sm:$0xff]
        %v1077 = vld [vmem:[#allocation3 + $0x20] sm:$0xff]
        %v1078 = vld [vmem:[#allocation3 + $0x28] sm:$0xff]
        %v1079 = vld [vmem:[#allocation3 + $0x30] sm:$0xff]
        %v1080 = vld [vmem:[#allocation3 + $0x38] sm:$0xff]
        %v1081 = vld [vmem:[#allocation3 + $0x40] sm:$0xff]
        %v1082 = vld [vmem:[#allocation3 + $0x48] sm:$0xff]
        %v1083 = vld [vmem:[#allocation3 + $0x50] sm:$0xff]
        %v1084 = vld [vmem:[#allocation3 + $0x58] sm:$0xff]
        %v1085 = vld [vmem:[#allocation3 + $0x60] sm:$0xff]
        %v1086 = vld [vmem:[#allocation3 + $0x68] sm:$0xff]
        %v1087 = vld [vmem:[#allocation3 + $0x70] sm:$0xff]
        %v1088 = vld [vmem:[#allocation3 + $0x78] sm:$0xff]
        %v1089 = vld [vmem:[%s455] sm:$0xff]
        %v1090 = vld [vmem:[%s455 + $0x8] sm:$0xff]
        %v1091 = vld [vmem:[%s455 + $0x10] sm:$0xff]
        %v1092 = vld [vmem:[%s455 + $0x18] sm:$0xff]
        %v1093 = vld [vmem:[%s455 + $0x20] sm:$0xff]
        %v1094 = vld [vmem:[%s455 + $0x28] sm:$0xff]
        %v1095 = vld [vmem:[%s455 + $0x30] sm:$0xff]
        %v1096 = vld [vmem:[%s455 + $0x38] sm:$0xff]
        %v1097 = vld [vmem:[%s455 + $0x40] sm:$0xff]
        %v1098 = vld [vmem:[%s455 + $0x48] sm:$0xff]
        %v1099 = vld [vmem:[%s455 + $0x50] sm:$0xff]
        %v1100 = vld [vmem:[%s455 + $0x58] sm:$0xff]
        %v1101 = vld [vmem:[%s455 + $0x60] sm:$0xff]
        %v1102 = vld [vmem:[%s455 + $0x68] sm:$0xff]
        %v1103 = vld [vmem:[%s455 + $0x70] sm:$0xff]
        %v1104 = vld [vmem:[%s455 + $0x78] sm:$0xff]
        %v1105 = vadd.f32 %v1073, %v1089
        %v1106 = vadd.f32 %v1074, %v1090
        %v1107 = vadd.f32 %v1075, %v1091
        %v1108 = vadd.f32 %v1076, %v1092
        %v1109 = vadd.f32 %v1077, %v1093
        %v1110 = vadd.f32 %v1078, %v1094
        %v1111 = vadd.f32 %v1079, %v1095
        %v1112 = vadd.f32 %v1080, %v1096
        %v1113 = vadd.f32 %v1081, %v1097
        %v1114 = vadd.f32 %v1082, %v1098
        %v1115 = vadd.f32 %v1083, %v1099
        %v1116 = vadd.f32 %v1084, %v1100
        %v1117 = vadd.f32 %v1085, %v1101
        %v1118 = vadd.f32 %v1086, %v1102
        %v1119 = vadd.f32 %v1087, %v1103
        %v1120 = vadd.f32 %v1088, %v1104
        %vm1121 = vcmask 7168
        %1122 = vst.msk [vmem:[%s470] sm:$0xff] %vm1121, %v1105
        %1123 = vst.msk [vmem:[%s470 + $0x8] sm:$0xff] %vm1121, %v1106
        %1124 = vst.msk [vmem:[%s470 + $0x10] sm:$0xff] %vm1121, %v1107
        %1125 = vst.msk [vmem:[%s470 + $0x18] sm:$0xff] %vm1121, %v1108
        %1126 = vst.msk [vmem:[%s470 + $0x20] sm:$0xff] %vm1121, %v1109
        %1127 = vst.msk [vmem:[%s470 + $0x28] sm:$0xff] %vm1121, %v1110
        %1128 = vst.msk [vmem:[%s470 + $0x30] sm:$0xff] %vm1121, %v1111
        %1129 = vst.msk [vmem:[%s470 + $0x38] sm:$0xff] %vm1121, %v1112
        %1130 = vst.msk [vmem:[%s470 + $0x40] sm:$0xff] %vm1121, %v1113
        %1131 = vst.msk [vmem:[%s470 + $0x48] sm:$0xff] %vm1121, %v1114
        %1132 = vst.msk [vmem:[%s470 + $0x50] sm:$0xff] %vm1121, %v1115
        %1133 = vst.msk [vmem:[%s470 + $0x58] sm:$0xff] %vm1121, %v1116
        %1134 = vst.msk [vmem:[%s470 + $0x60] sm:$0xff] %vm1121, %v1117
        %1135 = vst.msk [vmem:[%s470 + $0x68] sm:$0xff] %vm1121, %v1118
        %1136 = vst.msk [vmem:[%s470 + $0x70] sm:$0xff] %vm1121, %v1119
        %1137 = vst.msk [vmem:[%s470 + $0x78] sm:$0xff] %vm1121, %v1120
      $region68: #{_forward_impl.10} parent=47 // pred_fallthru
        _
      %s1138 = smul.u32 16, %s25
      %p1139 = scmp.lt.s32.totalorder %s1138, 31
      %s1140 = scalar_select %p1139, %s1138, 31
      %p1141 = scmp.lt.s32.totalorder %s26, 0
      %s1142 = scalar_select %p1141, %s26, 0
      %s1143 = sadd.s32 %s1142, %s1140
      %s1144 = smul.addr %s1143, 8
      %s1145 = scalar_lea.vmem %s7, %s1144
      %s1146 = smul.u32 16, %s25
      %p1147 = scmp.lt.s32.totalorder %s1146, 31
      %s1148 = scalar_select %p1147, %s1146, 31
      %s1149 = smul.addr %s1148, 8
      %s1150 = scalar_lea.vmem %s8, %s1149
      // Predicated region
      $region69: #{_forward_impl.10} parent=47 // pred_check
        %p1151 = pneg %p245
      $region70: #{_forward_impl.10} parent=47 // pred_check_branch
        %1153 = sbr.rel (%p1151) target = $region72
      $region71: #{_forward_impl.10} parent=47 // pred_region
        %s1154 = smul.u32 16, %s25
      $region72: #{_forward_impl.10} parent=47 // pred_fallthru
        _
      // Predicated region
      $region73: #{_forward_impl.10} parent=47 // pred_check
        %p1155 = pneg %p271
      $region74: #{_forward_impl.10} parent=47 // pred_check_branch
        %1157 = sbr.rel (%p1155) target = $region76
      $region75: #{_forward_impl.10} parent=47 // pred_region
        %s1158 = smul.u32 16, %s25
      $region76: #{_forward_impl.10} parent=47 // pred_fallthru
        _
    $region48: #{_forward_impl.10} parent=5 // pred_fallthru
      _
    %p1159 = scmp.le.s32.totalorder 2, %s15
    // Predicated region
    $region77: #{_forward_impl.10} parent=5 // pred_check
      %p1160 = pneg %p1159
    $region78: #{_forward_impl.10} parent=5 // pred_check_branch
      %1162 = sbr.rel (%p1160) target = $region80
    $region79: #{_forward_impl.10} parent=5 // pred_region
      %s1163 = ssub.s32 %s15, 2
      // Predicated region
      $region81: #{_forward_impl.10} parent=79 // pred_check
        %p1164 = pneg %p251
      $region82: #{_forward_impl.10} parent=79 // pred_check_branch
        %1166 = sbr.rel (%p1164) target = $region84
      $region83: #{_forward_impl.10} parent=79 // pred_region
        %s1167 = smul.u32 16, %s28
        %p1168 = scmp.lt.s32.totalorder %s1167, 31
        %s1169 = scalar_select %p1168, %s1167, 31
        %p1170 = scmp.lt.s32.totalorder %s29, 0
        %s1171 = scalar_select %p1170, %s29, 0
        %s1172 = sadd.s32 %s1171, %s1169
        %s1173 = smul.addr %s1172, 8
        %s1174 = scalar_lea.vmem %s7, %s1173
      $region84: #{_forward_impl.10} parent=79 // pred_fallthru
        _
      // Predicated region
      $region85: #{_forward_impl.10} parent=79 // pred_check
        %p1175 = pneg %p277
      $region86: #{_forward_impl.10} parent=79 // pred_check_branch
        %1177 = sbr.rel (%p1175) target = $region88
      $region87: #{_forward_impl.10} parent=79 // pred_region
        %s1178 = smul.u32 16, %s28
        %p1179 = scmp.lt.s32.totalorder %s1178, 31
        %s1180 = scalar_select %p1179, %s1178, 31
        %s1181 = smul.addr %s1180, 8
        %s1182 = scalar_lea.vmem %s8, %s1181
      $region88: #{_forward_impl.10} parent=79 // pred_fallthru
        _
    $region80: #{_forward_impl.10} parent=5 // pred_fallthru
      _
  $region6: #{_forward_impl.10} parent=0 // loop_footer
    %s19 = sadd.s32 1, %s15
  $region7: #{_forward_impl.10} parent=0 // loop_footer_branch
    %14 = sbr.rel target = $region3
  $region8: #{_forward_impl.10} parent=0 // loop_exit
    _

// kernel: _forward_impl.11
$region0: #{_forward_impl.11}
  #allocation0 [shape = 'u32[]', space=smem, size = 0x4, offset = 0x4, fixed_abs, tag = 'smem constant byte address 0x4 - core index']
  #allocation1 [shape = 'u32[144,128]{1,0:T(1,128)}', space=vmem, size = 0x12000, scoped, tag = 'internal scratch']
  #allocation2 [shape = 'f32[128,128]{1,0:T(8,128)}', space=vmem, size = 0x10000, scoped, tag = 'scratch operand']
  #allocation3 [shape = 'f32[128,1]{1,0:T(8,128)}', space=vmem, size = 0x10000, scoped, tag = 'scratch operand']
  %s0 = inlined_call_operand.vmem [shape: f32[256,128], index: 0, kind: input, shape index: {}]
  %s1 = inlined_call_operand.vmem [shape: f32[128,128], index: 1, kind: input, shape index: {}]
  %s2 = inlined_call_operand.vmem [shape: f32[1,128], index: 2, kind: input, shape index: {}]
  %s3 = inlined_call_operand.vmem [shape: f32[256,1], index: 3, kind: input, shape index: {}]
  %s4 = inlined_call_operand.vmem [shape: f32[256,128], index: 4, kind: output, shape index: {0}]
  %s5 = inlined_call_operand.vmem [shape: f32[256,1], index: 5, kind: output, shape index: {1}]
  %6 = xla_tuple %s4, %s5
  %s7 = sld [smem:[#allocation0]]
  $region77: #{_forward_impl.11} parent=0
    _
  %s9 = ssub.s32 1, %s7
  %s10 = scalar_select 0, %s9, %s7
  loop: start=0, step=1, limit=4
  $region2: #{_forward_impl.11} parent=0 // loop_pre_header
    _
  $region3: #{_forward_impl.11} parent=0 // loop_header
    %s12 = sphi 0, %s16
    %p13 = scmp.ge.s32.totalorder %s12, 4
    %s19 = sphi 0, %s38
    %s20 = sphi 0, %s34
    %s21 = sphi 0, %s30
    %s22 = sphi 0, %s19
    %s23 = sphi 0, %s20
    %s24 = sphi 0, %s21
    %s25 = sphi 0, %s22
    %s26 = sphi 0, %s23
    %s27 = sphi 0, %s24
    %s43 = sphi 0, %s45
    %s46 = sphi 0, %s43
    %s47 = sphi 0, %s46
    %s63 = sphi 0, %s47
    %s71 = sphi 0, %s73
    %s74 = sphi 0, %s71
    %s75 = sphi 0, %s74
    %s91 = sphi 0, %s75
    %s97 = sphi 0, %s99
    %s100 = sphi 0, %s97
    %s101 = sphi 0, %s100
    %s117 = sphi 0, %s101
    %s123 = sphi 0, %s125
    %s126 = sphi 0, %s123
    %s127 = sphi 0, %s126
    %s143 = sphi 0, %s127
    %s151 = sphi 0, %s153
    %s154 = sphi 0, %s151
    %s155 = sphi 0, %s154
    %s171 = sphi 0, %s155
    %s177 = sphi 0, %s179
    %s180 = sphi 0, %s177
    %s181 = sphi 0, %s180
    %s197 = sphi 0, %s181
  $region4: #{_forward_impl.11} parent=0 // loop_header_branch
    %15 = sbr.rel (%p13) target = $region8
  $region5: #{_forward_impl.11} parent=0 // loop_body
    %s17 = ssub.s32 %s12, 1
    %s18 = ssub.s32 %s12, 2
    %s28 = sadd.s32 1, %s21
    %p29 = scmp.ge.s32.totalorder %s28, 1
    %s30 = scalar_select %p29, 0, %s28
    %s31 = sadd.s32 1, %s20
    %s32 = scalar_select %p29, %s31, %s20
    %p33 = scmp.ge.s32.totalorder %s32, 1
    %s34 = scalar_select %p33, 0, %s32
    %s35 = sadd.s32 1, %s19
    %s36 = scalar_select %p33, %s35, %s19
    %p37 = scmp.ge.s32.totalorder %s36, 2
    %s38 = scalar_select %p37, 0, %s36
    %s39 = ssub.s32 %s19, %s38
    %s40 = ssub.s32 %s21, %s30
    %s41 = sor.u32 %s39, %s40
    %p42 = scmp.eq.s32.totalorder %s41, 0
    %s44 = sadd.s32 %s43, 1
    %s45 = scalar_select %p42, %s43, %s44
    %p48 = pneg %p42
    %p49 = scmp.eq.s32.totalorder %s12, 1
    %p50 = por %p48, %p49
    %p51 = scmp.ne.s32.totalorder %s43, %s46
    %p52 = scmp.eq.s32.totalorder %s12, 0
    %p53 = por %p51, %p52
    %p54 = scmp.ne.s32.totalorder %s43, %s46
    %p55 = scmp.eq.s32.totalorder %s17, 1
    %p56 = por %p54, %p55
    %p57 = scmp.ne.s32.totalorder %s46, %s47
    %p58 = scmp.eq.s32.totalorder %s17, 0
    %p59 = por %p57, %p58
    %p60 = scmp.ne.s32.totalorder %s46, %s47
    %p61 = scmp.eq.s32.totalorder %s18, 1
    %p62 = por %p60, %p61
    %p64 = scmp.ne.s32.totalorder %s47, %s63
    %p65 = scmp.eq.s32.totalorder %s18, 0
    %p66 = por %p64, %p65
    %s67 = ssub.s32 %s21, %s30
    %s68 = ssub.s32 %s20, %s34
    %s69 = sor.u32 %s67, %s68
    %p70 = scmp.eq.s32.totalorder %s69, 0
    %s72 = sadd.s32 %s71, 1
    %s73 = scalar_select %p70, %s71, %s72
    %p76 = pneg %p70
    %p77 = scmp.eq.s32.totalorder %s12, 1
    %p78 = por %p76, %p77
    %p79 = scmp.ne.s32.totalorder %s71, %s74
    %p80 = scmp.eq.s32.totalorder %s12, 0
    %p81 = por %p79, %p80
    %p82 = scmp.ne.s32.totalorder %s71, %s74
    %p83 = scmp.eq.s32.totalorder %s17, 1
    %p84 = por %p82, %p83
    %p85 = scmp.ne.s32.totalorder %s74, %s75
    %p86 = scmp.eq.s32.totalorder %s17, 0
    %p87 = por %p85, %p86
    %p88 = scmp.ne.s32.totalorder %s74, %s75
    %p89 = scmp.eq.s32.totalorder %s18, 1
    %p90 = por %p88, %p89
    %p92 = scmp.ne.s32.totalorder %s75, %s91
    %p93 = scmp.eq.s32.totalorder %s18, 0
    %p94 = por %p92, %p93
    %s95 = ssub.s32 %s21, %s30
    %p96 = scmp.eq.s32.totalorder %s95, 0
    %s98 = sadd.s32 %s97, 1
    %s99 = scalar_select %p96, %s97, %s98
    %p102 = pneg %p96
    %p103 = scmp.eq.s32.totalorder %s12, 1
    %p104 = por %p102, %p103
    %p105 = scmp.ne.s32.totalorder %s97, %s100
    %p106 = scmp.eq.s32.totalorder %s12, 0
    %p107 = por %p105, %p106
    %p108 = scmp.ne.s32.totalorder %s97, %s100
    %p109 = scmp.eq.s32.totalorder %s17, 1
    %p110 = por %p108, %p109
    %p111 = scmp.ne.s32.totalorder %s100, %s101
    %p112 = scmp.eq.s32.totalorder %s17, 0
    %p113 = por %p111, %p112
    %p114 = scmp.ne.s32.totalorder %s100, %s101
    %p115 = scmp.eq.s32.totalorder %s18, 1
    %p116 = por %p114, %p115
    %p118 = scmp.ne.s32.totalorder %s101, %s117
    %p119 = scmp.eq.s32.totalorder %s18, 0
    %p120 = por %p118, %p119
    %s121 = ssub.s32 %s19, %s38
    %p122 = scmp.eq.s32.totalorder %s121, 0
    %s124 = sadd.s32 %s123, 1
    %s125 = scalar_select %p122, %s123, %s124
    %p128 = pneg %p122
    %p129 = scmp.eq.s32.totalorder %s12, 1
    %p130 = por %p128, %p129
    %p131 = scmp.ne.s32.totalorder %s123, %s126
    %p132 = scmp.eq.s32.totalorder %s12, 0
    %p133 = por %p131, %p132
    %p134 = scmp.ne.s32.totalorder %s123, %s126
    %p135 = scmp.eq.s32.totalorder %s17, 1
    %p136 = por %p134, %p135
    %p137 = scmp.ne.s32.totalorder %s126, %s127
    %p138 = scmp.eq.s32.totalorder %s17, 0
    %p139 = por %p137, %p138
    %p140 = scmp.ne.s32.totalorder %s126, %s127
    %p141 = scmp.eq.s32.totalorder %s18, 1
    %p142 = por %p140, %p141
    %p144 = scmp.ne.s32.totalorder %s127, %s143
    %p145 = scmp.eq.s32.totalorder %s18, 0
    %p146 = por %p144, %p145
    %s147 = ssub.s32 %s19, %s38
    %s148 = ssub.s32 %s20, %s34
    %s149 = sor.u32 %s147, %s148
    %p150 = scmp.eq.s32.totalorder %s149, 0
    %s152 = sadd.s32 %s151, 1
    %s153 = scalar_select %p150, %s151, %s152
    %p156 = pneg %p150
    %p157 = scmp.eq.s32.totalorder %s12, 1
    %p158 = por %p156, %p157
    %p159 = scmp.ne.s32.totalorder %s151, %s154
    %p160 = scmp.eq.s32.totalorder %s12, 0
    %p161 = por %p159, %p160
    %p162 = scmp.ne.s32.totalorder %s151, %s154
    %p163 = scmp.eq.s32.totalorder %s17, 1
    %p164 = por %p162, %p163
    %p165 = scmp.ne.s32.totalorder %s154, %s155
    %p166 = scmp.eq.s32.totalorder %s17, 0
    %p167 = por %p165, %p166
    %p168 = scmp.ne.s32.totalorder %s154, %s155
    %p169 = scmp.eq.s32.totalorder %s18, 1
    %p170 = por %p168, %p169
    %p172 = scmp.ne.s32.totalorder %s155, %s171
    %p173 = scmp.eq.s32.totalorder %s18, 0
    %p174 = por %p172, %p173
    %s175 = ssub.s32 %s19, %s38
    %p176 = scmp.eq.s32.totalorder %s175, 0
    %s178 = sadd.s32 %s177, 1
    %s179 = scalar_select %p176, %s177, %s178
    %p182 = pneg %p176
    %p183 = scmp.eq.s32.totalorder %s12, 1
    %p184 = por %p182, %p183
    %p185 = scmp.ne.s32.totalorder %s177, %s180
    %p186 = scmp.eq.s32.totalorder %s12, 0
    %p187 = por %p185, %p186
    %p188 = scmp.ne.s32.totalorder %s177, %s180
    %p189 = scmp.eq.s32.totalorder %s17, 1
    %p190 = por %p188, %p189
    %p191 = scmp.ne.s32.totalorder %s180, %s181
    %p192 = scmp.eq.s32.totalorder %s17, 0
    %p193 = por %p191, %p192
    %p194 = scmp.ne.s32.totalorder %s180, %s181
    %p195 = scmp.eq.s32.totalorder %s18, 1
    %p196 = por %p194, %p195
    %p198 = scmp.ne.s32.totalorder %s181, %s197
    %p199 = scmp.eq.s32.totalorder %s18, 0
    %p200 = por %p198, %p199
    %p201 = scmp.le.s32.totalorder 1, %s12
    %p202 = scmp.lt.s32.totalorder %s12, 3
    %p203 = pnand %p201, %p202
    %p204 = pneg %p203
    // Predicated region
    $region9: #{_forward_impl.11} parent=5 // pred_check
      _
    $region10: #{_forward_impl.11} parent=5 // pred_check_branch
      %206 = sbr.rel (%p203) target = $region12
    $region11: #{_forward_impl.11} parent=5 // pred_region
      %s207 = ssub.s32 %s12, 1
      // Predicated region
      $region13: #{_forward_impl.11} parent=11 // pred_check
        %p208 = pneg %p87
      $region14: #{_forward_impl.11} parent=11 // pred_check_branch
        %210 = sbr.rel (%p208) target = $region16
      $region15: #{_forward_impl.11} parent=11 // pred_region
        %s211 = smul.u32 16, %s24
        %p212 = scmp.lt.s32.totalorder %s211, 15
        %s213 = scalar_select %p212, %s211, 15
        %p214 = scmp.lt.s32.totalorder %s23, 0
        %s215 = scalar_select %p214, %s23, 0
        %s216 = sadd.s32 %s215, %s213
        %s217 = smul.addr %s216, 8
        %s218 = scalar_lea.vmem %s1, %s217
        %s219 = smul.u32 16, %s24
      $region16: #{_forward_impl.11} parent=11 // pred_fallthru
        _
      // Predicated region
      $region17: #{_forward_impl.11} parent=11 // pred_check
        %p220 = pneg %p113
      $region18: #{_forward_impl.11} parent=11 // pred_check_branch
        %222 = sbr.rel (%p220) target = $region20
      $region19: #{_forward_impl.11} parent=11 // pred_region
        %p223 = scmp.lt.s32.totalorder %s24, 0
        %s224 = scalar_select %p223, %s24, 0
        %s225 = scalar_lea.vmem %s2, %s224
      $region20: #{_forward_impl.11} parent=11 // pred_fallthru
        _
    $region12: #{_forward_impl.11} parent=5 // pred_fallthru
      _
    %p226 = scmp.lt.s32.totalorder %s12, 2
    // Predicated region
    $region21: #{_forward_impl.11} parent=5 // pred_check
      %p227 = pneg %p226
    $region22: #{_forward_impl.11} parent=5 // pred_check_branch
      %229 = sbr.rel (%p227) target = $region24
    $region23: #{_forward_impl.11} parent=5 // pred_region
      // Predicated region
      $region25: #{_forward_impl.11} parent=23 // pred_check
        %p230 = pneg %p53
      $region26: #{_forward_impl.11} parent=23 // pred_check_branch
        %232 = sbr.rel (%p230) target = $region28
      $region27: #{_forward_impl.11} parent=23 // pred_region
        %s233 = smul.u32 16, %s19
        %p234 = scmp.lt.s32.totalorder %s233, 31
        %s235 = scalar_select %p234, %s233, 31
        %p236 = scmp.lt.s32.totalorder %s21, 0
        %s237 = scalar_select %p236, %s21, 0
        %s238 = sadd.s32 %s237, %s235
        %s239 = smul.addr %s238, 8
        %s240 = scalar_lea.vmem %s0, %s239
        %s241 = smul.u32 16, %s19
      $region28: #{_forward_impl.11} parent=23 // pred_fallthru
        _
      // Predicated region
      $region29: #{_forward_impl.11} parent=23 // pred_check
        %p242 = pneg %p133
      $region30: #{_forward_impl.11} parent=23 // pred_check_branch
        %244 = sbr.rel (%p242) target = $region32
      $region31: #{_forward_impl.11} parent=23 // pred_region
        %s245 = smul.u32 16, %s19
        %p246 = scmp.lt.s32.totalorder %s245, 31
        %s247 = scalar_select %p246, %s245, 31
        %s248 = smul.addr %s247, 8
        %s249 = scalar_lea.vmem %s3, %s248
        %s250 = smul.u32 16, %s19
      $region32: #{_forward_impl.11} parent=23 // pred_fallthru
        _
    $region24: #{_forward_impl.11} parent=5 // pred_fallthru
      _
    %p251 = scmp.le.s32.totalorder 1, %s12
    %p252 = scmp.lt.s32.totalorder %s12, 3
    %p253 = pnand %p251, %p252
    %p254 = pneg %p253
    // Predicated region
    $region33: #{_forward_impl.11} parent=5 // pred_check
      _
    $region34: #{_forward_impl.11} parent=5 // pred_check_branch
      %256 = sbr.rel (%p253) target = $region36
    $region35: #{_forward_impl.11} parent=5 // pred_region
      %s257 = ssub.s32 %s12, 1
      %s258 = smul.u32 16, %s22
      %p259 = scmp.lt.s32.totalorder %s258, 31
      %s260 = scalar_select %p259, %s258, 31
      %p261 = scmp.lt.s32.totalorder %s24, 0
      %s262 = scalar_select %p261, %s24, 0
      %s263 = sadd.s32 %s262, %s260
      %s264 = smul.addr %s263, 8
      %s265 = scalar_lea.vmem %s0, %s264
      %p266 = pneg %p59
      %p267 = pneg %p56
      %s268 = smul.u32 16, %s24
      %p269 = scmp.lt.s32.totalorder %s268, 15
      %s270 = scalar_select %p269, %s268, 15
      %p271 = scmp.lt.s32.totalorder %s23, 0
      %s272 = scalar_select %p271, %s23, 0
      %s273 = sadd.s32 %s272, %s270
      %s274 = smul.addr %s273, 8
      %s275 = scalar_lea.vmem %s1, %s274
      %p276 = pneg %p87
      %p277 = pneg %p84
      %p278 = scmp.lt.s32.totalorder %s24, 0
      %s279 = scalar_select %p278, %s24, 0
      %s280 = scalar_lea.vmem %s2, %s279
      %p281 = pneg %p113
      %p282 = pneg %p110
      %s283 = smul.u32 16, %s22
      %p284 = scmp.lt.s32.totalorder %s283, 31
      %s285 = scalar_select %p284, %s283, 31
      %s286 = smul.addr %s285, 8
      %s287 = scalar_lea.vmem %s3, %s286
      %p288 = pneg %p139
      %p289 = pneg %p136
      %p290 = pneg %p167
      %p291 = pneg %p164
      %s292 = smul.u32 16, %s22
      %p293 = scmp.lt.s32.totalorder %s292, 31
      %s294 = scalar_select %p293, %s292, 31
      %p295 = scmp.lt.s32.totalorder %s23, 0
      %s296 = scalar_select %p295, %s23, 0
      %s297 = sadd.s32 %s296, %s294
      %s298 = smul.addr %s297, 8
      %s299 = scalar_lea.vmem %s4, %s298
      %p300 = pneg %p193
      %p301 = pneg %p190
      %s302 = smul.u32 16, %s22
      %p303 = scmp.lt.s32.totalorder %s302, 31
      %s304 = scalar_select %p303, %s302, 31
      %s305 = smul.addr %s304, 8
      %s306 = scalar_lea.vmem %s5, %s305
      %s307 = smul.u32 16, %s22
      %p308 = scmp.lt.s32.totalorder %s307, 31
      %s309 = scalar_select %p308, %s307, 31
      %p310 = scmp.lt.s32.totalorder %s24, 0
      %s311 = scalar_select %p310, %s24, 0
      %s312 = sadd.s32 %s311, %s309
      %s313 = smul.addr %s312, 8
      %s314 = scalar_lea.vmem %s0, %s313
      %s315 = smul.u32 16, %s22
      %s316 = smul.u32 16, %s24
      %p317 = scmp.lt.s32.totalorder %s316, 15
      %s318 = scalar_select %p317, %s316, 15
      %p319 = scmp.lt.s32.totalorder %s23, 0
      %s320 = scalar_select %p319, %s23, 0
      %s321 = sadd.s32 %s320, %s318
      %s322 = smul.addr %s321, 8
      %s323 = scalar_lea.vmem %s1, %s322
      %s324 = smul.u32 16, %s24
      %p325 = scmp.lt.s32.totalorder %s24, 0
      %s326 = scalar_select %p325, %s24, 0
      %s327 = scalar_lea.vmem %s2, %s326
      %s328 = smul.u32 16, %s22
      %p329 = scmp.lt.s32.totalorder %s328, 31
      %s330 = scalar_select %p329, %s328, 31
      %s331 = smul.addr %s330, 8
      %s332 = scalar_lea.vmem %s3, %s331
      %s333 = smul.u32 16, %s22
      %s334 = smul.u32 16, %s22
      %p335 = scmp.lt.s32.totalorder %s334, 31
      %s336 = scalar_select %p335, %s334, 31
      %p337 = scmp.lt.s32.totalorder %s23, 0
      %s338 = scalar_select %p337, %s23, 0
      %s339 = sadd.s32 %s338, %s336
      %s340 = smul.addr %s339, 8
      %s341 = scalar_lea.vmem %s4, %s340
      %s342 = smul.u32 16, %s22
      %s343 = smul.u32 16, %s22
      %p344 = scmp.lt.s32.totalorder %s343, 31
      %s345 = scalar_select %p344, %s343, 31
      %s346 = smul.addr %s345, 8
      %s347 = scalar_lea.vmem %s5, %s346
      %s348 = smul.u32 16, %s22
      %p349 = scmp.eq.s32.totalorder %s23, 0
      %p350 = scmp.eq.s32.totalorder %s24, 0
      // Predicated region
      $region37: #{_forward_impl.11} parent=35 // pred_check
        %p351 = pneg %p350
      $region38: #{_forward_impl.11} parent=35 // pred_check_branch
        %353 = sbr.rel (%p351) target = $region40
      $region39: #{_forward_impl.11} parent=35 // pred_region
        %354 = vst [vmem:[#allocation2] sm:$0xff] 0.0
        %355 = vst [vmem:[#allocation2 + $0x8] sm:$0xff] 0.0
        %356 = vst [vmem:[#allocation2 + $0x10] sm:$0xff] 0.0
        %357 = vst [vmem:[#allocation2 + $0x18] sm:$0xff] 0.0
        %358 = vst [vmem:[#allocation2 + $0x20] sm:$0xff] 0.0
        %359 = vst [vmem:[#allocation2 + $0x28] sm:$0xff] 0.0
        %360 = vst [vmem:[#allocation2 + $0x30] sm:$0xff] 0.0
        %361 = vst [vmem:[#allocation2 + $0x38] sm:$0xff] 0.0
        %362 = vst [vmem:[#allocation2 + $0x40] sm:$0xff] 0.0
        %363 = vst [vmem:[#allocation2 + $0x48] sm:$0xff] 0.0
        %364 = vst [vmem:[#allocation2 + $0x50] sm:$0xff] 0.0
        %365 = vst [vmem:[#allocation2 + $0x58] sm:$0xff] 0.0
        %366 = vst [vmem:[#allocation2 + $0x60] sm:$0xff] 0.0
        %367 = vst [vmem:[#allocation2 + $0x68] sm:$0xff] 0.0
        %368 = vst [vmem:[#allocation2 + $0x70] sm:$0xff] 0.0
        %369 = vst [vmem:[#allocation2 + $0x78] sm:$0xff] 0.0
      $region40: #{_forward_impl.11} parent=35 // pred_fallthru
        _
      %v370 = vld [vmem:[%s314] sm:$0xff]
      %v371 = vld [vmem:[%s314 + $0x8] sm:$0xff]
      %v372 = vld [vmem:[%s314 + $0x10] sm:$0xff]
      %v373 = vld [vmem:[%s314 + $0x18] sm:$0xff]
      %v374 = vld [vmem:[%s314 + $0x20] sm:$0xff]
      %v375 = vld [vmem:[%s314 + $0x28] sm:$0xff]
      %v376 = vld [vmem:[%s314 + $0x30] sm:$0xff]
      %v377 = vld [vmem:[%s314 + $0x38] sm:$0xff]
      %v378 = vld [vmem:[%s314 + $0x40] sm:$0xff]
      %v379 = vld [vmem:[%s314 + $0x48] sm:$0xff]
      %v380 = vld [vmem:[%s314 + $0x50] sm:$0xff]
      %v381 = vld [vmem:[%s314 + $0x58] sm:$0xff]
      %v382 = vld [vmem:[%s314 + $0x60] sm:$0xff]
      %v383 = vld [vmem:[%s314 + $0x68] sm:$0xff]
      %v384 = vld [vmem:[%s314 + $0x70] sm:$0xff]
      %v385 = vld [vmem:[%s314 + $0x78] sm:$0xff]
      %v386 = vld [vmem:[#allocation2] sm:$0xff]
      %v387 = vld [vmem:[#allocation2 + $0x8] sm:$0xff]
      %v388 = vld [vmem:[#allocation2 + $0x10] sm:$0xff]
      %v389 = vld [vmem:[#allocation2 + $0x18] sm:$0xff]
      %v390 = vld [vmem:[#allocation2 + $0x20] sm:$0xff]
      %v391 = vld [vmem:[#allocation2 + $0x28] sm:$0xff]
      %v392 = vld [vmem:[#allocation2 + $0x30] sm:$0xff]
      %v393 = vld [vmem:[#allocation2 + $0x38] sm:$0xff]
      %v394 = vld [vmem:[#allocation2 + $0x40] sm:$0xff]
      %v395 = vld [vmem:[#allocation2 + $0x48] sm:$0xff]
      %v396 = vld [vmem:[#allocation2 + $0x50] sm:$0xff]
      %v397 = vld [vmem:[#allocation2 + $0x58] sm:$0xff]
      %v398 = vld [vmem:[#allocation2 + $0x60] sm:$0xff]
      %v399 = vld [vmem:[#allocation2 + $0x68] sm:$0xff]
      %v400 = vld [vmem:[#allocation2 + $0x70] sm:$0xff]
      %v401 = vld [vmem:[#allocation2 + $0x78] sm:$0xff]
      %v402 = vld [vmem:[%s323] sm:$0xff]
      %v403 = vld [vmem:[%s323 + $0x8] sm:$0xff]
      %v404 = vld [vmem:[%s323 + $0x10] sm:$0xff]
      %v405 = vld [vmem:[%s323 + $0x18] sm:$0xff]
      %v406 = vld [vmem:[%s323 + $0x20] sm:$0xff]
      %v407 = vld [vmem:[%s323 + $0x28] sm:$0xff]
      %v408 = vld [vmem:[%s323 + $0x30] sm:$0xff]
      %v409 = vld [vmem:[%s323 + $0x38] sm:$0xff]
      %v410 = vld [vmem:[%s323 + $0x40] sm:$0xff]
      %v411 = vld [vmem:[%s323 + $0x48] sm:$0xff]
      %v412 = vld [vmem:[%s323 + $0x50] sm:$0xff]
      %v413 = vld [vmem:[%s323 + $0x58] sm:$0xff]
      %v414 = vld [vmem:[%s323 + $0x60] sm:$0xff]
      %v415 = vld [vmem:[%s323 + $0x68] sm:$0xff]
      %v416 = vld [vmem:[%s323 + $0x70] sm:$0xff]
      %v417 = vld [vmem:[%s323 + $0x78] sm:$0xff]
      %418 = vmatprep.subr.mxu0 0.0
      %419 = vmatpush1.msra.mxu0 %v402
      %420 = vmatprep.subr.mxu0 0.0
      %421 = vmatpush1.msra.mxu0 %v403
      %422 = vmatprep.subr.mxu0 0.0
      %423 = vmatpush1.msra.mxu0 %v404
      %424 = vmatprep.subr.mxu0 0.0
      %425 = vmatpush1.msra.mxu0 %v405
      %426 = vmatprep.subr.mxu0 0.0
      %427 = vmatpush1.msra.mxu0 %v406
      %428 = vmatprep.subr.mxu0 0.0
      %429 = vmatpush1.msra.mxu0 %v407
      %430 = vmatprep.subr.mxu0 0.0
      %431 = vmatpush1.msra.mxu0 %v408
      %432 = vmatprep.subr.mxu0 0.0
      %433 = vmatpush1.msra.mxu0 %v409
      %434 = vmatprep.subr.mxu0 0.0
      %435 = vmatpush1.msra.mxu0 %v410
      %436 = vmatprep.subr.mxu0 0.0
      %437 = vmatpush1.msra.mxu0 %v411
      %438 = vmatprep.subr.mxu0 0.0
      %439 = vmatpush1.msra.mxu0 %v412
      %440 = vmatprep.subr.mxu0 0.0
      %441 = vmatpush1.msra.mxu0 %v413
      %442 = vmatprep.subr.mxu0 0.0
      %443 = vmatpush1.msra.mxu0 %v414
      %444 = vmatprep.subr.mxu0 0.0
      %445 = vmatpush1.msra.mxu0 %v415
      %446 = vmatprep.subr.mxu0 0.0
      %447 = vmatpush1.msra.mxu0 %v416
      %448 = vmatprep.subr.mxu0 0.0
      %449 = vmatpush1.msra.mxu0 %v417
      %450 = vmatprep.subr.mxu0 0.0
      %451 = vmatpush1.msra.mxu0 0.0
      %452 = vmatprep.subr.mxu0 0.0
      %453 = vmatpush1.msra.mxu0 0.0
      %454 = vmatprep.subr.mxu0 0.0
      %455 = vmatpush1.msra.mxu0 0.0
      %456 = vmatprep.subr.mxu0 0.0
      %457 = vmatpush1.msra.mxu0 0.0
      %458 = vmatprep.subr.mxu0 0.0
      %459 = vmatpush1.msra.mxu0 0.0
      %460 = vmatprep.subr.mxu0 0.0
      %461 = vmatpush1.msra.mxu0 0.0
      %462 = vmatprep.subr.mxu0 0.0
      %463 = vmatpush1.msra.mxu0 0.0
      %464 = vmatprep.subr.mxu0 0.0
      %465 = vmatpush1.msra.mxu0 0.0
      %466 = vmatprep.subr.mxu0 0.0
      %467 = vmatpush1.msra.mxu0 0.0
      %468 = vmatprep.subr.mxu0 0.0
      %469 = vmatpush1.msra.mxu0 0.0
      %470 = vmatprep.subr.mxu0 0.0
      %471 = vmatpush1.msra.mxu0 0.0
      %472 = vmatprep.subr.mxu0 0.0
      %473 = vmatpush1.msra.mxu0 0.0
      %474 = vmatprep.subr.mxu0 0.0
      %475 = vmatpush1.msra.mxu0 0.0
      %476 = vmatprep.subr.mxu0 0.0
      %477 = vmatpush1.msra.mxu0 0.0
      %478 = vmatprep.subr.mxu0 0.0
      %479 = vmatpush1.msra.mxu0 0.0
      %480 = vmatprep.subr.mxu0 0.0
      %481 = vmatpush1.msra.mxu0 0.0
      %482 = vmatprep.mubr.f32.mxu0 0.0
      %483 = vmatmul.mubr.f32.gmra.mrb[0].mxu0 %v370
      %v484 = vpop.f32.mrb[0].mxu0
      %v485 = vadd.f32 0.0, %v484
      %v486 = vpop.f32.mrb[0].mxu0
      %487 = vmatprep.mubr.f32.mxu0 0.0
      %488 = vmatmul.mubr.f32.gmra.mrb[0].mxu0 %v371
      %v489 = vpop.f32.mrb[0].mxu0
      %v490 = vadd.f32 0.0, %v489
      %v491 = vpop.f32.mrb[0].mxu0
      %492 = vmatprep.mubr.f32.mxu0 0.0
      %493 = vmatmul.mubr.f32.gmra.mrb[0].mxu0 %v372
      %v494 = vpop.f32.mrb[0].mxu0
      %v495 = vadd.f32 0.0, %v494
      %v496 = vpop.f32.mrb[0].mxu0
      %497 = vmatprep.mubr.f32.mxu0 0.0
      %498 = vmatmul.mubr.f32.gmra.mrb[0].mxu0 %v373
      %v499 = vpop.f32.mrb[0].mxu0
      %v500 = vadd.f32 0.0, %v499
      %v501 = vpop.f32.mrb[0].mxu0
      %502 = vmatprep.mubr.f32.mxu0 0.0
      %503 = vmatmul.mubr.f32.gmra.mrb[0].mxu0 %v374
      %v504 = vpop.f32.mrb[0].mxu0
      %v505 = vadd.f32 0.0, %v504
      %v506 = vpop.f32.mrb[0].mxu0
      %507 = vmatprep.mubr.f32.mxu0 0.0
      %508 = vmatmul.mubr.f32.gmra.mrb[0].mxu0 %v375
      %v509 = vpop.f32.mrb[0].mxu0
      %v510 = vadd.f32 0.0, %v509
      %v511 = vpop.f32.mrb[0].mxu0
      %512 = vmatprep.mubr.f32.mxu0 0.0
      %513 = vmatmul.mubr.f32.gmra.mrb[0].mxu0 %v376
      %v514 = vpop.f32.mrb[0].mxu0
      %v515 = vadd.f32 0.0, %v514
      %v516 = vpop.f32.mrb[0].mxu0
      %517 = vmatprep.mubr.f32.mxu0 0.0
      %518 = vmatmul.mubr.f32.gmra.mrb[0].mxu0 %v377
      %v519 = vpop.f32.mrb[0].mxu0
      %v520 = vadd.f32 0.0, %v519
      %v521 = vpop.f32.mrb[0].mxu0
      %522 = vmatprep.mubr.f32.mxu0 0.0
      %523 = vmatmul.mubr.f32.gmra.mrb[0].mxu0 %v378
      %v524 = vpop.f32.mrb[0].mxu0
      %v525 = vadd.f32 0.0, %v524
      %v526 = vpop.f32.mrb[0].mxu0
      %527 = vmatprep.mubr.f32.mxu0 0.0
      %528 = vmatmul.mubr.f32.gmra.mrb[0].mxu0 %v379
      %v529 = vpop.f32.mrb[0].mxu0
      %v530 = vadd.f32 0.0, %v529
      %v531 = vpop.f32.mrb[0].mxu0
      %532 = vmatprep.mubr.f32.mxu0 0.0
      %533 = vmatmul.mubr.f32.gmra.mrb[0].mxu0 %v380
      %v534 = vpop.f32.mrb[0].mxu0
      %v535 = vadd.f32 0.0, %v534
      %v536 = vpop.f32.mrb[0].mxu0
      %537 = vmatprep.mubr.f32.mxu0 0.0
      %538 = vmatmul.mubr.f32.gmra.mrb[0].mxu0 %v381
      %v539 = vpop.f32.mrb[0].mxu0
      %v540 = vadd.f32 0.0, %v539
      %v541 = vpop.f32.mrb[0].mxu0
      %542 = vmatprep.mubr.f32.mxu0 0.0
      %543 = vmatmul.mubr.f32.gmra.mrb[0].mxu0 %v382
      %v544 = vpop.f32.mrb[0].mxu0
      %v545 = vadd.f32 0.0, %v544
      %v546 = vpop.f32.mrb[0].mxu0
      %547 = vmatprep.mubr.f32.mxu0 0.0
      %548 = vmatmul.mubr.f32.gmra.mrb[0].mxu0 %v383
      %v549 = vpop.f32.mrb[0].mxu0
      %v550 = vadd.f32 0.0, %v549
      %v551 = vpop.f32.mrb[0].mxu0
      %552 = vmatprep.mubr.f32.mxu0 0.0
      %553 = vmatmul.mubr.f32.gmra.mrb[0].mxu0 %v384
      %v554 = vpop.f32.mrb[0].mxu0
      %v555 = vadd.f32 0.0, %v554
      %v556 = vpop.f32.mrb[0].mxu0
      %557 = vmatprep.mubr.f32.mxu0 0.0
      %558 = vmatmul.mubr.f32.gmra.mrb[0].mxu0 %v385
      %v559 = vpop.f32.mrb[0].mxu0
      %v560 = vadd.f32 0.0, %v559
      %v561 = vpop.f32.mrb[0].mxu0
      %562 = vdwg.mxu0
      %v563 = vadd.f32 %v386, %v485
      %v564 = vadd.f32 %v387, %v490
      %v565 = vadd.f32 %v388, %v495
      %v566 = vadd.f32 %v389, %v500
      %v567 = vadd.f32 %v390, %v505
      %v568 = vadd.f32 %v391, %v510
      %v569 = vadd.f32 %v392, %v515
      %v570 = vadd.f32 %v393, %v520
      %v571 = vadd.f32 %v394, %v525
      %v572 = vadd.f32 %v395, %v530
      %v573 = vadd.f32 %v396, %v535
      %v574 = vadd.f32 %v397, %v540
      %v575 = vadd.f32 %v398, %v545
      %v576 = vadd.f32 %v399, %v550
      %v577 = vadd.f32 %v400, %v555
      %v578 = vadd.f32 %v401, %v560
      %579 = vst [vmem:[#allocation2] sm:$0xff] %v563
      %580 = vst [vmem:[#allocation2 + $0x8] sm:$0xff] %v564
      %581 = vst [vmem:[#allocation2 + $0x10] sm:$0xff] %v565
      %582 = vst [vmem:[#allocation2 + $0x18] sm:$0xff] %v566
      %583 = vst [vmem:[#allocation2 + $0x20] sm:$0xff] %v567
      %584 = vst [vmem:[#allocation2 + $0x28] sm:$0xff] %v568
      %585 = vst [vmem:[#allocation2 + $0x30] sm:$0xff] %v569
      %586 = vst [vmem:[#allocation2 + $0x38] sm:$0xff] %v570
      %587 = vst [vmem:[#allocation2 + $0x40] sm:$0xff] %v571
      %588 = vst [vmem:[#allocation2 + $0x48] sm:$0xff] %v572
      %589 = vst [vmem:[#allocation2 + $0x50] sm:$0xff] %v573
      %590 = vst [vmem:[#allocation2 + $0x58] sm:$0xff] %v574
      %591 = vst [vmem:[#allocation2 + $0x60] sm:$0xff] %v575
      %592 = vst [vmem:[#allocation2 + $0x68] sm:$0xff] %v576
      %593 = vst [vmem:[#allocation2 + $0x70] sm:$0xff] %v577
      %594 = vst [vmem:[#allocation2 + $0x78] sm:$0xff] %v578
      %p595 = pnand %p349, %p350
      %p596 = pneg %p595
      // Predicated region
      $region41: #{_forward_impl.11} parent=35 // pred_check
        _
      $region42: #{_forward_impl.11} parent=35 // pred_check_branch
        %598 = sbr.rel (%p595) target = $region44
      $region43: #{_forward_impl.11} parent=35 // pred_region
        %vm599 = vcmask 7168
        %600 = vst.msk [vmem:[#allocation3] sm:$0xff] %vm599, 0.0
        %601 = vst.msk [vmem:[#allocation3 + $0x8] sm:$0xff] %vm599, 0.0
        %602 = vst.msk [vmem:[#allocation3 + $0x10] sm:$0xff] %vm599, 0.0
        %603 = vst.msk [vmem:[#allocation3 + $0x18] sm:$0xff] %vm599, 0.0
        %604 = vst.msk [vmem:[#allocation3 + $0x20] sm:$0xff] %vm599, 0.0
        %605 = vst.msk [vmem:[#allocation3 + $0x28] sm:$0xff] %vm599, 0.0
        %606 = vst.msk [vmem:[#allocation3 + $0x30] sm:$0xff] %vm599, 0.0
        %607 = vst.msk [vmem:[#allocation3 + $0x38] sm:$0xff] %vm599, 0.0
        %608 = vst.msk [vmem:[#allocation3 + $0x40] sm:$0xff] %vm599, 0.0
        %609 = vst.msk [vmem:[#allocation3 + $0x48] sm:$0xff] %vm599, 0.0
        %610 = vst.msk [vmem:[#allocation3 + $0x50] sm:$0xff] %vm599, 0.0
        %611 = vst.msk [vmem:[#allocation3 + $0x58] sm:$0xff] %vm599, 0.0
        %612 = vst.msk [vmem:[#allocation3 + $0x60] sm:$0xff] %vm599, 0.0
        %613 = vst.msk [vmem:[#allocation3 + $0x68] sm:$0xff] %vm599, 0.0
        %614 = vst.msk [vmem:[#allocation3 + $0x70] sm:$0xff] %vm599, 0.0
        %615 = vst.msk [vmem:[#allocation3 + $0x78] sm:$0xff] %vm599, 0.0
      $region44: #{_forward_impl.11} parent=35 // pred_fallthru
        _
      // Predicated region
      $region45: #{_forward_impl.11} parent=35 // pred_check
        %p616 = pneg %p349
      $region46: #{_forward_impl.11} parent=35 // pred_check_branch
        %618 = sbr.rel (%p616) target = $region48
      $region47: #{_forward_impl.11} parent=35 // pred_region
        %v619 = vld [vmem:[#allocation3] sm:$0xff]
        %v620 = vld [vmem:[#allocation3 + $0x8] sm:$0xff]
        %v621 = vld [vmem:[#allocation3 + $0x10] sm:$0xff]
        %v622 = vld [vmem:[#allocation3 + $0x18] sm:$0xff]
        %v623 = vld [vmem:[#allocation3 + $0x20] sm:$0xff]
        %v624 = vld [vmem:[#allocation3 + $0x28] sm:$0xff]
        %v625 = vld [vmem:[#allocation3 + $0x30] sm:$0xff]
        %v626 = vld [vmem:[#allocation3 + $0x38] sm:$0xff]
        %v627 = vld [vmem:[#allocation3 + $0x40] sm:$0xff]
        %v628 = vld [vmem:[#allocation3 + $0x48] sm:$0xff]
        %v629 = vld [vmem:[#allocation3 + $0x50] sm:$0xff]
        %v630 = vld [vmem:[#allocation3 + $0x58] sm:$0xff]
        %v631 = vld [vmem:[#allocation3 + $0x60] sm:$0xff]
        %v632 = vld [vmem:[#allocation3 + $0x68] sm:$0xff]
        %v633 = vld [vmem:[#allocation3 + $0x70] sm:$0xff]
        %v634 = vld [vmem:[#allocation3 + $0x78] sm:$0xff]
        %v635 = vld [vmem:[%s327] sm:$0x1]
        %v637 = vlaneseq
        %v638 = vshrl.u32 %v637, 7
        %v639 = vsub.s32 0, %v638
        %v640 = vrot.slane %v635, %v639
        %v642 = vmul.f32 %v370, %v640
        %v643 = vmul.f32 %v371, %v640
        %v644 = vmul.f32 %v372, %v640
        %v645 = vmul.f32 %v373, %v640
        %v646 = vmul.f32 %v374, %v640
        %v647 = vmul.f32 %v375, %v640
        %v648 = vmul.f32 %v376, %v640
        %v649 = vmul.f32 %v377, %v640
        %v650 = vmul.f32 %v378, %v640
        %v651 = vmul.f32 %v379, %v640
        %v652 = vmul.f32 %v380, %v640
        %v653 = vmul.f32 %v381, %v640
        %v654 = vmul.f32 %v382, %v640
        %v655 = vmul.f32 %v383, %v640
        %v656 = vmul.f32 %v384, %v640
        %v657 = vmul.f32 %v385, %v640
        %658 = vadd.xlane.f32.xlu0 %v642
        %v659 = vpop.xlane.xlu0 %658
        %660 = vadd.xlane.f32.xlu0 %v643
        %v661 = vpop.xlane.xlu0 %660
        %662 = vadd.xlane.f32.xlu0 %v644
        %v663 = vpop.xlane.xlu0 %662
        %664 = vadd.xlane.f32.xlu0 %v645
        %v665 = vpop.xlane.xlu0 %664
        %666 = vadd.xlane.f32.xlu0 %v646
        %v667 = vpop.xlane.xlu0 %666
        %668 = vadd.xlane.f32.xlu0 %v647
        %v669 = vpop.xlane.xlu0 %668
        %670 = vadd.xlane.f32.xlu0 %v648
        %v671 = vpop.xlane.xlu0 %670
        %672 = vadd.xlane.f32.xlu0 %v649
        %v673 = vpop.xlane.xlu0 %672
        %674 = vadd.xlane.f32.xlu0 %v650
        %v675 = vpop.xlane.xlu0 %674
        %676 = vadd.xlane.f32.xlu0 %v651
        %v677 = vpop.xlane.xlu0 %676
        %678 = vadd.xlane.f32.xlu0 %v652
        %v679 = vpop.xlane.xlu0 %678
        %680 = vadd.xlane.f32.xlu0 %v653
        %v681 = vpop.xlane.xlu0 %680
        %682 = vadd.xlane.f32.xlu0 %v654
        %v683 = vpop.xlane.xlu0 %682
        %684 = vadd.xlane.f32.xlu0 %v655
        %v685 = vpop.xlane.xlu0 %684
        %686 = vadd.xlane.f32.xlu0 %v656
        %v687 = vpop.xlane.xlu0 %686
        %688 = vadd.xlane.f32.xlu0 %v657
        %v689 = vpop.xlane.xlu0 %688
        %v690 = vadd.f32 %v619, %v659
        %v691 = vadd.f32 %v620, %v661
        %v692 = vadd.f32 %v621, %v663
        %v693 = vadd.f32 %v622, %v665
        %v694 = vadd.f32 %v623, %v667
        %v695 = vadd.f32 %v624, %v669
        %v696 = vadd.f32 %v625, %v671
        %v697 = vadd.f32 %v626, %v673
        %v698 = vadd.f32 %v627, %v675
        %v699 = vadd.f32 %v628, %v677
        %v700 = vadd.f32 %v629, %v679
        %v701 = vadd.f32 %v630, %v681
        %v702 = vadd.f32 %v631, %v683
        %v703 = vadd.f32 %v632, %v685
        %v704 = vadd.f32 %v633, %v687
        %v705 = vadd.f32 %v634, %v689
        %vm706 = vcmask 7168
        %707 = vst.msk [vmem:[#allocation3] sm:$0xff] %vm706, %v690
        %708 = vst.msk [vmem:[#allocation3 + $0x8] sm:$0xff] %vm706, %v691
        %709 = vst.msk [vmem:[#allocation3 + $0x10] sm:$0xff] %vm706, %v692
        %710 = vst.msk [vmem:[#allocation3 + $0x18] sm:$0xff] %vm706, %v693
        %711 = vst.msk [vmem:[#allocation3 + $0x20] sm:$0xff] %vm706, %v694
        %712 = vst.msk [vmem:[#allocation3 + $0x28] sm:$0xff] %vm706, %v695
        %713 = vst.msk [vmem:[#allocation3 + $0x30] sm:$0xff] %vm706, %v696
        %714 = vst.msk [vmem:[#allocation3 + $0x38] sm:$0xff] %vm706, %v697
        %715 = vst.msk [vmem:[#allocation3 + $0x40] sm:$0xff] %vm706, %v698
        %716 = vst.msk [vmem:[#allocation3 + $0x48] sm:$0xff] %vm706, %v699
        %717 = vst.msk [vmem:[#allocation3 + $0x50] sm:$0xff] %vm706, %v700
        %718 = vst.msk [vmem:[#allocation3 + $0x58] sm:$0xff] %vm706, %v701
        %719 = vst.msk [vmem:[#allocation3 + $0x60] sm:$0xff] %vm706, %v702
        %720 = vst.msk [vmem:[#allocation3 + $0x68] sm:$0xff] %vm706, %v703
        %721 = vst.msk [vmem:[#allocation3 + $0x70] sm:$0xff] %vm706, %v704
        %722 = vst.msk [vmem:[#allocation3 + $0x78] sm:$0xff] %vm706, %v705
      $region48: #{_forward_impl.11} parent=35 // pred_fallthru
        _
      // Predicated region
      $region49: #{_forward_impl.11} parent=35 // pred_check
        %p723 = pneg %p350
      $region50: #{_forward_impl.11} parent=35 // pred_check_branch
        %725 = sbr.rel (%p723) target = $region52
      $region51: #{_forward_impl.11} parent=35 // pred_region
        %v726 = vld [vmem:[#allocation2] sm:$0xff]
        %v727 = vld [vmem:[#allocation2 + $0x8] sm:$0xff]
        %v728 = vld [vmem:[#allocation2 + $0x10] sm:$0xff]
        %v729 = vld [vmem:[#allocation2 + $0x18] sm:$0xff]
        %v730 = vld [vmem:[#allocation2 + $0x20] sm:$0xff]
        %v731 = vld [vmem:[#allocation2 + $0x28] sm:$0xff]
        %v732 = vld [vmem:[#allocation2 + $0x30] sm:$0xff]
        %v733 = vld [vmem:[#allocation2 + $0x38] sm:$0xff]
        %v734 = vld [vmem:[#allocation2 + $0x40] sm:$0xff]
        %v735 = vld [vmem:[#allocation2 + $0x48] sm:$0xff]
        %v736 = vld [vmem:[#allocation2 + $0x50] sm:$0xff]
        %v737 = vld [vmem:[#allocation2 + $0x58] sm:$0xff]
        %v738 = vld [vmem:[#allocation2 + $0x60] sm:$0xff]
        %v739 = vld [vmem:[#allocation2 + $0x68] sm:$0xff]
        %v740 = vld [vmem:[#allocation2 + $0x70] sm:$0xff]
        %v741 = vld [vmem:[#allocation2 + $0x78] sm:$0xff]
        %742 = vst [vmem:[%s341] sm:$0xff] %v726
        %743 = vst [vmem:[%s341 + $0x8] sm:$0xff] %v727
        %744 = vst [vmem:[%s341 + $0x10] sm:$0xff] %v728
        %745 = vst [vmem:[%s341 + $0x18] sm:$0xff] %v729
        %746 = vst [vmem:[%s341 + $0x20] sm:$0xff] %v730
        %747 = vst [vmem:[%s341 + $0x28] sm:$0xff] %v731
        %748 = vst [vmem:[%s341 + $0x30] sm:$0xff] %v732
        %749 = vst [vmem:[%s341 + $0x38] sm:$0xff] %v733
        %750 = vst [vmem:[%s341 + $0x40] sm:$0xff] %v734
        %751 = vst [vmem:[%s341 + $0x48] sm:$0xff] %v735
        %752 = vst [vmem:[%s341 + $0x50] sm:$0xff] %v736
        %753 = vst [vmem:[%s341 + $0x58] sm:$0xff] %v737
        %754 = vst [vmem:[%s341 + $0x60] sm:$0xff] %v738
        %755 = vst [vmem:[%s341 + $0x68] sm:$0xff] %v739
        %756 = vst [vmem:[%s341 + $0x70] sm:$0xff] %v740
        %757 = vst [vmem:[%s341 + $0x78] sm:$0xff] %v741
      $region52: #{_forward_impl.11} parent=35 // pred_fallthru
        _
      // Predicated region
      $region53: #{_forward_impl.11} parent=35 // pred_check
        _
      $region54: #{_forward_impl.11} parent=35 // pred_check_branch
        %759 = sbr.rel (%p595) target = $region56
      $region55: #{_forward_impl.11} parent=35 // pred_region
        %v760 = vld [vmem:[#allocation3] sm:$0xff]
        %v761 = vld [vmem:[#allocation3 + $0x8] sm:$0xff]
        %v762 = vld [vmem:[#allocation3 + $0x10] sm:$0xff]
        %v763 = vld [vmem:[#allocation3 + $0x18] sm:$0xff]
        %v764 = vld [vmem:[#allocation3 + $0x20] sm:$0xff]
        %v765 = vld [vmem:[#allocation3 + $0x28] sm:$0xff]
        %v766 = vld [vmem:[#allocation3 + $0x30] sm:$0xff]
        %v767 = vld [vmem:[#allocation3 + $0x38] sm:$0xff]
        %v768 = vld [vmem:[#allocation3 + $0x40] sm:$0xff]
        %v769 = vld [vmem:[#allocation3 + $0x48] sm:$0xff]
        %v770 = vld [vmem:[#allocation3 + $0x50] sm:$0xff]
        %v771 = vld [vmem:[#allocation3 + $0x58] sm:$0xff]
        %v772 = vld [vmem:[#allocation3 + $0x60] sm:$0xff]
        %v773 = vld [vmem:[#allocation3 + $0x68] sm:$0xff]
        %v774 = vld [vmem:[#allocation3 + $0x70] sm:$0xff]
        %v775 = vld [vmem:[#allocation3 + $0x78] sm:$0xff]
        %v776 = vld [vmem:[%s332] sm:$0xff]
        %v777 = vld [vmem:[%s332 + $0x8] sm:$0xff]
        %v778 = vld [vmem:[%s332 + $0x10] sm:$0xff]
        %v779 = vld [vmem:[%s332 + $0x18] sm:$0xff]
        %v780 = vld [vmem:[%s332 + $0x20] sm:$0xff]
        %v781 = vld [vmem:[%s332 + $0x28] sm:$0xff]
        %v782 = vld [vmem:[%s332 + $0x30] sm:$0xff]
        %v783 = vld [vmem:[%s332 + $0x38] sm:$0xff]
        %v784 = vld [vmem:[%s332 + $0x40] sm:$0xff]
        %v785 = vld [vmem:[%s332 + $0x48] sm:$0xff]
        %v786 = vld [vmem:[%s332 + $0x50] sm:$0xff]
        %v787 = vld [vmem:[%s332 + $0x58] sm:$0xff]
        %v788 = vld [vmem:[%s332 + $0x60] sm:$0xff]
        %v789 = vld [vmem:[%s332 + $0x68] sm:$0xff]
        %v790 = vld [vmem:[%s332 + $0x70] sm:$0xff]
        %v791 = vld [vmem:[%s332 + $0x78] sm:$0xff]
        %v792 = vadd.f32 %v760, %v776
        %v793 = vadd.f32 %v761, %v777
        %v794 = vadd.f32 %v762, %v778
        %v795 = vadd.f32 %v763, %v779
        %v796 = vadd.f32 %v764, %v780
        %v797 = vadd.f32 %v765, %v781
        %v798 = vadd.f32 %v766, %v782
        %v799 = vadd.f32 %v767, %v783
        %v800 = vadd.f32 %v768, %v784
        %v801 = vadd.f32 %v769, %v785
        %v802 = vadd.f32 %v770, %v786
        %v803 = vadd.f32 %v771, %v787
        %v804 = vadd.f32 %v772, %v788
        %v805 = vadd.f32 %v773, %v789
        %v806 = vadd.f32 %v774, %v790
        %v807 = vadd.f32 %v775, %v791
        %vm808 = vcmask 7168
        %809 = vst.msk [vmem:[%s347] sm:$0xff] %vm808, %v792
        %810 = vst.msk [vmem:[%s347 + $0x8] sm:$0xff] %vm808, %v793
        %811 = vst.msk [vmem:[%s347 + $0x10] sm:$0xff] %vm808, %v794
        %812 = vst.msk [vmem:[%s347 + $0x18] sm:$0xff] %vm808, %v795
        %813 = vst.msk [vmem:[%s347 + $0x20] sm:$0xff] %vm808, %v796
        %814 = vst.msk [vmem:[%s347 + $0x28] sm:$0xff] %vm808, %v797
        %815 = vst.msk [vmem:[%s347 + $0x30] sm:$0xff] %vm808, %v798
        %816 = vst.msk [vmem:[%s347 + $0x38] sm:$0xff] %vm808, %v799
        %817 = vst.msk [vmem:[%s347 + $0x40] sm:$0xff] %vm808, %v800
        %818 = vst.msk [vmem:[%s347 + $0x48] sm:$0xff] %vm808, %v801
        %819 = vst.msk [vmem:[%s347 + $0x50] sm:$0xff] %vm808, %v802
        %820 = vst.msk [vmem:[%s347 + $0x58] sm:$0xff] %vm808, %v803
        %821 = vst.msk [vmem:[%s347 + $0x60] sm:$0xff] %vm808, %v804
        %822 = vst.msk [vmem:[%s347 + $0x68] sm:$0xff] %vm808, %v805
        %823 = vst.msk [vmem:[%s347 + $0x70] sm:$0xff] %vm808, %v806
        %824 = vst.msk [vmem:[%s347 + $0x78] sm:$0xff] %vm808, %v807
      $region56: #{_forward_impl.11} parent=35 // pred_fallthru
        _
      %s825 = smul.u32 16, %s22
      %p826 = scmp.lt.s32.totalorder %s825, 31
      %s827 = scalar_select %p826, %s825, 31
      %p828 = scmp.lt.s32.totalorder %s23, 0
      %s829 = scalar_select %p828, %s23, 0
      %s830 = sadd.s32 %s829, %s827
      %s831 = smul.addr %s830, 8
      %s832 = scalar_lea.vmem %s4, %s831
      %s833 = smul.u32 16, %s22
      %p834 = scmp.lt.s32.totalorder %s833, 31
      %s835 = scalar_select %p834, %s833, 31
      %s836 = smul.addr %s835, 8
      %s837 = scalar_lea.vmem %s5, %s836
      // Predicated region
      $region57: #{_forward_impl.11} parent=35 // pred_check
        %p838 = pneg %p164
      $region58: #{_forward_impl.11} parent=35 // pred_check_branch
        %840 = sbr.rel (%p838) target = $region60
      $region59: #{_forward_impl.11} parent=35 // pred_region
        %s841 = smul.u32 16, %s22
      $region60: #{_forward_impl.11} parent=35 // pred_fallthru
        _
      // Predicated region
      $region61: #{_forward_impl.11} parent=35 // pred_check
        %p842 = pneg %p190
      $region62: #{_forward_impl.11} parent=35 // pred_check_branch
        %844 = sbr.rel (%p842) target = $region64
      $region63: #{_forward_impl.11} parent=35 // pred_region
        %s845 = smul.u32 16, %s22
      $region64: #{_forward_impl.11} parent=35 // pred_fallthru
        _
    $region36: #{_forward_impl.11} parent=5 // pred_fallthru
      _
    %p846 = scmp.le.s32.totalorder 2, %s12
    // Predicated region
    $region65: #{_forward_impl.11} parent=5 // pred_check
      %p847 = pneg %p846
    $region66: #{_forward_impl.11} parent=5 // pred_check_branch
      %849 = sbr.rel (%p847) target = $region68
    $region67: #{_forward_impl.11} parent=5 // pred_region
      %s850 = ssub.s32 %s12, 2
      // Predicated region
      $region69: #{_forward_impl.11} parent=67 // pred_check
        %p851 = pneg %p170
      $region70: #{_forward_impl.11} parent=67 // pred_check_branch
        %853 = sbr.rel (%p851) target = $region72
      $region71: #{_forward_impl.11} parent=67 // pred_region
        %s854 = smul.u32 16, %s25
        %p855 = scmp.lt.s32.totalorder %s854, 31
        %s856 = scalar_select %p855, %s854, 31
        %p857 = scmp.lt.s32.totalorder %s26, 0
        %s858 = scalar_select %p857, %s26, 0
        %s859 = sadd.s32 %s858, %s856
        %s860 = smul.addr %s859, 8
        %s861 = scalar_lea.vmem %s4, %s860
      $region72: #{_forward_impl.11} parent=67 // pred_fallthru
        _
      // Predicated region
      $region73: #{_forward_impl.11} parent=67 // pred_check
        %p862 = pneg %p196
      $region74: #{_forward_impl.11} parent=67 // pred_check_branch
        %864 = sbr.rel (%p862) target = $region76
      $region75: #{_forward_impl.11} parent=67 // pred_region
        %s865 = smul.u32 16, %s25
        %p866 = scmp.lt.s32.totalorder %s865, 31
        %s867 = scalar_select %p866, %s865, 31
        %s868 = smul.addr %s867, 8
        %s869 = scalar_lea.vmem %s5, %s868
      $region76: #{_forward_impl.11} parent=67 // pred_fallthru
        _
    $region68: #{_forward_impl.11} parent=5 // pred_fallthru
      _
  $region6: #{_forward_impl.11} parent=0 // loop_footer
    %s16 = sadd.s32 1, %s12
  $region7: #{_forward_impl.11} parent=0 // loop_footer_branch
    %11 = sbr.rel target = $region3
  $region8: #{_forward_impl.11} parent=0 // loop_exit
    _

// kernel: _forward_impl.8
$region0: #{_forward_impl.8}
  #allocation0 [shape = 'u32[]', space=smem, size = 0x4, offset = 0x4, fixed_abs, tag = 'smem constant byte address 0x4 - core index']
  #allocation1 [shape = 'u32[144,128]{1,0:T(1,128)}', space=vmem, size = 0x12000, scoped, tag = 'internal scratch']
  #allocation2 [shape = 'f32[128,128]{1,0:T(8,128)}', space=vmem, size = 0x10000, scoped, tag = 'scratch operand']
  #allocation3 [shape = 'f32[128,128]{1,0:T(8,128)}', space=vmem, size = 0x10000, scoped, tag = 'scratch operand']
  #allocation4 [shape = 'f32[128,128]{1,0:T(8,128)}', space=vmem, size = 0x10000, scoped, tag = 'scratch operand']
  #allocation5 [shape = 'f32[128,1]{1,0:T(8,128)}', space=vmem, size = 0x10000, scoped, tag = 'scratch operand']
  %s0 = inlined_call_operand.vmem [shape: f32[256,128], index: 0, kind: input, shape index: {}]
  %s1 = inlined_call_operand.vmem [shape: f32[1,128], index: 1, kind: input, shape index: {}]
  %s2 = inlined_call_operand.vmem [shape: f32[1,128], index: 2, kind: input, shape index: {}]
  %s3 = inlined_call_operand.vmem [shape: f32[1,128], index: 3, kind: input, shape index: {}]
  %s4 = inlined_call_operand.vmem [shape: f32[128,128], index: 4, kind: input, shape index: {}]
  %s5 = inlined_call_operand.vmem [shape: f32[1,128], index: 5, kind: input, shape index: {}]
  %s6 = inlined_call_operand.vmem [shape: f32[256,1], index: 6, kind: input, shape index: {}]
  %s7 = inlined_call_operand.vmem [shape: f32[128,128], index: 7, kind: input, shape index: {}]
  %s8 = inlined_call_operand.vmem [shape: f32[256,128], index: 8, kind: output, shape index: {0}]
  %s9 = inlined_call_operand.vmem [shape: f32[256,128], index: 9, kind: output, shape index: {1}]
  %s10 = inlined_call_operand.vmem [shape: f32[256,1], index: 10, kind: output, shape index: {2}]
  %11 = xla_tuple %s8, %s9, %s10
  %s12 = sld [smem:[#allocation0]]
  $region105: #{_forward_impl.8} parent=0
    _
  %s14 = ssub.s32 1, %s12
  %s15 = scalar_select 0, %s14, %s12
  loop: start=0, step=1, limit=4
  $region2: #{_forward_impl.8} parent=0 // loop_pre_header
    _
  $region3: #{_forward_impl.8} parent=0 // loop_header
    %s17 = sphi 0, %s21
    %p18 = scmp.ge.s32.totalorder %s17, 4
    %s24 = sphi 0, %s43
    %s25 = sphi 0, %s39
    %s26 = sphi 0, %s35
    %s27 = sphi 0, %s24
    %s28 = sphi 0, %s25
    %s29 = sphi 0, %s26
    %s30 = sphi 0, %s27
    %s31 = sphi 0, %s28
    %s32 = sphi 0, %s29
    %s48 = sphi 0, %s50
    %s51 = sphi 0, %s48
    %s52 = sphi 0, %s51
    %s68 = sphi 0, %s52
    %s74 = sphi 0, %s76
    %s77 = sphi 0, %s74
    %s78 = sphi 0, %s77
    %s94 = sphi 0, %s78
    %s100 = sphi 0, %s102
    %s103 = sphi 0, %s100
    %s104 = sphi 0, %s103
    %s120 = sphi 0, %s104
    %s126 = sphi 0, %s128
    %s129 = sphi 0, %s126
    %s130 = sphi 0, %s129
    %s146 = sphi 0, %s130
    %s154 = sphi 0, %s156
    %s157 = sphi 0, %s154
    %s158 = sphi 0, %s157
    %s174 = sphi 0, %s158
    %s180 = sphi 0, %s182
    %s183 = sphi 0, %s180
    %s184 = sphi 0, %s183
    %s200 = sphi 0, %s184
    %s206 = sphi 0, %s208
    %s209 = sphi 0, %s206
    %s210 = sphi 0, %s209
    %s226 = sphi 0, %s210
    %s232 = sphi 0, %s234
    %s235 = sphi 0, %s232
    %s236 = sphi 0, %s235
    %s252 = sphi 0, %s236
    %s258 = sphi 0, %s260
    %s261 = sphi 0, %s258
    %s262 = sphi 0, %s261
    %s278 = sphi 0, %s262
    %s284 = sphi 0, %s286
    %s287 = sphi 0, %s284
    %s288 = sphi 0, %s287
    %s304 = sphi 0, %s288
    %s310 = sphi 0, %s312
    %s313 = sphi 0, %s310
    %s314 = sphi 0, %s313
    %s330 = sphi 0, %s314
  $region4: #{_forward_impl.8} parent=0 // loop_header_branch
    %20 = sbr.rel (%p18) target = $region8
  $region5: #{_forward_impl.8} parent=0 // loop_body
    %s22 = ssub.s32 %s17, 1
    %s23 = ssub.s32 %s17, 2
    %s33 = sadd.s32 1, %s26
    %p34 = scmp.ge.s32.totalorder %s33, 1
    %s35 = scalar_select %p34, 0, %s33
    %s36 = sadd.s32 1, %s25
    %s37 = scalar_select %p34, %s36, %s25
    %p38 = scmp.ge.s32.totalorder %s37, 1
    %s39 = scalar_select %p38, 0, %s37
    %s40 = sadd.s32 1, %s24
    %s41 = scalar_select %p38, %s40, %s24
    %p42 = scmp.ge.s32.totalorder %s41, 2
    %s43 = scalar_select %p42, 0, %s41
    %s44 = ssub.s32 %s24, %s43
    %s45 = ssub.s32 %s26, %s35
    %s46 = sor.u32 %s44, %s45
    %p47 = scmp.eq.s32.totalorder %s46, 0
    %s49 = sadd.s32 %s48, 1
    %s50 = scalar_select %p47, %s48, %s49
    %p53 = pneg %p47
    %p54 = scmp.eq.s32.totalorder %s17, 1
    %p55 = por %p53, %p54
    %p56 = scmp.ne.s32.totalorder %s48, %s51
    %p57 = scmp.eq.s32.totalorder %s17, 0
    %p58 = por %p56, %p57
    %p59 = scmp.ne.s32.totalorder %s48, %s51
    %p60 = scmp.eq.s32.totalorder %s22, 1
    %p61 = por %p59, %p60
    %p62 = scmp.ne.s32.totalorder %s51, %s52
    %p63 = scmp.eq.s32.totalorder %s22, 0
    %p64 = por %p62, %p63
    %p65 = scmp.ne.s32.totalorder %s51, %s52
    %p66 = scmp.eq.s32.totalorder %s23, 1
    %p67 = por %p65, %p66
    %p69 = scmp.ne.s32.totalorder %s52, %s68
    %p70 = scmp.eq.s32.totalorder %s23, 0
    %p71 = por %p69, %p70
    %s72 = ssub.s32 %s26, %s35
    %p73 = scmp.eq.s32.totalorder %s72, 0
    %s75 = sadd.s32 %s74, 1
    %s76 = scalar_select %p73, %s74, %s75
    %p79 = pneg %p73
    %p80 = scmp.eq.s32.totalorder %s17, 1
    %p81 = por %p79, %p80
    %p82 = scmp.ne.s32.totalorder %s74, %s77
    %p83 = scmp.eq.s32.totalorder %s17, 0
    %p84 = por %p82, %p83
    %p85 = scmp.ne.s32.totalorder %s74, %s77
    %p86 = scmp.eq.s32.totalorder %s22, 1
    %p87 = por %p85, %p86
    %p88 = scmp.ne.s32.totalorder %s77, %s78
    %p89 = scmp.eq.s32.totalorder %s22, 0
    %p90 = por %p88, %p89
    %p91 = scmp.ne.s32.totalorder %s77, %s78
    %p92 = scmp.eq.s32.totalorder %s23, 1
    %p93 = por %p91, %p92
    %p95 = scmp.ne.s32.totalorder %s78, %s94
    %p96 = scmp.eq.s32.totalorder %s23, 0
    %p97 = por %p95, %p96
    %s98 = ssub.s32 %s26, %s35
    %p99 = scmp.eq.s32.totalorder %s98, 0
    %s101 = sadd.s32 %s100, 1
    %s102 = scalar_select %p99, %s100, %s101
    %p105 = pneg %p99
    %p106 = scmp.eq.s32.totalorder %s17, 1
    %p107 = por %p105, %p106
    %p108 = scmp.ne.s32.totalorder %s100, %s103
    %p109 = scmp.eq.s32.totalorder %s17, 0
    %p110 = por %p108, %p109
    %p111 = scmp.ne.s32.totalorder %s100, %s103
    %p112 = scmp.eq.s32.totalorder %s22, 1
    %p113 = por %p111, %p112
    %p114 = scmp.ne.s32.totalorder %s103, %s104
    %p115 = scmp.eq.s32.totalorder %s22, 0
    %p116 = por %p114, %p115
    %p117 = scmp.ne.s32.totalorder %s103, %s104
    %p118 = scmp.eq.s32.totalorder %s23, 1
    %p119 = por %p117, %p118
    %p121 = scmp.ne.s32.totalorder %s104, %s120
    %p122 = scmp.eq.s32.totalorder %s23, 0
    %p123 = por %p121, %p122
    %s124 = ssub.s32 %s26, %s35
    %p125 = scmp.eq.s32.totalorder %s124, 0
    %s127 = sadd.s32 %s126, 1
    %s128 = scalar_select %p125, %s126, %s127
    %p131 = pneg %p125
    %p132 = scmp.eq.s32.totalorder %s17, 1
    %p133 = por %p131, %p132
    %p134 = scmp.ne.s32.totalorder %s126, %s129
    %p135 = scmp.eq.s32.totalorder %s17, 0
    %p136 = por %p134, %p135
    %p137 = scmp.ne.s32.totalorder %s126, %s129
    %p138 = scmp.eq.s32.totalorder %s22, 1
    %p139 = por %p137, %p138
    %p140 = scmp.ne.s32.totalorder %s129, %s130
    %p141 = scmp.eq.s32.totalorder %s22, 0
    %p142 = por %p140, %p141
    %p143 = scmp.ne.s32.totalorder %s129, %s130
    %p144 = scmp.eq.s32.totalorder %s23, 1
    %p145 = por %p143, %p144
    %p147 = scmp.ne.s32.totalorder %s130, %s146
    %p148 = scmp.eq.s32.totalorder %s23, 0
    %p149 = por %p147, %p148
    %s150 = ssub.s32 %s26, %s35
    %s151 = ssub.s32 %s25, %s39
    %s152 = sor.u32 %s150, %s151
    %p153 = scmp.eq.s32.totalorder %s152, 0
    %s155 = sadd.s32 %s154, 1
    %s156 = scalar_select %p153, %s154, %s155
    %p159 = pneg %p153
    %p160 = scmp.eq.s32.totalorder %s17, 1
    %p161 = por %p159, %p160
    %p162 = scmp.ne.s32.totalorder %s154, %s157
    %p163 = scmp.eq.s32.totalorder %s17, 0
    %p164 = por %p162, %p163
    %p165 = scmp.ne.s32.totalorder %s154, %s157
    %p166 = scmp.eq.s32.totalorder %s22, 1
    %p167 = por %p165, %p166
    %p168 = scmp.ne.s32.totalorder %s157, %s158
    %p169 = scmp.eq.s32.totalorder %s22, 0
    %p170 = por %p168, %p169
    %p171 = scmp.ne.s32.totalorder %s157, %s158
    %p172 = scmp.eq.s32.totalorder %s23, 1
    %p173 = por %p171, %p172
    %p175 = scmp.ne.s32.totalorder %s158, %s174
    %p176 = scmp.eq.s32.totalorder %s23, 0
    %p177 = por %p175, %p176
    %s178 = ssub.s32 %s26, %s35
    %p179 = scmp.eq.s32.totalorder %s178, 0
    %s181 = sadd.s32 %s180, 1
    %s182 = scalar_select %p179, %s180, %s181
    %p185 = pneg %p179
    %p186 = scmp.eq.s32.totalorder %s17, 1
    %p187 = por %p185, %p186
    %p188 = scmp.ne.s32.totalorder %s180, %s183
    %p189 = scmp.eq.s32.totalorder %s17, 0
    %p190 = por %p188, %p189
    %p191 = scmp.ne.s32.totalorder %s180, %s183
    %p192 = scmp.eq.s32.totalorder %s22, 1
    %p193 = por %p191, %p192
    %p194 = scmp.ne.s32.totalorder %s183, %s184
    %p195 = scmp.eq.s32.totalorder %s22, 0
    %p196 = por %p194, %p195
    %p197 = scmp.ne.s32.totalorder %s183, %s184
    %p198 = scmp.eq.s32.totalorder %s23, 1
    %p199 = por %p197, %p198
    %p201 = scmp.ne.s32.totalorder %s184, %s200
    %p202 = scmp.eq.s32.totalorder %s23, 0
    %p203 = por %p201, %p202
    %s204 = ssub.s32 %s24, %s43
    %p205 = scmp.eq.s32.totalorder %s204, 0
    %s207 = sadd.s32 %s206, 1
    %s208 = scalar_select %p205, %s206, %s207
    %p211 = pneg %p205
    %p212 = scmp.eq.s32.totalorder %s17, 1
    %p213 = por %p211, %p212
    %p214 = scmp.ne.s32.totalorder %s206, %s209
    %p215 = scmp.eq.s32.totalorder %s17, 0
    %p216 = por %p214, %p215
    %p217 = scmp.ne.s32.totalorder %s206, %s209
    %p218 = scmp.eq.s32.totalorder %s22, 1
    %p219 = por %p217, %p218
    %p220 = scmp.ne.s32.totalorder %s209, %s210
    %p221 = scmp.eq.s32.totalorder %s22, 0
    %p222 = por %p220, %p221
    %p223 = scmp.ne.s32.totalorder %s209, %s210
    %p224 = scmp.eq.s32.totalorder %s23, 1
    %p225 = por %p223, %p224
    %p227 = scmp.ne.s32.totalorder %s210, %s226
    %p228 = scmp.eq.s32.totalorder %s23, 0
    %p229 = por %p227, %p228
    %s230 = ssub.s32 %s25, %s39
    %p231 = scmp.eq.s32.totalorder %s230, 0
    %s233 = sadd.s32 %s232, 1
    %s234 = scalar_select %p231, %s232, %s233
    %p237 = pneg %p231
    %p238 = scmp.eq.s32.totalorder %s17, 1
    %p239 = por %p237, %p238
    %p240 = scmp.ne.s32.totalorder %s232, %s235
    %p241 = scmp.eq.s32.totalorder %s17, 0
    %p242 = por %p240, %p241
    %p243 = scmp.ne.s32.totalorder %s232, %s235
    %p244 = scmp.eq.s32.totalorder %s22, 1
    %p245 = por %p243, %p244
    %p246 = scmp.ne.s32.totalorder %s235, %s236
    %p247 = scmp.eq.s32.totalorder %s22, 0
    %p248 = por %p246, %p247
    %p249 = scmp.ne.s32.totalorder %s235, %s236
    %p250 = scmp.eq.s32.totalorder %s23, 1
    %p251 = por %p249, %p250
    %p253 = scmp.ne.s32.totalorder %s236, %s252
    %p254 = scmp.eq.s32.totalorder %s23, 0
    %p255 = por %p253, %p254
    %s256 = ssub.s32 %s24, %s43
    %p257 = scmp.eq.s32.totalorder %s256, 0
    %s259 = sadd.s32 %s258, 1
    %s260 = scalar_select %p257, %s258, %s259
    %p263 = pneg %p257
    %p264 = scmp.eq.s32.totalorder %s17, 1
    %p265 = por %p263, %p264
    %p266 = scmp.ne.s32.totalorder %s258, %s261
    %p267 = scmp.eq.s32.totalorder %s17, 0
    %p268 = por %p266, %p267
    %p269 = scmp.ne.s32.totalorder %s258, %s261
    %p270 = scmp.eq.s32.totalorder %s22, 1
    %p271 = por %p269, %p270
    %p272 = scmp.ne.s32.totalorder %s261, %s262
    %p273 = scmp.eq.s32.totalorder %s22, 0
    %p274 = por %p272, %p273
    %p275 = scmp.ne.s32.totalorder %s261, %s262
    %p276 = scmp.eq.s32.totalorder %s23, 1
    %p277 = por %p275, %p276
    %p279 = scmp.ne.s32.totalorder %s262, %s278
    %p280 = scmp.eq.s32.totalorder %s23, 0
    %p281 = por %p279, %p280
    %s282 = ssub.s32 %s24, %s43
    %p283 = scmp.eq.s32.totalorder %s282, 0
    %s285 = sadd.s32 %s284, 1
    %s286 = scalar_select %p283, %s284, %s285
    %p289 = pneg %p283
    %p290 = scmp.eq.s32.totalorder %s17, 1
    %p291 = por %p289, %p290
    %p292 = scmp.ne.s32.totalorder %s284, %s287
    %p293 = scmp.eq.s32.totalorder %s17, 0
    %p294 = por %p292, %p293
    %p295 = scmp.ne.s32.totalorder %s284, %s287
    %p296 = scmp.eq.s32.totalorder %s22, 1
    %p297 = por %p295, %p296
    %p298 = scmp.ne.s32.totalorder %s287, %s288
    %p299 = scmp.eq.s32.totalorder %s22, 0
    %p300 = por %p298, %p299
    %p301 = scmp.ne.s32.totalorder %s287, %s288
    %p302 = scmp.eq.s32.totalorder %s23, 1
    %p303 = por %p301, %p302
    %p305 = scmp.ne.s32.totalorder %s288, %s304
    %p306 = scmp.eq.s32.totalorder %s23, 0
    %p307 = por %p305, %p306
    %s308 = ssub.s32 %s24, %s43
    %p309 = scmp.eq.s32.totalorder %s308, 0
    %s311 = sadd.s32 %s310, 1
    %s312 = scalar_select %p309, %s310, %s311
    %p315 = pneg %p309
    %p316 = scmp.eq.s32.totalorder %s17, 1
    %p317 = por %p315, %p316
    %p318 = scmp.ne.s32.totalorder %s310, %s313
    %p319 = scmp.eq.s32.totalorder %s17, 0
    %p320 = por %p318, %p319
    %p321 = scmp.ne.s32.totalorder %s310, %s313
    %p322 = scmp.eq.s32.totalorder %s22, 1
    %p323 = por %p321, %p322
    %p324 = scmp.ne.s32.totalorder %s313, %s314
    %p325 = scmp.eq.s32.totalorder %s22, 0
    %p326 = por %p324, %p325
    %p327 = scmp.ne.s32.totalorder %s313, %s314
    %p328 = scmp.eq.s32.totalorder %s23, 1
    %p329 = por %p327, %p328
    %p331 = scmp.ne.s32.totalorder %s314, %s330
    %p332 = scmp.eq.s32.totalorder %s23, 0
    %p333 = por %p331, %p332
    %p334 = scmp.le.s32.totalorder 1, %s17
    %p335 = scmp.lt.s32.totalorder %s17, 3
    %p336 = pnand %p334, %p335
    %p337 = pneg %p336
    // Predicated region
    $region9: #{_forward_impl.8} parent=5 // pred_check
      _
    $region10: #{_forward_impl.8} parent=5 // pred_check_branch
      %339 = sbr.rel (%p336) target = $region12
    $region11: #{_forward_impl.8} parent=5 // pred_region
      %s340 = ssub.s32 %s17, 1
      // Predicated region
      $region13: #{_forward_impl.8} parent=11 // pred_check
        %p341 = pneg %p90
      $region14: #{_forward_impl.8} parent=11 // pred_check_branch
        %343 = sbr.rel (%p341) target = $region16
      $region15: #{_forward_impl.8} parent=11 // pred_region
        %p344 = scmp.lt.s32.totalorder %s29, 0
        %s345 = scalar_select %p344, %s29, 0
        %s346 = scalar_lea.vmem %s1, %s345
      $region16: #{_forward_impl.8} parent=11 // pred_fallthru
        _
      // Predicated region
      $region17: #{_forward_impl.8} parent=11 // pred_check
        %p347 = pneg %p116
      $region18: #{_forward_impl.8} parent=11 // pred_check_branch
        %349 = sbr.rel (%p347) target = $region20
      $region19: #{_forward_impl.8} parent=11 // pred_region
        %p350 = scmp.lt.s32.totalorder %s29, 0
        %s351 = scalar_select %p350, %s29, 0
        %s352 = scalar_lea.vmem %s2, %s351
      $region20: #{_forward_impl.8} parent=11 // pred_fallthru
        _
      // Predicated region
      $region21: #{_forward_impl.8} parent=11 // pred_check
        %p353 = pneg %p142
      $region22: #{_forward_impl.8} parent=11 // pred_check_branch
        %355 = sbr.rel (%p353) target = $region24
      $region23: #{_forward_impl.8} parent=11 // pred_region
        %p356 = scmp.lt.s32.totalorder %s29, 0
        %s357 = scalar_select %p356, %s29, 0
        %s358 = scalar_lea.vmem %s3, %s357
      $region24: #{_forward_impl.8} parent=11 // pred_fallthru
        _
      // Predicated region
      $region25: #{_forward_impl.8} parent=11 // pred_check
        %p359 = pneg %p170
      $region26: #{_forward_impl.8} parent=11 // pred_check_branch
        %361 = sbr.rel (%p359) target = $region28
      $region27: #{_forward_impl.8} parent=11 // pred_region
        %s362 = smul.u32 16, %s29
        %p363 = scmp.lt.s32.totalorder %s362, 15
        %s364 = scalar_select %p363, %s362, 15
        %p365 = scmp.lt.s32.totalorder %s28, 0
        %s366 = scalar_select %p365, %s28, 0
        %s367 = sadd.s32 %s366, %s364
        %s368 = smul.addr %s367, 8
        %s369 = scalar_lea.vmem %s4, %s368
        %s370 = smul.u32 16, %s29
      $region28: #{_forward_impl.8} parent=11 // pred_fallthru
        _
      // Predicated region
      $region29: #{_forward_impl.8} parent=11 // pred_check
        %p371 = pneg %p196
      $region30: #{_forward_impl.8} parent=11 // pred_check_branch
        %373 = sbr.rel (%p371) target = $region32
      $region31: #{_forward_impl.8} parent=11 // pred_region
        %p374 = scmp.lt.s32.totalorder %s29, 0
        %s375 = scalar_select %p374, %s29, 0
        %s376 = scalar_lea.vmem %s5, %s375
      $region32: #{_forward_impl.8} parent=11 // pred_fallthru
        _
      // Predicated region
      $region33: #{_forward_impl.8} parent=11 // pred_check
        %p377 = pneg %p248
      $region34: #{_forward_impl.8} parent=11 // pred_check_branch
        %379 = sbr.rel (%p377) target = $region36
      $region35: #{_forward_impl.8} parent=11 // pred_region
        %s380 = smul.u32 16, %s28
        %p381 = scmp.lt.s32.totalorder %s380, 15
        %s382 = scalar_select %p381, %s380, 15
        %s383 = smul.addr %s382, 8
        %s384 = scalar_lea.vmem %s7, %s383
        %s385 = smul.u32 16, %s28
      $region36: #{_forward_impl.8} parent=11 // pred_fallthru
        _
    $region12: #{_forward_impl.8} parent=5 // pred_fallthru
      _
    %p386 = scmp.lt.s32.totalorder %s17, 2
    // Predicated region
    $region37: #{_forward_impl.8} parent=5 // pred_check
      %p387 = pneg %p386
    $region38: #{_forward_impl.8} parent=5 // pred_check_branch
      %389 = sbr.rel (%p387) target = $region40
    $region39: #{_forward_impl.8} parent=5 // pred_region
      // Predicated region
      $region41: #{_forward_impl.8} parent=39 // pred_check
        %p390 = pneg %p58
      $region42: #{_forward_impl.8} parent=39 // pred_check_branch
        %392 = sbr.rel (%p390) target = $region44
      $region43: #{_forward_impl.8} parent=39 // pred_region
        %s393 = smul.u32 16, %s24
        %p394 = scmp.lt.s32.totalorder %s393, 31
        %s395 = scalar_select %p394, %s393, 31
        %p396 = scmp.lt.s32.totalorder %s26, 0
        %s397 = scalar_select %p396, %s26, 0
        %s398 = sadd.s32 %s397, %s395
        %s399 = smul.addr %s398, 8
        %s400 = scalar_lea.vmem %s0, %s399
        %s401 = smul.u32 16, %s24
      $region44: #{_forward_impl.8} parent=39 // pred_fallthru
        _
      // Predicated region
      $region45: #{_forward_impl.8} parent=39 // pred_check
        %p402 = pneg %p216
      $region46: #{_forward_impl.8} parent=39 // pred_check_branch
        %404 = sbr.rel (%p402) target = $region48
      $region47: #{_forward_impl.8} parent=39 // pred_region
        %s405 = smul.u32 16, %s24
        %p406 = scmp.lt.s32.totalorder %s405, 31
        %s407 = scalar_select %p406, %s405, 31
        %s408 = smul.addr %s407, 8
        %s409 = scalar_lea.vmem %s6, %s408
        %s410 = smul.u32 16, %s24
      $region48: #{_forward_impl.8} parent=39 // pred_fallthru
        _
    $region40: #{_forward_impl.8} parent=5 // pred_fallthru
      _
    %p411 = scmp.le.s32.totalorder 1, %s17
    %p412 = scmp.lt.s32.totalorder %s17, 3
    %p413 = pnand %p411, %p412
    %p414 = pneg %p413
    // Predicated region
    $region49: #{_forward_impl.8} parent=5 // pred_check
      _
    $region50: #{_forward_impl.8} parent=5 // pred_check_branch
      %416 = sbr.rel (%p413) target = $region52
    $region51: #{_forward_impl.8} parent=5 // pred_region
      %s417 = ssub.s32 %s17, 1
      %s418 = smul.u32 16, %s27
      %p419 = scmp.lt.s32.totalorder %s418, 31
      %s420 = scalar_select %p419, %s418, 31
      %p421 = scmp.lt.s32.totalorder %s29, 0
      %s422 = scalar_select %p421, %s29, 0
      %s423 = sadd.s32 %s422, %s420
      %s424 = smul.addr %s423, 8
      %s425 = scalar_lea.vmem %s0, %s424
      %p426 = pneg %p64
      %p427 = pneg %p61
      %p428 = scmp.lt.s32.totalorder %s29, 0
      %s429 = scalar_select %p428, %s29, 0
      %s430 = scalar_lea.vmem %s1, %s429
      %p431 = pneg %p90
      %p432 = pneg %p87
      %p433 = scmp.lt.s32.totalorder %s29, 0
      %s434 = scalar_select %p433, %s29, 0
      %s435 = scalar_lea.vmem %s2, %s434
      %p436 = pneg %p116
      %p437 = pneg %p113
      %p438 = scmp.lt.s32.totalorder %s29, 0
      %s439 = scalar_select %p438, %s29, 0
      %s440 = scalar_lea.vmem %s3, %s439
      %p441 = pneg %p142
      %p442 = pneg %p139
      %s443 = smul.u32 16, %s29
      %p444 = scmp.lt.s32.totalorder %s443, 15
      %s445 = scalar_select %p444, %s443, 15
      %p446 = scmp.lt.s32.totalorder %s28, 0
      %s447 = scalar_select %p446, %s28, 0
      %s448 = sadd.s32 %s447, %s445
      %s449 = smul.addr %s448, 8
      %s450 = scalar_lea.vmem %s4, %s449
      %p451 = pneg %p170
      %p452 = pneg %p167
      %p453 = scmp.lt.s32.totalorder %s29, 0
      %s454 = scalar_select %p453, %s29, 0
      %s455 = scalar_lea.vmem %s5, %s454
      %p456 = pneg %p196
      %p457 = pneg %p193
      %s458 = smul.u32 16, %s27
      %p459 = scmp.lt.s32.totalorder %s458, 31
      %s460 = scalar_select %p459, %s458, 31
      %s461 = smul.addr %s460, 8
      %s462 = scalar_lea.vmem %s6, %s461
      %p463 = pneg %p222
      %p464 = pneg %p219
      %s465 = smul.u32 16, %s28
      %p466 = scmp.lt.s32.totalorder %s465, 15
      %s467 = scalar_select %p466, %s465, 15
      %s468 = smul.addr %s467, 8
      %s469 = scalar_lea.vmem %s7, %s468
      %p470 = pneg %p248
      %p471 = pneg %p245
      %p472 = pneg %p274
      %p473 = pneg %p271
      %s474 = smul.u32 16, %s27
      %p475 = scmp.lt.s32.totalorder %s474, 31
      %s476 = scalar_select %p475, %s474, 31
      %s477 = smul.addr %s476, 8
      %s478 = scalar_lea.vmem %s8, %s477
      %p479 = pneg %p300
      %p480 = pneg %p297
      %s481 = smul.u32 16, %s27
      %p482 = scmp.lt.s32.totalorder %s481, 31
      %s483 = scalar_select %p482, %s481, 31
      %s484 = smul.addr %s483, 8
      %s485 = scalar_lea.vmem %s9, %s484
      %p486 = pneg %p326
      %p487 = pneg %p323
      %s488 = smul.u32 16, %s27
      %p489 = scmp.lt.s32.totalorder %s488, 31
      %s490 = scalar_select %p489, %s488, 31
      %s491 = smul.addr %s490, 8
      %s492 = scalar_lea.vmem %s10, %s491
      %s493 = smul.u32 16, %s27
      %p494 = scmp.lt.s32.totalorder %s493, 31
      %s495 = scalar_select %p494, %s493, 31
      %p496 = scmp.lt.s32.totalorder %s29, 0
      %s497 = scalar_select %p496, %s29, 0
      %s498 = sadd.s32 %s497, %s495
      %s499 = smul.addr %s498, 8
      %s500 = scalar_lea.vmem %s0, %s499
      %s501 = smul.u32 16, %s27
      %p502 = scmp.lt.s32.totalorder %s29, 0
      %s503 = scalar_select %p502, %s29, 0
      %s504 = scalar_lea.vmem %s1, %s503
      %p505 = scmp.lt.s32.totalorder %s29, 0
      %s506 = scalar_select %p505, %s29, 0
      %s507 = scalar_lea.vmem %s2, %s506
      %p508 = scmp.lt.s32.totalorder %s29, 0
      %s509 = scalar_select %p508, %s29, 0
      %s510 = scalar_lea.vmem %s3, %s509
      %s511 = smul.u32 16, %s29
      %p512 = scmp.lt.s32.totalorder %s511, 15
      %s513 = scalar_select %p512, %s511, 15
      %p514 = scmp.lt.s32.totalorder %s28, 0
      %s515 = scalar_select %p514, %s28, 0
      %s516 = sadd.s32 %s515, %s513
      %s517 = smul.addr %s516, 8
      %s518 = scalar_lea.vmem %s4, %s517
      %s519 = smul.u32 16, %s29
      %p520 = scmp.lt.s32.totalorder %s29, 0
      %s521 = scalar_select %p520, %s29, 0
      %s522 = scalar_lea.vmem %s5, %s521
      %s523 = smul.u32 16, %s27
      %p524 = scmp.lt.s32.totalorder %s523, 31
      %s525 = scalar_select %p524, %s523, 31
      %s526 = smul.addr %s525, 8
      %s527 = scalar_lea.vmem %s6, %s526
      %s528 = smul.u32 16, %s27
      %s529 = smul.u32 16, %s28
      %p530 = scmp.lt.s32.totalorder %s529, 15
      %s531 = scalar_select %p530, %s529, 15
      %s532 = smul.addr %s531, 8
      %s533 = scalar_lea.vmem %s7, %s532
      %s534 = smul.u32 16, %s28
      %s535 = smul.u32 16, %s27
      %p536 = scmp.lt.s32.totalorder %s535, 31
      %s537 = scalar_select %p536, %s535, 31
      %s538 = smul.addr %s537, 8
      %s539 = scalar_lea.vmem %s8, %s538
      %s540 = smul.u32 16, %s27
      %s541 = smul.u32 16, %s27
      %p542 = scmp.lt.s32.totalorder %s541, 31
      %s543 = scalar_select %p542, %s541, 31
      %s544 = smul.addr %s543, 8
      %s545 = scalar_lea.vmem %s9, %s544
      %s546 = smul.u32 16, %s27
      %s547 = smul.u32 16, %s27
      %p548 = scmp.lt.s32.totalorder %s547, 31
      %s549 = scalar_select %p548, %s547, 31
      %s550 = smul.addr %s549, 8
      %s551 = scalar_lea.vmem %s10, %s550
      %s552 = smul.u32 16, %s27
      %p553 = scmp.eq.s32.totalorder %s28, 0
      %p554 = scmp.eq.s32.totalorder %s29, 0
      %p555 = pnand %p553, %p554
      %p556 = pneg %p555
      // Predicated region
      $region53: #{_forward_impl.8} parent=51 // pred_check
        _
      $region54: #{_forward_impl.8} parent=51 // pred_check_branch
        %558 = sbr.rel (%p555) target = $region56
      $region55: #{_forward_impl.8} parent=51 // pred_region
        %559 = vst [vmem:[#allocation3] sm:$0xff] 0.0
        %560 = vst [vmem:[#allocation3 + $0x8] sm:$0xff] 0.0
        %561 = vst [vmem:[#allocation3 + $0x10] sm:$0xff] 0.0
        %562 = vst [vmem:[#allocation3 + $0x18] sm:$0xff] 0.0
        %563 = vst [vmem:[#allocation3 + $0x20] sm:$0xff] 0.0
        %564 = vst [vmem:[#allocation3 + $0x28] sm:$0xff] 0.0
        %565 = vst [vmem:[#allocation3 + $0x30] sm:$0xff] 0.0
        %566 = vst [vmem:[#allocation3 + $0x38] sm:$0xff] 0.0
        %567 = vst [vmem:[#allocation3 + $0x40] sm:$0xff] 0.0
        %568 = vst [vmem:[#allocation3 + $0x48] sm:$0xff] 0.0
        %569 = vst [vmem:[#allocation3 + $0x50] sm:$0xff] 0.0
        %570 = vst [vmem:[#allocation3 + $0x58] sm:$0xff] 0.0
        %571 = vst [vmem:[#allocation3 + $0x60] sm:$0xff] 0.0
        %572 = vst [vmem:[#allocation3 + $0x68] sm:$0xff] 0.0
        %573 = vst [vmem:[#allocation3 + $0x70] sm:$0xff] 0.0
        %574 = vst [vmem:[#allocation3 + $0x78] sm:$0xff] 0.0
        %575 = vst [vmem:[#allocation4] sm:$0xff] 0.0
        %576 = vst [vmem:[#allocation4 + $0x8] sm:$0xff] 0.0
        %577 = vst [vmem:[#allocation4 + $0x10] sm:$0xff] 0.0
        %578 = vst [vmem:[#allocation4 + $0x18] sm:$0xff] 0.0
        %579 = vst [vmem:[#allocation4 + $0x20] sm:$0xff] 0.0
        %580 = vst [vmem:[#allocation4 + $0x28] sm:$0xff] 0.0
        %581 = vst [vmem:[#allocation4 + $0x30] sm:$0xff] 0.0
        %582 = vst [vmem:[#allocation4 + $0x38] sm:$0xff] 0.0
        %583 = vst [vmem:[#allocation4 + $0x40] sm:$0xff] 0.0
        %584 = vst [vmem:[#allocation4 + $0x48] sm:$0xff] 0.0
        %585 = vst [vmem:[#allocation4 + $0x50] sm:$0xff] 0.0
        %586 = vst [vmem:[#allocation4 + $0x58] sm:$0xff] 0.0
        %587 = vst [vmem:[#allocation4 + $0x60] sm:$0xff] 0.0
        %588 = vst [vmem:[#allocation4 + $0x68] sm:$0xff] 0.0
        %589 = vst [vmem:[#allocation4 + $0x70] sm:$0xff] 0.0
        %590 = vst [vmem:[#allocation4 + $0x78] sm:$0xff] 0.0
      $region56: #{_forward_impl.8} parent=51 // pred_fallthru
        _
      // Predicated region
      $region57: #{_forward_impl.8} parent=51 // pred_check
        %p591 = pneg %p554
      $region58: #{_forward_impl.8} parent=51 // pred_check_branch
        %593 = sbr.rel (%p591) target = $region60
      $region59: #{_forward_impl.8} parent=51 // pred_region
        %594 = vst [vmem:[#allocation2] sm:$0xff] 0.0
        %595 = vst [vmem:[#allocation2 + $0x8] sm:$0xff] 0.0
        %596 = vst [vmem:[#allocation2 + $0x10] sm:$0xff] 0.0
        %597 = vst [vmem:[#allocation2 + $0x18] sm:$0xff] 0.0
        %598 = vst [vmem:[#allocation2 + $0x20] sm:$0xff] 0.0
        %599 = vst [vmem:[#allocation2 + $0x28] sm:$0xff] 0.0
        %600 = vst [vmem:[#allocation2 + $0x30] sm:$0xff] 0.0
        %601 = vst [vmem:[#allocation2 + $0x38] sm:$0xff] 0.0
        %602 = vst [vmem:[#allocation2 + $0x40] sm:$0xff] 0.0
        %603 = vst [vmem:[#allocation2 + $0x48] sm:$0xff] 0.0
        %604 = vst [vmem:[#allocation2 + $0x50] sm:$0xff] 0.0
        %605 = vst [vmem:[#allocation2 + $0x58] sm:$0xff] 0.0
        %606 = vst [vmem:[#allocation2 + $0x60] sm:$0xff] 0.0
        %607 = vst [vmem:[#allocation2 + $0x68] sm:$0xff] 0.0
        %608 = vst [vmem:[#allocation2 + $0x70] sm:$0xff] 0.0
        %609 = vst [vmem:[#allocation2 + $0x78] sm:$0xff] 0.0
      $region60: #{_forward_impl.8} parent=51 // pred_fallthru
        _
      %p610 = scmp.ge.s32.totalorder %s27, 1
      %s611 = scalar_select %p610, 1.0, 0.0
      %v612 = vld [vmem:[%s500] sm:$0xff]
      %v613 = vld [vmem:[%s500 + $0x8] sm:$0xff]
      %v614 = vld [vmem:[%s500 + $0x10] sm:$0xff]
      %v615 = vld [vmem:[%s500 + $0x18] sm:$0xff]
      %v616 = vld [vmem:[%s500 + $0x20] sm:$0xff]
      %v617 = vld [vmem:[%s500 + $0x28] sm:$0xff]
      %v618 = vld [vmem:[%s500 + $0x30] sm:$0xff]
      %v619 = vld [vmem:[%s500 + $0x38] sm:$0xff]
      %v620 = vld [vmem:[%s500 + $0x40] sm:$0xff]
      %v621 = vld [vmem:[%s500 + $0x48] sm:$0xff]
      %v622 = vld [vmem:[%s500 + $0x50] sm:$0xff]
      %v623 = vld [vmem:[%s500 + $0x58] sm:$0xff]
      %v624 = vld [vmem:[%s500 + $0x60] sm:$0xff]
      %v625 = vld [vmem:[%s500 + $0x68] sm:$0xff]
      %v626 = vld [vmem:[%s500 + $0x70] sm:$0xff]
      %v627 = vld [vmem:[%s500 + $0x78] sm:$0xff]
      %v628 = vmax.f32 %v612, 0.0
      %v629 = vmax.f32 %v613, 0.0
      %v630 = vmax.f32 %v614, 0.0
      %v631 = vmax.f32 %v615, 0.0
      %v632 = vmax.f32 %v616, 0.0
      %v633 = vmax.f32 %v617, 0.0
      %v634 = vmax.f32 %v618, 0.0
      %v635 = vmax.f32 %v619, 0.0
      %v636 = vmax.f32 %v620, 0.0
      %v637 = vmax.f32 %v621, 0.0
      %v638 = vmax.f32 %v622, 0.0
      %v639 = vmax.f32 %v623, 0.0
      %v640 = vmax.f32 %v624, 0.0
      %v641 = vmax.f32 %v625, 0.0
      %v642 = vmax.f32 %v626, 0.0
      %v643 = vmax.f32 %v627, 0.0
      %v644 = vsub.f32 %v612, %v628
      %v645 = vsub.f32 %v613, %v629
      %v646 = vsub.f32 %v614, %v630
      %v647 = vsub.f32 %v615, %v631
      %v648 = vsub.f32 %v616, %v632
      %v649 = vsub.f32 %v617, %v633
      %v650 = vsub.f32 %v618, %v634
      %v651 = vsub.f32 %v619, %v635
      %v652 = vsub.f32 %v620, %v636
      %v653 = vsub.f32 %v621, %v637
      %v654 = vsub.f32 %v622, %v638
      %v655 = vsub.f32 %v623, %v639
      %v656 = vsub.f32 %v624, %v640
      %v657 = vsub.f32 %v625, %v641
      %v658 = vsub.f32 %v626, %v642
      %v659 = vsub.f32 %v627, %v643
      %v660 = vld [vmem:[%s504] sm:$0x1]
      %v661 = vld [vmem:[%s507] sm:$0x1]
      %v662 = vsub.f32 %v661, %v660
      %v663 = vstv %s611
      %v664 = vmul.f32 %v662, %v663
      %v665 = vadd.f32 %v660, %v664
      %v666 = vsub.f32 %v660, %v661
      %v667 = vmul.f32 %v666, %v663
      %v668 = vadd.f32 %v661, %v667
      %v670 = vlaneseq
      %v671 = vshrl.u32 %v670, 7
      %v672 = vsub.s32 0, %v671
      %v673 = vrot.slane %v665, %v672
      %v675 = vmul.f32 %v628, %v673
      %v676 = vmul.f32 %v629, %v673
      %v677 = vmul.f32 %v630, %v673
      %v678 = vmul.f32 %v631, %v673
      %v679 = vmul.f32 %v632, %v673
      %v680 = vmul.f32 %v633, %v673
      %v681 = vmul.f32 %v634, %v673
      %v682 = vmul.f32 %v635, %v673
      %v683 = vmul.f32 %v636, %v673
      %v684 = vmul.f32 %v637, %v673
      %v685 = vmul.f32 %v638, %v673
      %v686 = vmul.f32 %v639, %v673
      %v687 = vmul.f32 %v640, %v673
      %v688 = vmul.f32 %v641, %v673
      %v689 = vmul.f32 %v642, %v673
      %v690 = vmul.f32 %v643, %v673
      %v692 = vlaneseq
      %v693 = vshrl.u32 %v692, 7
      %v694 = vsub.s32 0, %v693
      %v695 = vrot.slane %v668, %v694
      %v697 = vmul.f32 %v644, %v695
      %v698 = vmul.f32 %v645, %v695
      %v699 = vmul.f32 %v646, %v695
      %v700 = vmul.f32 %v647, %v695
      %v701 = vmul.f32 %v648, %v695
      %v702 = vmul.f32 %v649, %v695
      %v703 = vmul.f32 %v650, %v695
      %v704 = vmul.f32 %v651, %v695
      %v705 = vmul.f32 %v652, %v695
      %v706 = vmul.f32 %v653, %v695
      %v707 = vmul.f32 %v654, %v695
      %v708 = vmul.f32 %v655, %v695
      %v709 = vmul.f32 %v656, %v695
      %v710 = vmul.f32 %v657, %v695
      %v711 = vmul.f32 %v658, %v695
      %v712 = vmul.f32 %v659, %v695
      %v713 = vadd.f32 %v675, %v697
      %v714 = vadd.f32 %v676, %v698
      %v715 = vadd.f32 %v677, %v699
      %v716 = vadd.f32 %v678, %v700
      %v717 = vadd.f32 %v679, %v701
      %v718 = vadd.f32 %v680, %v702
      %v719 = vadd.f32 %v681, %v703
      %v720 = vadd.f32 %v682, %v704
      %v721 = vadd.f32 %v683, %v705
      %v722 = vadd.f32 %v684, %v706
      %v723 = vadd.f32 %v685, %v707
      %v724 = vadd.f32 %v686, %v708
      %v725 = vadd.f32 %v687, %v709
      %v726 = vadd.f32 %v688, %v710
      %v727 = vadd.f32 %v689, %v711
      %v728 = vadd.f32 %v690, %v712
      %v729 = vld [vmem:[#allocation2] sm:$0xff]
      %v730 = vld [vmem:[#allocation2 + $0x8] sm:$0xff]
      %v731 = vld [vmem:[#allocation2 + $0x10] sm:$0xff]
      %v732 = vld [vmem:[#allocation2 + $0x18] sm:$0xff]
      %v733 = vld [vmem:[#allocation2 + $0x20] sm:$0xff]
      %v734 = vld [vmem:[#allocation2 + $0x28] sm:$0xff]
      %v735 = vld [vmem:[#allocation2 + $0x30] sm:$0xff]
      %v736 = vld [vmem:[#allocation2 + $0x38] sm:$0xff]
      %v737 = vld [vmem:[#allocation2 + $0x40] sm:$0xff]
      %v738 = vld [vmem:[#allocation2 + $0x48] sm:$0xff]
      %v739 = vld [vmem:[#allocation2 + $0x50] sm:$0xff]
      %v740 = vld [vmem:[#allocation2 + $0x58] sm:$0xff]
      %v741 = vld [vmem:[#allocation2 + $0x60] sm:$0xff]
      %v742 = vld [vmem:[#allocation2 + $0x68] sm:$0xff]
      %v743 = vld [vmem:[#allocation2 + $0x70] sm:$0xff]
      %v744 = vld [vmem:[#allocation2 + $0x78] sm:$0xff]
      %v745 = vld [vmem:[%s518] sm:$0xff]
      %v746 = vld [vmem:[%s518 + $0x8] sm:$0xff]
      %v747 = vld [vmem:[%s518 + $0x10] sm:$0xff]
      %v748 = vld [vmem:[%s518 + $0x18] sm:$0xff]
      %v749 = vld [vmem:[%s518 + $0x20] sm:$0xff]
      %v750 = vld [vmem:[%s518 + $0x28] sm:$0xff]
      %v751 = vld [vmem:[%s518 + $0x30] sm:$0xff]
      %v752 = vld [vmem:[%s518 + $0x38] sm:$0xff]
      %v753 = vld [vmem:[%s518 + $0x40] sm:$0xff]
      %v754 = vld [vmem:[%s518 + $0x48] sm:$0xff]
      %v755 = vld [vmem:[%s518 + $0x50] sm:$0xff]
      %v756 = vld [vmem:[%s518 + $0x58] sm:$0xff]
      %v757 = vld [vmem:[%s518 + $0x60] sm:$0xff]
      %v758 = vld [vmem:[%s518 + $0x68] sm:$0xff]
      %v759 = vld [vmem:[%s518 + $0x70] sm:$0xff]
      %v760 = vld [vmem:[%s518 + $0x78] sm:$0xff]
      %761 = vmatprep.subr.mxu0 0.0
      %762 = vmatpush1.msra.mxu0 %v745
      %763 = vmatprep.subr.mxu0 0.0
      %764 = vmatpush1.msra.mxu0 %v746
      %765 = vmatprep.subr.mxu0 0.0
      %766 = vmatpush1.msra.mxu0 %v747
      %767 = vmatprep.subr.mxu0 0.0
      %768 = vmatpush1.msra.mxu0 %v748
      %769 = vmatprep.subr.mxu0 0.0
      %770 = vmatpush1.msra.mxu0 %v749
      %771 = vmatprep.subr.mxu0 0.0
      %772 = vmatpush1.msra.mxu0 %v750
      %773 = vmatprep.subr.mxu0 0.0
      %774 = vmatpush1.msra.mxu0 %v751
      %775 = vmatprep.subr.mxu0 0.0
      %776 = vmatpush1.msra.mxu0 %v752
      %777 = vmatprep.subr.mxu0 0.0
      %778 = vmatpush1.msra.mxu0 %v753
      %779 = vmatprep.subr.mxu0 0.0
      %780 = vmatpush1.msra.mxu0 %v754
      %781 = vmatprep.subr.mxu0 0.0
      %782 = vmatpush1.msra.mxu0 %v755
      %783 = vmatprep.subr.mxu0 0.0
      %784 = vmatpush1.msra.mxu0 %v756
      %785 = vmatprep.subr.mxu0 0.0
      %786 = vmatpush1.msra.mxu0 %v757
      %787 = vmatprep.subr.mxu0 0.0
      %788 = vmatpush1.msra.mxu0 %v758
      %789 = vmatprep.subr.mxu0 0.0
      %790 = vmatpush1.msra.mxu0 %v759
      %791 = vmatprep.subr.mxu0 0.0
      %792 = vmatpush1.msra.mxu0 %v760
      %793 = vmatprep.subr.mxu0 0.0
      %794 = vmatpush1.msra.mxu0 0.0
      %795 = vmatprep.subr.mxu0 0.0
      %796 = vmatpush1.msra.mxu0 0.0
      %797 = vmatprep.subr.mxu0 0.0
      %798 = vmatpush1.msra.mxu0 0.0
      %799 = vmatprep.subr.mxu0 0.0
      %800 = vmatpush1.msra.mxu0 0.0
      %801 = vmatprep.subr.mxu0 0.0
      %802 = vmatpush1.msra.mxu0 0.0
      %803 = vmatprep.subr.mxu0 0.0
      %804 = vmatpush1.msra.mxu0 0.0
      %805 = vmatprep.subr.mxu0 0.0
      %806 = vmatpush1.msra.mxu0 0.0
      %807 = vmatprep.subr.mxu0 0.0
      %808 = vmatpush1.msra.mxu0 0.0
      %809 = vmatprep.subr.mxu0 0.0
      %810 = vmatpush1.msra.mxu0 0.0
      %811 = vmatprep.subr.mxu0 0.0
      %812 = vmatpush1.msra.mxu0 0.0
      %813 = vmatprep.subr.mxu0 0.0
      %814 = vmatpush1.msra.mxu0 0.0
      %815 = vmatprep.subr.mxu0 0.0
      %816 = vmatpush1.msra.mxu0 0.0
      %817 = vmatprep.subr.mxu0 0.0
      %818 = vmatpush1.msra.mxu0 0.0
      %819 = vmatprep.subr.mxu0 0.0
      %820 = vmatpush1.msra.mxu0 0.0
      %821 = vmatprep.subr.mxu0 0.0
      %822 = vmatpush1.msra.mxu0 0.0
      %823 = vmatprep.subr.mxu0 0.0
      %824 = vmatpush1.msra.mxu0 0.0
      %825 = vmatprep.mubr.f32.mxu0 0.0
      %826 = vmatmul.mubr.f32.gmra.mrb[0].mxu0 %v713
      %v827 = vpop.f32.mrb[0].mxu0
      %v828 = vadd.f32 0.0, %v827
      %v829 = vpop.f32.mrb[0].mxu0
      %830 = vmatprep.mubr.f32.mxu0 0.0
      %831 = vmatmul.mubr.f32.gmra.mrb[0].mxu0 %v714
      %v832 = vpop.f32.mrb[0].mxu0
      %v833 = vadd.f32 0.0, %v832
      %v834 = vpop.f32.mrb[0].mxu0
      %835 = vmatprep.mubr.f32.mxu0 0.0
      %836 = vmatmul.mubr.f32.gmra.mrb[0].mxu0 %v715
      %v837 = vpop.f32.mrb[0].mxu0
      %v838 = vadd.f32 0.0, %v837
      %v839 = vpop.f32.mrb[0].mxu0
      %840 = vmatprep.mubr.f32.mxu0 0.0
      %841 = vmatmul.mubr.f32.gmra.mrb[0].mxu0 %v716
      %v842 = vpop.f32.mrb[0].mxu0
      %v843 = vadd.f32 0.0, %v842
      %v844 = vpop.f32.mrb[0].mxu0
      %845 = vmatprep.mubr.f32.mxu0 0.0
      %846 = vmatmul.mubr.f32.gmra.mrb[0].mxu0 %v717
      %v847 = vpop.f32.mrb[0].mxu0
      %v848 = vadd.f32 0.0, %v847
      %v849 = vpop.f32.mrb[0].mxu0
      %850 = vmatprep.mubr.f32.mxu0 0.0
      %851 = vmatmul.mubr.f32.gmra.mrb[0].mxu0 %v718
      %v852 = vpop.f32.mrb[0].mxu0
      %v853 = vadd.f32 0.0, %v852
      %v854 = vpop.f32.mrb[0].mxu0
      %855 = vmatprep.mubr.f32.mxu0 0.0
      %856 = vmatmul.mubr.f32.gmra.mrb[0].mxu0 %v719
      %v857 = vpop.f32.mrb[0].mxu0
      %v858 = vadd.f32 0.0, %v857
      %v859 = vpop.f32.mrb[0].mxu0
      %860 = vmatprep.mubr.f32.mxu0 0.0
      %861 = vmatmul.mubr.f32.gmra.mrb[0].mxu0 %v720
      %v862 = vpop.f32.mrb[0].mxu0
      %v863 = vadd.f32 0.0, %v862
      %v864 = vpop.f32.mrb[0].mxu0
      %865 = vmatprep.mubr.f32.mxu0 0.0
      %866 = vmatmul.mubr.f32.gmra.mrb[0].mxu0 %v721
      %v867 = vpop.f32.mrb[0].mxu0
      %v868 = vadd.f32 0.0, %v867
      %v869 = vpop.f32.mrb[0].mxu0
      %870 = vmatprep.mubr.f32.mxu0 0.0
      %871 = vmatmul.mubr.f32.gmra.mrb[0].mxu0 %v722
      %v872 = vpop.f32.mrb[0].mxu0
      %v873 = vadd.f32 0.0, %v872
      %v874 = vpop.f32.mrb[0].mxu0
      %875 = vmatprep.mubr.f32.mxu0 0.0
      %876 = vmatmul.mubr.f32.gmra.mrb[0].mxu0 %v723
      %v877 = vpop.f32.mrb[0].mxu0
      %v878 = vadd.f32 0.0, %v877
      %v879 = vpop.f32.mrb[0].mxu0
      %880 = vmatprep.mubr.f32.mxu0 0.0
      %881 = vmatmul.mubr.f32.gmra.mrb[0].mxu0 %v724
      %v882 = vpop.f32.mrb[0].mxu0
      %v883 = vadd.f32 0.0, %v882
      %v884 = vpop.f32.mrb[0].mxu0
      %885 = vmatprep.mubr.f32.mxu0 0.0
      %886 = vmatmul.mubr.f32.gmra.mrb[0].mxu0 %v725
      %v887 = vpop.f32.mrb[0].mxu0
      %v888 = vadd.f32 0.0, %v887
      %v889 = vpop.f32.mrb[0].mxu0
      %890 = vmatprep.mubr.f32.mxu0 0.0
      %891 = vmatmul.mubr.f32.gmra.mrb[0].mxu0 %v726
      %v892 = vpop.f32.mrb[0].mxu0
      %v893 = vadd.f32 0.0, %v892
      %v894 = vpop.f32.mrb[0].mxu0
      %895 = vmatprep.mubr.f32.mxu0 0.0
      %896 = vmatmul.mubr.f32.gmra.mrb[0].mxu0 %v727
      %v897 = vpop.f32.mrb[0].mxu0
      %v898 = vadd.f32 0.0, %v897
      %v899 = vpop.f32.mrb[0].mxu0
      %900 = vmatprep.mubr.f32.mxu0 0.0
      %901 = vmatmul.mubr.f32.gmra.mrb[0].mxu0 %v728
      %v902 = vpop.f32.mrb[0].mxu0
      %v903 = vadd.f32 0.0, %v902
      %v904 = vpop.f32.mrb[0].mxu0
      %905 = vdwg.mxu0
      %v906 = vadd.f32 %v729, %v828
      %v907 = vadd.f32 %v730, %v833
      %v908 = vadd.f32 %v731, %v838
      %v909 = vadd.f32 %v732, %v843
      %v910 = vadd.f32 %v733, %v848
      %v911 = vadd.f32 %v734, %v853
      %v912 = vadd.f32 %v735, %v858
      %v913 = vadd.f32 %v736, %v863
      %v914 = vadd.f32 %v737, %v868
      %v915 = vadd.f32 %v738, %v873
      %v916 = vadd.f32 %v739, %v878
      %v917 = vadd.f32 %v740, %v883
      %v918 = vadd.f32 %v741, %v888
      %v919 = vadd.f32 %v742, %v893
      %v920 = vadd.f32 %v743, %v898
      %v921 = vadd.f32 %v744, %v903
      %922 = vst [vmem:[#allocation2] sm:$0xff] %v906
      %923 = vst [vmem:[#allocation2 + $0x8] sm:$0xff] %v907
      %924 = vst [vmem:[#allocation2 + $0x10] sm:$0xff] %v908
      %925 = vst [vmem:[#allocation2 + $0x18] sm:$0xff] %v909
      %926 = vst [vmem:[#allocation2 + $0x20] sm:$0xff] %v910
      %927 = vst [vmem:[#allocation2 + $0x28] sm:$0xff] %v911
      %928 = vst [vmem:[#allocation2 + $0x30] sm:$0xff] %v912
      %929 = vst [vmem:[#allocation2 + $0x38] sm:$0xff] %v913
      %930 = vst [vmem:[#allocation2 + $0x40] sm:$0xff] %v914
      %931 = vst [vmem:[#allocation2 + $0x48] sm:$0xff] %v915
      %932 = vst [vmem:[#allocation2 + $0x50] sm:$0xff] %v916
      %933 = vst [vmem:[#allocation2 + $0x58] sm:$0xff] %v917
      %934 = vst [vmem:[#allocation2 + $0x60] sm:$0xff] %v918
      %935 = vst [vmem:[#allocation2 + $0x68] sm:$0xff] %v919
      %936 = vst [vmem:[#allocation2 + $0x70] sm:$0xff] %v920
      %937 = vst [vmem:[#allocation2 + $0x78] sm:$0xff] %v921
      // Predicated region
      $region61: #{_forward_impl.8} parent=51 // pred_check
        _
      $region62: #{_forward_impl.8} parent=51 // pred_check_branch
        %939 = sbr.rel (%p555) target = $region64
      $region63: #{_forward_impl.8} parent=51 // pred_region
        %vm940 = vcmask 7168
        %941 = vst.msk [vmem:[#allocation5] sm:$0xff] %vm940, 0.0
        %942 = vst.msk [vmem:[#allocation5 + $0x8] sm:$0xff] %vm940, 0.0
        %943 = vst.msk [vmem:[#allocation5 + $0x10] sm:$0xff] %vm940, 0.0
        %944 = vst.msk [vmem:[#allocation5 + $0x18] sm:$0xff] %vm940, 0.0
        %945 = vst.msk [vmem:[#allocation5 + $0x20] sm:$0xff] %vm940, 0.0
        %946 = vst.msk [vmem:[#allocation5 + $0x28] sm:$0xff] %vm940, 0.0
        %947 = vst.msk [vmem:[#allocation5 + $0x30] sm:$0xff] %vm940, 0.0
        %948 = vst.msk [vmem:[#allocation5 + $0x38] sm:$0xff] %vm940, 0.0
        %949 = vst.msk [vmem:[#allocation5 + $0x40] sm:$0xff] %vm940, 0.0
        %950 = vst.msk [vmem:[#allocation5 + $0x48] sm:$0xff] %vm940, 0.0
        %951 = vst.msk [vmem:[#allocation5 + $0x50] sm:$0xff] %vm940, 0.0
        %952 = vst.msk [vmem:[#allocation5 + $0x58] sm:$0xff] %vm940, 0.0
        %953 = vst.msk [vmem:[#allocation5 + $0x60] sm:$0xff] %vm940, 0.0
        %954 = vst.msk [vmem:[#allocation5 + $0x68] sm:$0xff] %vm940, 0.0
        %955 = vst.msk [vmem:[#allocation5 + $0x70] sm:$0xff] %vm940, 0.0
        %956 = vst.msk [vmem:[#allocation5 + $0x78] sm:$0xff] %vm940, 0.0
      $region64: #{_forward_impl.8} parent=51 // pred_fallthru
        _
      // Predicated region
      $region65: #{_forward_impl.8} parent=51 // pred_check
        %p957 = pneg %p553
      $region66: #{_forward_impl.8} parent=51 // pred_check_branch
        %959 = sbr.rel (%p957) target = $region68
      $region67: #{_forward_impl.8} parent=51 // pred_region
        %v960 = vsub.f32 %v628, %v644
        %v961 = vsub.f32 %v629, %v645
        %v962 = vsub.f32 %v630, %v646
        %v963 = vsub.f32 %v631, %v647
        %v964 = vsub.f32 %v632, %v648
        %v965 = vsub.f32 %v633, %v649
        %v966 = vsub.f32 %v634, %v650
        %v967 = vsub.f32 %v635, %v651
        %v968 = vsub.f32 %v636, %v652
        %v969 = vsub.f32 %v637, %v653
        %v970 = vsub.f32 %v638, %v654
        %v971 = vsub.f32 %v639, %v655
        %v972 = vsub.f32 %v640, %v656
        %v973 = vsub.f32 %v641, %v657
        %v974 = vsub.f32 %v642, %v658
        %v975 = vsub.f32 %v643, %v659
        %v976 = vmul.f32 %v960, %v663
        %v977 = vmul.f32 %v961, %v663
        %v978 = vmul.f32 %v962, %v663
        %v979 = vmul.f32 %v963, %v663
        %v980 = vmul.f32 %v964, %v663
        %v981 = vmul.f32 %v965, %v663
        %v982 = vmul.f32 %v966, %v663
        %v983 = vmul.f32 %v967, %v663
        %v984 = vmul.f32 %v968, %v663
        %v985 = vmul.f32 %v969, %v663
        %v986 = vmul.f32 %v970, %v663
        %v987 = vmul.f32 %v971, %v663
        %v988 = vmul.f32 %v972, %v663
        %v989 = vmul.f32 %v973, %v663
        %v990 = vmul.f32 %v974, %v663
        %v991 = vmul.f32 %v975, %v663
        %v992 = vadd.f32 %v644, %v976
        %v993 = vadd.f32 %v645, %v977
        %v994 = vadd.f32 %v646, %v978
        %v995 = vadd.f32 %v647, %v979
        %v996 = vadd.f32 %v648, %v980
        %v997 = vadd.f32 %v649, %v981
        %v998 = vadd.f32 %v650, %v982
        %v999 = vadd.f32 %v651, %v983
        %v1000 = vadd.f32 %v652, %v984
        %v1001 = vadd.f32 %v653, %v985
        %v1002 = vadd.f32 %v654, %v986
        %v1003 = vadd.f32 %v655, %v987
        %v1004 = vadd.f32 %v656, %v988
        %v1005 = vadd.f32 %v657, %v989
        %v1006 = vadd.f32 %v658, %v990
        %v1007 = vadd.f32 %v659, %v991
        %v1008 = vld [vmem:[#allocation5] sm:$0xff]
        %v1009 = vld [vmem:[#allocation5 + $0x8] sm:$0xff]
        %v1010 = vld [vmem:[#allocation5 + $0x10] sm:$0xff]
        %v1011 = vld [vmem:[#allocation5 + $0x18] sm:$0xff]
        %v1012 = vld [vmem:[#allocation5 + $0x20] sm:$0xff]
        %v1013 = vld [vmem:[#allocation5 + $0x28] sm:$0xff]
        %v1014 = vld [vmem:[#allocation5 + $0x30] sm:$0xff]
        %v1015 = vld [vmem:[#allocation5 + $0x38] sm:$0xff]
        %v1016 = vld [vmem:[#allocation5 + $0x40] sm:$0xff]
        %v1017 = vld [vmem:[#allocation5 + $0x48] sm:$0xff]
        %v1018 = vld [vmem:[#allocation5 + $0x50] sm:$0xff]
        %v1019 = vld [vmem:[#allocation5 + $0x58] sm:$0xff]
        %v1020 = vld [vmem:[#allocation5 + $0x60] sm:$0xff]
        %v1021 = vld [vmem:[#allocation5 + $0x68] sm:$0xff]
        %v1022 = vld [vmem:[#allocation5 + $0x70] sm:$0xff]
        %v1023 = vld [vmem:[#allocation5 + $0x78] sm:$0xff]
        %v1024 = vld [vmem:[%s522] sm:$0x1]
        %v1026 = vlaneseq
        %v1027 = vshrl.u32 %v1026, 7
        %v1028 = vsub.s32 0, %v1027
        %v1029 = vrot.slane %v1024, %v1028
        %v1031 = vmul.f32 %v713, %v1029
        %v1032 = vmul.f32 %v714, %v1029
        %v1033 = vmul.f32 %v715, %v1029
        %v1034 = vmul.f32 %v716, %v1029
        %v1035 = vmul.f32 %v717, %v1029
        %v1036 = vmul.f32 %v718, %v1029
        %v1037 = vmul.f32 %v719, %v1029
        %v1038 = vmul.f32 %v720, %v1029
        %v1039 = vmul.f32 %v721, %v1029
        %v1040 = vmul.f32 %v722, %v1029
        %v1041 = vmul.f32 %v723, %v1029
        %v1042 = vmul.f32 %v724, %v1029
        %v1043 = vmul.f32 %v725, %v1029
        %v1044 = vmul.f32 %v726, %v1029
        %v1045 = vmul.f32 %v727, %v1029
        %v1046 = vmul.f32 %v728, %v1029
        %v1047 = vld [vmem:[%s510] sm:$0x1]
        %v1049 = vlaneseq
        %v1050 = vshrl.u32 %v1049, 7
        %v1051 = vsub.s32 0, %v1050
        %v1052 = vrot.slane %v1047, %v1051
        %v1054 = vmul.f32 %v992, %v1052
        %v1055 = vmul.f32 %v993, %v1052
        %v1056 = vmul.f32 %v994, %v1052
        %v1057 = vmul.f32 %v995, %v1052
        %v1058 = vmul.f32 %v996, %v1052
        %v1059 = vmul.f32 %v997, %v1052
        %v1060 = vmul.f32 %v998, %v1052
        %v1061 = vmul.f32 %v999, %v1052
        %v1062 = vmul.f32 %v1000, %v1052
        %v1063 = vmul.f32 %v1001, %v1052
        %v1064 = vmul.f32 %v1002, %v1052
        %v1065 = vmul.f32 %v1003, %v1052
        %v1066 = vmul.f32 %v1004, %v1052
        %v1067 = vmul.f32 %v1005, %v1052
        %v1068 = vmul.f32 %v1006, %v1052
        %v1069 = vmul.f32 %v1007, %v1052
        %v1070 = vadd.f32 %v1031, %v1054
        %v1071 = vadd.f32 %v1032, %v1055
        %v1072 = vadd.f32 %v1033, %v1056
        %v1073 = vadd.f32 %v1034, %v1057
        %v1074 = vadd.f32 %v1035, %v1058
        %v1075 = vadd.f32 %v1036, %v1059
        %v1076 = vadd.f32 %v1037, %v1060
        %v1077 = vadd.f32 %v1038, %v1061
        %v1078 = vadd.f32 %v1039, %v1062
        %v1079 = vadd.f32 %v1040, %v1063
        %v1080 = vadd.f32 %v1041, %v1064
        %v1081 = vadd.f32 %v1042, %v1065
        %v1082 = vadd.f32 %v1043, %v1066
        %v1083 = vadd.f32 %v1044, %v1067
        %v1084 = vadd.f32 %v1045, %v1068
        %v1085 = vadd.f32 %v1046, %v1069
        %1086 = vadd.xlane.f32.xlu0 %v1070
        %v1087 = vpop.xlane.xlu0 %1086
        %1088 = vadd.xlane.f32.xlu0 %v1071
        %v1089 = vpop.xlane.xlu0 %1088
        %1090 = vadd.xlane.f32.xlu0 %v1072
        %v1091 = vpop.xlane.xlu0 %1090
        %1092 = vadd.xlane.f32.xlu0 %v1073
        %v1093 = vpop.xlane.xlu0 %1092
        %1094 = vadd.xlane.f32.xlu0 %v1074
        %v1095 = vpop.xlane.xlu0 %1094
        %1096 = vadd.xlane.f32.xlu0 %v1075
        %v1097 = vpop.xlane.xlu0 %1096
        %1098 = vadd.xlane.f32.xlu0 %v1076
        %v1099 = vpop.xlane.xlu0 %1098
        %1100 = vadd.xlane.f32.xlu0 %v1077
        %v1101 = vpop.xlane.xlu0 %1100
        %1102 = vadd.xlane.f32.xlu0 %v1078
        %v1103 = vpop.xlane.xlu0 %1102
        %1104 = vadd.xlane.f32.xlu0 %v1079
        %v1105 = vpop.xlane.xlu0 %1104
        %1106 = vadd.xlane.f32.xlu0 %v1080
        %v1107 = vpop.xlane.xlu0 %1106
        %1108 = vadd.xlane.f32.xlu0 %v1081
        %v1109 = vpop.xlane.xlu0 %1108
        %1110 = vadd.xlane.f32.xlu0 %v1082
        %v1111 = vpop.xlane.xlu0 %1110
        %1112 = vadd.xlane.f32.xlu0 %v1083
        %v1113 = vpop.xlane.xlu0 %1112
        %1114 = vadd.xlane.f32.xlu0 %v1084
        %v1115 = vpop.xlane.xlu0 %1114
        %1116 = vadd.xlane.f32.xlu0 %v1085
        %v1117 = vpop.xlane.xlu0 %1116
        %v1118 = vadd.f32 %v1008, %v1087
        %v1119 = vadd.f32 %v1009, %v1089
        %v1120 = vadd.f32 %v1010, %v1091
        %v1121 = vadd.f32 %v1011, %v1093
        %v1122 = vadd.f32 %v1012, %v1095
        %v1123 = vadd.f32 %v1013, %v1097
        %v1124 = vadd.f32 %v1014, %v1099
        %v1125 = vadd.f32 %v1015, %v1101
        %v1126 = vadd.f32 %v1016, %v1103
        %v1127 = vadd.f32 %v1017, %v1105
        %v1128 = vadd.f32 %v1018, %v1107
        %v1129 = vadd.f32 %v1019, %v1109
        %v1130 = vadd.f32 %v1020, %v1111
        %v1131 = vadd.f32 %v1021, %v1113
        %v1132 = vadd.f32 %v1022, %v1115
        %v1133 = vadd.f32 %v1023, %v1117
        %vm1134 = vcmask 7168
        %1135 = vst.msk [vmem:[#allocation5] sm:$0xff] %vm1134, %v1118
        %1136 = vst.msk [vmem:[#allocation5 + $0x8] sm:$0xff] %vm1134, %v1119
        %1137 = vst.msk [vmem:[#allocation5 + $0x10] sm:$0xff] %vm1134, %v1120
        %1138 = vst.msk [vmem:[#allocation5 + $0x18] sm:$0xff] %vm1134, %v1121
        %1139 = vst.msk [vmem:[#allocation5 + $0x20] sm:$0xff] %vm1134, %v1122
        %1140 = vst.msk [vmem:[#allocation5 + $0x28] sm:$0xff] %vm1134, %v1123
        %1141 = vst.msk [vmem:[#allocation5 + $0x30] sm:$0xff] %vm1134, %v1124
        %1142 = vst.msk [vmem:[#allocation5 + $0x38] sm:$0xff] %vm1134, %v1125
        %1143 = vst.msk [vmem:[#allocation5 + $0x40] sm:$0xff] %vm1134, %v1126
        %1144 = vst.msk [vmem:[#allocation5 + $0x48] sm:$0xff] %vm1134, %v1127
        %1145 = vst.msk [vmem:[#allocation5 + $0x50] sm:$0xff] %vm1134, %v1128
        %1146 = vst.msk [vmem:[#allocation5 + $0x58] sm:$0xff] %vm1134, %v1129
        %1147 = vst.msk [vmem:[#allocation5 + $0x60] sm:$0xff] %vm1134, %v1130
        %1148 = vst.msk [vmem:[#allocation5 + $0x68] sm:$0xff] %vm1134, %v1131
        %1149 = vst.msk [vmem:[#allocation5 + $0x70] sm:$0xff] %vm1134, %v1132
        %1150 = vst.msk [vmem:[#allocation5 + $0x78] sm:$0xff] %vm1134, %v1133
      $region68: #{_forward_impl.8} parent=51 // pred_fallthru
        _
      // Predicated region
      $region69: #{_forward_impl.8} parent=51 // pred_check
        %p1151 = pneg %p554
      $region70: #{_forward_impl.8} parent=51 // pred_check_branch
        %1153 = sbr.rel (%p1151) target = $region72
      $region71: #{_forward_impl.8} parent=51 // pred_region
        %v1154 = vld [vmem:[#allocation2] sm:$0xff]
        %v1155 = vld [vmem:[#allocation2 + $0x8] sm:$0xff]
        %v1156 = vld [vmem:[#allocation2 + $0x10] sm:$0xff]
        %v1157 = vld [vmem:[#allocation2 + $0x18] sm:$0xff]
        %v1158 = vld [vmem:[#allocation2 + $0x20] sm:$0xff]
        %v1159 = vld [vmem:[#allocation2 + $0x28] sm:$0xff]
        %v1160 = vld [vmem:[#allocation2 + $0x30] sm:$0xff]
        %v1161 = vld [vmem:[#allocation2 + $0x38] sm:$0xff]
        %v1162 = vld [vmem:[#allocation2 + $0x40] sm:$0xff]
        %v1163 = vld [vmem:[#allocation2 + $0x48] sm:$0xff]
        %v1164 = vld [vmem:[#allocation2 + $0x50] sm:$0xff]
        %v1165 = vld [vmem:[#allocation2 + $0x58] sm:$0xff]
        %v1166 = vld [vmem:[#allocation2 + $0x60] sm:$0xff]
        %v1167 = vld [vmem:[#allocation2 + $0x68] sm:$0xff]
        %v1168 = vld [vmem:[#allocation2 + $0x70] sm:$0xff]
        %v1169 = vld [vmem:[#allocation2 + $0x78] sm:$0xff]
        %v1170 = vld [vmem:[%s533] sm:$0xff]
        %v1171 = vld [vmem:[%s533 + $0x8] sm:$0xff]
        %v1172 = vld [vmem:[%s533 + $0x10] sm:$0xff]
        %v1173 = vld [vmem:[%s533 + $0x18] sm:$0xff]
        %v1174 = vld [vmem:[%s533 + $0x20] sm:$0xff]
        %v1175 = vld [vmem:[%s533 + $0x28] sm:$0xff]
        %v1176 = vld [vmem:[%s533 + $0x30] sm:$0xff]
        %v1177 = vld [vmem:[%s533 + $0x38] sm:$0xff]
        %v1178 = vld [vmem:[%s533 + $0x40] sm:$0xff]
        %v1179 = vld [vmem:[%s533 + $0x48] sm:$0xff]
        %v1180 = vld [vmem:[%s533 + $0x50] sm:$0xff]
        %v1181 = vld [vmem:[%s533 + $0x58] sm:$0xff]
        %v1182 = vld [vmem:[%s533 + $0x60] sm:$0xff]
        %v1183 = vld [vmem:[%s533 + $0x68] sm:$0xff]
        %v1184 = vld [vmem:[%s533 + $0x70] sm:$0xff]
        %v1185 = vld [vmem:[%s533 + $0x78] sm:$0xff]
        %v1186 = vld [vmem:[#allocation3] sm:$0xff]
        %v1187 = vld [vmem:[#allocation3 + $0x8] sm:$0xff]
        %v1188 = vld [vmem:[#allocation3 + $0x10] sm:$0xff]
        %v1189 = vld [vmem:[#allocation3 + $0x18] sm:$0xff]
        %v1190 = vld [vmem:[#allocation3 + $0x20] sm:$0xff]
        %v1191 = vld [vmem:[#allocation3 + $0x28] sm:$0xff]
        %v1192 = vld [vmem:[#allocation3 + $0x30] sm:$0xff]
        %v1193 = vld [vmem:[#allocation3 + $0x38] sm:$0xff]
        %v1194 = vld [vmem:[#allocation3 + $0x40] sm:$0xff]
        %v1195 = vld [vmem:[#allocation3 + $0x48] sm:$0xff]
        %v1196 = vld [vmem:[#allocation3 + $0x50] sm:$0xff]
        %v1197 = vld [vmem:[#allocation3 + $0x58] sm:$0xff]
        %v1198 = vld [vmem:[#allocation3 + $0x60] sm:$0xff]
        %v1199 = vld [vmem:[#allocation3 + $0x68] sm:$0xff]
        %v1200 = vld [vmem:[#allocation3 + $0x70] sm:$0xff]
        %v1201 = vld [vmem:[#allocation3 + $0x78] sm:$0xff]
        %1202 = vmatprep.subr.mxu0 0.0
        %1203 = vmatpush1.msra.mxu0 %v1170
        %1204 = vmatprep.subr.mxu0 0.0
        %1205 = vmatpush1.msra.mxu0 %v1171
        %1206 = vmatprep.subr.mxu0 0.0
        %1207 = vmatpush1.msra.mxu0 %v1172
        %1208 = vmatprep.subr.mxu0 0.0
        %1209 = vmatpush1.msra.mxu0 %v1173
        %1210 = vmatprep.subr.mxu0 0.0
        %1211 = vmatpush1.msra.mxu0 %v1174
        %1212 = vmatprep.subr.mxu0 0.0
        %1213 = vmatpush1.msra.mxu0 %v1175
        %1214 = vmatprep.subr.mxu0 0.0
        %1215 = vmatpush1.msra.mxu0 %v1176
        %1216 = vmatprep.subr.mxu0 0.0
        %1217 = vmatpush1.msra.mxu0 %v1177
        %1218 = vmatprep.subr.mxu0 0.0
        %1219 = vmatpush1.msra.mxu0 %v1178
        %1220 = vmatprep.subr.mxu0 0.0
        %1221 = vmatpush1.msra.mxu0 %v1179
        %1222 = vmatprep.subr.mxu0 0.0
        %1223 = vmatpush1.msra.mxu0 %v1180
        %1224 = vmatprep.subr.mxu0 0.0
        %1225 = vmatpush1.msra.mxu0 %v1181
        %1226 = vmatprep.subr.mxu0 0.0
        %1227 = vmatpush1.msra.mxu0 %v1182
        %1228 = vmatprep.subr.mxu0 0.0
        %1229 = vmatpush1.msra.mxu0 %v1183
        %1230 = vmatprep.subr.mxu0 0.0
        %1231 = vmatpush1.msra.mxu0 %v1184
        %1232 = vmatprep.subr.mxu0 0.0
        %1233 = vmatpush1.msra.mxu0 %v1185
        %1234 = vmatprep.subr.mxu0 0.0
        %1235 = vmatpush1.msra.mxu0 0.0
        %1236 = vmatprep.subr.mxu0 0.0
        %1237 = vmatpush1.msra.mxu0 0.0
        %1238 = vmatprep.subr.mxu0 0.0
        %1239 = vmatpush1.msra.mxu0 0.0
        %1240 = vmatprep.subr.mxu0 0.0
        %1241 = vmatpush1.msra.mxu0 0.0
        %1242 = vmatprep.subr.mxu0 0.0
        %1243 = vmatpush1.msra.mxu0 0.0
        %1244 = vmatprep.subr.mxu0 0.0
        %1245 = vmatpush1.msra.mxu0 0.0
        %1246 = vmatprep.subr.mxu0 0.0
        %1247 = vmatpush1.msra.mxu0 0.0
        %1248 = vmatprep.subr.mxu0 0.0
        %1249 = vmatpush1.msra.mxu0 0.0
        %1250 = vmatprep.subr.mxu0 0.0
        %1251 = vmatpush1.msra.mxu0 0.0
        %1252 = vmatprep.subr.mxu0 0.0
        %1253 = vmatpush1.msra.mxu0 0.0
        %1254 = vmatprep.subr.mxu0 0.0
        %1255 = vmatpush1.msra.mxu0 0.0
        %1256 = vmatprep.subr.mxu0 0.0
        %1257 = vmatpush1.msra.mxu0 0.0
        %1258 = vmatprep.subr.mxu0 0.0
        %1259 = vmatpush1.msra.mxu0 0.0
        %1260 = vmatprep.subr.mxu0 0.0
        %1261 = vmatpush1.msra.mxu0 0.0
        %1262 = vmatprep.subr.mxu0 0.0
        %1263 = vmatpush1.msra.mxu0 0.0
        %1264 = vmatprep.subr.mxu0 0.0
        %1265 = vmatpush1.msra.mxu0 0.0
        %1266 = vmatprep.mubr.f32.mxu0 0.0
        %1267 = vmatmul.mubr.f32.gmra.mrb[0].mxu0 %v1154
        %v1268 = vpop.f32.mrb[0].mxu0
        %v1269 = vadd.f32 0.0, %v1268
        %v1270 = vpop.f32.mrb[0].mxu0
        %1271 = vmatprep.mubr.f32.mxu0 0.0
        %1272 = vmatmul.mubr.f32.gmra.mrb[0].mxu0 %v1155
        %v1273 = vpop.f32.mrb[0].mxu0
        %v1274 = vadd.f32 0.0, %v1273
        %v1275 = vpop.f32.mrb[0].mxu0
        %1276 = vmatprep.mubr.f32.mxu0 0.0
        %1277 = vmatmul.mubr.f32.gmra.mrb[0].mxu0 %v1156
        %v1278 = vpop.f32.mrb[0].mxu0
        %v1279 = vadd.f32 0.0, %v1278
        %v1280 = vpop.f32.mrb[0].mxu0
        %1281 = vmatprep.mubr.f32.mxu0 0.0
        %1282 = vmatmul.mubr.f32.gmra.mrb[0].mxu0 %v1157
        %v1283 = vpop.f32.mrb[0].mxu0
        %v1284 = vadd.f32 0.0, %v1283
        %v1285 = vpop.f32.mrb[0].mxu0
        %1286 = vmatprep.mubr.f32.mxu0 0.0
        %1287 = vmatmul.mubr.f32.gmra.mrb[0].mxu0 %v1158
        %v1288 = vpop.f32.mrb[0].mxu0
        %v1289 = vadd.f32 0.0, %v1288
        %v1290 = vpop.f32.mrb[0].mxu0
        %1291 = vmatprep.mubr.f32.mxu0 0.0
        %1292 = vmatmul.mubr.f32.gmra.mrb[0].mxu0 %v1159
        %v1293 = vpop.f32.mrb[0].mxu0
        %v1294 = vadd.f32 0.0, %v1293
        %v1295 = vpop.f32.mrb[0].mxu0
        %1296 = vmatprep.mubr.f32.mxu0 0.0
        %1297 = vmatmul.mubr.f32.gmra.mrb[0].mxu0 %v1160
        %v1298 = vpop.f32.mrb[0].mxu0
        %v1299 = vadd.f32 0.0, %v1298
        %v1300 = vpop.f32.mrb[0].mxu0
        %1301 = vmatprep.mubr.f32.mxu0 0.0
        %1302 = vmatmul.mubr.f32.gmra.mrb[0].mxu0 %v1161
        %v1303 = vpop.f32.mrb[0].mxu0
        %v1304 = vadd.f32 0.0, %v1303
        %v1305 = vpop.f32.mrb[0].mxu0
        %1306 = vmatprep.mubr.f32.mxu0 0.0
        %1307 = vmatmul.mubr.f32.gmra.mrb[0].mxu0 %v1162
        %v1308 = vpop.f32.mrb[0].mxu0
        %v1309 = vadd.f32 0.0, %v1308
        %v1310 = vpop.f32.mrb[0].mxu0
        %1311 = vmatprep.mubr.f32.mxu0 0.0
        %1312 = vmatmul.mubr.f32.gmra.mrb[0].mxu0 %v1163
        %v1313 = vpop.f32.mrb[0].mxu0
        %v1314 = vadd.f32 0.0, %v1313
        %v1315 = vpop.f32.mrb[0].mxu0
        %1316 = vmatprep.mubr.f32.mxu0 0.0
        %1317 = vmatmul.mubr.f32.gmra.mrb[0].mxu0 %v1164
        %v1318 = vpop.f32.mrb[0].mxu0
        %v1319 = vadd.f32 0.0, %v1318
        %v1320 = vpop.f32.mrb[0].mxu0
        %1321 = vmatprep.mubr.f32.mxu0 0.0
        %1322 = vmatmul.mubr.f32.gmra.mrb[0].mxu0 %v1165
        %v1323 = vpop.f32.mrb[0].mxu0
        %v1324 = vadd.f32 0.0, %v1323
        %v1325 = vpop.f32.mrb[0].mxu0
        %1326 = vmatprep.mubr.f32.mxu0 0.0
        %1327 = vmatmul.mubr.f32.gmra.mrb[0].mxu0 %v1166
        %v1328 = vpop.f32.mrb[0].mxu0
        %v1329 = vadd.f32 0.0, %v1328
        %v1330 = vpop.f32.mrb[0].mxu0
        %1331 = vmatprep.mubr.f32.mxu0 0.0
        %1332 = vmatmul.mubr.f32.gmra.mrb[0].mxu0 %v1167
        %v1333 = vpop.f32.mrb[0].mxu0
        %v1334 = vadd.f32 0.0, %v1333
        %v1335 = vpop.f32.mrb[0].mxu0
        %1336 = vmatprep.mubr.f32.mxu0 0.0
        %1337 = vmatmul.mubr.f32.gmra.mrb[0].mxu0 %v1168
        %v1338 = vpop.f32.mrb[0].mxu0
        %v1339 = vadd.f32 0.0, %v1338
        %v1340 = vpop.f32.mrb[0].mxu0
        %1341 = vmatprep.mubr.f32.mxu0 0.0
        %1342 = vmatmul.mubr.f32.gmra.mrb[0].mxu0 %v1169
        %v1343 = vpop.f32.mrb[0].mxu0
        %v1344 = vadd.f32 0.0, %v1343
        %v1345 = vpop.f32.mrb[0].mxu0
        %1346 = vdwg.mxu0
        %v1347 = vadd.f32 %v1186, %v1269
        %v1348 = vadd.f32 %v1187, %v1274
        %v1349 = vadd.f32 %v1188, %v1279
        %v1350 = vadd.f32 %v1189, %v1284
        %v1351 = vadd.f32 %v1190, %v1289
        %v1352 = vadd.f32 %v1191, %v1294
        %v1353 = vadd.f32 %v1192, %v1299
        %v1354 = vadd.f32 %v1193, %v1304
        %v1355 = vadd.f32 %v1194, %v1309
        %v1356 = vadd.f32 %v1195, %v1314
        %v1357 = vadd.f32 %v1196, %v1319
        %v1358 = vadd.f32 %v1197, %v1324
        %v1359 = vadd.f32 %v1198, %v1329
        %v1360 = vadd.f32 %v1199, %v1334
        %v1361 = vadd.f32 %v1200, %v1339
        %v1362 = vadd.f32 %v1201, %v1344
        %1363 = vst [vmem:[#allocation3] sm:$0xff] %v1347
        %1364 = vst [vmem:[#allocation3 + $0x8] sm:$0xff] %v1348
        %1365 = vst [vmem:[#allocation3 + $0x10] sm:$0xff] %v1349
        %1366 = vst [vmem:[#allocation3 + $0x18] sm:$0xff] %v1350
        %1367 = vst [vmem:[#allocation3 + $0x20] sm:$0xff] %v1351
        %1368 = vst [vmem:[#allocation3 + $0x28] sm:$0xff] %v1352
        %1369 = vst [vmem:[#allocation3 + $0x30] sm:$0xff] %v1353
        %1370 = vst [vmem:[#allocation3 + $0x38] sm:$0xff] %v1354
        %1371 = vst [vmem:[#allocation3 + $0x40] sm:$0xff] %v1355
        %1372 = vst [vmem:[#allocation3 + $0x48] sm:$0xff] %v1356
        %1373 = vst [vmem:[#allocation3 + $0x50] sm:$0xff] %v1357
        %1374 = vst [vmem:[#allocation3 + $0x58] sm:$0xff] %v1358
        %1375 = vst [vmem:[#allocation3 + $0x60] sm:$0xff] %v1359
        %1376 = vst [vmem:[#allocation3 + $0x68] sm:$0xff] %v1360
        %1377 = vst [vmem:[#allocation3 + $0x70] sm:$0xff] %v1361
        %1378 = vst [vmem:[#allocation3 + $0x78] sm:$0xff] %v1362
        %v1379 = vld [vmem:[#allocation4] sm:$0xff]
        %v1380 = vld [vmem:[#allocation4 + $0x8] sm:$0xff]
        %v1381 = vld [vmem:[#allocation4 + $0x10] sm:$0xff]
        %v1382 = vld [vmem:[#allocation4 + $0x18] sm:$0xff]
        %v1383 = vld [vmem:[#allocation4 + $0x20] sm:$0xff]
        %v1384 = vld [vmem:[#allocation4 + $0x28] sm:$0xff]
        %v1385 = vld [vmem:[#allocation4 + $0x30] sm:$0xff]
        %v1386 = vld [vmem:[#allocation4 + $0x38] sm:$0xff]
        %v1387 = vld [vmem:[#allocation4 + $0x40] sm:$0xff]
        %v1388 = vld [vmem:[#allocation4 + $0x48] sm:$0xff]
        %v1389 = vld [vmem:[#allocation4 + $0x50] sm:$0xff]
        %v1390 = vld [vmem:[#allocation4 + $0x58] sm:$0xff]
        %v1391 = vld [vmem:[#allocation4 + $0x60] sm:$0xff]
        %v1392 = vld [vmem:[#allocation4 + $0x68] sm:$0xff]
        %v1393 = vld [vmem:[#allocation4 + $0x70] sm:$0xff]
        %v1394 = vld [vmem:[#allocation4 + $0x78] sm:$0xff]
        %v1395 = vand.u32 2147483647, %v1154
        %v1396 = vand.u32 2147483647, %v1155
        %v1397 = vand.u32 2147483647, %v1156
        %v1398 = vand.u32 2147483647, %v1157
        %v1399 = vand.u32 2147483647, %v1158
        %v1400 = vand.u32 2147483647, %v1159
        %v1401 = vand.u32 2147483647, %v1160
        %v1402 = vand.u32 2147483647, %v1161
        %v1403 = vand.u32 2147483647, %v1162
        %v1404 = vand.u32 2147483647, %v1163
        %v1405 = vand.u32 2147483647, %v1164
        %v1406 = vand.u32 2147483647, %v1165
        %v1407 = vand.u32 2147483647, %v1166
        %v1408 = vand.u32 2147483647, %v1167
        %v1409 = vand.u32 2147483647, %v1168
        %v1410 = vand.u32 2147483647, %v1169
        %1411 = vmatprep.subr.mxu0 0.0
        %1412 = vmatpush1.msra.mxu0 %v1170
        %1413 = vmatprep.subr.mxu0 0.0
        %1414 = vmatpush1.msra.mxu0 %v1171
        %1415 = vmatprep.subr.mxu0 0.0
        %1416 = vmatpush1.msra.mxu0 %v1172
        %1417 = vmatprep.subr.mxu0 0.0
        %1418 = vmatpush1.msra.mxu0 %v1173
        %1419 = vmatprep.subr.mxu0 0.0
        %1420 = vmatpush1.msra.mxu0 %v1174
        %1421 = vmatprep.subr.mxu0 0.0
        %1422 = vmatpush1.msra.mxu0 %v1175
        %1423 = vmatprep.subr.mxu0 0.0
        %1424 = vmatpush1.msra.mxu0 %v1176
        %1425 = vmatprep.subr.mxu0 0.0
        %1426 = vmatpush1.msra.mxu0 %v1177
        %1427 = vmatprep.subr.mxu0 0.0
        %1428 = vmatpush1.msra.mxu0 %v1178
        %1429 = vmatprep.subr.mxu0 0.0
        %1430 = vmatpush1.msra.mxu0 %v1179
        %1431 = vmatprep.subr.mxu0 0.0
        %1432 = vmatpush1.msra.mxu0 %v1180
        %1433 = vmatprep.subr.mxu0 0.0
        %1434 = vmatpush1.msra.mxu0 %v1181
        %1435 = vmatprep.subr.mxu0 0.0
        %1436 = vmatpush1.msra.mxu0 %v1182
        %1437 = vmatprep.subr.mxu0 0.0
        %1438 = vmatpush1.msra.mxu0 %v1183
        %1439 = vmatprep.subr.mxu0 0.0
        %1440 = vmatpush1.msra.mxu0 %v1184
        %1441 = vmatprep.subr.mxu0 0.0
        %1442 = vmatpush1.msra.mxu0 %v1185
        %1443 = vmatprep.subr.mxu0 0.0
        %1444 = vmatpush1.msra.mxu0 0.0
        %1445 = vmatprep.subr.mxu0 0.0
        %1446 = vmatpush1.msra.mxu0 0.0
        %1447 = vmatprep.subr.mxu0 0.0
        %1448 = vmatpush1.msra.mxu0 0.0
        %1449 = vmatprep.subr.mxu0 0.0
        %1450 = vmatpush1.msra.mxu0 0.0
        %1451 = vmatprep.subr.mxu0 0.0
        %1452 = vmatpush1.msra.mxu0 0.0
        %1453 = vmatprep.subr.mxu0 0.0
        %1454 = vmatpush1.msra.mxu0 0.0
        %1455 = vmatprep.subr.mxu0 0.0
        %1456 = vmatpush1.msra.mxu0 0.0
        %1457 = vmatprep.subr.mxu0 0.0
        %1458 = vmatpush1.msra.mxu0 0.0
        %1459 = vmatprep.subr.mxu0 0.0
        %1460 = vmatpush1.msra.mxu0 0.0
        %1461 = vmatprep.subr.mxu0 0.0
        %1462 = vmatpush1.msra.mxu0 0.0
        %1463 = vmatprep.subr.mxu0 0.0
        %1464 = vmatpush1.msra.mxu0 0.0
        %1465 = vmatprep.subr.mxu0 0.0
        %1466 = vmatpush1.msra.mxu0 0.0
        %1467 = vmatprep.subr.mxu0 0.0
        %1468 = vmatpush1.msra.mxu0 0.0
        %1469 = vmatprep.subr.mxu0 0.0
        %1470 = vmatpush1.msra.mxu0 0.0
        %1471 = vmatprep.subr.mxu0 0.0
        %1472 = vmatpush1.msra.mxu0 0.0
        %1473 = vmatprep.subr.mxu0 0.0
        %1474 = vmatpush1.msra.mxu0 0.0
        %1475 = vmatprep.mubr.f32.mxu0 0.0
        %1476 = vmatmul.mubr.f32.gmra.mrb[0].mxu0 %v1395
        %v1477 = vpop.f32.mrb[0].mxu0
        %v1478 = vadd.f32 0.0, %v1477
        %v1479 = vpop.f32.mrb[0].mxu0
        %1480 = vmatprep.mubr.f32.mxu0 0.0
        %1481 = vmatmul.mubr.f32.gmra.mrb[0].mxu0 %v1396
        %v1482 = vpop.f32.mrb[0].mxu0
        %v1483 = vadd.f32 0.0, %v1482
        %v1484 = vpop.f32.mrb[0].mxu0
        %1485 = vmatprep.mubr.f32.mxu0 0.0
        %1486 = vmatmul.mubr.f32.gmra.mrb[0].mxu0 %v1397
        %v1487 = vpop.f32.mrb[0].mxu0
        %v1488 = vadd.f32 0.0, %v1487
        %v1489 = vpop.f32.mrb[0].mxu0
        %1490 = vmatprep.mubr.f32.mxu0 0.0
        %1491 = vmatmul.mubr.f32.gmra.mrb[0].mxu0 %v1398
        %v1492 = vpop.f32.mrb[0].mxu0
        %v1493 = vadd.f32 0.0, %v1492
        %v1494 = vpop.f32.mrb[0].mxu0
        %1495 = vmatprep.mubr.f32.mxu0 0.0
        %1496 = vmatmul.mubr.f32.gmra.mrb[0].mxu0 %v1399
        %v1497 = vpop.f32.mrb[0].mxu0
        %v1498 = vadd.f32 0.0, %v1497
        %v1499 = vpop.f32.mrb[0].mxu0
        %1500 = vmatprep.mubr.f32.mxu0 0.0
        %1501 = vmatmul.mubr.f32.gmra.mrb[0].mxu0 %v1400
        %v1502 = vpop.f32.mrb[0].mxu0
        %v1503 = vadd.f32 0.0, %v1502
        %v1504 = vpop.f32.mrb[0].mxu0
        %1505 = vmatprep.mubr.f32.mxu0 0.0
        %1506 = vmatmul.mubr.f32.gmra.mrb[0].mxu0 %v1401
        %v1507 = vpop.f32.mrb[0].mxu0
        %v1508 = vadd.f32 0.0, %v1507
        %v1509 = vpop.f32.mrb[0].mxu0
        %1510 = vmatprep.mubr.f32.mxu0 0.0
        %1511 = vmatmul.mubr.f32.gmra.mrb[0].mxu0 %v1402
        %v1512 = vpop.f32.mrb[0].mxu0
        %v1513 = vadd.f32 0.0, %v1512
        %v1514 = vpop.f32.mrb[0].mxu0
        %1515 = vmatprep.mubr.f32.mxu0 0.0
        %1516 = vmatmul.mubr.f32.gmra.mrb[0].mxu0 %v1403
        %v1517 = vpop.f32.mrb[0].mxu0
        %v1518 = vadd.f32 0.0, %v1517
        %v1519 = vpop.f32.mrb[0].mxu0
        %1520 = vmatprep.mubr.f32.mxu0 0.0
        %1521 = vmatmul.mubr.f32.gmra.mrb[0].mxu0 %v1404
        %v1522 = vpop.f32.mrb[0].mxu0
        %v1523 = vadd.f32 0.0, %v1522
        %v1524 = vpop.f32.mrb[0].mxu0
        %1525 = vmatprep.mubr.f32.mxu0 0.0
        %1526 = vmatmul.mubr.f32.gmra.mrb[0].mxu0 %v1405
        %v1527 = vpop.f32.mrb[0].mxu0
        %v1528 = vadd.f32 0.0, %v1527
        %v1529 = vpop.f32.mrb[0].mxu0
        %1530 = vmatprep.mubr.f32.mxu0 0.0
        %1531 = vmatmul.mubr.f32.gmra.mrb[0].mxu0 %v1406
        %v1532 = vpop.f32.mrb[0].mxu0
        %v1533 = vadd.f32 0.0, %v1532
        %v1534 = vpop.f32.mrb[0].mxu0
        %1535 = vmatprep.mubr.f32.mxu0 0.0
        %1536 = vmatmul.mubr.f32.gmra.mrb[0].mxu0 %v1407
        %v1537 = vpop.f32.mrb[0].mxu0
        %v1538 = vadd.f32 0.0, %v1537
        %v1539 = vpop.f32.mrb[0].mxu0
        %1540 = vmatprep.mubr.f32.mxu0 0.0
        %1541 = vmatmul.mubr.f32.gmra.mrb[0].mxu0 %v1408
        %v1542 = vpop.f32.mrb[0].mxu0
        %v1543 = vadd.f32 0.0, %v1542
        %v1544 = vpop.f32.mrb[0].mxu0
        %1545 = vmatprep.mubr.f32.mxu0 0.0
        %1546 = vmatmul.mubr.f32.gmra.mrb[0].mxu0 %v1409
        %v1547 = vpop.f32.mrb[0].mxu0
        %v1548 = vadd.f32 0.0, %v1547
        %v1549 = vpop.f32.mrb[0].mxu0
        %1550 = vmatprep.mubr.f32.mxu0 0.0
        %1551 = vmatmul.mubr.f32.gmra.mrb[0].mxu0 %v1410
        %v1552 = vpop.f32.mrb[0].mxu0
        %v1553 = vadd.f32 0.0, %v1552
        %v1554 = vpop.f32.mrb[0].mxu0
        %1555 = vdwg.mxu0
        %v1556 = vadd.f32 %v1379, %v1478
        %v1557 = vadd.f32 %v1380, %v1483
        %v1558 = vadd.f32 %v1381, %v1488
        %v1559 = vadd.f32 %v1382, %v1493
        %v1560 = vadd.f32 %v1383, %v1498
        %v1561 = vadd.f32 %v1384, %v1503
        %v1562 = vadd.f32 %v1385, %v1508
        %v1563 = vadd.f32 %v1386, %v1513
        %v1564 = vadd.f32 %v1387, %v1518
        %v1565 = vadd.f32 %v1388, %v1523
        %v1566 = vadd.f32 %v1389, %v1528
        %v1567 = vadd.f32 %v1390, %v1533
        %v1568 = vadd.f32 %v1391, %v1538
        %v1569 = vadd.f32 %v1392, %v1543
        %v1570 = vadd.f32 %v1393, %v1548
        %v1571 = vadd.f32 %v1394, %v1553
        %1572 = vst [vmem:[#allocation4] sm:$0xff] %v1556
        %1573 = vst [vmem:[#allocation4 + $0x8] sm:$0xff] %v1557
        %1574 = vst [vmem:[#allocation4 + $0x10] sm:$0xff] %v1558
        %1575 = vst [vmem:[#allocation4 + $0x18] sm:$0xff] %v1559
        %1576 = vst [vmem:[#allocation4 + $0x20] sm:$0xff] %v1560
        %1577 = vst [vmem:[#allocation4 + $0x28] sm:$0xff] %v1561
        %1578 = vst [vmem:[#allocation4 + $0x30] sm:$0xff] %v1562
        %1579 = vst [vmem:[#allocation4 + $0x38] sm:$0xff] %v1563
        %1580 = vst [vmem:[#allocation4 + $0x40] sm:$0xff] %v1564
        %1581 = vst [vmem:[#allocation4 + $0x48] sm:$0xff] %v1565
        %1582 = vst [vmem:[#allocation4 + $0x50] sm:$0xff] %v1566
        %1583 = vst [vmem:[#allocation4 + $0x58] sm:$0xff] %v1567
        %1584 = vst [vmem:[#allocation4 + $0x60] sm:$0xff] %v1568
        %1585 = vst [vmem:[#allocation4 + $0x68] sm:$0xff] %v1569
        %1586 = vst [vmem:[#allocation4 + $0x70] sm:$0xff] %v1570
        %1587 = vst [vmem:[#allocation4 + $0x78] sm:$0xff] %v1571
      $region72: #{_forward_impl.8} parent=51 // pred_fallthru
        _
      // Predicated region
      $region73: #{_forward_impl.8} parent=51 // pred_check
        _
      $region74: #{_forward_impl.8} parent=51 // pred_check_branch
        %1589 = sbr.rel (%p555) target = $region76
      $region75: #{_forward_impl.8} parent=51 // pred_region
        %v1590 = vld [vmem:[#allocation3] sm:$0xff]
        %v1591 = vld [vmem:[#allocation3 + $0x8] sm:$0xff]
        %v1592 = vld [vmem:[#allocation3 + $0x10] sm:$0xff]
        %v1593 = vld [vmem:[#allocation3 + $0x18] sm:$0xff]
        %v1594 = vld [vmem:[#allocation3 + $0x20] sm:$0xff]
        %v1595 = vld [vmem:[#allocation3 + $0x28] sm:$0xff]
        %v1596 = vld [vmem:[#allocation3 + $0x30] sm:$0xff]
        %v1597 = vld [vmem:[#allocation3 + $0x38] sm:$0xff]
        %v1598 = vld [vmem:[#allocation3 + $0x40] sm:$0xff]
        %v1599 = vld [vmem:[#allocation3 + $0x48] sm:$0xff]
        %v1600 = vld [vmem:[#allocation3 + $0x50] sm:$0xff]
        %v1601 = vld [vmem:[#allocation3 + $0x58] sm:$0xff]
        %v1602 = vld [vmem:[#allocation3 + $0x60] sm:$0xff]
        %v1603 = vld [vmem:[#allocation3 + $0x68] sm:$0xff]
        %v1604 = vld [vmem:[#allocation3 + $0x70] sm:$0xff]
        %v1605 = vld [vmem:[#allocation3 + $0x78] sm:$0xff]
        %1606 = vst [vmem:[%s539] sm:$0xff] %v1590
        %1607 = vst [vmem:[%s539 + $0x8] sm:$0xff] %v1591
        %1608 = vst [vmem:[%s539 + $0x10] sm:$0xff] %v1592
        %1609 = vst [vmem:[%s539 + $0x18] sm:$0xff] %v1593
        %1610 = vst [vmem:[%s539 + $0x20] sm:$0xff] %v1594
        %1611 = vst [vmem:[%s539 + $0x28] sm:$0xff] %v1595
        %1612 = vst [vmem:[%s539 + $0x30] sm:$0xff] %v1596
        %1613 = vst [vmem:[%s539 + $0x38] sm:$0xff] %v1597
        %1614 = vst [vmem:[%s539 + $0x40] sm:$0xff] %v1598
        %1615 = vst [vmem:[%s539 + $0x48] sm:$0xff] %v1599
        %1616 = vst [vmem:[%s539 + $0x50] sm:$0xff] %v1600
        %1617 = vst [vmem:[%s539 + $0x58] sm:$0xff] %v1601
        %1618 = vst [vmem:[%s539 + $0x60] sm:$0xff] %v1602
        %1619 = vst [vmem:[%s539 + $0x68] sm:$0xff] %v1603
        %1620 = vst [vmem:[%s539 + $0x70] sm:$0xff] %v1604
        %1621 = vst [vmem:[%s539 + $0x78] sm:$0xff] %v1605
        %v1622 = vld [vmem:[#allocation4] sm:$0xff]
        %v1623 = vld [vmem:[#allocation4 + $0x8] sm:$0xff]
        %v1624 = vld [vmem:[#allocation4 + $0x10] sm:$0xff]
        %v1625 = vld [vmem:[#allocation4 + $0x18] sm:$0xff]
        %v1626 = vld [vmem:[#allocation4 + $0x20] sm:$0xff]
        %v1627 = vld [vmem:[#allocation4 + $0x28] sm:$0xff]
        %v1628 = vld [vmem:[#allocation4 + $0x30] sm:$0xff]
        %v1629 = vld [vmem:[#allocation4 + $0x38] sm:$0xff]
        %v1630 = vld [vmem:[#allocation4 + $0x40] sm:$0xff]
        %v1631 = vld [vmem:[#allocation4 + $0x48] sm:$0xff]
        %v1632 = vld [vmem:[#allocation4 + $0x50] sm:$0xff]
        %v1633 = vld [vmem:[#allocation4 + $0x58] sm:$0xff]
        %v1634 = vld [vmem:[#allocation4 + $0x60] sm:$0xff]
        %v1635 = vld [vmem:[#allocation4 + $0x68] sm:$0xff]
        %v1636 = vld [vmem:[#allocation4 + $0x70] sm:$0xff]
        %v1637 = vld [vmem:[#allocation4 + $0x78] sm:$0xff]
        %1638 = vst [vmem:[%s545] sm:$0xff] %v1622
        %1639 = vst [vmem:[%s545 + $0x8] sm:$0xff] %v1623
        %1640 = vst [vmem:[%s545 + $0x10] sm:$0xff] %v1624
        %1641 = vst [vmem:[%s545 + $0x18] sm:$0xff] %v1625
        %1642 = vst [vmem:[%s545 + $0x20] sm:$0xff] %v1626
        %1643 = vst [vmem:[%s545 + $0x28] sm:$0xff] %v1627
        %1644 = vst [vmem:[%s545 + $0x30] sm:$0xff] %v1628
        %1645 = vst [vmem:[%s545 + $0x38] sm:$0xff] %v1629
        %1646 = vst [vmem:[%s545 + $0x40] sm:$0xff] %v1630
        %1647 = vst [vmem:[%s545 + $0x48] sm:$0xff] %v1631
        %1648 = vst [vmem:[%s545 + $0x50] sm:$0xff] %v1632
        %1649 = vst [vmem:[%s545 + $0x58] sm:$0xff] %v1633
        %1650 = vst [vmem:[%s545 + $0x60] sm:$0xff] %v1634
        %1651 = vst [vmem:[%s545 + $0x68] sm:$0xff] %v1635
        %1652 = vst [vmem:[%s545 + $0x70] sm:$0xff] %v1636
        %1653 = vst [vmem:[%s545 + $0x78] sm:$0xff] %v1637
        %v1654 = vld [vmem:[#allocation5] sm:$0xff]
        %v1655 = vld [vmem:[#allocation5 + $0x8] sm:$0xff]
        %v1656 = vld [vmem:[#allocation5 + $0x10] sm:$0xff]
        %v1657 = vld [vmem:[#allocation5 + $0x18] sm:$0xff]
        %v1658 = vld [vmem:[#allocation5 + $0x20] sm:$0xff]
        %v1659 = vld [vmem:[#allocation5 + $0x28] sm:$0xff]
        %v1660 = vld [vmem:[#allocation5 + $0x30] sm:$0xff]
        %v1661 = vld [vmem:[#allocation5 + $0x38] sm:$0xff]
        %v1662 = vld [vmem:[#allocation5 + $0x40] sm:$0xff]
        %v1663 = vld [vmem:[#allocation5 + $0x48] sm:$0xff]
        %v1664 = vld [vmem:[#allocation5 + $0x50] sm:$0xff]
        %v1665 = vld [vmem:[#allocation5 + $0x58] sm:$0xff]
        %v1666 = vld [vmem:[#allocation5 + $0x60] sm:$0xff]
        %v1667 = vld [vmem:[#allocation5 + $0x68] sm:$0xff]
        %v1668 = vld [vmem:[#allocation5 + $0x70] sm:$0xff]
        %v1669 = vld [vmem:[#allocation5 + $0x78] sm:$0xff]
        %v1670 = vld [vmem:[%s527] sm:$0xff]
        %v1671 = vld [vmem:[%s527 + $0x8] sm:$0xff]
        %v1672 = vld [vmem:[%s527 + $0x10] sm:$0xff]
        %v1673 = vld [vmem:[%s527 + $0x18] sm:$0xff]
        %v1674 = vld [vmem:[%s527 + $0x20] sm:$0xff]
        %v1675 = vld [vmem:[%s527 + $0x28] sm:$0xff]
        %v1676 = vld [vmem:[%s527 + $0x30] sm:$0xff]
        %v1677 = vld [vmem:[%s527 + $0x38] sm:$0xff]
        %v1678 = vld [vmem:[%s527 + $0x40] sm:$0xff]
        %v1679 = vld [vmem:[%s527 + $0x48] sm:$0xff]
        %v1680 = vld [vmem:[%s527 + $0x50] sm:$0xff]
        %v1681 = vld [vmem:[%s527 + $0x58] sm:$0xff]
        %v1682 = vld [vmem:[%s527 + $0x60] sm:$0xff]
        %v1683 = vld [vmem:[%s527 + $0x68] sm:$0xff]
        %v1684 = vld [vmem:[%s527 + $0x70] sm:$0xff]
        %v1685 = vld [vmem:[%s527 + $0x78] sm:$0xff]
        %v1686 = vadd.f32 %v1654, %v1670
        %v1687 = vadd.f32 %v1655, %v1671
        %v1688 = vadd.f32 %v1656, %v1672
        %v1689 = vadd.f32 %v1657, %v1673
        %v1690 = vadd.f32 %v1658, %v1674
        %v1691 = vadd.f32 %v1659, %v1675
        %v1692 = vadd.f32 %v1660, %v1676
        %v1693 = vadd.f32 %v1661, %v1677
        %v1694 = vadd.f32 %v1662, %v1678
        %v1695 = vadd.f32 %v1663, %v1679
        %v1696 = vadd.f32 %v1664, %v1680
        %v1697 = vadd.f32 %v1665, %v1681
        %v1698 = vadd.f32 %v1666, %v1682
        %v1699 = vadd.f32 %v1667, %v1683
        %v1700 = vadd.f32 %v1668, %v1684
        %v1701 = vadd.f32 %v1669, %v1685
        %vm1702 = vcmask 7168
        %1703 = vst.msk [vmem:[%s551] sm:$0xff] %vm1702, %v1686
        %1704 = vst.msk [vmem:[%s551 + $0x8] sm:$0xff] %vm1702, %v1687
        %1705 = vst.msk [vmem:[%s551 + $0x10] sm:$0xff] %vm1702, %v1688
        %1706 = vst.msk [vmem:[%s551 + $0x18] sm:$0xff] %vm1702, %v1689
        %1707 = vst.msk [vmem:[%s551 + $0x20] sm:$0xff] %vm1702, %v1690
        %1708 = vst.msk [vmem:[%s551 + $0x28] sm:$0xff] %vm1702, %v1691
        %1709 = vst.msk [vmem:[%s551 + $0x30] sm:$0xff] %vm1702, %v1692
        %1710 = vst.msk [vmem:[%s551 + $0x38] sm:$0xff] %vm1702, %v1693
        %1711 = vst.msk [vmem:[%s551 + $0x40] sm:$0xff] %vm1702, %v1694
        %1712 = vst.msk [vmem:[%s551 + $0x48] sm:$0xff] %vm1702, %v1695
        %1713 = vst.msk [vmem:[%s551 + $0x50] sm:$0xff] %vm1702, %v1696
        %1714 = vst.msk [vmem:[%s551 + $0x58] sm:$0xff] %vm1702, %v1697
        %1715 = vst.msk [vmem:[%s551 + $0x60] sm:$0xff] %vm1702, %v1698
        %1716 = vst.msk [vmem:[%s551 + $0x68] sm:$0xff] %vm1702, %v1699
        %1717 = vst.msk [vmem:[%s551 + $0x70] sm:$0xff] %vm1702, %v1700
        %1718 = vst.msk [vmem:[%s551 + $0x78] sm:$0xff] %vm1702, %v1701
      $region76: #{_forward_impl.8} parent=51 // pred_fallthru
        _
      %s1719 = smul.u32 16, %s27
      %p1720 = scmp.lt.s32.totalorder %s1719, 31
      %s1721 = scalar_select %p1720, %s1719, 31
      %s1722 = smul.addr %s1721, 8
      %s1723 = scalar_lea.vmem %s8, %s1722
      %s1724 = smul.u32 16, %s27
      %p1725 = scmp.lt.s32.totalorder %s1724, 31
      %s1726 = scalar_select %p1725, %s1724, 31
      %s1727 = smul.addr %s1726, 8
      %s1728 = scalar_lea.vmem %s9, %s1727
      %s1729 = smul.u32 16, %s27
      %p1730 = scmp.lt.s32.totalorder %s1729, 31
      %s1731 = scalar_select %p1730, %s1729, 31
      %s1732 = smul.addr %s1731, 8
      %s1733 = scalar_lea.vmem %s10, %s1732
      // Predicated region
      $region77: #{_forward_impl.8} parent=51 // pred_check
        %p1734 = pneg %p271
      $region78: #{_forward_impl.8} parent=51 // pred_check_branch
        %1736 = sbr.rel (%p1734) target = $region80
      $region79: #{_forward_impl.8} parent=51 // pred_region
        %s1737 = smul.u32 16, %s27
      $region80: #{_forward_impl.8} parent=51 // pred_fallthru
        _
      // Predicated region
      $region81: #{_forward_impl.8} parent=51 // pred_check
        %p1738 = pneg %p297
      $region82: #{_forward_impl.8} parent=51 // pred_check_branch
        %1740 = sbr.rel (%p1738) target = $region84
      $region83: #{_forward_impl.8} parent=51 // pred_region
        %s1741 = smul.u32 16, %s27
      $region84: #{_forward_impl.8} parent=51 // pred_fallthru
        _
      // Predicated region
      $region85: #{_forward_impl.8} parent=51 // pred_check
        %p1742 = pneg %p323
      $region86: #{_forward_impl.8} parent=51 // pred_check_branch
        %1744 = sbr.rel (%p1742) target = $region88
      $region87: #{_forward_impl.8} parent=51 // pred_region
        %s1745 = smul.u32 16, %s27
      $region88: #{_forward_impl.8} parent=51 // pred_fallthru
        _
    $region52: #{_forward_impl.8} parent=5 // pred_fallthru
      _
    %p1746 = scmp.le.s32.totalorder 2, %s17
    // Predicated region
    $region89: #{_forward_impl.8} parent=5 // pred_check
      %p1747 = pneg %p1746
    $region90: #{_forward_impl.8} parent=5 // pred_check_branch
      %1749 = sbr.rel (%p1747) target = $region92
    $region91: #{_forward_impl.8} parent=5 // pred_region
      %s1750 = ssub.s32 %s17, 2
      // Predicated region
      $region93: #{_forward_impl.8} parent=91 // pred_check
        %p1751 = pneg %p277
      $region94: #{_forward_impl.8} parent=91 // pred_check_branch
        %1753 = sbr.rel (%p1751) target = $region96
      $region95: #{_forward_impl.8} parent=91 // pred_region
        %s1754 = smul.u32 16, %s30
        %p1755 = scmp.lt.s32.totalorder %s1754, 31
        %s1756 = scalar_select %p1755, %s1754, 31
        %s1757 = smul.addr %s1756, 8
        %s1758 = scalar_lea.vmem %s8, %s1757
      $region96: #{_forward_impl.8} parent=91 // pred_fallthru
        _
      // Predicated region
      $region97: #{_forward_impl.8} parent=91 // pred_check
        %p1759 = pneg %p303
      $region98: #{_forward_impl.8} parent=91 // pred_check_branch
        %1761 = sbr.rel (%p1759) target = $region100
      $region99: #{_forward_impl.8} parent=91 // pred_region
        %s1762 = smul.u32 16, %s30
        %p1763 = scmp.lt.s32.totalorder %s1762, 31
        %s1764 = scalar_select %p1763, %s1762, 31
        %s1765 = smul.addr %s1764, 8
        %s1766 = scalar_lea.vmem %s9, %s1765
      $region100: #{_forward_impl.8} parent=91 // pred_fallthru
        _
      // Predicated region
      $region101: #{_forward_impl.8} parent=91 // pred_check
        %p1767 = pneg %p329
      $region102: #{_forward_impl.8} parent=91 // pred_check_branch
        %1769 = sbr.rel (%p1767) target = $region104
      $region103: #{_forward_impl.8} parent=91 // pred_region
        %s1770 = smul.u32 16, %s30
        %p1771 = scmp.lt.s32.totalorder %s1770, 31
        %s1772 = scalar_select %p1771, %s1770, 31
        %s1773 = smul.addr %s1772, 8
        %s1774 = scalar_lea.vmem %s10, %s1773
      $region104: #{_forward_impl.8} parent=91 // pred_fallthru
        _
    $region92: #{_forward_impl.8} parent=5 // pred_fallthru
      _
  $region6: #{_forward_impl.8} parent=0 // loop_footer
    %s21 = sadd.s32 1, %s17
  $region7: #{_forward_impl.8} parent=0 // loop_footer_branch
    %16 = sbr.rel target = $region3
  $region8: #{_forward_impl.8} parent=0 // loop_exit
    _

// kernel: _forward_impl.13
$region0: #{_forward_impl.13}
  #allocation0 [shape = 'u32[]', space=smem, size = 0x4, offset = 0x4, fixed_abs, tag = 'smem constant byte address 0x4 - core index']
  #allocation1 [shape = 'u32[144,128]{1,0:T(1,128)}', space=vmem, size = 0x12000, scoped, tag = 'internal scratch']
  #allocation2 [shape = 'f32[128,128]{1,0:T(8,128)}', space=vmem, size = 0x10000, scoped, tag = 'scratch operand']
  #allocation3 [shape = 'f32[128,128]{1,0:T(8,128)}', space=vmem, size = 0x10000, scoped, tag = 'scratch operand']
  %s0 = inlined_call_operand.vmem [shape: f32[256,128], index: 0, kind: input, shape index: {}]
  %s1 = inlined_call_operand.vmem [shape: f32[128,128], index: 1, kind: input, shape index: {}]
  %s2 = inlined_call_operand.vmem [shape: f32[256,128], index: 2, kind: output, shape index: {0}]
  %s3 = inlined_call_operand.vmem [shape: f32[256,128], index: 3, kind: output, shape index: {1}]
  %4 = xla_tuple %s2, %s3
  %s5 = sld [smem:[#allocation0]]
  $region57: #{_forward_impl.13} parent=0
    _
  %s7 = ssub.s32 1, %s5
  %s8 = scalar_select 0, %s7, %s5
  loop: start=0, step=1, limit=4
  $region2: #{_forward_impl.13} parent=0 // loop_pre_header
    _
  $region3: #{_forward_impl.13} parent=0 // loop_header
    %s10 = sphi 0, %s14
    %p11 = scmp.ge.s32.totalorder %s10, 4
    %s17 = sphi 0, %s29
    %s18 = sphi 0, %s25
    %s19 = sphi 0, %s17
    %s20 = sphi 0, %s18
    %s21 = sphi 0, %s19
    %s22 = sphi 0, %s20
    %s34 = sphi 0, %s36
    %s37 = sphi 0, %s34
    %s38 = sphi 0, %s37
    %s54 = sphi 0, %s38
    %s60 = sphi 0, %s62
    %s63 = sphi 0, %s60
    %s64 = sphi 0, %s63
    %s80 = sphi 0, %s64
    %s86 = sphi 0, %s88
    %s89 = sphi 0, %s86
    %s90 = sphi 0, %s89
    %s106 = sphi 0, %s90
    %s112 = sphi 0, %s114
    %s115 = sphi 0, %s112
    %s116 = sphi 0, %s115
    %s132 = sphi 0, %s116
  $region4: #{_forward_impl.13} parent=0 // loop_header_branch
    %13 = sbr.rel (%p11) target = $region8
  $region5: #{_forward_impl.13} parent=0 // loop_body
    %s15 = ssub.s32 %s10, 1
    %s16 = ssub.s32 %s10, 2
    %s23 = sadd.s32 1, %s18
    %p24 = scmp.ge.s32.totalorder %s23, 1
    %s25 = scalar_select %p24, 0, %s23
    %s26 = sadd.s32 1, %s17
    %s27 = scalar_select %p24, %s26, %s17
    %p28 = scmp.ge.s32.totalorder %s27, 2
    %s29 = scalar_select %p28, 0, %s27
    %s30 = ssub.s32 %s17, %s29
    %s31 = ssub.s32 %s18, %s25
    %s32 = sor.u32 %s30, %s31
    %p33 = scmp.eq.s32.totalorder %s32, 0
    %s35 = sadd.s32 %s34, 1
    %s36 = scalar_select %p33, %s34, %s35
    %p39 = pneg %p33
    %p40 = scmp.eq.s32.totalorder %s10, 1
    %p41 = por %p39, %p40
    %p42 = scmp.ne.s32.totalorder %s34, %s37
    %p43 = scmp.eq.s32.totalorder %s10, 0
    %p44 = por %p42, %p43
    %p45 = scmp.ne.s32.totalorder %s34, %s37
    %p46 = scmp.eq.s32.totalorder %s15, 1
    %p47 = por %p45, %p46
    %p48 = scmp.ne.s32.totalorder %s37, %s38
    %p49 = scmp.eq.s32.totalorder %s15, 0
    %p50 = por %p48, %p49
    %p51 = scmp.ne.s32.totalorder %s37, %s38
    %p52 = scmp.eq.s32.totalorder %s16, 1
    %p53 = por %p51, %p52
    %p55 = scmp.ne.s32.totalorder %s38, %s54
    %p56 = scmp.eq.s32.totalorder %s16, 0
    %p57 = por %p55, %p56
    %s58 = ssub.s32 %s18, %s25
    %p59 = scmp.eq.s32.totalorder %s58, 0
    %s61 = sadd.s32 %s60, 1
    %s62 = scalar_select %p59, %s60, %s61
    %p65 = pneg %p59
    %p66 = scmp.eq.s32.totalorder %s10, 1
    %p67 = por %p65, %p66
    %p68 = scmp.ne.s32.totalorder %s60, %s63
    %p69 = scmp.eq.s32.totalorder %s10, 0
    %p70 = por %p68, %p69
    %p71 = scmp.ne.s32.totalorder %s60, %s63
    %p72 = scmp.eq.s32.totalorder %s15, 1
    %p73 = por %p71, %p72
    %p74 = scmp.ne.s32.totalorder %s63, %s64
    %p75 = scmp.eq.s32.totalorder %s15, 0
    %p76 = por %p74, %p75
    %p77 = scmp.ne.s32.totalorder %s63, %s64
    %p78 = scmp.eq.s32.totalorder %s16, 1
    %p79 = por %p77, %p78
    %p81 = scmp.ne.s32.totalorder %s64, %s80
    %p82 = scmp.eq.s32.totalorder %s16, 0
    %p83 = por %p81, %p82
    %s84 = ssub.s32 %s17, %s29
    %p85 = scmp.eq.s32.totalorder %s84, 0
    %s87 = sadd.s32 %s86, 1
    %s88 = scalar_select %p85, %s86, %s87
    %p91 = pneg %p85
    %p92 = scmp.eq.s32.totalorder %s10, 1
    %p93 = por %p91, %p92
    %p94 = scmp.ne.s32.totalorder %s86, %s89
    %p95 = scmp.eq.s32.totalorder %s10, 0
    %p96 = por %p94, %p95
    %p97 = scmp.ne.s32.totalorder %s86, %s89
    %p98 = scmp.eq.s32.totalorder %s15, 1
    %p99 = por %p97, %p98
    %p100 = scmp.ne.s32.totalorder %s89, %s90
    %p101 = scmp.eq.s32.totalorder %s15, 0
    %p102 = por %p100, %p101
    %p103 = scmp.ne.s32.totalorder %s89, %s90
    %p104 = scmp.eq.s32.totalorder %s16, 1
    %p105 = por %p103, %p104
    %p107 = scmp.ne.s32.totalorder %s90, %s106
    %p108 = scmp.eq.s32.totalorder %s16, 0
    %p109 = por %p107, %p108
    %s110 = ssub.s32 %s17, %s29
    %p111 = scmp.eq.s32.totalorder %s110, 0
    %s113 = sadd.s32 %s112, 1
    %s114 = scalar_select %p111, %s112, %s113
    %p117 = pneg %p111
    %p118 = scmp.eq.s32.totalorder %s10, 1
    %p119 = por %p117, %p118
    %p120 = scmp.ne.s32.totalorder %s112, %s115
    %p121 = scmp.eq.s32.totalorder %s10, 0
    %p122 = por %p120, %p121
    %p123 = scmp.ne.s32.totalorder %s112, %s115
    %p124 = scmp.eq.s32.totalorder %s15, 1
    %p125 = por %p123, %p124
    %p126 = scmp.ne.s32.totalorder %s115, %s116
    %p127 = scmp.eq.s32.totalorder %s15, 0
    %p128 = por %p126, %p127
    %p129 = scmp.ne.s32.totalorder %s115, %s116
    %p130 = scmp.eq.s32.totalorder %s16, 1
    %p131 = por %p129, %p130
    %p133 = scmp.ne.s32.totalorder %s116, %s132
    %p134 = scmp.eq.s32.totalorder %s16, 0
    %p135 = por %p133, %p134
    %p136 = scmp.le.s32.totalorder 1, %s10
    %p137 = scmp.lt.s32.totalorder %s10, 3
    %p138 = pnand %p136, %p137
    %p139 = pneg %p138
    // Predicated region
    $region9: #{_forward_impl.13} parent=5 // pred_check
      _
    $region10: #{_forward_impl.13} parent=5 // pred_check_branch
      %141 = sbr.rel (%p138) target = $region12
    $region11: #{_forward_impl.13} parent=5 // pred_region
      %s142 = ssub.s32 %s10, 1
      // Predicated region
      $region13: #{_forward_impl.13} parent=11 // pred_check
        %p143 = pneg %p76
      $region14: #{_forward_impl.13} parent=11 // pred_check_branch
        %145 = sbr.rel (%p143) target = $region16
      $region15: #{_forward_impl.13} parent=11 // pred_region
        %s146 = smul.u32 16, %s20
        %p147 = scmp.lt.s32.totalorder %s146, 15
        %s148 = scalar_select %p147, %s146, 15
        %s149 = smul.addr %s148, 8
        %s150 = scalar_lea.vmem %s1, %s149
        %s151 = smul.u32 16, %s20
      $region16: #{_forward_impl.13} parent=11 // pred_fallthru
        _
    $region12: #{_forward_impl.13} parent=5 // pred_fallthru
      _
    %p152 = scmp.lt.s32.totalorder %s10, 2
    // Predicated region
    $region17: #{_forward_impl.13} parent=5 // pred_check
      %p153 = pneg %p152
    $region18: #{_forward_impl.13} parent=5 // pred_check_branch
      %155 = sbr.rel (%p153) target = $region20
    $region19: #{_forward_impl.13} parent=5 // pred_region
      // Predicated region
      $region21: #{_forward_impl.13} parent=19 // pred_check
        %p156 = pneg %p44
      $region22: #{_forward_impl.13} parent=19 // pred_check_branch
        %158 = sbr.rel (%p156) target = $region24
      $region23: #{_forward_impl.13} parent=19 // pred_region
        %s159 = smul.u32 16, %s17
        %p160 = scmp.lt.s32.totalorder %s159, 31
        %s161 = scalar_select %p160, %s159, 31
        %p162 = scmp.lt.s32.totalorder %s18, 0
        %s163 = scalar_select %p162, %s18, 0
        %s164 = sadd.s32 %s163, %s161
        %s165 = smul.addr %s164, 8
        %s166 = scalar_lea.vmem %s0, %s165
        %s167 = smul.u32 16, %s17
      $region24: #{_forward_impl.13} parent=19 // pred_fallthru
        _
    $region20: #{_forward_impl.13} parent=5 // pred_fallthru
      _
    %p168 = scmp.le.s32.totalorder 1, %s10
    %p169 = scmp.lt.s32.totalorder %s10, 3
    %p170 = pnand %p168, %p169
    %p171 = pneg %p170
    // Predicated region
    $region25: #{_forward_impl.13} parent=5 // pred_check
      _
    $region26: #{_forward_impl.13} parent=5 // pred_check_branch
      %173 = sbr.rel (%p170) target = $region28
    $region27: #{_forward_impl.13} parent=5 // pred_region
      %s174 = ssub.s32 %s10, 1
      %s175 = smul.u32 16, %s19
      %p176 = scmp.lt.s32.totalorder %s175, 31
      %s177 = scalar_select %p176, %s175, 31
      %p178 = scmp.lt.s32.totalorder %s20, 0
      %s179 = scalar_select %p178, %s20, 0
      %s180 = sadd.s32 %s179, %s177
      %s181 = smul.addr %s180, 8
      %s182 = scalar_lea.vmem %s0, %s181
      %p183 = pneg %p50
      %p184 = pneg %p47
      %s185 = smul.u32 16, %s20
      %p186 = scmp.lt.s32.totalorder %s185, 15
      %s187 = scalar_select %p186, %s185, 15
      %s188 = smul.addr %s187, 8
      %s189 = scalar_lea.vmem %s1, %s188
      %p190 = pneg %p76
      %p191 = pneg %p73
      %p192 = pneg %p102
      %p193 = pneg %p99
      %s194 = smul.u32 16, %s19
      %p195 = scmp.lt.s32.totalorder %s194, 31
      %s196 = scalar_select %p195, %s194, 31
      %s197 = smul.addr %s196, 8
      %s198 = scalar_lea.vmem %s2, %s197
      %p199 = pneg %p128
      %p200 = pneg %p125
      %s201 = smul.u32 16, %s19
      %p202 = scmp.lt.s32.totalorder %s201, 31
      %s203 = scalar_select %p202, %s201, 31
      %s204 = smul.addr %s203, 8
      %s205 = scalar_lea.vmem %s3, %s204
      %s206 = smul.u32 16, %s19
      %p207 = scmp.lt.s32.totalorder %s206, 31
      %s208 = scalar_select %p207, %s206, 31
      %p209 = scmp.lt.s32.totalorder %s20, 0
      %s210 = scalar_select %p209, %s20, 0
      %s211 = sadd.s32 %s210, %s208
      %s212 = smul.addr %s211, 8
      %s213 = scalar_lea.vmem %s0, %s212
      %s214 = smul.u32 16, %s19
      %s215 = smul.u32 16, %s20
      %p216 = scmp.lt.s32.totalorder %s215, 15
      %s217 = scalar_select %p216, %s215, 15
      %s218 = smul.addr %s217, 8
      %s219 = scalar_lea.vmem %s1, %s218
      %s220 = smul.u32 16, %s20
      %s221 = smul.u32 16, %s19
      %p222 = scmp.lt.s32.totalorder %s221, 31
      %s223 = scalar_select %p222, %s221, 31
      %s224 = smul.addr %s223, 8
      %s225 = scalar_lea.vmem %s2, %s224
      %s226 = smul.u32 16, %s19
      %s227 = smul.u32 16, %s19
      %p228 = scmp.lt.s32.totalorder %s227, 31
      %s229 = scalar_select %p228, %s227, 31
      %s230 = smul.addr %s229, 8
      %s231 = scalar_lea.vmem %s3, %s230
      %s232 = smul.u32 16, %s19
      %p233 = scmp.eq.s32.totalorder %s20, 0
      // Predicated region
      $region29: #{_forward_impl.13} parent=27 // pred_check
        %p234 = pneg %p233
      $region30: #{_forward_impl.13} parent=27 // pred_check_branch
        %236 = sbr.rel (%p234) target = $region32
      $region31: #{_forward_impl.13} parent=27 // pred_region
        %237 = vst [vmem:[#allocation2] sm:$0xff] 0.0
        %238 = vst [vmem:[#allocation2 + $0x8] sm:$0xff] 0.0
        %239 = vst [vmem:[#allocation2 + $0x10] sm:$0xff] 0.0
        %240 = vst [vmem:[#allocation2 + $0x18] sm:$0xff] 0.0
        %241 = vst [vmem:[#allocation2 + $0x20] sm:$0xff] 0.0
        %242 = vst [vmem:[#allocation2 + $0x28] sm:$0xff] 0.0
        %243 = vst [vmem:[#allocation2 + $0x30] sm:$0xff] 0.0
        %244 = vst [vmem:[#allocation2 + $0x38] sm:$0xff] 0.0
        %245 = vst [vmem:[#allocation2 + $0x40] sm:$0xff] 0.0
        %246 = vst [vmem:[#allocation2 + $0x48] sm:$0xff] 0.0
        %247 = vst [vmem:[#allocation2 + $0x50] sm:$0xff] 0.0
        %248 = vst [vmem:[#allocation2 + $0x58] sm:$0xff] 0.0
        %249 = vst [vmem:[#allocation2 + $0x60] sm:$0xff] 0.0
        %250 = vst [vmem:[#allocation2 + $0x68] sm:$0xff] 0.0
        %251 = vst [vmem:[#allocation2 + $0x70] sm:$0xff] 0.0
        %252 = vst [vmem:[#allocation2 + $0x78] sm:$0xff] 0.0
        %253 = vst [vmem:[#allocation3] sm:$0xff] 0.0
        %254 = vst [vmem:[#allocation3 + $0x8] sm:$0xff] 0.0
        %255 = vst [vmem:[#allocation3 + $0x10] sm:$0xff] 0.0
        %256 = vst [vmem:[#allocation3 + $0x18] sm:$0xff] 0.0
        %257 = vst [vmem:[#allocation3 + $0x20] sm:$0xff] 0.0
        %258 = vst [vmem:[#allocation3 + $0x28] sm:$0xff] 0.0
        %259 = vst [vmem:[#allocation3 + $0x30] sm:$0xff] 0.0
        %260 = vst [vmem:[#allocation3 + $0x38] sm:$0xff] 0.0
        %261 = vst [vmem:[#allocation3 + $0x40] sm:$0xff] 0.0
        %262 = vst [vmem:[#allocation3 + $0x48] sm:$0xff] 0.0
        %263 = vst [vmem:[#allocation3 + $0x50] sm:$0xff] 0.0
        %264 = vst [vmem:[#allocation3 + $0x58] sm:$0xff] 0.0
        %265 = vst [vmem:[#allocation3 + $0x60] sm:$0xff] 0.0
        %266 = vst [vmem:[#allocation3 + $0x68] sm:$0xff] 0.0
        %267 = vst [vmem:[#allocation3 + $0x70] sm:$0xff] 0.0
        %268 = vst [vmem:[#allocation3 + $0x78] sm:$0xff] 0.0
      $region32: #{_forward_impl.13} parent=27 // pred_fallthru
        _
      %v269 = vld [vmem:[%s213] sm:$0xff]
      %v270 = vld [vmem:[%s213 + $0x8] sm:$0xff]
      %v271 = vld [vmem:[%s213 + $0x10] sm:$0xff]
      %v272 = vld [vmem:[%s213 + $0x18] sm:$0xff]
      %v273 = vld [vmem:[%s213 + $0x20] sm:$0xff]
      %v274 = vld [vmem:[%s213 + $0x28] sm:$0xff]
      %v275 = vld [vmem:[%s213 + $0x30] sm:$0xff]
      %v276 = vld [vmem:[%s213 + $0x38] sm:$0xff]
      %v277 = vld [vmem:[%s213 + $0x40] sm:$0xff]
      %v278 = vld [vmem:[%s213 + $0x48] sm:$0xff]
      %v279 = vld [vmem:[%s213 + $0x50] sm:$0xff]
      %v280 = vld [vmem:[%s213 + $0x58] sm:$0xff]
      %v281 = vld [vmem:[%s213 + $0x60] sm:$0xff]
      %v282 = vld [vmem:[%s213 + $0x68] sm:$0xff]
      %v283 = vld [vmem:[%s213 + $0x70] sm:$0xff]
      %v284 = vld [vmem:[%s213 + $0x78] sm:$0xff]
      %v285 = vld [vmem:[%s219] sm:$0xff]
      %v286 = vld [vmem:[%s219 + $0x8] sm:$0xff]
      %v287 = vld [vmem:[%s219 + $0x10] sm:$0xff]
      %v288 = vld [vmem:[%s219 + $0x18] sm:$0xff]
      %v289 = vld [vmem:[%s219 + $0x20] sm:$0xff]
      %v290 = vld [vmem:[%s219 + $0x28] sm:$0xff]
      %v291 = vld [vmem:[%s219 + $0x30] sm:$0xff]
      %v292 = vld [vmem:[%s219 + $0x38] sm:$0xff]
      %v293 = vld [vmem:[%s219 + $0x40] sm:$0xff]
      %v294 = vld [vmem:[%s219 + $0x48] sm:$0xff]
      %v295 = vld [vmem:[%s219 + $0x50] sm:$0xff]
      %v296 = vld [vmem:[%s219 + $0x58] sm:$0xff]
      %v297 = vld [vmem:[%s219 + $0x60] sm:$0xff]
      %v298 = vld [vmem:[%s219 + $0x68] sm:$0xff]
      %v299 = vld [vmem:[%s219 + $0x70] sm:$0xff]
      %v300 = vld [vmem:[%s219 + $0x78] sm:$0xff]
      %v301 = vld [vmem:[#allocation2] sm:$0xff]
      %v302 = vld [vmem:[#allocation2 + $0x8] sm:$0xff]
      %v303 = vld [vmem:[#allocation2 + $0x10] sm:$0xff]
      %v304 = vld [vmem:[#allocation2 + $0x18] sm:$0xff]
      %v305 = vld [vmem:[#allocation2 + $0x20] sm:$0xff]
      %v306 = vld [vmem:[#allocation2 + $0x28] sm:$0xff]
      %v307 = vld [vmem:[#allocation2 + $0x30] sm:$0xff]
      %v308 = vld [vmem:[#allocation2 + $0x38] sm:$0xff]
      %v309 = vld [vmem:[#allocation2 + $0x40] sm:$0xff]
      %v310 = vld [vmem:[#allocation2 + $0x48] sm:$0xff]
      %v311 = vld [vmem:[#allocation2 + $0x50] sm:$0xff]
      %v312 = vld [vmem:[#allocation2 + $0x58] sm:$0xff]
      %v313 = vld [vmem:[#allocation2 + $0x60] sm:$0xff]
      %v314 = vld [vmem:[#allocation2 + $0x68] sm:$0xff]
      %v315 = vld [vmem:[#allocation2 + $0x70] sm:$0xff]
      %v316 = vld [vmem:[#allocation2 + $0x78] sm:$0xff]
      %317 = vmatprep.subr.mxu0 0.0
      %318 = vmatpush1.msra.mxu0 %v285
      %319 = vmatprep.subr.mxu0 0.0
      %320 = vmatpush1.msra.mxu0 %v286
      %321 = vmatprep.subr.mxu0 0.0
      %322 = vmatpush1.msra.mxu0 %v287
      %323 = vmatprep.subr.mxu0 0.0
      %324 = vmatpush1.msra.mxu0 %v288
      %325 = vmatprep.subr.mxu0 0.0
      %326 = vmatpush1.msra.mxu0 %v289
      %327 = vmatprep.subr.mxu0 0.0
      %328 = vmatpush1.msra.mxu0 %v290
      %329 = vmatprep.subr.mxu0 0.0
      %330 = vmatpush1.msra.mxu0 %v291
      %331 = vmatprep.subr.mxu0 0.0
      %332 = vmatpush1.msra.mxu0 %v292
      %333 = vmatprep.subr.mxu0 0.0
      %334 = vmatpush1.msra.mxu0 %v293
      %335 = vmatprep.subr.mxu0 0.0
      %336 = vmatpush1.msra.mxu0 %v294
      %337 = vmatprep.subr.mxu0 0.0
      %338 = vmatpush1.msra.mxu0 %v295
      %339 = vmatprep.subr.mxu0 0.0
      %340 = vmatpush1.msra.mxu0 %v296
      %341 = vmatprep.subr.mxu0 0.0
      %342 = vmatpush1.msra.mxu0 %v297
      %343 = vmatprep.subr.mxu0 0.0
      %344 = vmatpush1.msra.mxu0 %v298
      %345 = vmatprep.subr.mxu0 0.0
      %346 = vmatpush1.msra.mxu0 %v299
      %347 = vmatprep.subr.mxu0 0.0
      %348 = vmatpush1.msra.mxu0 %v300
      %349 = vmatprep.subr.mxu0 0.0
      %350 = vmatpush1.msra.mxu0 0.0
      %351 = vmatprep.subr.mxu0 0.0
      %352 = vmatpush1.msra.mxu0 0.0
      %353 = vmatprep.subr.mxu0 0.0
      %354 = vmatpush1.msra.mxu0 0.0
      %355 = vmatprep.subr.mxu0 0.0
      %356 = vmatpush1.msra.mxu0 0.0
      %357 = vmatprep.subr.mxu0 0.0
      %358 = vmatpush1.msra.mxu0 0.0
      %359 = vmatprep.subr.mxu0 0.0
      %360 = vmatpush1.msra.mxu0 0.0
      %361 = vmatprep.subr.mxu0 0.0
      %362 = vmatpush1.msra.mxu0 0.0
      %363 = vmatprep.subr.mxu0 0.0
      %364 = vmatpush1.msra.mxu0 0.0
      %365 = vmatprep.subr.mxu0 0.0
      %366 = vmatpush1.msra.mxu0 0.0
      %367 = vmatprep.subr.mxu0 0.0
      %368 = vmatpush1.msra.mxu0 0.0
      %369 = vmatprep.subr.mxu0 0.0
      %370 = vmatpush1.msra.mxu0 0.0
      %371 = vmatprep.subr.mxu0 0.0
      %372 = vmatpush1.msra.mxu0 0.0
      %373 = vmatprep.subr.mxu0 0.0
      %374 = vmatpush1.msra.mxu0 0.0
      %375 = vmatprep.subr.mxu0 0.0
      %376 = vmatpush1.msra.mxu0 0.0
      %377 = vmatprep.subr.mxu0 0.0
      %378 = vmatpush1.msra.mxu0 0.0
      %379 = vmatprep.subr.mxu0 0.0
      %380 = vmatpush1.msra.mxu0 0.0
      %381 = vmatprep.mubr.f32.mxu0 0.0
      %382 = vmatmul.mubr.f32.gmra.mrb[0].mxu0 %v269
      %v383 = vpop.f32.mrb[0].mxu0
      %v384 = vadd.f32 0.0, %v383
      %v385 = vpop.f32.mrb[0].mxu0
      %386 = vmatprep.mubr.f32.mxu0 0.0
      %387 = vmatmul.mubr.f32.gmra.mrb[0].mxu0 %v270
      %v388 = vpop.f32.mrb[0].mxu0
      %v389 = vadd.f32 0.0, %v388
      %v390 = vpop.f32.mrb[0].mxu0
      %391 = vmatprep.mubr.f32.mxu0 0.0
      %392 = vmatmul.mubr.f32.gmra.mrb[0].mxu0 %v271
      %v393 = vpop.f32.mrb[0].mxu0
      %v394 = vadd.f32 0.0, %v393
      %v395 = vpop.f32.mrb[0].mxu0
      %396 = vmatprep.mubr.f32.mxu0 0.0
      %397 = vmatmul.mubr.f32.gmra.mrb[0].mxu0 %v272
      %v398 = vpop.f32.mrb[0].mxu0
      %v399 = vadd.f32 0.0, %v398
      %v400 = vpop.f32.mrb[0].mxu0
      %401 = vmatprep.mubr.f32.mxu0 0.0
      %402 = vmatmul.mubr.f32.gmra.mrb[0].mxu0 %v273
      %v403 = vpop.f32.mrb[0].mxu0
      %v404 = vadd.f32 0.0, %v403
      %v405 = vpop.f32.mrb[0].mxu0
      %406 = vmatprep.mubr.f32.mxu0 0.0
      %407 = vmatmul.mubr.f32.gmra.mrb[0].mxu0 %v274
      %v408 = vpop.f32.mrb[0].mxu0
      %v409 = vadd.f32 0.0, %v408
      %v410 = vpop.f32.mrb[0].mxu0
      %411 = vmatprep.mubr.f32.mxu0 0.0
      %412 = vmatmul.mubr.f32.gmra.mrb[0].mxu0 %v275
      %v413 = vpop.f32.mrb[0].mxu0
      %v414 = vadd.f32 0.0, %v413
      %v415 = vpop.f32.mrb[0].mxu0
      %416 = vmatprep.mubr.f32.mxu0 0.0
      %417 = vmatmul.mubr.f32.gmra.mrb[0].mxu0 %v276
      %v418 = vpop.f32.mrb[0].mxu0
      %v419 = vadd.f32 0.0, %v418
      %v420 = vpop.f32.mrb[0].mxu0
      %421 = vmatprep.mubr.f32.mxu0 0.0
      %422 = vmatmul.mubr.f32.gmra.mrb[0].mxu0 %v277
      %v423 = vpop.f32.mrb[0].mxu0
      %v424 = vadd.f32 0.0, %v423
      %v425 = vpop.f32.mrb[0].mxu0
      %426 = vmatprep.mubr.f32.mxu0 0.0
      %427 = vmatmul.mubr.f32.gmra.mrb[0].mxu0 %v278
      %v428 = vpop.f32.mrb[0].mxu0
      %v429 = vadd.f32 0.0, %v428
      %v430 = vpop.f32.mrb[0].mxu0
      %431 = vmatprep.mubr.f32.mxu0 0.0
      %432 = vmatmul.mubr.f32.gmra.mrb[0].mxu0 %v279
      %v433 = vpop.f32.mrb[0].mxu0
      %v434 = vadd.f32 0.0, %v433
      %v435 = vpop.f32.mrb[0].mxu0
      %436 = vmatprep.mubr.f32.mxu0 0.0
      %437 = vmatmul.mubr.f32.gmra.mrb[0].mxu0 %v280
      %v438 = vpop.f32.mrb[0].mxu0
      %v439 = vadd.f32 0.0, %v438
      %v440 = vpop.f32.mrb[0].mxu0
      %441 = vmatprep.mubr.f32.mxu0 0.0
      %442 = vmatmul.mubr.f32.gmra.mrb[0].mxu0 %v281
      %v443 = vpop.f32.mrb[0].mxu0
      %v444 = vadd.f32 0.0, %v443
      %v445 = vpop.f32.mrb[0].mxu0
      %446 = vmatprep.mubr.f32.mxu0 0.0
      %447 = vmatmul.mubr.f32.gmra.mrb[0].mxu0 %v282
      %v448 = vpop.f32.mrb[0].mxu0
      %v449 = vadd.f32 0.0, %v448
      %v450 = vpop.f32.mrb[0].mxu0
      %451 = vmatprep.mubr.f32.mxu0 0.0
      %452 = vmatmul.mubr.f32.gmra.mrb[0].mxu0 %v283
      %v453 = vpop.f32.mrb[0].mxu0
      %v454 = vadd.f32 0.0, %v453
      %v455 = vpop.f32.mrb[0].mxu0
      %456 = vmatprep.mubr.f32.mxu0 0.0
      %457 = vmatmul.mubr.f32.gmra.mrb[0].mxu0 %v284
      %v458 = vpop.f32.mrb[0].mxu0
      %v459 = vadd.f32 0.0, %v458
      %v460 = vpop.f32.mrb[0].mxu0
      %461 = vdwg.mxu0
      %v462 = vadd.f32 %v301, %v384
      %v463 = vadd.f32 %v302, %v389
      %v464 = vadd.f32 %v303, %v394
      %v465 = vadd.f32 %v304, %v399
      %v466 = vadd.f32 %v305, %v404
      %v467 = vadd.f32 %v306, %v409
      %v468 = vadd.f32 %v307, %v414
      %v469 = vadd.f32 %v308, %v419
      %v470 = vadd.f32 %v309, %v424
      %v471 = vadd.f32 %v310, %v429
      %v472 = vadd.f32 %v311, %v434
      %v473 = vadd.f32 %v312, %v439
      %v474 = vadd.f32 %v313, %v444
      %v475 = vadd.f32 %v314, %v449
      %v476 = vadd.f32 %v315, %v454
      %v477 = vadd.f32 %v316, %v459
      %478 = vst [vmem:[#allocation2] sm:$0xff] %v462
      %479 = vst [vmem:[#allocation2 + $0x8] sm:$0xff] %v463
      %480 = vst [vmem:[#allocation2 + $0x10] sm:$0xff] %v464
      %481 = vst [vmem:[#allocation2 + $0x18] sm:$0xff] %v465
      %482 = vst [vmem:[#allocation2 + $0x20] sm:$0xff] %v466
      %483 = vst [vmem:[#allocation2 + $0x28] sm:$0xff] %v467
      %484 = vst [vmem:[#allocation2 + $0x30] sm:$0xff] %v468
      %485 = vst [vmem:[#allocation2 + $0x38] sm:$0xff] %v469
      %486 = vst [vmem:[#allocation2 + $0x40] sm:$0xff] %v470
      %487 = vst [vmem:[#allocation2 + $0x48] sm:$0xff] %v471
      %488 = vst [vmem:[#allocation2 + $0x50] sm:$0xff] %v472
      %489 = vst [vmem:[#allocation2 + $0x58] sm:$0xff] %v473
      %490 = vst [vmem:[#allocation2 + $0x60] sm:$0xff] %v474
      %491 = vst [vmem:[#allocation2 + $0x68] sm:$0xff] %v475
      %492 = vst [vmem:[#allocation2 + $0x70] sm:$0xff] %v476
      %493 = vst [vmem:[#allocation2 + $0x78] sm:$0xff] %v477
      %v494 = vld [vmem:[#allocation3] sm:$0xff]
      %v495 = vld [vmem:[#allocation3 + $0x8] sm:$0xff]
      %v496 = vld [vmem:[#allocation3 + $0x10] sm:$0xff]
      %v497 = vld [vmem:[#allocation3 + $0x18] sm:$0xff]
      %v498 = vld [vmem:[#allocation3 + $0x20] sm:$0xff]
      %v499 = vld [vmem:[#allocation3 + $0x28] sm:$0xff]
      %v500 = vld [vmem:[#allocation3 + $0x30] sm:$0xff]
      %v501 = vld [vmem:[#allocation3 + $0x38] sm:$0xff]
      %v502 = vld [vmem:[#allocation3 + $0x40] sm:$0xff]
      %v503 = vld [vmem:[#allocation3 + $0x48] sm:$0xff]
      %v504 = vld [vmem:[#allocation3 + $0x50] sm:$0xff]
      %v505 = vld [vmem:[#allocation3 + $0x58] sm:$0xff]
      %v506 = vld [vmem:[#allocation3 + $0x60] sm:$0xff]
      %v507 = vld [vmem:[#allocation3 + $0x68] sm:$0xff]
      %v508 = vld [vmem:[#allocation3 + $0x70] sm:$0xff]
      %v509 = vld [vmem:[#allocation3 + $0x78] sm:$0xff]
      %v510 = vand.u32 2147483647, %v269
      %v511 = vand.u32 2147483647, %v270
      %v512 = vand.u32 2147483647, %v271
      %v513 = vand.u32 2147483647, %v272
      %v514 = vand.u32 2147483647, %v273
      %v515 = vand.u32 2147483647, %v274
      %v516 = vand.u32 2147483647, %v275
      %v517 = vand.u32 2147483647, %v276
      %v518 = vand.u32 2147483647, %v277
      %v519 = vand.u32 2147483647, %v278
      %v520 = vand.u32 2147483647, %v279
      %v521 = vand.u32 2147483647, %v280
      %v522 = vand.u32 2147483647, %v281
      %v523 = vand.u32 2147483647, %v282
      %v524 = vand.u32 2147483647, %v283
      %v525 = vand.u32 2147483647, %v284
      %526 = vmatprep.subr.mxu0 0.0
      %527 = vmatpush1.msra.mxu0 %v285
      %528 = vmatprep.subr.mxu0 0.0
      %529 = vmatpush1.msra.mxu0 %v286
      %530 = vmatprep.subr.mxu0 0.0
      %531 = vmatpush1.msra.mxu0 %v287
      %532 = vmatprep.subr.mxu0 0.0
      %533 = vmatpush1.msra.mxu0 %v288
      %534 = vmatprep.subr.mxu0 0.0
      %535 = vmatpush1.msra.mxu0 %v289
      %536 = vmatprep.subr.mxu0 0.0
      %537 = vmatpush1.msra.mxu0 %v290
      %538 = vmatprep.subr.mxu0 0.0
      %539 = vmatpush1.msra.mxu0 %v291
      %540 = vmatprep.subr.mxu0 0.0
      %541 = vmatpush1.msra.mxu0 %v292
      %542 = vmatprep.subr.mxu0 0.0
      %543 = vmatpush1.msra.mxu0 %v293
      %544 = vmatprep.subr.mxu0 0.0
      %545 = vmatpush1.msra.mxu0 %v294
      %546 = vmatprep.subr.mxu0 0.0
      %547 = vmatpush1.msra.mxu0 %v295
      %548 = vmatprep.subr.mxu0 0.0
      %549 = vmatpush1.msra.mxu0 %v296
      %550 = vmatprep.subr.mxu0 0.0
      %551 = vmatpush1.msra.mxu0 %v297
      %552 = vmatprep.subr.mxu0 0.0
      %553 = vmatpush1.msra.mxu0 %v298
      %554 = vmatprep.subr.mxu0 0.0
      %555 = vmatpush1.msra.mxu0 %v299
      %556 = vmatprep.subr.mxu0 0.0
      %557 = vmatpush1.msra.mxu0 %v300
      %558 = vmatprep.subr.mxu0 0.0
      %559 = vmatpush1.msra.mxu0 0.0
      %560 = vmatprep.subr.mxu0 0.0
      %561 = vmatpush1.msra.mxu0 0.0
      %562 = vmatprep.subr.mxu0 0.0
      %563 = vmatpush1.msra.mxu0 0.0
      %564 = vmatprep.subr.mxu0 0.0
      %565 = vmatpush1.msra.mxu0 0.0
      %566 = vmatprep.subr.mxu0 0.0
      %567 = vmatpush1.msra.mxu0 0.0
      %568 = vmatprep.subr.mxu0 0.0
      %569 = vmatpush1.msra.mxu0 0.0
      %570 = vmatprep.subr.mxu0 0.0
      %571 = vmatpush1.msra.mxu0 0.0
      %572 = vmatprep.subr.mxu0 0.0
      %573 = vmatpush1.msra.mxu0 0.0
      %574 = vmatprep.subr.mxu0 0.0
      %575 = vmatpush1.msra.mxu0 0.0
      %576 = vmatprep.subr.mxu0 0.0
      %577 = vmatpush1.msra.mxu0 0.0
      %578 = vmatprep.subr.mxu0 0.0
      %579 = vmatpush1.msra.mxu0 0.0
      %580 = vmatprep.subr.mxu0 0.0
      %581 = vmatpush1.msra.mxu0 0.0
      %582 = vmatprep.subr.mxu0 0.0
      %583 = vmatpush1.msra.mxu0 0.0
      %584 = vmatprep.subr.mxu0 0.0
      %585 = vmatpush1.msra.mxu0 0.0
      %586 = vmatprep.subr.mxu0 0.0
      %587 = vmatpush1.msra.mxu0 0.0
      %588 = vmatprep.subr.mxu0 0.0
      %589 = vmatpush1.msra.mxu0 0.0
      %590 = vmatprep.mubr.f32.mxu0 0.0
      %591 = vmatmul.mubr.f32.gmra.mrb[0].mxu0 %v510
      %v592 = vpop.f32.mrb[0].mxu0
      %v593 = vadd.f32 0.0, %v592
      %v594 = vpop.f32.mrb[0].mxu0
      %595 = vmatprep.mubr.f32.mxu0 0.0
      %596 = vmatmul.mubr.f32.gmra.mrb[0].mxu0 %v511
      %v597 = vpop.f32.mrb[0].mxu0
      %v598 = vadd.f32 0.0, %v597
      %v599 = vpop.f32.mrb[0].mxu0
      %600 = vmatprep.mubr.f32.mxu0 0.0
      %601 = vmatmul.mubr.f32.gmra.mrb[0].mxu0 %v512
      %v602 = vpop.f32.mrb[0].mxu0
      %v603 = vadd.f32 0.0, %v602
      %v604 = vpop.f32.mrb[0].mxu0
      %605 = vmatprep.mubr.f32.mxu0 0.0
      %606 = vmatmul.mubr.f32.gmra.mrb[0].mxu0 %v513
      %v607 = vpop.f32.mrb[0].mxu0
      %v608 = vadd.f32 0.0, %v607
      %v609 = vpop.f32.mrb[0].mxu0
      %610 = vmatprep.mubr.f32.mxu0 0.0
      %611 = vmatmul.mubr.f32.gmra.mrb[0].mxu0 %v514
      %v612 = vpop.f32.mrb[0].mxu0
      %v613 = vadd.f32 0.0, %v612
      %v614 = vpop.f32.mrb[0].mxu0
      %615 = vmatprep.mubr.f32.mxu0 0.0
      %616 = vmatmul.mubr.f32.gmra.mrb[0].mxu0 %v515
      %v617 = vpop.f32.mrb[0].mxu0
      %v618 = vadd.f32 0.0, %v617
      %v619 = vpop.f32.mrb[0].mxu0
      %620 = vmatprep.mubr.f32.mxu0 0.0
      %621 = vmatmul.mubr.f32.gmra.mrb[0].mxu0 %v516
      %v622 = vpop.f32.mrb[0].mxu0
      %v623 = vadd.f32 0.0, %v622
      %v624 = vpop.f32.mrb[0].mxu0
      %625 = vmatprep.mubr.f32.mxu0 0.0
      %626 = vmatmul.mubr.f32.gmra.mrb[0].mxu0 %v517
      %v627 = vpop.f32.mrb[0].mxu0
      %v628 = vadd.f32 0.0, %v627
      %v629 = vpop.f32.mrb[0].mxu0
      %630 = vmatprep.mubr.f32.mxu0 0.0
      %631 = vmatmul.mubr.f32.gmra.mrb[0].mxu0 %v518
      %v632 = vpop.f32.mrb[0].mxu0
      %v633 = vadd.f32 0.0, %v632
      %v634 = vpop.f32.mrb[0].mxu0
      %635 = vmatprep.mubr.f32.mxu0 0.0
      %636 = vmatmul.mubr.f32.gmra.mrb[0].mxu0 %v519
      %v637 = vpop.f32.mrb[0].mxu0
      %v638 = vadd.f32 0.0, %v637
      %v639 = vpop.f32.mrb[0].mxu0
      %640 = vmatprep.mubr.f32.mxu0 0.0
      %641 = vmatmul.mubr.f32.gmra.mrb[0].mxu0 %v520
      %v642 = vpop.f32.mrb[0].mxu0
      %v643 = vadd.f32 0.0, %v642
      %v644 = vpop.f32.mrb[0].mxu0
      %645 = vmatprep.mubr.f32.mxu0 0.0
      %646 = vmatmul.mubr.f32.gmra.mrb[0].mxu0 %v521
      %v647 = vpop.f32.mrb[0].mxu0
      %v648 = vadd.f32 0.0, %v647
      %v649 = vpop.f32.mrb[0].mxu0
      %650 = vmatprep.mubr.f32.mxu0 0.0
      %651 = vmatmul.mubr.f32.gmra.mrb[0].mxu0 %v522
      %v652 = vpop.f32.mrb[0].mxu0
      %v653 = vadd.f32 0.0, %v652
      %v654 = vpop.f32.mrb[0].mxu0
      %655 = vmatprep.mubr.f32.mxu0 0.0
      %656 = vmatmul.mubr.f32.gmra.mrb[0].mxu0 %v523
      %v657 = vpop.f32.mrb[0].mxu0
      %v658 = vadd.f32 0.0, %v657
      %v659 = vpop.f32.mrb[0].mxu0
      %660 = vmatprep.mubr.f32.mxu0 0.0
      %661 = vmatmul.mubr.f32.gmra.mrb[0].mxu0 %v524
      %v662 = vpop.f32.mrb[0].mxu0
      %v663 = vadd.f32 0.0, %v662
      %v664 = vpop.f32.mrb[0].mxu0
      %665 = vmatprep.mubr.f32.mxu0 0.0
      %666 = vmatmul.mubr.f32.gmra.mrb[0].mxu0 %v525
      %v667 = vpop.f32.mrb[0].mxu0
      %v668 = vadd.f32 0.0, %v667
      %v669 = vpop.f32.mrb[0].mxu0
      %670 = vdwg.mxu0
      %v671 = vadd.f32 %v494, %v593
      %v672 = vadd.f32 %v495, %v598
      %v673 = vadd.f32 %v496, %v603
      %v674 = vadd.f32 %v497, %v608
      %v675 = vadd.f32 %v498, %v613
      %v676 = vadd.f32 %v499, %v618
      %v677 = vadd.f32 %v500, %v623
      %v678 = vadd.f32 %v501, %v628
      %v679 = vadd.f32 %v502, %v633
      %v680 = vadd.f32 %v503, %v638
      %v681 = vadd.f32 %v504, %v643
      %v682 = vadd.f32 %v505, %v648
      %v683 = vadd.f32 %v506, %v653
      %v684 = vadd.f32 %v507, %v658
      %v685 = vadd.f32 %v508, %v663
      %v686 = vadd.f32 %v509, %v668
      %687 = vst [vmem:[#allocation3] sm:$0xff] %v671
      %688 = vst [vmem:[#allocation3 + $0x8] sm:$0xff] %v672
      %689 = vst [vmem:[#allocation3 + $0x10] sm:$0xff] %v673
      %690 = vst [vmem:[#allocation3 + $0x18] sm:$0xff] %v674
      %691 = vst [vmem:[#allocation3 + $0x20] sm:$0xff] %v675
      %692 = vst [vmem:[#allocation3 + $0x28] sm:$0xff] %v676
      %693 = vst [vmem:[#allocation3 + $0x30] sm:$0xff] %v677
      %694 = vst [vmem:[#allocation3 + $0x38] sm:$0xff] %v678
      %695 = vst [vmem:[#allocation3 + $0x40] sm:$0xff] %v679
      %696 = vst [vmem:[#allocation3 + $0x48] sm:$0xff] %v680
      %697 = vst [vmem:[#allocation3 + $0x50] sm:$0xff] %v681
      %698 = vst [vmem:[#allocation3 + $0x58] sm:$0xff] %v682
      %699 = vst [vmem:[#allocation3 + $0x60] sm:$0xff] %v683
      %700 = vst [vmem:[#allocation3 + $0x68] sm:$0xff] %v684
      %701 = vst [vmem:[#allocation3 + $0x70] sm:$0xff] %v685
      %702 = vst [vmem:[#allocation3 + $0x78] sm:$0xff] %v686
      // Predicated region
      $region33: #{_forward_impl.13} parent=27 // pred_check
        %p703 = pneg %p233
      $region34: #{_forward_impl.13} parent=27 // pred_check_branch
        %705 = sbr.rel (%p703) target = $region36
      $region35: #{_forward_impl.13} parent=27 // pred_region
        %v706 = vld [vmem:[#allocation2] sm:$0xff]
        %v707 = vld [vmem:[#allocation2 + $0x8] sm:$0xff]
        %v708 = vld [vmem:[#allocation2 + $0x10] sm:$0xff]
        %v709 = vld [vmem:[#allocation2 + $0x18] sm:$0xff]
        %v710 = vld [vmem:[#allocation2 + $0x20] sm:$0xff]
        %v711 = vld [vmem:[#allocation2 + $0x28] sm:$0xff]
        %v712 = vld [vmem:[#allocation2 + $0x30] sm:$0xff]
        %v713 = vld [vmem:[#allocation2 + $0x38] sm:$0xff]
        %v714 = vld [vmem:[#allocation2 + $0x40] sm:$0xff]
        %v715 = vld [vmem:[#allocation2 + $0x48] sm:$0xff]
        %v716 = vld [vmem:[#allocation2 + $0x50] sm:$0xff]
        %v717 = vld [vmem:[#allocation2 + $0x58] sm:$0xff]
        %v718 = vld [vmem:[#allocation2 + $0x60] sm:$0xff]
        %v719 = vld [vmem:[#allocation2 + $0x68] sm:$0xff]
        %v720 = vld [vmem:[#allocation2 + $0x70] sm:$0xff]
        %v721 = vld [vmem:[#allocation2 + $0x78] sm:$0xff]
        %722 = vst [vmem:[%s225] sm:$0xff] %v706
        %723 = vst [vmem:[%s225 + $0x8] sm:$0xff] %v707
        %724 = vst [vmem:[%s225 + $0x10] sm:$0xff] %v708
        %725 = vst [vmem:[%s225 + $0x18] sm:$0xff] %v709
        %726 = vst [vmem:[%s225 + $0x20] sm:$0xff] %v710
        %727 = vst [vmem:[%s225 + $0x28] sm:$0xff] %v711
        %728 = vst [vmem:[%s225 + $0x30] sm:$0xff] %v712
        %729 = vst [vmem:[%s225 + $0x38] sm:$0xff] %v713
        %730 = vst [vmem:[%s225 + $0x40] sm:$0xff] %v714
        %731 = vst [vmem:[%s225 + $0x48] sm:$0xff] %v715
        %732 = vst [vmem:[%s225 + $0x50] sm:$0xff] %v716
        %733 = vst [vmem:[%s225 + $0x58] sm:$0xff] %v717
        %734 = vst [vmem:[%s225 + $0x60] sm:$0xff] %v718
        %735 = vst [vmem:[%s225 + $0x68] sm:$0xff] %v719
        %736 = vst [vmem:[%s225 + $0x70] sm:$0xff] %v720
        %737 = vst [vmem:[%s225 + $0x78] sm:$0xff] %v721
        %v738 = vld [vmem:[#allocation3] sm:$0xff]
        %v739 = vld [vmem:[#allocation3 + $0x8] sm:$0xff]
        %v740 = vld [vmem:[#allocation3 + $0x10] sm:$0xff]
        %v741 = vld [vmem:[#allocation3 + $0x18] sm:$0xff]
        %v742 = vld [vmem:[#allocation3 + $0x20] sm:$0xff]
        %v743 = vld [vmem:[#allocation3 + $0x28] sm:$0xff]
        %v744 = vld [vmem:[#allocation3 + $0x30] sm:$0xff]
        %v745 = vld [vmem:[#allocation3 + $0x38] sm:$0xff]
        %v746 = vld [vmem:[#allocation3 + $0x40] sm:$0xff]
        %v747 = vld [vmem:[#allocation3 + $0x48] sm:$0xff]
        %v748 = vld [vmem:[#allocation3 + $0x50] sm:$0xff]
        %v749 = vld [vmem:[#allocation3 + $0x58] sm:$0xff]
        %v750 = vld [vmem:[#allocation3 + $0x60] sm:$0xff]
        %v751 = vld [vmem:[#allocation3 + $0x68] sm:$0xff]
        %v752 = vld [vmem:[#allocation3 + $0x70] sm:$0xff]
        %v753 = vld [vmem:[#allocation3 + $0x78] sm:$0xff]
        %754 = vst [vmem:[%s231] sm:$0xff] %v738
        %755 = vst [vmem:[%s231 + $0x8] sm:$0xff] %v739
        %756 = vst [vmem:[%s231 + $0x10] sm:$0xff] %v740
        %757 = vst [vmem:[%s231 + $0x18] sm:$0xff] %v741
        %758 = vst [vmem:[%s231 + $0x20] sm:$0xff] %v742
        %759 = vst [vmem:[%s231 + $0x28] sm:$0xff] %v743
        %760 = vst [vmem:[%s231 + $0x30] sm:$0xff] %v744
        %761 = vst [vmem:[%s231 + $0x38] sm:$0xff] %v745
        %762 = vst [vmem:[%s231 + $0x40] sm:$0xff] %v746
        %763 = vst [vmem:[%s231 + $0x48] sm:$0xff] %v747
        %764 = vst [vmem:[%s231 + $0x50] sm:$0xff] %v748
        %765 = vst [vmem:[%s231 + $0x58] sm:$0xff] %v749
        %766 = vst [vmem:[%s231 + $0x60] sm:$0xff] %v750
        %767 = vst [vmem:[%s231 + $0x68] sm:$0xff] %v751
        %768 = vst [vmem:[%s231 + $0x70] sm:$0xff] %v752
        %769 = vst [vmem:[%s231 + $0x78] sm:$0xff] %v753
      $region36: #{_forward_impl.13} parent=27 // pred_fallthru
        _
      %s770 = smul.u32 16, %s19
      %p771 = scmp.lt.s32.totalorder %s770, 31
      %s772 = scalar_select %p771, %s770, 31
      %s773 = smul.addr %s772, 8
      %s774 = scalar_lea.vmem %s2, %s773
      %s775 = smul.u32 16, %s19
      %p776 = scmp.lt.s32.totalorder %s775, 31
      %s777 = scalar_select %p776, %s775, 31
      %s778 = smul.addr %s777, 8
      %s779 = scalar_lea.vmem %s3, %s778
      // Predicated region
      $region37: #{_forward_impl.13} parent=27 // pred_check
        %p780 = pneg %p99
      $region38: #{_forward_impl.13} parent=27 // pred_check_branch
        %782 = sbr.rel (%p780) target = $region40
      $region39: #{_forward_impl.13} parent=27 // pred_region
        %s783 = smul.u32 16, %s19
      $region40: #{_forward_impl.13} parent=27 // pred_fallthru
        _
      // Predicated region
      $region41: #{_forward_impl.13} parent=27 // pred_check
        %p784 = pneg %p125
      $region42: #{_forward_impl.13} parent=27 // pred_check_branch
        %786 = sbr.rel (%p784) target = $region44
      $region43: #{_forward_impl.13} parent=27 // pred_region
        %s787 = smul.u32 16, %s19
      $region44: #{_forward_impl.13} parent=27 // pred_fallthru
        _
    $region28: #{_forward_impl.13} parent=5 // pred_fallthru
      _
    %p788 = scmp.le.s32.totalorder 2, %s10
    // Predicated region
    $region45: #{_forward_impl.13} parent=5 // pred_check
      %p789 = pneg %p788
    $region46: #{_forward_impl.13} parent=5 // pred_check_branch
      %791 = sbr.rel (%p789) target = $region48
    $region47: #{_forward_impl.13} parent=5 // pred_region
      %s792 = ssub.s32 %s10, 2
      // Predicated region
      $region49: #{_forward_impl.13} parent=47 // pred_check
        %p793 = pneg %p105
      $region50: #{_forward_impl.13} parent=47 // pred_check_branch
        %795 = sbr.rel (%p793) target = $region52
      $region51: #{_forward_impl.13} parent=47 // pred_region
        %s796 = smul.u32 16, %s21
        %p797 = scmp.lt.s32.totalorder %s796, 31
        %s798 = scalar_select %p797, %s796, 31
        %s799 = smul.addr %s798, 8
        %s800 = scalar_lea.vmem %s2, %s799
      $region52: #{_forward_impl.13} parent=47 // pred_fallthru
        _
      // Predicated region
      $region53: #{_forward_impl.13} parent=47 // pred_check
        %p801 = pneg %p131
      $region54: #{_forward_impl.13} parent=47 // pred_check_branch
        %803 = sbr.rel (%p801) target = $region56
      $region55: #{_forward_impl.13} parent=47 // pred_region
        %s804 = smul.u32 16, %s21
        %p805 = scmp.lt.s32.totalorder %s804, 31
        %s806 = scalar_select %p805, %s804, 31
        %s807 = smul.addr %s806, 8
        %s808 = scalar_lea.vmem %s3, %s807
      $region56: #{_forward_impl.13} parent=47 // pred_fallthru
        _
    $region48: #{_forward_impl.13} parent=5 // pred_fallthru
      _
  $region6: #{_forward_impl.13} parent=0 // loop_footer
    %s14 = sadd.s32 1, %s10
  $region7: #{_forward_impl.13} parent=0 // loop_footer_branch
    %9 = sbr.rel target = $region3
  $region8: #{_forward_impl.13} parent=0 // loop_exit
    _

</llo_original>
